<compile_context>
chip_gen: v7x
topology: tpu7x:2x2x1
jax: 0.10.0
libtpu: 0.0.40
codegen_flags: <defaults>
</compile_context>

<pallas_src>
import functools

import jax
import jax.numpy as jnp
from jax.experimental import pallas as pl
from jax.experimental.pallas import tpu as pltpu

# ----------------------------- configuration ------------------------------
BN_EPS = 1e-3
LANE = 128                         # pad every channel axis to a multiple of this
STEM_OUT = 16
HEAD_OUT = 64                      # stand-in for b0's in_features = 1280
# (cin, cout, expand_ratio, stride, se_ratio)
BLOCK_CFG = [
    (16, 16, 1, 1, 0.25),
    (16, 24, 6, 2, 0.25),
    (24, 24, 6, 1, 0.25),
]
N_GRAPH, N_VOWEL, N_CONSO = 168, 11, 7
ACT_DTYPE = jnp.bfloat16           # inter-kernel activation storage dtype


def cpad(c):
    return ((c + LANE - 1) // LANE) * LANE


# ------------------------------- kernels ----------------------------------
def _mm_bn_act_kernel(x_ref, w_ref, s_ref, b_ref, o_ref, *, act):
    """y = act((x @ w) * scale + bias)   (BN folded into scale/bias)."""
    y = jnp.dot(x_ref[...].astype(jnp.bfloat16), w_ref[...],
                preferred_element_type=jnp.float32)
    y = y * s_ref[...] + b_ref[...]
    if act == "swish":
        y = y * jax.nn.sigmoid(y)
    o_ref[...] = y.astype(o_ref.dtype)


def mm_bn_act(x, w, scale, bias, act="linear", out_dtype=ACT_DTYPE):
    """Fused 1x1-conv-as-matmul + folded BN + activation.  w is bf16.

    Row-wise op, so a ragged final row block (Pallas boundary masking) is
    harmless; weights stay VMEM-resident via the constant index_map.
    """
    M, K = x.shape
    N = w.shape[1]
    bm = M if M <= 1024 else 1024
    return pl.pallas_call(
        functools.partial(_mm_bn_act_kernel, act=act),
        out_shape=jax.ShapeDtypeStruct((M, N), out_dtype),
        grid=(pl.cdiv(M, bm),),
        in_specs=[
            pl.BlockSpec((bm, K), lambda i: (i, 0)),
            pl.BlockSpec((K, N), lambda i: (0, 0)),
            pl.BlockSpec((1, N), lambda i: (0, 0)),
            pl.BlockSpec((1, N), lambda i: (0, 0)),
        ],
        out_specs=pl.BlockSpec((bm, N), lambda i: (i, 0)),
        compiler_params=pltpu.CompilerParams(
            dimension_semantics=("parallel",)),
    )(x, w, scale, bias)


def _se_proj_store(h, srw_ref, srb_ref, sew_ref, seb_ref,
                   pw_ref, ps_ref, pb_ref, o_ref, residual):
    """Shared MBConv tail: squeeze&excite gate, flattened 1x1 project (+BN),
    optional residual, bf16 store.  h is (ho, wo, Cexp) f32 in vregs."""
    ho, wo, cexp = h.shape
    n_pix = ho * wo
    # global average pool (leading reduce then sublane reduce)
    pooled = jnp.sum(jnp.sum(h, axis=0), axis=0, keepdims=True) * (1.0 / n_pix)
    se = jnp.dot(pooled.astype(jnp.bfloat16), srw_ref[...],
                 preferred_element_type=jnp.float32) + srb_ref[...]
    se = se * jax.nn.sigmoid(se)                            # swish
    se = jnp.dot(se.astype(jnp.bfloat16), sew_ref[...],
                 preferred_element_type=jnp.float32) + seb_ref[...]
    gate = jax.nn.sigmoid(se)                               # (1, Cexp)
    # flattened project: one (n_pix, Cexp) @ (Cexp, Cout) MXU matmul
    hf = (h.reshape(n_pix, cexp) * gate).astype(jnp.bfloat16)
    out = jnp.dot(hf, pw_ref[...], preferred_element_type=jnp.float32)
    out = out * ps_ref[...] + pb_ref[...]                   # folded BN
    if residual is not None:
        out = out + residual
    o_ref[0] = out.astype(o_ref.dtype)                      # single dense store


def _mbconv_s1_kernel(*refs, H, W, has_expand, has_res):
    """Fully fused stride-1 MBConv for one image:

       expand 1x1 (+BN+swish)  [in VMEM]
       -> SAME pad into zero-init VMEM scratch
       -> depthwise 3x3 (+BN+swish)  (9 contiguous taps from the scratch)
       -> squeeze & excite -> flattened 1x1 project (+BN) -> residual.
    The expanded (6x-channel) tensor never leaves VMEM.
    """
    if has_expand:
        (x_ref, ew_ref, es_ref, eb_ref,
         dww_ref, dws_ref, dwb_ref,
         srw_ref, srb_ref, sew_ref, seb_ref,
         pw_ref, ps_ref, pb_ref, o_ref, xpad_ref) = refs
    else:
        (x_ref,
         dww_ref, dws_ref, dwb_ref,
         srw_ref, srb_ref, sew_ref, seb_ref,
         pw_ref, ps_ref, pb_ref, o_ref, xpad_ref) = refs

    x = x_ref[0]                                   # (H, W, Cin_p) bf16
    cin_p = x.shape[-1]

    # ---- expand 1x1 conv + BN + swish (one flattened MXU matmul) ----
    if has_expand:
        ex = jnp.dot(x.reshape(H * W, cin_p), ew_ref[...],
                     preferred_element_type=jnp.float32)
        ex = ex * es_ref[...] + eb_ref[...]
        ex = ex * jax.nn.sigmoid(ex)
        ex3 = ex.reshape(H, W, ex.shape[-1])
    else:
        ex3 = x.astype(jnp.float32)

    # ---- SAME pad (k=3, s=1) via zero-initialized VMEM scratch ----
    xpad_ref[...] = jnp.zeros(xpad_ref.shape, xpad_ref.dtype)
    xpad_ref[1:H + 1, 1:W + 1, :] = ex3

    # ---- depthwise 3x3 conv (9 contiguous taps) + BN + swish ----
    # TODO(synk): bf16 tap accumulation on v6e/v7x (VALU is the binding slot).
    acc = None
    for dy in range(3):
        for dx in range(3):
            tap = xpad_ref[dy:dy + H, dx:dx + W, :]          # (H, W, Cexp) f32
            contrib = tap * dww_ref[dy * 3 + dx]             # (1, Cexp) bcast
            acc = contrib if acc is None else acc + contrib
    y = acc * dws_ref[...] + dwb_ref[...]
    h = y * jax.nn.sigmoid(y)

    res = x.reshape(H * W, cin_p).astype(jnp.float32) if has_res else None
    _se_proj_store(h, srw_ref, srb_ref, sew_ref, seb_ref,
                   pw_ref, ps_ref, pb_ref, o_ref, res)


def mbconv_s1(x, p, *, has_expand, has_res):
    """Wrapper for the fused stride-1 MBConv kernel (grid over batch)."""
    B, H, W, cin_p = x.shape
    cexp_p = p["expand_w"].shape[1] if has_expand else cin_p
    cout_p = p["proj_w"].shape[1]
    cse_p = p["se_rw"].shape[1]

    in_specs = [pl.BlockSpec((1, H, W, cin_p), lambda b: (b, 0, 0, 0))]
    args = [x]
    if has_expand:
        in_specs += [
            pl.BlockSpec((cin_p, cexp_p), lambda b: (0, 0)),
            pl.BlockSpec((1, cexp_p), lambda b: (0, 0)),
            pl.BlockSpec((1, cexp_p), lambda b: (0, 0)),
        ]
        args += [p["expand_w"], p["expand_s"], p["expand_b"]]
    in_specs += [
        pl.BlockSpec((9, 1, cexp_p), lambda b: (0, 0, 0)),
        pl.BlockSpec((1, cexp_p), lambda b: (0, 0)),
        pl.BlockSpec((1, cexp_p), lambda b: (0, 0)),
        pl.BlockSpec((cexp_p, cse_p), lambda b: (0, 0)),
        pl.BlockSpec((1, cse_p), lambda b: (0, 0)),
        pl.BlockSpec((cse_p, cexp_p), lambda b: (0, 0)),
        pl.BlockSpec((1, cexp_p), lambda b: (0, 0)),
        pl.BlockSpec((cexp_p, cout_p), lambda b: (0, 0)),
        pl.BlockSpec((1, cout_p), lambda b: (0, 0)),
        pl.BlockSpec((1, cout_p), lambda b: (0, 0)),
    ]
    args += [p["dw_w"], p["dw_s"], p["dw_b"],
             p["se_rw"], p["se_rb"], p["se_ew"], p["se_eb"],
             p["proj_w"], p["proj_s"], p["proj_b"]]

    # TODO(synk): at full resolution add a row-band grid axis with a 1-row halo
    # (more parallel steps for v7x, keeps the working set under 64 MiB VMEM).
    out = pl.pallas_call(
        functools.partial(_mbconv_s1_kernel, H=H, W=W,
                          has_expand=has_expand, has_res=has_res),
        out_shape=jax.ShapeDtypeStruct((B, H * W, cout_p), ACT_DTYPE),
        grid=(B,),
        in_specs=in_specs,
        out_specs=pl.BlockSpec((1, H * W, cout_p), lambda b: (b, 0, 0)),
        scratch_shapes=[pltpu.VMEM((H + 2, W + 2, cexp_p), jnp.float32)],
        compiler_params=pltpu.CompilerParams(
            dimension_semantics=("parallel",)),
    )(*args)
    return out.reshape(B, H, W, cout_p)


def _mbconv_s2_kernel(hp_ref, dww_ref, dws_ref, dwb_ref,
                      srw_ref, srb_ref, sew_ref, seb_ref,
                      pw_ref, ps_ref, pb_ref, o_ref, *, ho, wo):
    """Fused stride-2 MBConv core for one image (expand done outside):

       depthwise 3x3 stride-2 (+BN+swish) on a 4-phase (even/odd row/col)
       pre-split tile -> SE -> flattened 1x1 project (+BN).  Each stride-2 tap
       is a contiguous in-VMEM slice (no strided reads).
    """
    xv = hp_ref[0]                              # (4, ho+1, wo+1, Cexp_p) bf16
    acc = None
    for dy in range(3):
        for dx in range(3):
            # phase (dy%2, dx%2) holds padded rows/cols of that parity.
            tap = xv[2 * (dy % 2) + (dx % 2),
                     dy // 2:dy // 2 + ho, dx // 2:dx // 2 + wo, :]
            contrib = tap.astype(jnp.float32) * dww_ref[dy * 3 + dx]
            acc = contrib if acc is None else acc + contrib
    y = acc * dws_ref[...] + dwb_ref[...]
    h = y * jax.nn.sigmoid(y)
    _se_proj_store(h, srw_ref, srb_ref, sew_ref, seb_ref,
                   pw_ref, ps_ref, pb_ref, o_ref, None)


def mbconv_s2(hp, p, *, ho, wo):
    B = hp.shape[0]
    hh, wh, cexp_p = hp.shape[2], hp.shape[3], hp.shape[-1]
    cout_p = p["proj_w"].shape[1]
    cse_p = p["se_rw"].shape[1]
    out = pl.pallas_call(
        functools.partial(_mbconv_s2_kernel, ho=ho, wo=wo),
        out_shape=jax.ShapeDtypeStruct((B, ho * wo, cout_p), ACT_DTYPE),
        grid=(B,),
        in_specs=[
            pl.BlockSpec((1, 4, hh, wh, cexp_p), lambda b: (b, 0, 0, 0, 0)),
            pl.BlockSpec((9, 1, cexp_p), lambda b: (0, 0, 0)),
            pl.BlockSpec((1, cexp_p), lambda b: (0, 0)),
            pl.BlockSpec((1, cexp_p), lambda b: (0, 0)),
            pl.BlockSpec((cexp_p, cse_p), lambda b: (0, 0)),
            pl.BlockSpec((1, cse_p), lambda b: (0, 0)),
            pl.BlockSpec((cse_p, cexp_p), lambda b: (0, 0)),
            pl.BlockSpec((1, cexp_p), lambda b: (0, 0)),
            pl.BlockSpec((cexp_p, cout_p), lambda b: (0, 0)),
            pl.BlockSpec((1, cout_p), lambda b: (0, 0)),
            pl.BlockSpec((1, cout_p), lambda b: (0, 0)),
        ],
        out_specs=pl.BlockSpec((1, ho * wo, cout_p), lambda b: (b, 0, 0)),
        compiler_params=pltpu.CompilerParams(
            dimension_semantics=("parallel",)),
    )(hp, p["dw_w"], p["dw_s"], p["dw_b"],
      p["se_rw"], p["se_rb"], p["se_ew"], p["se_eb"],
      p["proj_w"], p["proj_s"], p["proj_b"])
    return out.reshape(B, ho, wo, cout_p)


def _head_fc_kernel(x_ref, hw_ref, hs_ref, hb_ref, fw_ref, fb_ref, o_ref,
                    *, inv_hw):
    """_conv_head + _bn1 + avg-pool + flatten + 3 fused FC heads.

    Pooling is hoisted before the 1x1 conv_head / _bn1 -- exact, because the
    custom forward applies no nonlinearity between conv_head/_bn1 and the pool.
    """
    s = jnp.sum(x_ref[...].astype(jnp.float32), axis=1) * inv_hw   # (bb, C)
    feat = jnp.dot(s.astype(jnp.bfloat16), hw_ref[...],
                   preferred_element_type=jnp.float32)
    feat = feat * hs_ref[...] + hb_ref[...]                 # _conv_head + _bn1
    logits = jnp.dot(feat.astype(jnp.bfloat16), fw_ref[...],
                     preferred_element_type=jnp.float32)
    o_ref[...] = logits + fb_ref[...]                       # fc_*3 heads


def head_fc(h, params):
    B, ho, wo, cp_ = h.shape
    hflat = h.reshape(B, ho * wo, cp_)
    head_p = params["head_w"].shape[1]
    nout_p = params["fc_w"].shape[1]
    bb = B if B <= 8 else 8                                 # batch tile
    return pl.pallas_call(
        functools.partial(_head_fc_kernel, inv_hw=1.0 / (ho * wo)),
        out_shape=jax.ShapeDtypeStruct((B, nout_p), jnp.float32),
        grid=(pl.cdiv(B, bb),),
        in_specs=[
            pl.BlockSpec((bb, ho * wo, cp_), lambda i: (i, 0, 0)),
            pl.BlockSpec((cp_, head_p), lambda i: (0, 0)),
            pl.BlockSpec((1, head_p), lambda i: (0, 0)),
            pl.BlockSpec((1, head_p), lambda i: (0, 0)),
            pl.BlockSpec((head_p, nout_p), lambda i: (0, 0)),
            pl.BlockSpec((1, nout_p), lambda i: (0, 0)),
        ],
        out_specs=pl.BlockSpec((bb, nout_p), lambda i: (i, 0)),
        compiler_params=pltpu.CompilerParams(
            dimension_semantics=("parallel",)),
    )(hflat, params["head_w"], params["head_s"], params["head_b"],
      params["fc_w"], params["fc_b"])


# ------------------------------ glue (JAX) ---------------------------------
def _same_pad(size, k, s):
    out = -(-size // s)
    pad = max((out - 1) * s + k - size, 0)
    return pad // 2, pad - pad // 2, out


def extract_patches(x, stride, k=3):
    """TF-style SAME padding + 3x3 im2col, used ONLY for the 3-channel stem.

    TODO(synk): fold this into a fused stem kernel (phase-split taps formed in
    VMEM) to remove the HBM round trip at full Bengali-image resolution.
    """
    B, H, W, C = x.shape
    pt, pb, Ho = _same_pad(H, k, stride)
    pleft, pright, Wo = _same_pad(W, k, stride)
    xp = jnp.pad(x, ((0, 0), (pt, pb), (pleft, pright), (0, 0)))
    taps = []
    for dy in range(k):
        for dx in range(k):
            taps.append(
                xp[:, dy:dy + (Ho - 1) * stride + 1:stride,
                      dx:dx + (Wo - 1) * stride + 1:stride, :])
    return jnp.stack(taps, axis=3), Ho, Wo


def mbconv(x, p, cfg):
    cin, cout, expand, stride, _se_ratio = cfg
    B, H, W, _ = x.shape

    if stride == 1:
        # fully fused: expand + pad + dwconv + SE + project + residual
        return mbconv_s1(x, p, has_expand=(expand != 1),
                         has_res=(cin == cout))

    # stride 2: expand 1x1 (+BN+swish) as one matmul kernel (bf16 out), then
    # TF-SAME pad + even/odd phase split in JAX (pad AFTER the expand so the
    # padding stays exactly zero), then the fused dwconv+SE+project kernel.
    # TODO(synk): fuse the expand + phase split in-kernel (strided VMEM writes)
    # to drop the remaining expanded-tensor HBM round trip.
    cexp_p = p["expand_w"].shape[1]
    h = mm_bn_act(x.reshape(B * H * W, x.shape[-1]), p["expand_w"],
                  p["expand_s"], p["expand_b"], act="swish")
    h = h.reshape(B, H, W, cexp_p)
    # TF SAME for even H, k=3, s=2 pads (0, 1); pad one extra zero row/col so
    # the even/odd phase split below is rectangular (extra row never read).
    hp = jnp.pad(h, ((0, 0), (0, 2), (0, 2), (0, 0)))
    hp = jnp.stack([hp[:, a::2, b::2, :] for a in (0, 1) for b in (0, 1)],
                   axis=1)                                   # (B,4,H/2+1,W/2+1,C)
    return mbconv_s2(hp, p, ho=H // 2, wo=W // 2)


def bengali_forward(x_nchw, params):
    x = jnp.transpose(x_nchw, (0, 2, 3, 1)).astype(ACT_DTYPE)   # NCHW -> NHWC
    B = x.shape[0]
    cin = x.shape[-1]

    # _conv_stem (3x3, stride 2, SAME) + _bn0   (no swish: custom forward)
    patches, Ho, Wo = extract_patches(x, stride=2)
    h = mm_bn_act(patches.reshape(B * Ho * Wo, 9 * cin), params["stem_w"],
                  params["stem_s"], params["stem_b"], act="linear")
    h = h.reshape(B, Ho, Wo, -1)

    # _blocks : one fused kernel per stride-1 block, expand + fused core for
    # the stride-2 block.
    for cfg, p in zip(BLOCK_CFG, params["blocks"]):
        h = mbconv(h, p, cfg)

    # _conv_head + _bn1 (no swish) + _avg_pooling + _dropout(eval) + flatten
    # + fc_graph3 / fc_vowel3 / fc_conso3 -- one fused kernel.
    logits = head_fc(h, params)
    g0, g1 = N_GRAPH, N_GRAPH + N_VOWEL
    return logits[:, :g0], logits[:, g0:g1], logits[:, g1:g1 + N_CONSO]


# ----------------------- deterministic parameter init ----------------------
def _nrm(key, shape, scale):
    return scale * jax.random.normal(key, shape, jnp.float32)


def _pad_w(w, rp, cp_, dtype=jnp.bfloat16):
    r, c = w.shape
    return jnp.pad(w, ((0, rp - r), (0, cp_ - c))).astype(dtype)


def make_bn(key, c, cp_):
    """Folded BN scale/bias, zero-padded (scale=1, bias=0) to cp_ lanes."""
    k1, k2, k3, k4 = jax.random.split(key, 4)
    gamma = 1.0 + 0.05 * jax.random.normal(k1, (c,), jnp.float32)
    beta = 0.05 * jax.random.normal(k2, (c,), jnp.float32)
    mean = 0.05 * jax.random.normal(k3, (c,), jnp.float32)
    var = 1.0 + 0.05 * jnp.abs(jax.random.normal(k4, (c,), jnp.float32))
    scale = gamma / jnp.sqrt(var + BN_EPS)
    bias = beta - mean * scale
    scale = jnp.concatenate([scale, jnp.ones((cp_ - c,), jnp.float32)])
    bias = jnp.concatenate([bias, jnp.zeros((cp_ - c,), jnp.float32)])
    return scale.reshape(1, cp_), bias.reshape(1, cp_)


def make_mbconv(key, cin, cout, expand, se_ratio):
    ks = jax.random.split(key, 10)
    cexp = cin * expand
    cse = max(1, int(cin * se_ratio))
    cin_p, cexp_p = cpad(cin), cpad(cexp)
    cout_p, cse_p = cpad(cout), cpad(cse)
    # TODO(synk): cexp=144 pads to 256 lanes (~44% waste); split 128+16 or pick
    # a 128-friendly expand width when scaling the config.
    p = {}
    if expand != 1:
        p["expand_w"] = _pad_w(_nrm(ks[0], (cin, cexp), cin ** -0.5),
                               cin_p, cexp_p)
        p["expand_s"], p["expand_b"] = make_bn(ks[1], cexp, cexp_p)
    p["dw_w"] = jnp.pad(_nrm(ks[2], (9, cexp), 1.0 / 3.0),
                        ((0, 0), (0, cexp_p - cexp))).reshape(9, 1, cexp_p)
    p["dw_s"], p["dw_b"] = make_bn(ks[3], cexp, cexp_p)
    p["se_rw"] = _pad_w(_nrm(ks[4], (cexp, cse), cexp ** -0.5), cexp_p, cse_p)
    p["se_rb"] = jnp.pad(_nrm(ks[5], (1, cse), 0.01),
                         ((0, 0), (0, cse_p - cse)))
    p["se_ew"] = _pad_w(_nrm(ks[6], (cse, cexp), cse ** -0.5), cse_p, cexp_p)
    p["se_eb"] = jnp.pad(_nrm(ks[7], (1, cexp), 0.01),
                         ((0, 0), (0, cexp_p - cexp)))
    p["proj_w"] = _pad_w(_nrm(ks[8], (cexp, cout), cexp ** -0.5),
                         cexp_p, cout_p)
    p["proj_s"], p["proj_b"] = make_bn(ks[9], cout, cout_p)
    return p


def init_params(key):
    ks = jax.random.split(key, 8)
    stem_p = cpad(STEM_OUT)
    stem_s, stem_b = make_bn(ks[1], STEM_OUT, stem_p)
    params = {
        "stem_w": _pad_w(_nrm(ks[0], (27, STEM_OUT), 27 ** -0.5), 27, stem_p),
        "stem_s": stem_s, "stem_b": stem_b,
        "blocks": [make_mbconv(ks[2 + i], *cfg[:3], cfg[4])
                   for i, cfg in enumerate(BLOCK_CFG)],
    }
    last_c = BLOCK_CFG[-1][1]
    last_p, head_p = cpad(last_c), cpad(HEAD_OUT)
    params["head_w"] = _pad_w(_nrm(ks[5], (last_c, HEAD_OUT), last_c ** -0.5),
                              last_p, head_p)
    params["head_s"], params["head_b"] = make_bn(ks[6], HEAD_OUT, head_p)
    n_out = N_GRAPH + N_VOWEL + N_CONSO
    nout_p = cpad(n_out)
    kf1, kf2 = jax.random.split(ks[7])
    params["fc_w"] = _pad_w(_nrm(kf1, (HEAD_OUT, n_out), HEAD_OUT ** -0.5),
                            head_p, nout_p)
    params["fc_b"] = jnp.pad(_nrm(kf2, (1, n_out), 0.01),
                             ((0, 0), (0, nout_p - n_out)))
    return params


# ---------------------------------- main -----------------------------------
if __name__ == "__main__":
    root = jax.random.PRNGKey(0)
    pkey, xkey = jax.random.split(root)
    params = init_params(pkey)
    # 32x32 input keeps every feature-map width a multiple of 8 so all in-kernel
    # spatial flattens are sublane-aligned (16 -> 16 -> 8 -> 8).
    x = jax.random.normal(xkey, (2, 3, 32, 32), jnp.float32)   # NCHW, like torch

    fwd = jax.jit(bengali_forward)
    graph, vowel, conso = fwd(x, params)
    jax.block_until_ready((graph, vowel, conso))

    assert graph.shape == (2, N_GRAPH)
    assert vowel.shape == (2, N_VOWEL)
    assert conso.shape == (2, N_CONSO)
    assert bool(jnp.all(jnp.isfinite(graph)))
    assert bool(jnp.all(jnp.isfinite(vowel)))
    assert bool(jnp.all(jnp.isfinite(conso)))
    print("KERNEL_OK")
</pallas_src>

<mosaic_0001>
module attributes {stable_mosaic.version = 11 : i64} {
  func.func @_mm_bn_act_kernel(%arg0: i32, %arg1: memref<512x27xbf16, #tpu.memory_space<vmem>>, %arg2: memref<27x128xbf16, #tpu.memory_space<vmem>>, %arg3: memref<1x128xf32, #tpu.memory_space<vmem>>, %arg4: memref<1x128xf32, #tpu.memory_space<vmem>>, %arg5: memref<512x128xbf16, #tpu.memory_space<vmem>>) attributes {dimension_semantics = [#tpu.dimension_semantics<parallel>], iteration_bounds = array<i64: 1>, scalar_prefetch = 0 : i64, scratch_operands = 0 : i64, tpu.core_type = #tpu.core_type<tc>, window_params = [{transform_indices = @transform_0, window_bounds = array<i64: 512, 27>}, {pipeline_mode = #tpu.pipeline_mode<synchronous>, transform_indices = @transform_1, window_bounds = array<i64: 27, 128>}, {pipeline_mode = #tpu.pipeline_mode<synchronous>, transform_indices = @transform_2, window_bounds = array<i64: 1, 128>}, {pipeline_mode = #tpu.pipeline_mode<synchronous>, transform_indices = @transform_3, window_bounds = array<i64: 1, 128>}, {transform_indices = @transform_4, window_bounds = array<i64: 512, 128>}]} {
    %c0 = arith.constant 0 : index
    %c0_0 = arith.constant 0 : index
    %0 = vector.load %arg1[%c0, %c0_0] : memref<512x27xbf16, #tpu.memory_space<vmem>>, vector<512x27xbf16>
    %c0_1 = arith.constant 0 : index
    %c0_2 = arith.constant 0 : index
    %1 = vector.load %arg2[%c0_1, %c0_2] : memref<27x128xbf16, #tpu.memory_space<vmem>>, vector<27x128xbf16>
    %cst = arith.constant dense<0.000000e+00> : vector<512x128xf32>
    %2 = tpu.matmul %0, %1, %cst {dimension_numbers = #tpu.dot_dimension_numbers<[1], [0], [0], [1], [0, 0, 1, 1], [], []>} : vector<512x27xbf16>, vector<27x128xbf16>, vector<512x128xf32> -> vector<512x128xf32>
    %c0_3 = arith.constant 0 : index
    %c0_4 = arith.constant 0 : index
    %3 = vector.load %arg3[%c0_3, %c0_4] : memref<1x128xf32, #tpu.memory_space<vmem>>, vector<1x128xf32>
    %4 = vector.broadcast %3 : vector<1x128xf32> to vector<512x128xf32>
    %5 = arith.mulf %2, %4 : vector<512x128xf32>
    %c0_5 = arith.constant 0 : index
    %c0_6 = arith.constant 0 : index
    %6 = vector.load %arg4[%c0_5, %c0_6] : memref<1x128xf32, #tpu.memory_space<vmem>>, vector<1x128xf32>
    %7 = vector.broadcast %6 : vector<1x128xf32> to vector<512x128xf32>
    %8 = arith.addf %5, %7 : vector<512x128xf32>
    %9 = arith.truncf %8 : vector<512x128xf32> to vector<512x128xbf16>
    %c0_7 = arith.constant 0 : index
    %c0_8 = arith.constant 0 : index
    %10 = vector.load %arg5[%c0_7, %c0_8] : memref<512x128xbf16, #tpu.memory_space<vmem>>, vector<512x128xbf16>
    tpu.vector_store %arg5[%c0_7, %c0_8], %9 {strides = array<i32>} : memref<512x128xbf16, #tpu.memory_space<vmem>>, vector<512x128xbf16>,
    return
  }
  func.func @transform_0(%arg0: i32) -> (i32, i32) {
    %c0_i32 = arith.constant 0 : i32
    %c0_i32_0 = arith.constant 0 : i32
    return %arg0, %c0_i32 : i32, i32
  }
  func.func @transform_1(%arg0: i32) -> (i32, i32) {
    %c0_i32 = arith.constant 0 : i32
    %c0_i32_0 = arith.constant 0 : i32
    %c0_i32_1 = arith.constant 0 : i32
    return %c0_i32, %c0_i32_0 : i32, i32
  }
  func.func @transform_2(%arg0: i32) -> (i32, i32) {
    %c0_i32 = arith.constant 0 : i32
    %c0_i32_0 = arith.constant 0 : i32
    %c0_i32_1 = arith.constant 0 : i32
    return %c0_i32, %c0_i32_0 : i32, i32
  }
  func.func @transform_3(%arg0: i32) -> (i32, i32) {
    %c0_i32 = arith.constant 0 : i32
    %c0_i32_0 = arith.constant 0 : i32
    %c0_i32_1 = arith.constant 0 : i32
    return %c0_i32, %c0_i32_0 : i32, i32
  }
  func.func @transform_4(%arg0: i32) -> (i32, i32) {
    %c0_i32 = arith.constant 0 : i32
    %c0_i32_0 = arith.constant 0 : i32
    return %arg0, %c0_i32 : i32, i32
  }
}

module attributes {stable_mosaic.version = 11 : i64} {
  func.func @_mbconv_s1_kernel(%arg0: i32, %arg1: memref<1x16x16x128xbf16, #tpu.memory_space<vmem>>, %arg2: memref<9x1x128xf32, #tpu.memory_space<vmem>>, %arg3: memref<1x128xf32, #tpu.memory_space<vmem>>, %arg4: memref<1x128xf32, #tpu.memory_space<vmem>>, %arg5: memref<128x128xbf16, #tpu.memory_space<vmem>>, %arg6: memref<1x128xf32, #tpu.memory_space<vmem>>, %arg7: memref<128x128xbf16, #tpu.memory_space<vmem>>, %arg8: memref<1x128xf32, #tpu.memory_space<vmem>>, %arg9: memref<128x128xbf16, #tpu.memory_space<vmem>>, %arg10: memref<1x128xf32, #tpu.memory_space<vmem>>, %arg11: memref<1x128xf32, #tpu.memory_space<vmem>>, %arg12: memref<1x256x128xbf16, #tpu.memory_space<vmem>>, %arg13: memref<18x18x128xf32, #tpu.memory_space<vmem>>) attributes {dimension_semantics = [#tpu.dimension_semantics<parallel>], iteration_bounds = array<i64: 2>, scalar_prefetch = 0 : i64, scratch_operands = 1 : i64, tpu.core_type = #tpu.core_type<tc>, window_params = [{transform_indices = @transform_0, window_bounds = array<i64: 1, 16, 16, 128>}, {pipeline_mode = #tpu.pipeline_mode<synchronous>, transform_indices = @transform_1, window_bounds = array<i64: 9, 1, 128>}, {pipeline_mode = #tpu.pipeline_mode<synchronous>, transform_indices = @transform_2, window_bounds = array<i64: 1, 128>}, {pipeline_mode = #tpu.pipeline_mode<synchronous>, transform_indices = @transform_3, window_bounds = array<i64: 1, 128>}, {pipeline_mode = #tpu.pipeline_mode<synchronous>, transform_indices = @transform_4, window_bounds = array<i64: 128, 128>}, {pipeline_mode = #tpu.pipeline_mode<synchronous>, transform_indices = @transform_5, window_bounds = array<i64: 1, 128>}, {pipeline_mode = #tpu.pipeline_mode<synchronous>, transform_indices = @transform_6, window_bounds = array<i64: 128, 128>}, {pipeline_mode = #tpu.pipeline_mode<synchronous>, transform_indices = @transform_7, window_bounds = array<i64: 1, 128>}, {pipeline_mode = #tpu.pipeline_mode<synchronous>, transform_indices = @transform_8, window_bounds = array<i64: 128, 128>}, {pipeline_mode = #tpu.pipeline_mode<synchronous>, transform_indices = @transform_9, window_bounds = array<i64: 1, 128>}, {pipeline_mode = #tpu.pipeline_mode<synchronous>, transform_indices = @transform_10, window_bounds = array<i64: 1, 128>}, {transform_indices = @transform_11, window_bounds = array<i64: 1, 256, 128>}]} {
    %c0 = arith.constant 0 : index
    %c0_0 = arith.constant 0 : index
    %c0_1 = arith.constant 0 : index
    %c0_2 = arith.constant 0 : index
    %0 = vector.load %arg1[%c0, %c0_0, %c0_1, %c0_2] : memref<1x16x16x128xbf16, #tpu.memory_space<vmem>>, vector<1x16x16x128xbf16>
    %1 = vector.shape_cast %0 : vector<1x16x16x128xbf16> to vector<16x16x128xbf16>
    %2 = arith.extf %1 : vector<16x16x128xbf16> to vector<16x16x128xf32>
    %cst = arith.constant 0.000000e+00 : f32
    %3 = vector.broadcast %cst : f32 to vector<18x18x128xf32>
    %c0_3 = arith.constant 0 : index
    %c0_4 = arith.constant 0 : index
    %c0_5 = arith.constant 0 : index
    %4 = vector.load %arg13[%c0_3, %c0_4, %c0_5] : memref<18x18x128xf32, #tpu.memory_space<vmem>>, vector<18x18x128xf32>
    tpu.vector_store %arg13[%c0_3, %c0_4, %c0_5], %3 {strides = array<i32>} : memref<18x18x128xf32, #tpu.memory_space<vmem>>, vector<18x18x128xf32>,
    %c1 = arith.constant 1 : index
    %c1_6 = arith.constant 1 : index
    %c0_7 = arith.constant 0 : index
    %5 = vector.load %arg13[%c1, %c1_6, %c0_7] : memref<18x18x128xf32, #tpu.memory_space<vmem>>, vector<16x16x128xf32>
    tpu.vector_store %arg13[%c1, %c1_6, %c0_7], %2 {strides = array<i32>} : memref<18x18x128xf32, #tpu.memory_space<vmem>>, vector<16x16x128xf32>,
    %c0_8 = arith.constant 0 : index
    %c0_9 = arith.constant 0 : index
    %c0_10 = arith.constant 0 : index
    %6 = vector.load %arg13[%c0_8, %c0_9, %c0_10] : memref<18x18x128xf32, #tpu.memory_space<vmem>>, vector<16x16x128xf32>
    %c0_11 = arith.constant 0 : index
    %c0_12 = arith.constant 0 : index
    %c0_13 = arith.constant 0 : index
    %7 = vector.load %arg2[%c0_11, %c0_12, %c0_13] : memref<9x1x128xf32, #tpu.memory_space<vmem>>, vector<1x1x128xf32>
    %8 = vector.shape_cast %7 : vector<1x1x128xf32> to vector<1x128xf32>
    %9 = vector.shape_cast %8 : vector<1x128xf32> to vector<1x1x128xf32>
    %10 = vector.broadcast %9 : vector<1x1x128xf32> to vector<16x16x128xf32>
    %11 = arith.mulf %6, %10 : vector<16x16x128xf32>
    %c0_14 = arith.constant 0 : index
    %c1_15 = arith.constant 1 : index
    %c0_16 = arith.constant 0 : index
    %12 = vector.load %arg13[%c0_14, %c1_15, %c0_16] : memref<18x18x128xf32, #tpu.memory_space<vmem>>, vector<16x16x128xf32>
    %c1_17 = arith.constant 1 : index
    %c0_18 = arith.constant 0 : index
    %c0_19 = arith.constant 0 : index
    %13 = vector.load %arg2[%c1_17, %c0_18, %c0_19] : memref<9x1x128xf32, #tpu.memory_space<vmem>>, vector<1x1x128xf32>
    %14 = vector.shape_cast %13 : vector<1x1x128xf32> to vector<1x128xf32>
    %15 = vector.shape_cast %14 : vector<1x128xf32> to vector<1x1x128xf32>
    %16 = vector.broadcast %15 : vector<1x1x128xf32> to vector<16x16x128xf32>
    %17 = arith.mulf %12, %16 : vector<16x16x128xf32>
    %18 = arith.addf %11, %17 : vector<16x16x128xf32>
    %c0_20 = arith.constant 0 : index
    %c2 = arith.constant 2 : index
    %c0_21 = arith.constant 0 : index
    %19 = vector.load %arg13[%c0_20, %c2, %c0_21] : memref<18x18x128xf32, #tpu.memory_space<vmem>>, vector<16x16x128xf32>
    %c2_22 = arith.constant 2 : index
    %c0_23 = arith.constant 0 : index
    %c0_24 = arith.constant 0 : index
    %20 = vector.load %arg2[%c2_22, %c0_23, %c0_24] : memref<9x1x128xf32, #tpu.memory_space<vmem>>, vector<1x1x128xf32>
    %21 = vector.shape_cast %20 : vector<1x1x128xf32> to vector<1x128xf32>
    %22 = vector.shape_cast %21 : vector<1x128xf32> to vector<1x1x128xf32>
    %23 = vector.broadcast %22 : vector<1x1x128xf32> to vector<16x16x128xf32>
    %24 = arith.mulf %19, %23 : vector<16x16x128xf32>
    %25 = arith.addf %18, %24 : vector<16x16x128xf32>
    %c1_25 = arith.constant 1 : index
    %c0_26 = arith.constant 0 : index
    %c0_27 = arith.constant 0 : index
    %26 = vector.load %arg13[%c1_25, %c0_26, %c0_27] : memref<18x18x128xf32, #tpu.memory_space<vmem>>, vector<16x16x128xf32>
    %c3 = arith.constant 3 : index
    %c0_28 = arith.constant 0 : index
    %c0_29 = arith.constant 0 : index
    %27 = vector.load %arg2[%c3, %c0_28, %c0_29] : memref<9x1x128xf32, #tpu.memory_space<vmem>>, vector<1x1x128xf32>
    %28 = vector.shape_cast %27 : vector<1x1x128xf32> to vector<1x128xf32>
    %29 = vector.shape_cast %28 : vector<1x128xf32> to vector<1x1x128xf32>
    %30 = vector.broadcast %29 : vector<1x1x128xf32> to vector<16x16x128xf32>
    %31 = arith.mulf %26, %30 : vector<16x16x128xf32>
    %32 = arith.addf %25, %31 : vector<16x16x128xf32>
    %c1_30 = arith.constant 1 : index
    %c1_31 = arith.constant 1 : index
    %c0_32 = arith.constant 0 : index
    %33 = vector.load %arg13[%c1_30, %c1_31, %c0_32] : memref<18x18x128xf32, #tpu.memory_space<vmem>>, vector<16x16x128xf32>
    %c4 = arith.constant 4 : index
    %c0_33 = arith.constant 0 : index
    %c0_34 = arith.constant 0 : index
    %34 = vector.load %arg2[%c4, %c0_33, %c0_34] : memref<9x1x128xf32, #tpu.memory_space<vmem>>, vector<1x1x128xf32>
    %35 = vector.shape_cast %34 : vector<1x1x128xf32> to vector<1x128xf32>
    %36 = vector.shape_cast %35 : vector<1x128xf32> to vector<1x1x128xf32>
    %37 = vector.broadcast %36 : vector<1x1x128xf32> to vector<16x16x128xf32>
    %38 = arith.mulf %33, %37 : vector<16x16x128xf32>
    %39 = arith.addf %32, %38 : vector<16x16x128xf32>
    %c1_35 = arith.constant 1 : index
    %c2_36 = arith.constant 2 : index
    %c0_37 = arith.constant 0 : index
    %40 = vector.load %arg13[%c1_35, %c2_36, %c0_37] : memref<18x18x128xf32, #tpu.memory_space<vmem>>, vector<16x16x128xf32>
    %c5 = arith.constant 5 : index
    %c0_38 = arith.constant 0 : index
    %c0_39 = arith.constant 0 : index
    %41 = vector.load %arg2[%c5, %c0_38, %c0_39] : memref<9x1x128xf32, #tpu.memory_space<vmem>>, vector<1x1x128xf32>
    %42 = vector.shape_cast %41 : vector<1x1x128xf32> to vector<1x128xf32>
    %43 = vector.shape_cast %42 : vector<1x128xf32> to vector<1x1x128xf32>
    %44 = vector.broadcast %43 : vector<1x1x128xf32> to vector<16x16x128xf32>
    %45 = arith.mulf %40, %44 : vector<16x16x128xf32>
    %46 = arith.addf %39, %45 : vector<16x16x128xf32>
    %c2_40 = arith.constant 2 : index
    %c0_41 = arith.constant 0 : index
    %c0_42 = arith.constant 0 : index
    %47 = vector.load %arg13[%c2_40, %c0_41, %c0_42] : memref<18x18x128xf32, #tpu.memory_space<vmem>>, vector<16x16x128xf32>
    %c6 = arith.constant 6 : index
    %c0_43 = arith.constant 0 : index
    %c0_44 = arith.constant 0 : index
    %48 = vector.load %arg2[%c6, %c0_43, %c0_44] : memref<9x1x128xf32, #tpu.memory_space<vmem>>, vector<1x1x128xf32>
    %49 = vector.shape_cast %48 : vector<1x1x128xf32> to vector<1x128xf32>
    %50 = vector.shape_cast %49 : vector<1x128xf32> to vector<1x1x128xf32>
    %51 = vector.broadcast %50 : vector<1x1x128xf32> to vector<16x16x128xf32>
    %52 = arith.mulf %47, %51 : vector<16x16x128xf32>
    %53 = arith.addf %46, %52 : vector<16x16x128xf32>
    %c2_45 = arith.constant 2 : index
    %c1_46 = arith.constant 1 : index
    %c0_47 = arith.constant 0 : index
    %54 = vector.load %arg13[%c2_45, %c1_46, %c0_47] : memref<18x18x128xf32, #tpu.memory_space<vmem>>, vector<16x16x128xf32>
    %c7 = arith.constant 7 : index
    %c0_48 = arith.constant 0 : index
    %c0_49 = arith.constant 0 : index
    %55 = vector.load %arg2[%c7, %c0_48, %c0_49] : memref<9x1x128xf32, #tpu.memory_space<vmem>>, vector<1x1x128xf32>
    %56 = vector.shape_cast %55 : vector<1x1x128xf32> to vector<1x128xf32>
    %57 = vector.shape_cast %56 : vector<1x128xf32> to vector<1x1x128xf32>
    %58 = vector.broadcast %57 : vector<1x1x128xf32> to vector<16x16x128xf32>
    %59 = arith.mulf %54, %58 : vector<16x16x128xf32>
    %60 = arith.addf %53, %59 : vector<16x16x128xf32>
    %c2_50 = arith.constant 2 : index
    %c2_51 = arith.constant 2 : index
    %c0_52 = arith.constant 0 : index
    %61 = vector.load %arg13[%c2_50, %c2_51, %c0_52] : memref<18x18x128xf32, #tpu.memory_space<vmem>>, vector<16x16x128xf32>
    %c8 = arith.constant 8 : index
    %c0_53 = arith.constant 0 : index
    %c0_54 = arith.constant 0 : index
    %62 = vector.load %arg2[%c8, %c0_53, %c0_54] : memref<9x1x128xf32, #tpu.memory_space<vmem>>, vector<1x1x128xf32>
    %63 = vector.shape_cast %62 : vector<1x1x128xf32> to vector<1x128xf32>
    %64 = vector.shape_cast %63 : vector<1x128xf32> to vector<1x1x128xf32>
    %65 = vector.broadcast %64 : vector<1x1x128xf32> to vector<16x16x128xf32>
    %66 = arith.mulf %61, %65 : vector<16x16x128xf32>
    %67 = arith.addf %60, %66 : vector<16x16x128xf32>
    %c0_55 = arith.constant 0 : index
    %c0_56 = arith.constant 0 : index
    %68 = vector.load %arg3[%c0_55, %c0_56] : memref<1x128xf32, #tpu.memory_space<vmem>>, vector<1x128xf32>
    %69 = vector.shape_cast %68 : vector<1x128xf32> to vector<1x1x128xf32>
    %70 = vector.broadcast %69 : vector<1x1x128xf32> to vector<16x16x128xf32>
    %71 = arith.mulf %67, %70 : vector<16x16x128xf32>
    %c0_57 = arith.constant 0 : index
    %c0_58 = arith.constant 0 : index
    %72 = vector.load %arg4[%c0_57, %c0_58] : memref<1x128xf32, #tpu.memory_space<vmem>>, vector<1x128xf32>
    %73 = vector.shape_cast %72 : vector<1x128xf32> to vector<1x1x128xf32>
    %74 = vector.broadcast %73 : vector<1x1x128xf32> to vector<16x16x128xf32>
    %75 = arith.addf %71, %74 : vector<16x16x128xf32>
    %76 = arith.negf %75 : vector<16x16x128xf32>
    %77 = math.exp %76 : vector<16x16x128xf32>
    %cst_59 = arith.constant 1.000000e+00 : f32
    %78 = vector.broadcast %cst_59 : f32 to vector<16x16x128xf32>
    %79 = arith.addf %78, %77 : vector<16x16x128xf32>
    %80 = arith.divf %78, %79 : vector<16x16x128xf32>
    %81 = arith.mulf %75, %80 : vector<16x16x128xf32>
    %82 = vector.shape_cast %1 : vector<16x16x128xbf16> to vector<256x128xbf16>
    %83 = arith.extf %82 : vector<256x128xbf16> to vector<256x128xf32>
    %cst_60 = arith.constant dense<0.000000e+00> : vector<16x128xf32>
    %84 = vector.multi_reduction <add>, %81, %cst_60 [0] : vector<16x16x128xf32> to vector<16x128xf32>
    %cst_61 = arith.constant dense<0.000000e+00> : vector<128xf32>
    %85 = vector.multi_reduction <add>, %84, %cst_61 [0] : vector<16x128xf32> to vector<128xf32>
    %86 = vector.shape_cast %85 : vector<128xf32> to vector<1x128xf32>
    %cst_62 = arith.constant 3.906250e-03 : f32
    %87 = vector.broadcast %cst_62 : f32 to vector<1x128xf32>
    %88 = arith.mulf %86, %87 : vector<1x128xf32>
    %89 = arith.truncf %88 : vector<1x128xf32> to vector<1x128xbf16>
    %c0_63 = arith.constant 0 : index
    %c0_64 = arith.constant 0 : index
    %90 = vector.load %arg5[%c0_63, %c0_64] : memref<128x128xbf16, #tpu.memory_space<vmem>>, vector<128x128xbf16>
    %cst_65 = arith.constant dense<0.000000e+00> : vector<1x128xf32>
    %91 = tpu.matmul %89, %90, %cst_65 {dimension_numbers = #tpu.dot_dimension_numbers<[1], [0], [0], [1], [0, 0, 1, 1], [], []>} : vector<1x128xbf16>, vector<128x128xbf16>, vector<1x128xf32> -> vector<1x128xf32>
    %c0_66 = arith.constant 0 : index
    %c0_67 = arith.constant 0 : index
    %92 = vector.load %arg6[%c0_66, %c0_67] : memref<1x128xf32, #tpu.memory_space<vmem>>, vector<1x128xf32>
    %93 = arith.addf %91, %92 : vector<1x128xf32>
    %94 = arith.negf %93 : vector<1x128xf32>
    %95 = math.exp %94 : vector<1x128xf32>
    %cst_68 = arith.constant 1.000000e+00 : f32
    %96 = vector.broadcast %cst_68 : f32 to vector<1x128xf32>
    %97 = arith.addf %96, %95 : vector<1x128xf32>
    %98 = arith.divf %96, %97 : vector<1x128xf32>
    %99 = arith.mulf %93, %98 : vector<1x128xf32>
    %100 = arith.truncf %99 : vector<1x128xf32> to vector<1x128xbf16>
    %c0_69 = arith.constant 0 : index
    %c0_70 = arith.constant 0 : index
    %101 = vector.load %arg7[%c0_69, %c0_70] : memref<128x128xbf16, #tpu.memory_space<vmem>>, vector<128x128xbf16>
    %cst_71 = arith.constant dense<0.000000e+00> : vector<1x128xf32>
    %102 = tpu.matmul %100, %101, %cst_71 {dimension_numbers = #tpu.dot_dimension_numbers<[1], [0], [0], [1], [0, 0, 1, 1], [], []>} : vector<1x128xbf16>, vector<128x128xbf16>, vector<1x128xf32> -> vector<1x128xf32>
    %c0_72 = arith.constant 0 : index
    %c0_73 = arith.constant 0 : index
    %103 = vector.load %arg8[%c0_72, %c0_73] : memref<1x128xf32, #tpu.memory_space<vmem>>, vector<1x128xf32>
    %104 = arith.addf %102, %103 : vector<1x128xf32>
    %105 = arith.negf %104 : vector<1x128xf32>
    %106 = math.exp %105 : vector<1x128xf32>
    %cst_74 = arith.constant 1.000000e+00 : f32
    %107 = vector.broadcast %cst_74 : f32 to vector<1x128xf32>
    %108 = arith.addf %107, %106 : vector<1x128xf32>
    %109 = arith.divf %107, %108 : vector<1x128xf32>
    %110 = vector.shape_cast %81 : vector<16x16x128xf32> to vector<256x128xf32>
    %111 = vector.broadcast %109 : vector<1x128xf32> to vector<256x128xf32>
    %112 = arith.mulf %110, %111 : vector<256x128xf32>
    %113 = arith.truncf %112 : vector<256x128xf32> to vector<256x128xbf16>
    %c0_75 = arith.constant 0 : index
    %c0_76 = arith.constant 0 : index
    %114 = vector.load %arg9[%c0_75, %c0_76] : memref<128x128xbf16, #tpu.memory_space<vmem>>, vector<128x128xbf16>
    %cst_77 = arith.constant dense<0.000000e+00> : vector<256x128xf32>
    %115 = tpu.matmul %113, %114, %cst_77 {dimension_numbers = #tpu.dot_dimension_numbers<[1], [0], [0], [1], [0, 0, 1, 1], [], []>} : vector<256x128xbf16>, vector<128x128xbf16>, vector<256x128xf32> -> vector<256x128xf32>
    %c0_78 = arith.constant 0 : index
    %c0_79 = arith.constant 0 : index
    %116 = vector.load %arg10[%c0_78, %c0_79] : memref<1x128xf32, #tpu.memory_space<vmem>>, vector<1x128xf32>
    %117 = vector.broadcast %116 : vector<1x128xf32> to vector<256x128xf32>
    %118 = arith.mulf %115, %117 : vector<256x128xf32>
    %c0_80 = arith.constant 0 : index
    %c0_81 = arith.constant 0 : index
    %119 = vector.load %arg11[%c0_80, %c0_81] : memref<1x128xf32, #tpu.memory_space<vmem>>, vector<1x128xf32>
    %120 = vector.broadcast %119 : vector<1x128xf32> to vector<256x128xf32>
    %121 = arith.addf %118, %120 : vector<256x128xf32>
    %122 = arith.addf %121, %83 : vector<256x128xf32>
    %123 = arith.truncf %122 : vector<256x128xf32> to vector<256x128xbf16>
    %c0_82 = arith.constant 0 : index
    %c0_83 = arith.constant 0 : index
    %c0_84 = arith.constant 0 : index
    %124 = vector.load %arg12[%c0_82, %c0_83, %c0_84] : memref<1x256x128xbf16, #tpu.memory_space<vmem>>, vector<1x256x128xbf16>
    %125 = vector.shape_cast %124 : vector<1x256x128xbf16> to vector<256x128xbf16>
    %126 = vector.shape_cast %123 : vector<256x128xbf16> to vector<1x256x128xbf16>
    tpu.vector_store %arg12[%c0_82, %c0_83, %c0_84], %126 {strides = array<i32>} : memref<1x256x128xbf16, #tpu.memory_space<vmem>>, vector<1x256x128xbf16>,
    return
  }
  func.func @transform_0(%arg0: i32) -> (i32, i32, i32, i32) {
    %c0_i32 = arith.constant 0 : i32
    %c0_i32_0 = arith.constant 0 : i32
    %c0_i32_1 = arith.constant 0 : i32
    %c0_i32_2 = arith.constant 0 : i32
    return %arg0, %c0_i32, %c0_i32_0, %c0_i32_1 : i32, i32, i32, i32
  }
  func.func @transform_1(%arg0: i32) -> (i32, i32, i32) {
    %c0_i32 = arith.constant 0 : i32
    %c0_i32_0 = arith.constant 0 : i32
    %c0_i32_1 = arith.constant 0 : i32
    %c0_i32_2 = arith.constant 0 : i32
    return %c0_i32, %c0_i32_0, %c0_i32_1 : i32, i32, i32
  }
  func.func @transform_2(%arg0: i32) -> (i32, i32) {
    %c0_i32 = arith.constant 0 : i32
    %c0_i32_0 = arith.constant 0 : i32
    %c0_i32_1 = arith.constant 0 : i32
    return %c0_i32, %c0_i32_0 : i32, i32
  }
  func.func @transform_3(%arg0: i32) -> (i32, i32) {
    %c0_i32 = arith.constant 0 : i32
    %c0_i32_0 = arith.constant 0 : i32
    %c0_i32_1 = arith.constant 0 : i32
    return %c0_i32, %c0_i32_0 : i32, i32
  }
  func.func @transform_4(%arg0: i32) -> (i32, i32) {
    %c0_i32 = arith.constant 0 : i32
    %c0_i32_0 = arith.constant 0 : i32
    %c0_i32_1 = arith.constant 0 : i32
    return %c0_i32, %c0_i32_0 : i32, i32
  }
  func.func @transform_5(%arg0: i32) -> (i32, i32) {
    %c0_i32 = arith.constant 0 : i32
    %c0_i32_0 = arith.constant 0 : i32
    %c0_i32_1 = arith.constant 0 : i32
    return %c0_i32, %c0_i32_0 : i32, i32
  }
  func.func @transform_6(%arg0: i32) -> (i32, i32) {
    %c0_i32 = arith.constant 0 : i32
    %c0_i32_0 = arith.constant 0 : i32
    %c0_i32_1 = arith.constant 0 : i32
    return %c0_i32, %c0_i32_0 : i32, i32
  }
  func.func @transform_7(%arg0: i32) -> (i32, i32) {
    %c0_i32 = arith.constant 0 : i32
    %c0_i32_0 = arith.constant 0 : i32
    %c0_i32_1 = arith.constant 0 : i32
    return %c0_i32, %c0_i32_0 : i32, i32
  }
  func.func @transform_8(%arg0: i32) -> (i32, i32) {
    %c0_i32 = arith.constant 0 : i32
    %c0_i32_0 = arith.constant 0 : i32
    %c0_i32_1 = arith.constant 0 : i32
    return %c0_i32, %c0_i32_0 : i32, i32
  }
  func.func @transform_9(%arg0: i32) -> (i32, i32) {
    %c0_i32 = arith.constant 0 : i32
    %c0_i32_0 = arith.constant 0 : i32
    %c0_i32_1 = arith.constant 0 : i32
    return %c0_i32, %c0_i32_0 : i32, i32
  }
  func.func @transform_10(%arg0: i32) -> (i32, i32) {
    %c0_i32 = arith.constant 0 : i32
    %c0_i32_0 = arith.constant 0 : i32
    %c0_i32_1 = arith.constant 0 : i32
    return %c0_i32, %c0_i32_0 : i32, i32
  }
  func.func @transform_11(%arg0: i32) -> (i32, i32, i32) {
    %c0_i32 = arith.constant 0 : i32
    %c0_i32_0 = arith.constant 0 : i32
    %c0_i32_1 = arith.constant 0 : i32
    return %arg0, %c0_i32, %c0_i32_0 : i32, i32, i32
  }
}

module attributes {stable_mosaic.version = 11 : i64} {
  func.func @_mm_bn_act_kernel(%arg0: i32, %arg1: memref<512x128xbf16, #tpu.memory_space<vmem>>, %arg2: memref<128x128xbf16, #tpu.memory_space<vmem>>, %arg3: memref<1x128xf32, #tpu.memory_space<vmem>>, %arg4: memref<1x128xf32, #tpu.memory_space<vmem>>, %arg5: memref<512x128xbf16, #tpu.memory_space<vmem>>) attributes {dimension_semantics = [#tpu.dimension_semantics<parallel>], iteration_bounds = array<i64: 1>, scalar_prefetch = 0 : i64, scratch_operands = 0 : i64, tpu.core_type = #tpu.core_type<tc>, window_params = [{transform_indices = @transform_0, window_bounds = array<i64: 512, 128>}, {pipeline_mode = #tpu.pipeline_mode<synchronous>, transform_indices = @transform_1, window_bounds = array<i64: 128, 128>}, {pipeline_mode = #tpu.pipeline_mode<synchronous>, transform_indices = @transform_2, window_bounds = array<i64: 1, 128>}, {pipeline_mode = #tpu.pipeline_mode<synchronous>, transform_indices = @transform_3, window_bounds = array<i64: 1, 128>}, {transform_indices = @transform_4, window_bounds = array<i64: 512, 128>}]} {
    %c0 = arith.constant 0 : index
    %c0_0 = arith.constant 0 : index
    %0 = vector.load %arg1[%c0, %c0_0] : memref<512x128xbf16, #tpu.memory_space<vmem>>, vector<512x128xbf16>
    %c0_1 = arith.constant 0 : index
    %c0_2 = arith.constant 0 : index
    %1 = vector.load %arg2[%c0_1, %c0_2] : memref<128x128xbf16, #tpu.memory_space<vmem>>, vector<128x128xbf16>
    %cst = arith.constant dense<0.000000e+00> : vector<512x128xf32>
    %2 = tpu.matmul %0, %1, %cst {dimension_numbers = #tpu.dot_dimension_numbers<[1], [0], [0], [1], [0, 0, 1, 1], [], []>} : vector<512x128xbf16>, vector<128x128xbf16>, vector<512x128xf32> -> vector<512x128xf32>
    %c0_3 = arith.constant 0 : index
    %c0_4 = arith.constant 0 : index
    %3 = vector.load %arg3[%c0_3, %c0_4] : memref<1x128xf32, #tpu.memory_space<vmem>>, vector<1x128xf32>
    %4 = vector.broadcast %3 : vector<1x128xf32> to vector<512x128xf32>
    %5 = arith.mulf %2, %4 : vector<512x128xf32>
    %c0_5 = arith.constant 0 : index
    %c0_6 = arith.constant 0 : index
    %6 = vector.load %arg4[%c0_5, %c0_6] : memref<1x128xf32, #tpu.memory_space<vmem>>, vector<1x128xf32>
    %7 = vector.broadcast %6 : vector<1x128xf32> to vector<512x128xf32>
    %8 = arith.addf %5, %7 : vector<512x128xf32>
    %9 = arith.negf %8 : vector<512x128xf32>
    %10 = math.exp %9 : vector<512x128xf32>
    %cst_7 = arith.constant 1.000000e+00 : f32
    %11 = vector.broadcast %cst_7 : f32 to vector<512x128xf32>
    %12 = arith.addf %11, %10 : vector<512x128xf32>
    %13 = arith.divf %11, %12 : vector<512x128xf32>
    %14 = arith.mulf %8, %13 : vector<512x128xf32>
    %15 = arith.truncf %14 : vector<512x128xf32> to vector<512x128xbf16>
    %c0_8 = arith.constant 0 : index
    %c0_9 = arith.constant 0 : index
    %16 = vector.load %arg5[%c0_8, %c0_9] : memref<512x128xbf16, #tpu.memory_space<vmem>>, vector<512x128xbf16>
    tpu.vector_store %arg5[%c0_8, %c0_9], %15 {strides = array<i32>} : memref<512x128xbf16, #tpu.memory_space<vmem>>, vector<512x128xbf16>,
    return
  }
  func.func @transform_0(%arg0: i32) -> (i32, i32) {
    %c0_i32 = arith.constant 0 : i32
    %c0_i32_0 = arith.constant 0 : i32
    return %arg0, %c0_i32 : i32, i32
  }
  func.func @transform_1(%arg0: i32) -> (i32, i32) {
    %c0_i32 = arith.constant 0 : i32
    %c0_i32_0 = arith.constant 0 : i32
    %c0_i32_1 = arith.constant 0 : i32
    return %c0_i32, %c0_i32_0 : i32, i32
  }
  func.func @transform_2(%arg0: i32) -> (i32, i32) {
    %c0_i32 = arith.constant 0 : i32
    %c0_i32_0 = arith.constant 0 : i32
    %c0_i32_1 = arith.constant 0 : i32
    return %c0_i32, %c0_i32_0 : i32, i32
  }
  func.func @transform_3(%arg0: i32) -> (i32, i32) {
    %c0_i32 = arith.constant 0 : i32
    %c0_i32_0 = arith.constant 0 : i32
    %c0_i32_1 = arith.constant 0 : i32
    return %c0_i32, %c0_i32_0 : i32, i32
  }
  func.func @transform_4(%arg0: i32) -> (i32, i32) {
    %c0_i32 = arith.constant 0 : i32
    %c0_i32_0 = arith.constant 0 : i32
    return %arg0, %c0_i32 : i32, i32
  }
}

module attributes {stable_mosaic.version = 11 : i64} {
  func.func @_mbconv_s2_kernel(%arg0: i32, %arg1: memref<1x4x9x9x128xbf16, #tpu.memory_space<vmem>>, %arg2: memref<9x1x128xf32, #tpu.memory_space<vmem>>, %arg3: memref<1x128xf32, #tpu.memory_space<vmem>>, %arg4: memref<1x128xf32, #tpu.memory_space<vmem>>, %arg5: memref<128x128xbf16, #tpu.memory_space<vmem>>, %arg6: memref<1x128xf32, #tpu.memory_space<vmem>>, %arg7: memref<128x128xbf16, #tpu.memory_space<vmem>>, %arg8: memref<1x128xf32, #tpu.memory_space<vmem>>, %arg9: memref<128x128xbf16, #tpu.memory_space<vmem>>, %arg10: memref<1x128xf32, #tpu.memory_space<vmem>>, %arg11: memref<1x128xf32, #tpu.memory_space<vmem>>, %arg12: memref<1x64x128xbf16, #tpu.memory_space<vmem>>) attributes {dimension_semantics = [#tpu.dimension_semantics<parallel>], iteration_bounds = array<i64: 2>, scalar_prefetch = 0 : i64, scratch_operands = 0 : i64, tpu.core_type = #tpu.core_type<tc>, window_params = [{transform_indices = @transform_0, window_bounds = array<i64: 1, 4, 9, 9, 128>}, {pipeline_mode = #tpu.pipeline_mode<synchronous>, transform_indices = @transform_1, window_bounds = array<i64: 9, 1, 128>}, {pipeline_mode = #tpu.pipeline_mode<synchronous>, transform_indices = @transform_2, window_bounds = array<i64: 1, 128>}, {pipeline_mode = #tpu.pipeline_mode<synchronous>, transform_indices = @transform_3, window_bounds = array<i64: 1, 128>}, {pipeline_mode = #tpu.pipeline_mode<synchronous>, transform_indices = @transform_4, window_bounds = array<i64: 128, 128>}, {pipeline_mode = #tpu.pipeline_mode<synchronous>, transform_indices = @transform_5, window_bounds = array<i64: 1, 128>}, {pipeline_mode = #tpu.pipeline_mode<synchronous>, transform_indices = @transform_6, window_bounds = array<i64: 128, 128>}, {pipeline_mode = #tpu.pipeline_mode<synchronous>, transform_indices = @transform_7, window_bounds = array<i64: 1, 128>}, {pipeline_mode = #tpu.pipeline_mode<synchronous>, transform_indices = @transform_8, window_bounds = array<i64: 128, 128>}, {pipeline_mode = #tpu.pipeline_mode<synchronous>, transform_indices = @transform_9, window_bounds = array<i64: 1, 128>}, {pipeline_mode = #tpu.pipeline_mode<synchronous>, transform_indices = @transform_10, window_bounds = array<i64: 1, 128>}, {transform_indices = @transform_11, window_bounds = array<i64: 1, 64, 128>}]} {
    %c0 = arith.constant 0 : index
    %c0_0 = arith.constant 0 : index
    %c0_1 = arith.constant 0 : index
    %c0_2 = arith.constant 0 : index
    %c0_3 = arith.constant 0 : index
    %0 = vector.load %arg1[%c0, %c0_0, %c0_1, %c0_2, %c0_3] : memref<1x4x9x9x128xbf16, #tpu.memory_space<vmem>>, vector<1x4x9x9x128xbf16>
    %1 = vector.shape_cast %0 : vector<1x4x9x9x128xbf16> to vector<4x9x9x128xbf16>
    %2 = vector.extract_strided_slice %1 {offsets = [0, 0, 0, 0], sizes = [1, 8, 8, 128], strides = [1, 1, 1, 1]} : vector<4x9x9x128xbf16> to vector<1x8x8x128xbf16>
    %3 = vector.shape_cast %2 : vector<1x8x8x128xbf16> to vector<8x8x128xbf16>
    %4 = arith.extf %3 : vector<8x8x128xbf16> to vector<8x8x128xf32>
    %c0_4 = arith.constant 0 : index
    %c0_5 = arith.constant 0 : index
    %c0_6 = arith.constant 0 : index
    %5 = vector.load %arg2[%c0_4, %c0_5, %c0_6] : memref<9x1x128xf32, #tpu.memory_space<vmem>>, vector<1x1x128xf32>
    %6 = vector.shape_cast %5 : vector<1x1x128xf32> to vector<1x128xf32>
    %7 = vector.shape_cast %6 : vector<1x128xf32> to vector<1x1x128xf32>
    %8 = vector.broadcast %7 : vector<1x1x128xf32> to vector<8x8x128xf32>
    %9 = arith.mulf %4, %8 : vector<8x8x128xf32>
    %10 = vector.extract_strided_slice %1 {offsets = [1, 0, 0, 0], sizes = [1, 8, 8, 128], strides = [1, 1, 1, 1]} : vector<4x9x9x128xbf16> to vector<1x8x8x128xbf16>
    %11 = vector.shape_cast %10 : vector<1x8x8x128xbf16> to vector<8x8x128xbf16>
    %12 = arith.extf %11 : vector<8x8x128xbf16> to vector<8x8x128xf32>
    %c1 = arith.constant 1 : index
    %c0_7 = arith.constant 0 : index
    %c0_8 = arith.constant 0 : index
    %13 = vector.load %arg2[%c1, %c0_7, %c0_8] : memref<9x1x128xf32, #tpu.memory_space<vmem>>, vector<1x1x128xf32>
    %14 = vector.shape_cast %13 : vector<1x1x128xf32> to vector<1x128xf32>
    %15 = vector.shape_cast %14 : vector<1x128xf32> to vector<1x1x128xf32>
    %16 = vector.broadcast %15 : vector<1x1x128xf32> to vector<8x8x128xf32>
    %17 = arith.mulf %12, %16 : vector<8x8x128xf32>
    %18 = arith.addf %9, %17 : vector<8x8x128xf32>
    %19 = vector.extract_strided_slice %1 {offsets = [0, 0, 1, 0], sizes = [1, 8, 8, 128], strides = [1, 1, 1, 1]} : vector<4x9x9x128xbf16> to vector<1x8x8x128xbf16>
    %20 = vector.shape_cast %19 : vector<1x8x8x128xbf16> to vector<8x8x128xbf16>
    %21 = arith.extf %20 : vector<8x8x128xbf16> to vector<8x8x128xf32>
    %c2 = arith.constant 2 : index
    %c0_9 = arith.constant 0 : index
    %c0_10 = arith.constant 0 : index
    %22 = vector.load %arg2[%c2, %c0_9, %c0_10] : memref<9x1x128xf32, #tpu.memory_space<vmem>>, vector<1x1x128xf32>
    %23 = vector.shape_cast %22 : vector<1x1x128xf32> to vector<1x128xf32>
    %24 = vector.shape_cast %23 : vector<1x128xf32> to vector<1x1x128xf32>
    %25 = vector.broadcast %24 : vector<1x1x128xf32> to vector<8x8x128xf32>
    %26 = arith.mulf %21, %25 : vector<8x8x128xf32>
    %27 = arith.addf %18, %26 : vector<8x8x128xf32>
    %28 = vector.extract_strided_slice %1 {offsets = [2, 0, 0, 0], sizes = [1, 8, 8, 128], strides = [1, 1, 1, 1]} : vector<4x9x9x128xbf16> to vector<1x8x8x128xbf16>
    %29 = vector.shape_cast %28 : vector<1x8x8x128xbf16> to vector<8x8x128xbf16>
    %30 = arith.extf %29 : vector<8x8x128xbf16> to vector<8x8x128xf32>
    %c3 = arith.constant 3 : index
    %c0_11 = arith.constant 0 : index
    %c0_12 = arith.constant 0 : index
    %31 = vector.load %arg2[%c3, %c0_11, %c0_12] : memref<9x1x128xf32, #tpu.memory_space<vmem>>, vector<1x1x128xf32>
    %32 = vector.shape_cast %31 : vector<1x1x128xf32> to vector<1x128xf32>
    %33 = vector.shape_cast %32 : vector<1x128xf32> to vector<1x1x128xf32>
    %34 = vector.broadcast %33 : vector<1x1x128xf32> to vector<8x8x128xf32>
    %35 = arith.mulf %30, %34 : vector<8x8x128xf32>
    %36 = arith.addf %27, %35 : vector<8x8x128xf32>
    %37 = vector.extract_strided_slice %1 {offsets = [3, 0, 0, 0], sizes = [1, 8, 8, 128], strides = [1, 1, 1, 1]} : vector<4x9x9x128xbf16> to vector<1x8x8x128xbf16>
    %38 = vector.shape_cast %37 : vector<1x8x8x128xbf16> to vector<8x8x128xbf16>
    %39 = arith.extf %38 : vector<8x8x128xbf16> to vector<8x8x128xf32>
    %c4 = arith.constant 4 : index
    %c0_13 = arith.constant 0 : index
    %c0_14 = arith.constant 0 : index
    %40 = vector.load %arg2[%c4, %c0_13, %c0_14] : memref<9x1x128xf32, #tpu.memory_space<vmem>>, vector<1x1x128xf32>
    %41 = vector.shape_cast %40 : vector<1x1x128xf32> to vector<1x128xf32>
    %42 = vector.shape_cast %41 : vector<1x128xf32> to vector<1x1x128xf32>
    %43 = vector.broadcast %42 : vector<1x1x128xf32> to vector<8x8x128xf32>
    %44 = arith.mulf %39, %43 : vector<8x8x128xf32>
    %45 = arith.addf %36, %44 : vector<8x8x128xf32>
    %46 = vector.extract_strided_slice %1 {offsets = [2, 0, 1, 0], sizes = [1, 8, 8, 128], strides = [1, 1, 1, 1]} : vector<4x9x9x128xbf16> to vector<1x8x8x128xbf16>
    %47 = vector.shape_cast %46 : vector<1x8x8x128xbf16> to vector<8x8x128xbf16>
    %48 = arith.extf %47 : vector<8x8x128xbf16> to vector<8x8x128xf32>
    %c5 = arith.constant 5 : index
    %c0_15 = arith.constant 0 : index
    %c0_16 = arith.constant 0 : index
    %49 = vector.load %arg2[%c5, %c0_15, %c0_16] : memref<9x1x128xf32, #tpu.memory_space<vmem>>, vector<1x1x128xf32>
    %50 = vector.shape_cast %49 : vector<1x1x128xf32> to vector<1x128xf32>
    %51 = vector.shape_cast %50 : vector<1x128xf32> to vector<1x1x128xf32>
    %52 = vector.broadcast %51 : vector<1x1x128xf32> to vector<8x8x128xf32>
    %53 = arith.mulf %48, %52 : vector<8x8x128xf32>
    %54 = arith.addf %45, %53 : vector<8x8x128xf32>
    %55 = vector.extract_strided_slice %1 {offsets = [0, 1, 0, 0], sizes = [1, 8, 8, 128], strides = [1, 1, 1, 1]} : vector<4x9x9x128xbf16> to vector<1x8x8x128xbf16>
    %56 = vector.shape_cast %55 : vector<1x8x8x128xbf16> to vector<8x8x128xbf16>
    %57 = arith.extf %56 : vector<8x8x128xbf16> to vector<8x8x128xf32>
    %c6 = arith.constant 6 : index
    %c0_17 = arith.constant 0 : index
    %c0_18 = arith.constant 0 : index
    %58 = vector.load %arg2[%c6, %c0_17, %c0_18] : memref<9x1x128xf32, #tpu.memory_space<vmem>>, vector<1x1x128xf32>
    %59 = vector.shape_cast %58 : vector<1x1x128xf32> to vector<1x128xf32>
    %60 = vector.shape_cast %59 : vector<1x128xf32> to vector<1x1x128xf32>
    %61 = vector.broadcast %60 : vector<1x1x128xf32> to vector<8x8x128xf32>
    %62 = arith.mulf %57, %61 : vector<8x8x128xf32>
    %63 = arith.addf %54, %62 : vector<8x8x128xf32>
    %64 = vector.extract_strided_slice %1 {offsets = [1, 1, 0, 0], sizes = [1, 8, 8, 128], strides = [1, 1, 1, 1]} : vector<4x9x9x128xbf16> to vector<1x8x8x128xbf16>
    %65 = vector.shape_cast %64 : vector<1x8x8x128xbf16> to vector<8x8x128xbf16>
    %66 = arith.extf %65 : vector<8x8x128xbf16> to vector<8x8x128xf32>
    %c7 = arith.constant 7 : index
    %c0_19 = arith.constant 0 : index
    %c0_20 = arith.constant 0 : index
    %67 = vector.load %arg2[%c7, %c0_19, %c0_20] : memref<9x1x128xf32, #tpu.memory_space<vmem>>, vector<1x1x128xf32>
    %68 = vector.shape_cast %67 : vector<1x1x128xf32> to vector<1x128xf32>
    %69 = vector.shape_cast %68 : vector<1x128xf32> to vector<1x1x128xf32>
    %70 = vector.broadcast %69 : vector<1x1x128xf32> to vector<8x8x128xf32>
    %71 = arith.mulf %66, %70 : vector<8x8x128xf32>
    %72 = arith.addf %63, %71 : vector<8x8x128xf32>
    %73 = vector.extract_strided_slice %1 {offsets = [0, 1, 1, 0], sizes = [1, 8, 8, 128], strides = [1, 1, 1, 1]} : vector<4x9x9x128xbf16> to vector<1x8x8x128xbf16>
    %74 = vector.shape_cast %73 : vector<1x8x8x128xbf16> to vector<8x8x128xbf16>
    %75 = arith.extf %74 : vector<8x8x128xbf16> to vector<8x8x128xf32>
    %c8 = arith.constant 8 : index
    %c0_21 = arith.constant 0 : index
    %c0_22 = arith.constant 0 : index
    %76 = vector.load %arg2[%c8, %c0_21, %c0_22] : memref<9x1x128xf32, #tpu.memory_space<vmem>>, vector<1x1x128xf32>
    %77 = vector.shape_cast %76 : vector<1x1x128xf32> to vector<1x128xf32>
    %78 = vector.shape_cast %77 : vector<1x128xf32> to vector<1x1x128xf32>
    %79 = vector.broadcast %78 : vector<1x1x128xf32> to vector<8x8x128xf32>
    %80 = arith.mulf %75, %79 : vector<8x8x128xf32>
    %81 = arith.addf %72, %80 : vector<8x8x128xf32>
    %c0_23 = arith.constant 0 : index
    %c0_24 = arith.constant 0 : index
    %82 = vector.load %arg3[%c0_23, %c0_24] : memref<1x128xf32, #tpu.memory_space<vmem>>, vector<1x128xf32>
    %83 = vector.shape_cast %82 : vector<1x128xf32> to vector<1x1x128xf32>
    %84 = vector.broadcast %83 : vector<1x1x128xf32> to vector<8x8x128xf32>
    %85 = arith.mulf %81, %84 : vector<8x8x128xf32>
    %c0_25 = arith.constant 0 : index
    %c0_26 = arith.constant 0 : index
    %86 = vector.load %arg4[%c0_25, %c0_26] : memref<1x128xf32, #tpu.memory_space<vmem>>, vector<1x128xf32>
    %87 = vector.shape_cast %86 : vector<1x128xf32> to vector<1x1x128xf32>
    %88 = vector.broadcast %87 : vector<1x1x128xf32> to vector<8x8x128xf32>
    %89 = arith.addf %85, %88 : vector<8x8x128xf32>
    %90 = arith.negf %89 : vector<8x8x128xf32>
    %91 = math.exp %90 : vector<8x8x128xf32>
    %cst = arith.constant 1.000000e+00 : f32
    %92 = vector.broadcast %cst : f32 to vector<8x8x128xf32>
    %93 = arith.addf %92, %91 : vector<8x8x128xf32>
    %94 = arith.divf %92, %93 : vector<8x8x128xf32>
    %95 = arith.mulf %89, %94 : vector<8x8x128xf32>
    %cst_27 = arith.constant dense<0.000000e+00> : vector<8x128xf32>
    %96 = vector.multi_reduction <add>, %95, %cst_27 [0] : vector<8x8x128xf32> to vector<8x128xf32>
    %cst_28 = arith.constant dense<0.000000e+00> : vector<128xf32>
    %97 = vector.multi_reduction <add>, %96, %cst_28 [0] : vector<8x128xf32> to vector<128xf32>
    %98 = vector.shape_cast %97 : vector<128xf32> to vector<1x128xf32>
    %cst_29 = arith.constant 1.562500e-02 : f32
    %99 = vector.broadcast %cst_29 : f32 to vector<1x128xf32>
    %100 = arith.mulf %98, %99 : vector<1x128xf32>
    %101 = arith.truncf %100 : vector<1x128xf32> to vector<1x128xbf16>
    %c0_30 = arith.constant 0 : index
    %c0_31 = arith.constant 0 : index
    %102 = vector.load %arg5[%c0_30, %c0_31] : memref<128x128xbf16, #tpu.memory_space<vmem>>, vector<128x128xbf16>
    %cst_32 = arith.constant dense<0.000000e+00> : vector<1x128xf32>
    %103 = tpu.matmul %101, %102, %cst_32 {dimension_numbers = #tpu.dot_dimension_numbers<[1], [0], [0], [1], [0, 0, 1, 1], [], []>} : vector<1x128xbf16>, vector<128x128xbf16>, vector<1x128xf32> -> vector<1x128xf32>
    %c0_33 = arith.constant 0 : index
    %c0_34 = arith.constant 0 : index
    %104 = vector.load %arg6[%c0_33, %c0_34] : memref<1x128xf32, #tpu.memory_space<vmem>>, vector<1x128xf32>
    %105 = arith.addf %103, %104 : vector<1x128xf32>
    %106 = arith.negf %105 : vector<1x128xf32>
    %107 = math.exp %106 : vector<1x128xf32>
    %cst_35 = arith.constant 1.000000e+00 : f32
    %108 = vector.broadcast %cst_35 : f32 to vector<1x128xf32>
    %109 = arith.addf %108, %107 : vector<1x128xf32>
    %110 = arith.divf %108, %109 : vector<1x128xf32>
    %111 = arith.mulf %105, %110 : vector<1x128xf32>
    %112 = arith.truncf %111 : vector<1x128xf32> to vector<1x128xbf16>
    %c0_36 = arith.constant 0 : index
    %c0_37 = arith.constant 0 : index
    %113 = vector.load %arg7[%c0_36, %c0_37] : memref<128x128xbf16, #tpu.memory_space<vmem>>, vector<128x128xbf16>
    %cst_38 = arith.constant dense<0.000000e+00> : vector<1x128xf32>
    %114 = tpu.matmul %112, %113, %cst_38 {dimension_numbers = #tpu.dot_dimension_numbers<[1], [0], [0], [1], [0, 0, 1, 1], [], []>} : vector<1x128xbf16>, vector<128x128xbf16>, vector<1x128xf32> -> vector<1x128xf32>
    %c0_39 = arith.constant 0 : index
    %c0_40 = arith.constant 0 : index
    %115 = vector.load %arg8[%c0_39, %c0_40] : memref<1x128xf32, #tpu.memory_space<vmem>>, vector<1x128xf32>
    %116 = arith.addf %114, %115 : vector<1x128xf32>
    %117 = arith.negf %116 : vector<1x128xf32>
    %118 = math.exp %117 : vector<1x128xf32>
    %cst_41 = arith.constant 1.000000e+00 : f32
    %119 = vector.broadcast %cst_41 : f32 to vector<1x128xf32>
    %120 = arith.addf %119, %118 : vector<1x128xf32>
    %121 = arith.divf %119, %120 : vector<1x128xf32>
    %122 = vector.shape_cast %95 : vector<8x8x128xf32> to vector<64x128xf32>
    %123 = vector.broadcast %121 : vector<1x128xf32> to vector<64x128xf32>
    %124 = arith.mulf %122, %123 : vector<64x128xf32>
    %125 = arith.truncf %124 : vector<64x128xf32> to vector<64x128xbf16>
    %c0_42 = arith.constant 0 : index
    %c0_43 = arith.constant 0 : index
    %126 = vector.load %arg9[%c0_42, %c0_43] : memref<128x128xbf16, #tpu.memory_space<vmem>>, vector<128x128xbf16>
    %cst_44 = arith.constant dense<0.000000e+00> : vector<64x128xf32>
    %127 = tpu.matmul %125, %126, %cst_44 {dimension_numbers = #tpu.dot_dimension_numbers<[1], [0], [0], [1], [0, 0, 1, 1], [], []>} : vector<64x128xbf16>, vector<128x128xbf16>, vector<64x128xf32> -> vector<64x128xf32>
    %c0_45 = arith.constant 0 : index
    %c0_46 = arith.constant 0 : index
    %128 = vector.load %arg10[%c0_45, %c0_46] : memref<1x128xf32, #tpu.memory_space<vmem>>, vector<1x128xf32>
    %129 = vector.broadcast %128 : vector<1x128xf32> to vector<64x128xf32>
    %130 = arith.mulf %127, %129 : vector<64x128xf32>
    %c0_47 = arith.constant 0 : index
    %c0_48 = arith.constant 0 : index
    %131 = vector.load %arg11[%c0_47, %c0_48] : memref<1x128xf32, #tpu.memory_space<vmem>>, vector<1x128xf32>
    %132 = vector.broadcast %131 : vector<1x128xf32> to vector<64x128xf32>
    %133 = arith.addf %130, %132 : vector<64x128xf32>
    %134 = arith.truncf %133 : vector<64x128xf32> to vector<64x128xbf16>
    %c0_49 = arith.constant 0 : index
    %c0_50 = arith.constant 0 : index
    %c0_51 = arith.constant 0 : index
    %135 = vector.load %arg12[%c0_49, %c0_50, %c0_51] : memref<1x64x128xbf16, #tpu.memory_space<vmem>>, vector<1x64x128xbf16>
    %136 = vector.shape_cast %135 : vector<1x64x128xbf16> to vector<64x128xbf16>
    %137 = vector.shape_cast %134 : vector<64x128xbf16> to vector<1x64x128xbf16>
    tpu.vector_store %arg12[%c0_49, %c0_50, %c0_51], %137 {strides = array<i32>} : memref<1x64x128xbf16, #tpu.memory_space<vmem>>, vector<1x64x128xbf16>,
    return
  }
  func.func @transform_0(%arg0: i32) -> (i32, i32, i32, i32, i32) {
    %c0_i32 = arith.constant 0 : i32
    %c0_i32_0 = arith.constant 0 : i32
    %c0_i32_1 = arith.constant 0 : i32
    %c0_i32_2 = arith.constant 0 : i32
    %c0_i32_3 = arith.constant 0 : i32
    return %arg0, %c0_i32, %c0_i32_0, %c0_i32_1, %c0_i32_2 : i32, i32, i32, i32, i32
  }
  func.func @transform_1(%arg0: i32) -> (i32, i32, i32) {
    %c0_i32 = arith.constant 0 : i32
    %c0_i32_0 = arith.constant 0 : i32
    %c0_i32_1 = arith.constant 0 : i32
    %c0_i32_2 = arith.constant 0 : i32
    return %c0_i32, %c0_i32_0, %c0_i32_1 : i32, i32, i32
  }
  func.func @transform_2(%arg0: i32) -> (i32, i32) {
    %c0_i32 = arith.constant 0 : i32
    %c0_i32_0 = arith.constant 0 : i32
    %c0_i32_1 = arith.constant 0 : i32
    return %c0_i32, %c0_i32_0 : i32, i32
  }
  func.func @transform_3(%arg0: i32) -> (i32, i32) {
    %c0_i32 = arith.constant 0 : i32
    %c0_i32_0 = arith.constant 0 : i32
    %c0_i32_1 = arith.constant 0 : i32
    return %c0_i32, %c0_i32_0 : i32, i32
  }
  func.func @transform_4(%arg0: i32) -> (i32, i32) {
    %c0_i32 = arith.constant 0 : i32
    %c0_i32_0 = arith.constant 0 : i32
    %c0_i32_1 = arith.constant 0 : i32
    return %c0_i32, %c0_i32_0 : i32, i32
  }
  func.func @transform_5(%arg0: i32) -> (i32, i32) {
    %c0_i32 = arith.constant 0 : i32
    %c0_i32_0 = arith.constant 0 : i32
    %c0_i32_1 = arith.constant 0 : i32
    return %c0_i32, %c0_i32_0 : i32, i32
  }
  func.func @transform_6(%arg0: i32) -> (i32, i32) {
    %c0_i32 = arith.constant 0 : i32
    %c0_i32_0 = arith.constant 0 : i32
    %c0_i32_1 = arith.constant 0 : i32
    return %c0_i32, %c0_i32_0 : i32, i32
  }
  func.func @transform_7(%arg0: i32) -> (i32, i32) {
    %c0_i32 = arith.constant 0 : i32
    %c0_i32_0 = arith.constant 0 : i32
    %c0_i32_1 = arith.constant 0 : i32
    return %c0_i32, %c0_i32_0 : i32, i32
  }
  func.func @transform_8(%arg0: i32) -> (i32, i32) {
    %c0_i32 = arith.constant 0 : i32
    %c0_i32_0 = arith.constant 0 : i32
    %c0_i32_1 = arith.constant 0 : i32
    return %c0_i32, %c0_i32_0 : i32, i32
  }
  func.func @transform_9(%arg0: i32) -> (i32, i32) {
    %c0_i32 = arith.constant 0 : i32
    %c0_i32_0 = arith.constant 0 : i32
    %c0_i32_1 = arith.constant 0 : i32
    return %c0_i32, %c0_i32_0 : i32, i32
  }
  func.func @transform_10(%arg0: i32) -> (i32, i32) {
    %c0_i32 = arith.constant 0 : i32
    %c0_i32_0 = arith.constant 0 : i32
    %c0_i32_1 = arith.constant 0 : i32
    return %c0_i32, %c0_i32_0 : i32, i32
  }
  func.func @transform_11(%arg0: i32) -> (i32, i32, i32) {
    %c0_i32 = arith.constant 0 : i32
    %c0_i32_0 = arith.constant 0 : i32
    %c0_i32_1 = arith.constant 0 : i32
    return %arg0, %c0_i32, %c0_i32_0 : i32, i32, i32
  }
}

module attributes {stable_mosaic.version = 11 : i64} {
  func.func @_mbconv_s1_kernel(%arg0: i32, %arg1: memref<1x8x8x128xbf16, #tpu.memory_space<vmem>>, %arg2: memref<128x256xbf16, #tpu.memory_space<vmem>>, %arg3: memref<1x256xf32, #tpu.memory_space<vmem>>, %arg4: memref<1x256xf32, #tpu.memory_space<vmem>>, %arg5: memref<9x1x256xf32, #tpu.memory_space<vmem>>, %arg6: memref<1x256xf32, #tpu.memory_space<vmem>>, %arg7: memref<1x256xf32, #tpu.memory_space<vmem>>, %arg8: memref<256x128xbf16, #tpu.memory_space<vmem>>, %arg9: memref<1x128xf32, #tpu.memory_space<vmem>>, %arg10: memref<128x256xbf16, #tpu.memory_space<vmem>>, %arg11: memref<1x256xf32, #tpu.memory_space<vmem>>, %arg12: memref<256x128xbf16, #tpu.memory_space<vmem>>, %arg13: memref<1x128xf32, #tpu.memory_space<vmem>>, %arg14: memref<1x128xf32, #tpu.memory_space<vmem>>, %arg15: memref<1x64x128xbf16, #tpu.memory_space<vmem>>, %arg16: memref<10x10x256xf32, #tpu.memory_space<vmem>>) attributes {dimension_semantics = [#tpu.dimension_semantics<parallel>], iteration_bounds = array<i64: 2>, scalar_prefetch = 0 : i64, scratch_operands = 1 : i64, tpu.core_type = #tpu.core_type<tc>, window_params = [{transform_indices = @transform_0, window_bounds = array<i64: 1, 8, 8, 128>}, {pipeline_mode = #tpu.pipeline_mode<synchronous>, transform_indices = @transform_1, window_bounds = array<i64: 128, 256>}, {pipeline_mode = #tpu.pipeline_mode<synchronous>, transform_indices = @transform_2, window_bounds = array<i64: 1, 256>}, {pipeline_mode = #tpu.pipeline_mode<synchronous>, transform_indices = @transform_3, window_bounds = array<i64: 1, 256>}, {pipeline_mode = #tpu.pipeline_mode<synchronous>, transform_indices = @transform_4, window_bounds = array<i64: 9, 1, 256>}, {pipeline_mode = #tpu.pipeline_mode<synchronous>, transform_indices = @transform_5, window_bounds = array<i64: 1, 256>}, {pipeline_mode = #tpu.pipeline_mode<synchronous>, transform_indices = @transform_6, window_bounds = array<i64: 1, 256>}, {pipeline_mode = #tpu.pipeline_mode<synchronous>, transform_indices = @transform_7, window_bounds = array<i64: 256, 128>}, {pipeline_mode = #tpu.pipeline_mode<synchronous>, transform_indices = @transform_8, window_bounds = array<i64: 1, 128>}, {pipeline_mode = #tpu.pipeline_mode<synchronous>, transform_indices = @transform_9, window_bounds = array<i64: 128, 256>}, {pipeline_mode = #tpu.pipeline_mode<synchronous>, transform_indices = @transform_10, window_bounds = array<i64: 1, 256>}, {pipeline_mode = #tpu.pipeline_mode<synchronous>, transform_indices = @transform_11, window_bounds = array<i64: 256, 128>}, {pipeline_mode = #tpu.pipeline_mode<synchronous>, transform_indices = @transform_12, window_bounds = array<i64: 1, 128>}, {pipeline_mode = #tpu.pipeline_mode<synchronous>, transform_indices = @transform_13, window_bounds = array<i64: 1, 128>}, {transform_indices = @transform_14, window_bounds = array<i64: 1, 64, 128>}]} {
    %c0 = arith.constant 0 : index
    %c0_0 = arith.constant 0 : index
    %c0_1 = arith.constant 0 : index
    %c0_2 = arith.constant 0 : index
    %0 = vector.load %arg1[%c0, %c0_0, %c0_1, %c0_2] : memref<1x8x8x128xbf16, #tpu.memory_space<vmem>>, vector<1x8x8x128xbf16>
    %1 = vector.shape_cast %0 : vector<1x8x8x128xbf16> to vector<8x8x128xbf16>
    %2 = vector.shape_cast %1 : vector<8x8x128xbf16> to vector<64x128xbf16>
    %c0_3 = arith.constant 0 : index
    %c0_4 = arith.constant 0 : index
    %3 = vector.load %arg2[%c0_3, %c0_4] : memref<128x256xbf16, #tpu.memory_space<vmem>>, vector<128x256xbf16>
    %cst = arith.constant dense<0.000000e+00> : vector<64x256xf32>
    %4 = tpu.matmul %2, %3, %cst {dimension_numbers = #tpu.dot_dimension_numbers<[1], [0], [0], [1], [0, 0, 1, 1], [], []>} : vector<64x128xbf16>, vector<128x256xbf16>, vector<64x256xf32> -> vector<64x256xf32>
    %c0_5 = arith.constant 0 : index
    %c0_6 = arith.constant 0 : index
    %5 = vector.load %arg3[%c0_5, %c0_6] : memref<1x256xf32, #tpu.memory_space<vmem>>, vector<1x256xf32>
    %6 = vector.broadcast %5 : vector<1x256xf32> to vector<64x256xf32>
    %7 = arith.mulf %4, %6 : vector<64x256xf32>
    %c0_7 = arith.constant 0 : index
    %c0_8 = arith.constant 0 : index
    %8 = vector.load %arg4[%c0_7, %c0_8] : memref<1x256xf32, #tpu.memory_space<vmem>>, vector<1x256xf32>
    %9 = vector.broadcast %8 : vector<1x256xf32> to vector<64x256xf32>
    %10 = arith.addf %7, %9 : vector<64x256xf32>
    %11 = arith.negf %10 : vector<64x256xf32>
    %12 = math.exp %11 : vector<64x256xf32>
    %cst_9 = arith.constant 1.000000e+00 : f32
    %13 = vector.broadcast %cst_9 : f32 to vector<64x256xf32>
    %14 = arith.addf %13, %12 : vector<64x256xf32>
    %15 = arith.divf %13, %14 : vector<64x256xf32>
    %16 = arith.mulf %10, %15 : vector<64x256xf32>
    %17 = vector.shape_cast %16 : vector<64x256xf32> to vector<8x8x256xf32>
    %cst_10 = arith.constant 0.000000e+00 : f32
    %18 = vector.broadcast %cst_10 : f32 to vector<10x10x256xf32>
    %c0_11 = arith.constant 0 : index
    %c0_12 = arith.constant 0 : index
    %c0_13 = arith.constant 0 : index
    %19 = vector.load %arg16[%c0_11, %c0_12, %c0_13] : memref<10x10x256xf32, #tpu.memory_space<vmem>>, vector<10x10x256xf32>
    tpu.vector_store %arg16[%c0_11, %c0_12, %c0_13], %18 {strides = array<i32>} : memref<10x10x256xf32, #tpu.memory_space<vmem>>, vector<10x10x256xf32>,
    %c1 = arith.constant 1 : index
    %c1_14 = arith.constant 1 : index
    %c0_15 = arith.constant 0 : index
    %20 = vector.load %arg16[%c1, %c1_14, %c0_15] : memref<10x10x256xf32, #tpu.memory_space<vmem>>, vector<8x8x256xf32>
    tpu.vector_store %arg16[%c1, %c1_14, %c0_15], %17 {strides = array<i32>} : memref<10x10x256xf32, #tpu.memory_space<vmem>>, vector<8x8x256xf32>,
    %c0_16 = arith.constant 0 : index
    %c0_17 = arith.constant 0 : index
    %c0_18 = arith.constant 0 : index
    %21 = vector.load %arg16[%c0_16, %c0_17, %c0_18] : memref<10x10x256xf32, #tpu.memory_space<vmem>>, vector<8x8x256xf32>
    %c0_19 = arith.constant 0 : index
    %c0_20 = arith.constant 0 : index
    %c0_21 = arith.constant 0 : index
    %22 = vector.load %arg5[%c0_19, %c0_20, %c0_21] : memref<9x1x256xf32, #tpu.memory_space<vmem>>, vector<1x1x256xf32>
    %23 = vector.shape_cast %22 : vector<1x1x256xf32> to vector<1x256xf32>
    %24 = vector.shape_cast %23 : vector<1x256xf32> to vector<1x1x256xf32>
    %25 = vector.broadcast %24 : vector<1x1x256xf32> to vector<8x8x256xf32>
    %26 = arith.mulf %21, %25 : vector<8x8x256xf32>
    %c0_22 = arith.constant 0 : index
    %c1_23 = arith.constant 1 : index
    %c0_24 = arith.constant 0 : index
    %27 = vector.load %arg16[%c0_22, %c1_23, %c0_24] : memref<10x10x256xf32, #tpu.memory_space<vmem>>, vector<8x8x256xf32>
    %c1_25 = arith.constant 1 : index
    %c0_26 = arith.constant 0 : index
    %c0_27 = arith.constant 0 : index
    %28 = vector.load %arg5[%c1_25, %c0_26, %c0_27] : memref<9x1x256xf32, #tpu.memory_space<vmem>>, vector<1x1x256xf32>
    %29 = vector.shape_cast %28 : vector<1x1x256xf32> to vector<1x256xf32>
    %30 = vector.shape_cast %29 : vector<1x256xf32> to vector<1x1x256xf32>
    %31 = vector.broadcast %30 : vector<1x1x256xf32> to vector<8x8x256xf32>
    %32 = arith.mulf %27, %31 : vector<8x8x256xf32>
    %33 = arith.addf %26, %32 : vector<8x8x256xf32>
    %c0_28 = arith.constant 0 : index
    %c2 = arith.constant 2 : index
    %c0_29 = arith.constant 0 : index
    %34 = vector.load %arg16[%c0_28, %c2, %c0_29] : memref<10x10x256xf32, #tpu.memory_space<vmem>>, vector<8x8x256xf32>
    %c2_30 = arith.constant 2 : index
    %c0_31 = arith.constant 0 : index
    %c0_32 = arith.constant 0 : index
    %35 = vector.load %arg5[%c2_30, %c0_31, %c0_32] : memref<9x1x256xf32, #tpu.memory_space<vmem>>, vector<1x1x256xf32>
    %36 = vector.shape_cast %35 : vector<1x1x256xf32> to vector<1x256xf32>
    %37 = vector.shape_cast %36 : vector<1x256xf32> to vector<1x1x256xf32>
    %38 = vector.broadcast %37 : vector<1x1x256xf32> to vector<8x8x256xf32>
    %39 = arith.mulf %34, %38 : vector<8x8x256xf32>
    %40 = arith.addf %33, %39 : vector<8x8x256xf32>
    %c1_33 = arith.constant 1 : index
    %c0_34 = arith.constant 0 : index
    %c0_35 = arith.constant 0 : index
    %41 = vector.load %arg16[%c1_33, %c0_34, %c0_35] : memref<10x10x256xf32, #tpu.memory_space<vmem>>, vector<8x8x256xf32>
    %c3 = arith.constant 3 : index
    %c0_36 = arith.constant 0 : index
    %c0_37 = arith.constant 0 : index
    %42 = vector.load %arg5[%c3, %c0_36, %c0_37] : memref<9x1x256xf32, #tpu.memory_space<vmem>>, vector<1x1x256xf32>
    %43 = vector.shape_cast %42 : vector<1x1x256xf32> to vector<1x256xf32>
    %44 = vector.shape_cast %43 : vector<1x256xf32> to vector<1x1x256xf32>
    %45 = vector.broadcast %44 : vector<1x1x256xf32> to vector<8x8x256xf32>
    %46 = arith.mulf %41, %45 : vector<8x8x256xf32>
    %47 = arith.addf %40, %46 : vector<8x8x256xf32>
    %c1_38 = arith.constant 1 : index
    %c1_39 = arith.constant 1 : index
    %c0_40 = arith.constant 0 : index
    %48 = vector.load %arg16[%c1_38, %c1_39, %c0_40] : memref<10x10x256xf32, #tpu.memory_space<vmem>>, vector<8x8x256xf32>
    %c4 = arith.constant 4 : index
    %c0_41 = arith.constant 0 : index
    %c0_42 = arith.constant 0 : index
    %49 = vector.load %arg5[%c4, %c0_41, %c0_42] : memref<9x1x256xf32, #tpu.memory_space<vmem>>, vector<1x1x256xf32>
    %50 = vector.shape_cast %49 : vector<1x1x256xf32> to vector<1x256xf32>
    %51 = vector.shape_cast %50 : vector<1x256xf32> to vector<1x1x256xf32>
    %52 = vector.broadcast %51 : vector<1x1x256xf32> to vector<8x8x256xf32>
    %53 = arith.mulf %48, %52 : vector<8x8x256xf32>
    %54 = arith.addf %47, %53 : vector<8x8x256xf32>
    %c1_43 = arith.constant 1 : index
    %c2_44 = arith.constant 2 : index
    %c0_45 = arith.constant 0 : index
    %55 = vector.load %arg16[%c1_43, %c2_44, %c0_45] : memref<10x10x256xf32, #tpu.memory_space<vmem>>, vector<8x8x256xf32>
    %c5 = arith.constant 5 : index
    %c0_46 = arith.constant 0 : index
    %c0_47 = arith.constant 0 : index
    %56 = vector.load %arg5[%c5, %c0_46, %c0_47] : memref<9x1x256xf32, #tpu.memory_space<vmem>>, vector<1x1x256xf32>
    %57 = vector.shape_cast %56 : vector<1x1x256xf32> to vector<1x256xf32>
    %58 = vector.shape_cast %57 : vector<1x256xf32> to vector<1x1x256xf32>
    %59 = vector.broadcast %58 : vector<1x1x256xf32> to vector<8x8x256xf32>
    %60 = arith.mulf %55, %59 : vector<8x8x256xf32>
    %61 = arith.addf %54, %60 : vector<8x8x256xf32>
    %c2_48 = arith.constant 2 : index
    %c0_49 = arith.constant 0 : index
    %c0_50 = arith.constant 0 : index
    %62 = vector.load %arg16[%c2_48, %c0_49, %c0_50] : memref<10x10x256xf32, #tpu.memory_space<vmem>>, vector<8x8x256xf32>
    %c6 = arith.constant 6 : index
    %c0_51 = arith.constant 0 : index
    %c0_52 = arith.constant 0 : index
    %63 = vector.load %arg5[%c6, %c0_51, %c0_52] : memref<9x1x256xf32, #tpu.memory_space<vmem>>, vector<1x1x256xf32>
    %64 = vector.shape_cast %63 : vector<1x1x256xf32> to vector<1x256xf32>
    %65 = vector.shape_cast %64 : vector<1x256xf32> to vector<1x1x256xf32>
    %66 = vector.broadcast %65 : vector<1x1x256xf32> to vector<8x8x256xf32>
    %67 = arith.mulf %62, %66 : vector<8x8x256xf32>
    %68 = arith.addf %61, %67 : vector<8x8x256xf32>
    %c2_53 = arith.constant 2 : index
    %c1_54 = arith.constant 1 : index
    %c0_55 = arith.constant 0 : index
    %69 = vector.load %arg16[%c2_53, %c1_54, %c0_55] : memref<10x10x256xf32, #tpu.memory_space<vmem>>, vector<8x8x256xf32>
    %c7 = arith.constant 7 : index
    %c0_56 = arith.constant 0 : index
    %c0_57 = arith.constant 0 : index
    %70 = vector.load %arg5[%c7, %c0_56, %c0_57] : memref<9x1x256xf32, #tpu.memory_space<vmem>>, vector<1x1x256xf32>
    %71 = vector.shape_cast %70 : vector<1x1x256xf32> to vector<1x256xf32>
    %72 = vector.shape_cast %71 : vector<1x256xf32> to vector<1x1x256xf32>
    %73 = vector.broadcast %72 : vector<1x1x256xf32> to vector<8x8x256xf32>
    %74 = arith.mulf %69, %73 : vector<8x8x256xf32>
    %75 = arith.addf %68, %74 : vector<8x8x256xf32>
    %c2_58 = arith.constant 2 : index
    %c2_59 = arith.constant 2 : index
    %c0_60 = arith.constant 0 : index
    %76 = vector.load %arg16[%c2_58, %c2_59, %c0_60] : memref<10x10x256xf32, #tpu.memory_space<vmem>>, vector<8x8x256xf32>
    %c8 = arith.constant 8 : index
    %c0_61 = arith.constant 0 : index
    %c0_62 = arith.constant 0 : index
    %77 = vector.load %arg5[%c8, %c0_61, %c0_62] : memref<9x1x256xf32, #tpu.memory_space<vmem>>, vector<1x1x256xf32>
    %78 = vector.shape_cast %77 : vector<1x1x256xf32> to vector<1x256xf32>
    %79 = vector.shape_cast %78 : vector<1x256xf32> to vector<1x1x256xf32>
    %80 = vector.broadcast %79 : vector<1x1x256xf32> to vector<8x8x256xf32>
    %81 = arith.mulf %76, %80 : vector<8x8x256xf32>
    %82 = arith.addf %75, %81 : vector<8x8x256xf32>
    %c0_63 = arith.constant 0 : index
    %c0_64 = arith.constant 0 : index
    %83 = vector.load %arg6[%c0_63, %c0_64] : memref<1x256xf32, #tpu.memory_space<vmem>>, vector<1x256xf32>
    %84 = vector.shape_cast %83 : vector<1x256xf32> to vector<1x1x256xf32>
    %85 = vector.broadcast %84 : vector<1x1x256xf32> to vector<8x8x256xf32>
    %86 = arith.mulf %82, %85 : vector<8x8x256xf32>
    %c0_65 = arith.constant 0 : index
    %c0_66 = arith.constant 0 : index
    %87 = vector.load %arg7[%c0_65, %c0_66] : memref<1x256xf32, #tpu.memory_space<vmem>>, vector<1x256xf32>
    %88 = vector.shape_cast %87 : vector<1x256xf32> to vector<1x1x256xf32>
    %89 = vector.broadcast %88 : vector<1x1x256xf32> to vector<8x8x256xf32>
    %90 = arith.addf %86, %89 : vector<8x8x256xf32>
    %91 = arith.negf %90 : vector<8x8x256xf32>
    %92 = math.exp %91 : vector<8x8x256xf32>
    %cst_67 = arith.constant 1.000000e+00 : f32
    %93 = vector.broadcast %cst_67 : f32 to vector<8x8x256xf32>
    %94 = arith.addf %93, %92 : vector<8x8x256xf32>
    %95 = arith.divf %93, %94 : vector<8x8x256xf32>
    %96 = arith.mulf %90, %95 : vector<8x8x256xf32>
    %97 = vector.shape_cast %1 : vector<8x8x128xbf16> to vector<64x128xbf16>
    %98 = arith.extf %97 : vector<64x128xbf16> to vector<64x128xf32>
    %cst_68 = arith.constant dense<0.000000e+00> : vector<8x256xf32>
    %99 = vector.multi_reduction <add>, %96, %cst_68 [0] : vector<8x8x256xf32> to vector<8x256xf32>
    %cst_69 = arith.constant dense<0.000000e+00> : vector<256xf32>
    %100 = vector.multi_reduction <add>, %99, %cst_69 [0] : vector<8x256xf32> to vector<256xf32>
    %101 = vector.shape_cast %100 : vector<256xf32> to vector<1x256xf32>
    %cst_70 = arith.constant 1.562500e-02 : f32
    %102 = vector.broadcast %cst_70 : f32 to vector<1x256xf32>
    %103 = arith.mulf %101, %102 : vector<1x256xf32>
    %104 = arith.truncf %103 : vector<1x256xf32> to vector<1x256xbf16>
    %c0_71 = arith.constant 0 : index
    %c0_72 = arith.constant 0 : index
    %105 = vector.load %arg8[%c0_71, %c0_72] : memref<256x128xbf16, #tpu.memory_space<vmem>>, vector<256x128xbf16>
    %cst_73 = arith.constant dense<0.000000e+00> : vector<1x128xf32>
    %106 = tpu.matmul %104, %105, %cst_73 {dimension_numbers = #tpu.dot_dimension_numbers<[1], [0], [0], [1], [0, 0, 1, 1], [], []>} : vector<1x256xbf16>, vector<256x128xbf16>, vector<1x128xf32> -> vector<1x128xf32>
    %c0_74 = arith.constant 0 : index
    %c0_75 = arith.constant 0 : index
    %107 = vector.load %arg9[%c0_74, %c0_75] : memref<1x128xf32, #tpu.memory_space<vmem>>, vector<1x128xf32>
    %108 = arith.addf %106, %107 : vector<1x128xf32>
    %109 = arith.negf %108 : vector<1x128xf32>
    %110 = math.exp %109 : vector<1x128xf32>
    %cst_76 = arith.constant 1.000000e+00 : f32
    %111 = vector.broadcast %cst_76 : f32 to vector<1x128xf32>
    %112 = arith.addf %111, %110 : vector<1x128xf32>
    %113 = arith.divf %111, %112 : vector<1x128xf32>
    %114 = arith.mulf %108, %113 : vector<1x128xf32>
    %115 = arith.truncf %114 : vector<1x128xf32> to vector<1x128xbf16>
    %c0_77 = arith.constant 0 : index
    %c0_78 = arith.constant 0 : index
    %116 = vector.load %arg10[%c0_77, %c0_78] : memref<128x256xbf16, #tpu.memory_space<vmem>>, vector<128x256xbf16>
    %cst_79 = arith.constant dense<0.000000e+00> : vector<1x256xf32>
    %117 = tpu.matmul %115, %116, %cst_79 {dimension_numbers = #tpu.dot_dimension_numbers<[1], [0], [0], [1], [0, 0, 1, 1], [], []>} : vector<1x128xbf16>, vector<128x256xbf16>, vector<1x256xf32> -> vector<1x256xf32>
    %c0_80 = arith.constant 0 : index
    %c0_81 = arith.constant 0 : index
    %118 = vector.load %arg11[%c0_80, %c0_81] : memref<1x256xf32, #tpu.memory_space<vmem>>, vector<1x256xf32>
    %119 = arith.addf %117, %118 : vector<1x256xf32>
    %120 = arith.negf %119 : vector<1x256xf32>
    %121 = math.exp %120 : vector<1x256xf32>
    %cst_82 = arith.constant 1.000000e+00 : f32
    %122 = vector.broadcast %cst_82 : f32 to vector<1x256xf32>
    %123 = arith.addf %122, %121 : vector<1x256xf32>
    %124 = arith.divf %122, %123 : vector<1x256xf32>
    %125 = vector.shape_cast %96 : vector<8x8x256xf32> to vector<64x256xf32>
    %126 = vector.broadcast %124 : vector<1x256xf32> to vector<64x256xf32>
    %127 = arith.mulf %125, %126 : vector<64x256xf32>
    %128 = arith.truncf %127 : vector<64x256xf32> to vector<64x256xbf16>
    %c0_83 = arith.constant 0 : index
    %c0_84 = arith.constant 0 : index
    %129 = vector.load %arg12[%c0_83, %c0_84] : memref<256x128xbf16, #tpu.memory_space<vmem>>, vector<256x128xbf16>
    %cst_85 = arith.constant dense<0.000000e+00> : vector<64x128xf32>
    %130 = tpu.matmul %128, %129, %cst_85 {dimension_numbers = #tpu.dot_dimension_numbers<[1], [0], [0], [1], [0, 0, 1, 1], [], []>} : vector<64x256xbf16>, vector<256x128xbf16>, vector<64x128xf32> -> vector<64x128xf32>
    %c0_86 = arith.constant 0 : index
    %c0_87 = arith.constant 0 : index
    %131 = vector.load %arg13[%c0_86, %c0_87] : memref<1x128xf32, #tpu.memory_space<vmem>>, vector<1x128xf32>
    %132 = vector.broadcast %131 : vector<1x128xf32> to vector<64x128xf32>
    %133 = arith.mulf %130, %132 : vector<64x128xf32>
    %c0_88 = arith.constant 0 : index
    %c0_89 = arith.constant 0 : index
    %134 = vector.load %arg14[%c0_88, %c0_89] : memref<1x128xf32, #tpu.memory_space<vmem>>, vector<1x128xf32>
    %135 = vector.broadcast %134 : vector<1x128xf32> to vector<64x128xf32>
    %136 = arith.addf %133, %135 : vector<64x128xf32>
    %137 = arith.addf %136, %98 : vector<64x128xf32>
    %138 = arith.truncf %137 : vector<64x128xf32> to vector<64x128xbf16>
    %c0_90 = arith.constant 0 : index
    %c0_91 = arith.constant 0 : index
    %c0_92 = arith.constant 0 : index
    %139 = vector.load %arg15[%c0_90, %c0_91, %c0_92] : memref<1x64x128xbf16, #tpu.memory_space<vmem>>, vector<1x64x128xbf16>
    %140 = vector.shape_cast %139 : vector<1x64x128xbf16> to vector<64x128xbf16>
    %141 = vector.shape_cast %138 : vector<64x128xbf16> to vector<1x64x128xbf16>
    tpu.vector_store %arg15[%c0_90, %c0_91, %c0_92], %141 {strides = array<i32>} : memref<1x64x128xbf16, #tpu.memory_space<vmem>>, vector<1x64x128xbf16>,
    return
  }
  func.func @transform_0(%arg0: i32) -> (i32, i32, i32, i32) {
    %c0_i32 = arith.constant 0 : i32
    %c0_i32_0 = arith.constant 0 : i32
    %c0_i32_1 = arith.constant 0 : i32
    %c0_i32_2 = arith.constant 0 : i32
    return %arg0, %c0_i32, %c0_i32_0, %c0_i32_1 : i32, i32, i32, i32
  }
  func.func @transform_1(%arg0: i32) -> (i32, i32) {
    %c0_i32 = arith.constant 0 : i32
    %c0_i32_0 = arith.constant 0 : i32
    %c0_i32_1 = arith.constant 0 : i32
    return %c0_i32, %c0_i32_0 : i32, i32
  }
  func.func @transform_2(%arg0: i32) -> (i32, i32) {
    %c0_i32 = arith.constant 0 : i32
    %c0_i32_0 = arith.constant 0 : i32
    %c0_i32_1 = arith.constant 0 : i32
    return %c0_i32, %c0_i32_0 : i32, i32
  }
  func.func @transform_3(%arg0: i32) -> (i32, i32) {
    %c0_i32 = arith.constant 0 : i32
    %c0_i32_0 = arith.constant 0 : i32
    %c0_i32_1 = arith.constant 0 : i32
    return %c0_i32, %c0_i32_0 : i32, i32
  }
  func.func @transform_4(%arg0: i32) -> (i32, i32, i32) {
    %c0_i32 = arith.constant 0 : i32
    %c0_i32_0 = arith.constant 0 : i32
    %c0_i32_1 = arith.constant 0 : i32
    %c0_i32_2 = arith.constant 0 : i32
    return %c0_i32, %c0_i32_0, %c0_i32_1 : i32, i32, i32
  }
  func.func @transform_5(%arg0: i32) -> (i32, i32) {
    %c0_i32 = arith.constant 0 : i32
    %c0_i32_0 = arith.constant 0 : i32
    %c0_i32_1 = arith.constant 0 : i32
    return %c0_i32, %c0_i32_0 : i32, i32
  }
  func.func @transform_6(%arg0: i32) -> (i32, i32) {
    %c0_i32 = arith.constant 0 : i32
    %c0_i32_0 = arith.constant 0 : i32
    %c0_i32_1 = arith.constant 0 : i32
    return %c0_i32, %c0_i32_0 : i32, i32
  }
  func.func @transform_7(%arg0: i32) -> (i32, i32) {
    %c0_i32 = arith.constant 0 : i32
    %c0_i32_0 = arith.constant 0 : i32
    %c0_i32_1 = arith.constant 0 : i32
    return %c0_i32, %c0_i32_0 : i32, i32
  }
  func.func @transform_8(%arg0: i32) -> (i32, i32) {
    %c0_i32 = arith.constant 0 : i32
    %c0_i32_0 = arith.constant 0 : i32
    %c0_i32_1 = arith.constant 0 : i32
    return %c0_i32, %c0_i32_0 : i32, i32
  }
  func.func @transform_9(%arg0: i32) -> (i32, i32) {
    %c0_i32 = arith.constant 0 : i32
    %c0_i32_0 = arith.constant 0 : i32
    %c0_i32_1 = arith.constant 0 : i32
    return %c0_i32, %c0_i32_0 : i32, i32
  }
  func.func @transform_10(%arg0: i32) -> (i32, i32) {
    %c0_i32 = arith.constant 0 : i32
    %c0_i32_0 = arith.constant 0 : i32
    %c0_i32_1 = arith.constant 0 : i32
    return %c0_i32, %c0_i32_0 : i32, i32
  }
  func.func @transform_11(%arg0: i32) -> (i32, i32) {
    %c0_i32 = arith.constant 0 : i32
    %c0_i32_0 = arith.constant 0 : i32
    %c0_i32_1 = arith.constant 0 : i32
    return %c0_i32, %c0_i32_0 : i32, i32
  }
  func.func @transform_12(%arg0: i32) -> (i32, i32) {
    %c0_i32 = arith.constant 0 : i32
    %c0_i32_0 = arith.constant 0 : i32
    %c0_i32_1 = arith.constant 0 : i32
    return %c0_i32, %c0_i32_0 : i32, i32
  }
  func.func @transform_13(%arg0: i32) -> (i32, i32) {
    %c0_i32 = arith.constant 0 : i32
    %c0_i32_0 = arith.constant 0 : i32
    %c0_i32_1 = arith.constant 0 : i32
    return %c0_i32, %c0_i32_0 : i32, i32
  }
  func.func @transform_14(%arg0: i32) -> (i32, i32, i32) {
    %c0_i32 = arith.constant 0 : i32
    %c0_i32_0 = arith.constant 0 : i32
    %c0_i32_1 = arith.constant 0 : i32
    return %arg0, %c0_i32, %c0_i32_0 : i32, i32, i32
  }
}

module attributes {stable_mosaic.version = 11 : i64} {
  func.func @_head_fc_kernel(%arg0: i32, %arg1: memref<2x64x128xbf16, #tpu.memory_space<vmem>>, %arg2: memref<128x128xbf16, #tpu.memory_space<vmem>>, %arg3: memref<1x128xf32, #tpu.memory_space<vmem>>, %arg4: memref<1x128xf32, #tpu.memory_space<vmem>>, %arg5: memref<128x256xbf16, #tpu.memory_space<vmem>>, %arg6: memref<1x256xf32, #tpu.memory_space<vmem>>, %arg7: memref<2x256xf32, #tpu.memory_space<vmem>>) attributes {dimension_semantics = [#tpu.dimension_semantics<parallel>], iteration_bounds = array<i64: 1>, scalar_prefetch = 0 : i64, scratch_operands = 0 : i64, tpu.core_type = #tpu.core_type<tc>, window_params = [{transform_indices = @transform_0, window_bounds = array<i64: 2, 64, 128>}, {pipeline_mode = #tpu.pipeline_mode<synchronous>, transform_indices = @transform_1, window_bounds = array<i64: 128, 128>}, {pipeline_mode = #tpu.pipeline_mode<synchronous>, transform_indices = @transform_2, window_bounds = array<i64: 1, 128>}, {pipeline_mode = #tpu.pipeline_mode<synchronous>, transform_indices = @transform_3, window_bounds = array<i64: 1, 128>}, {pipeline_mode = #tpu.pipeline_mode<synchronous>, transform_indices = @transform_4, window_bounds = array<i64: 128, 256>}, {pipeline_mode = #tpu.pipeline_mode<synchronous>, transform_indices = @transform_5, window_bounds = array<i64: 1, 256>}, {transform_indices = @transform_6, window_bounds = array<i64: 2, 256>}]} {
    %c0 = arith.constant 0 : index
    %c0_0 = arith.constant 0 : index
    %c0_1 = arith.constant 0 : index
    %0 = vector.load %arg1[%c0, %c0_0, %c0_1] : memref<2x64x128xbf16, #tpu.memory_space<vmem>>, vector<2x64x128xbf16>
    %1 = arith.extf %0 : vector<2x64x128xbf16> to vector<2x64x128xf32>
    %cst = arith.constant dense<0.000000e+00> : vector<2x128xf32>
    %2 = vector.multi_reduction <add>, %1, %cst [1] : vector<2x64x128xf32> to vector<2x128xf32>
    %cst_2 = arith.constant 1.562500e-02 : f32
    %3 = vector.broadcast %cst_2 : f32 to vector<2x128xf32>
    %4 = arith.mulf %2, %3 : vector<2x128xf32>
    %5 = arith.truncf %4 : vector<2x128xf32> to vector<2x128xbf16>
    %c0_3 = arith.constant 0 : index
    %c0_4 = arith.constant 0 : index
    %6 = vector.load %arg2[%c0_3, %c0_4] : memref<128x128xbf16, #tpu.memory_space<vmem>>, vector<128x128xbf16>
    %cst_5 = arith.constant dense<0.000000e+00> : vector<2x128xf32>
    %7 = tpu.matmul %5, %6, %cst_5 {dimension_numbers = #tpu.dot_dimension_numbers<[1], [0], [0], [1], [0, 0, 1, 1], [], []>} : vector<2x128xbf16>, vector<128x128xbf16>, vector<2x128xf32> -> vector<2x128xf32>
    %c0_6 = arith.constant 0 : index
    %c0_7 = arith.constant 0 : index
    %8 = vector.load %arg3[%c0_6, %c0_7] : memref<1x128xf32, #tpu.memory_space<vmem>>, vector<1x128xf32>
    %9 = vector.broadcast %8 : vector<1x128xf32> to vector<2x128xf32>
    %10 = arith.mulf %7, %9 : vector<2x128xf32>
    %c0_8 = arith.constant 0 : index
    %c0_9 = arith.constant 0 : index
    %11 = vector.load %arg4[%c0_8, %c0_9] : memref<1x128xf32, #tpu.memory_space<vmem>>, vector<1x128xf32>
    %12 = vector.broadcast %11 : vector<1x128xf32> to vector<2x128xf32>
    %13 = arith.addf %10, %12 : vector<2x128xf32>
    %14 = arith.truncf %13 : vector<2x128xf32> to vector<2x128xbf16>
    %c0_10 = arith.constant 0 : index
    %c0_11 = arith.constant 0 : index
    %15 = vector.load %arg5[%c0_10, %c0_11] : memref<128x256xbf16, #tpu.memory_space<vmem>>, vector<128x256xbf16>
    %cst_12 = arith.constant dense<0.000000e+00> : vector<2x256xf32>
    %16 = tpu.matmul %14, %15, %cst_12 {dimension_numbers = #tpu.dot_dimension_numbers<[1], [0], [0], [1], [0, 0, 1, 1], [], []>} : vector<2x128xbf16>, vector<128x256xbf16>, vector<2x256xf32> -> vector<2x256xf32>
    %c0_13 = arith.constant 0 : index
    %c0_14 = arith.constant 0 : index
    %17 = vector.load %arg6[%c0_13, %c0_14] : memref<1x256xf32, #tpu.memory_space<vmem>>, vector<1x256xf32>
    %18 = vector.broadcast %17 : vector<1x256xf32> to vector<2x256xf32>
    %19 = arith.addf %16, %18 : vector<2x256xf32>
    %c0_15 = arith.constant 0 : index
    %c0_16 = arith.constant 0 : index
    %20 = vector.load %arg7[%c0_15, %c0_16] : memref<2x256xf32, #tpu.memory_space<vmem>>, vector<2x256xf32>
    tpu.vector_store %arg7[%c0_15, %c0_16], %19 {strides = array<i32>} : memref<2x256xf32, #tpu.memory_space<vmem>>, vector<2x256xf32>,
    return
  }
  func.func @transform_0(%arg0: i32) -> (i32, i32, i32) {
    %c0_i32 = arith.constant 0 : i32
    %c0_i32_0 = arith.constant 0 : i32
    %c0_i32_1 = arith.constant 0 : i32
    return %arg0, %c0_i32, %c0_i32_0 : i32, i32, i32
  }
  func.func @transform_1(%arg0: i32) -> (i32, i32) {
    %c0_i32 = arith.constant 0 : i32
    %c0_i32_0 = arith.constant 0 : i32
    %c0_i32_1 = arith.constant 0 : i32
    return %c0_i32, %c0_i32_0 : i32, i32
  }
  func.func @transform_2(%arg0: i32) -> (i32, i32) {
    %c0_i32 = arith.constant 0 : i32
    %c0_i32_0 = arith.constant 0 : i32
    %c0_i32_1 = arith.constant 0 : i32
    return %c0_i32, %c0_i32_0 : i32, i32
  }
  func.func @transform_3(%arg0: i32) -> (i32, i32) {
    %c0_i32 = arith.constant 0 : i32
    %c0_i32_0 = arith.constant 0 : i32
    %c0_i32_1 = arith.constant 0 : i32
    return %c0_i32, %c0_i32_0 : i32, i32
  }
  func.func @transform_4(%arg0: i32) -> (i32, i32) {
    %c0_i32 = arith.constant 0 : i32
    %c0_i32_0 = arith.constant 0 : i32
    %c0_i32_1 = arith.constant 0 : i32
    return %c0_i32, %c0_i32_0 : i32, i32
  }
  func.func @transform_5(%arg0: i32) -> (i32, i32) {
    %c0_i32 = arith.constant 0 : i32
    %c0_i32_0 = arith.constant 0 : i32
    %c0_i32_1 = arith.constant 0 : i32
    return %c0_i32, %c0_i32_0 : i32, i32
  }
  func.func @transform_6(%arg0: i32) -> (i32, i32) {
    %c0_i32 = arith.constant 0 : i32
    %c0_i32_0 = arith.constant 0 : i32
    return %arg0, %c0_i32 : i32, i32
  }
}

</mosaic_0001>

<llo_original>
// kernel: bengali_forward.8
$region0: #{bengali_forward.8}
  #allocation0 [shape = 'u32[]', space=smem, size = 0x4, offset = 0x4, fixed_abs, tag = 'smem constant byte address 0x4 - core index']
  #allocation1 [shape = 'u32[144,128]{1,0:T(1,128)}', space=vmem, size = 0x12000, scoped, tag = 'internal scratch']
  %s0 = inlined_call_operand.vmem [shape: bf16[512,128], index: 0, kind: input, shape index: {}]
  %s1 = inlined_call_operand.vmem [shape: bf16[128,128], index: 1, kind: input, shape index: {}]
  %s2 = inlined_call_operand.vmem [shape: f32[1,128], index: 2, kind: input, shape index: {}]
  %s3 = inlined_call_operand.vmem [shape: f32[1,128], index: 3, kind: input, shape index: {}]
  %s4 = inlined_call_operand.vmem [shape: bf16[512,128], index: 4, kind: output, shape index: {}]
  %s5 = sld [smem:[#allocation0]]
  $region26: #{bengali_forward.8} parent=0
    _
  %s7 = ssub.s32 1, %s5
  %s8 = scalar_select 0, %s7, %s5
  // Predicated region
  $region2: #{bengali_forward.8} parent=0 // pred_check
    _
  $region3: #{bengali_forward.8} parent=0 // pred_check_branch
    %10 = sbr.rel (0) target = $region5
  $region4: #{bengali_forward.8} parent=0 // pred_region
    _
  $region5: #{bengali_forward.8} parent=0 // pred_fallthru
    _
  // Predicated region
  $region6: #{bengali_forward.8} parent=0 // pred_check
    _
  $region7: #{bengali_forward.8} parent=0 // pred_check_branch
    %12 = sbr.rel (0) target = $region9
  $region8: #{bengali_forward.8} parent=0 // pred_region
    _
  $region9: #{bengali_forward.8} parent=0 // pred_fallthru
    _
  // Predicated region
  $region10: #{bengali_forward.8} parent=0 // pred_check
    _
  $region11: #{bengali_forward.8} parent=0 // pred_check_branch
    %14 = sbr.rel (0) target = $region13
  $region12: #{bengali_forward.8} parent=0 // pred_region
    _
  $region13: #{bengali_forward.8} parent=0 // pred_fallthru
    _
  // Predicated region
  $region14: #{bengali_forward.8} parent=0 // pred_check
    _
  $region15: #{bengali_forward.8} parent=0 // pred_check_branch
    %16 = sbr.rel (0) target = $region17
  $region16: #{bengali_forward.8} parent=0 // pred_region
    _
  $region17: #{bengali_forward.8} parent=0 // pred_fallthru
    _
  %v18 = vld [vmem:[%s0] sm:$0xf]
  %v19 = vld [vmem:[%s0 + $0x4] sm:$0xf]
  %v20 = vld [vmem:[%s0 + $0x8] sm:$0xf]
  %v21 = vld [vmem:[%s0 + $0xc] sm:$0xf]
  %v22 = vld [vmem:[%s0 + $0x10] sm:$0xf]
  %v23 = vld [vmem:[%s0 + $0x14] sm:$0xf]
  %v24 = vld [vmem:[%s0 + $0x18] sm:$0xf]
  %v25 = vld [vmem:[%s0 + $0x1c] sm:$0xf]
  %v26 = vld [vmem:[%s0 + $0x20] sm:$0xf]
  %v27 = vld [vmem:[%s0 + $0x24] sm:$0xf]
  %v28 = vld [vmem:[%s0 + $0x28] sm:$0xf]
  %v29 = vld [vmem:[%s0 + $0x2c] sm:$0xf]
  %v30 = vld [vmem:[%s0 + $0x30] sm:$0xf]
  %v31 = vld [vmem:[%s0 + $0x34] sm:$0xf]
  %v32 = vld [vmem:[%s0 + $0x38] sm:$0xf]
  %v33 = vld [vmem:[%s0 + $0x3c] sm:$0xf]
  %v34 = vld [vmem:[%s0 + $0x40] sm:$0xf]
  %v35 = vld [vmem:[%s0 + $0x44] sm:$0xf]
  %v36 = vld [vmem:[%s0 + $0x48] sm:$0xf]
  %v37 = vld [vmem:[%s0 + $0x4c] sm:$0xf]
  %v38 = vld [vmem:[%s0 + $0x50] sm:$0xf]
  %v39 = vld [vmem:[%s0 + $0x54] sm:$0xf]
  %v40 = vld [vmem:[%s0 + $0x58] sm:$0xf]
  %v41 = vld [vmem:[%s0 + $0x5c] sm:$0xf]
  %v42 = vld [vmem:[%s0 + $0x60] sm:$0xf]
  %v43 = vld [vmem:[%s0 + $0x64] sm:$0xf]
  %v44 = vld [vmem:[%s0 + $0x68] sm:$0xf]
  %v45 = vld [vmem:[%s0 + $0x6c] sm:$0xf]
  %v46 = vld [vmem:[%s0 + $0x70] sm:$0xf]
  %v47 = vld [vmem:[%s0 + $0x74] sm:$0xf]
  %v48 = vld [vmem:[%s0 + $0x78] sm:$0xf]
  %v49 = vld [vmem:[%s0 + $0x7c] sm:$0xf]
  %v50 = vld [vmem:[%s0 + $0x80] sm:$0xf]
  %v51 = vld [vmem:[%s0 + $0x84] sm:$0xf]
  %v52 = vld [vmem:[%s0 + $0x88] sm:$0xf]
  %v53 = vld [vmem:[%s0 + $0x8c] sm:$0xf]
  %v54 = vld [vmem:[%s0 + $0x90] sm:$0xf]
  %v55 = vld [vmem:[%s0 + $0x94] sm:$0xf]
  %v56 = vld [vmem:[%s0 + $0x98] sm:$0xf]
  %v57 = vld [vmem:[%s0 + $0x9c] sm:$0xf]
  %v58 = vld [vmem:[%s0 + $0xa0] sm:$0xf]
  %v59 = vld [vmem:[%s0 + $0xa4] sm:$0xf]
  %v60 = vld [vmem:[%s0 + $0xa8] sm:$0xf]
  %v61 = vld [vmem:[%s0 + $0xac] sm:$0xf]
  %v62 = vld [vmem:[%s0 + $0xb0] sm:$0xf]
  %v63 = vld [vmem:[%s0 + $0xb4] sm:$0xf]
  %v64 = vld [vmem:[%s0 + $0xb8] sm:$0xf]
  %v65 = vld [vmem:[%s0 + $0xbc] sm:$0xf]
  %v66 = vld [vmem:[%s0 + $0xc0] sm:$0xf]
  %v67 = vld [vmem:[%s0 + $0xc4] sm:$0xf]
  %v68 = vld [vmem:[%s0 + $0xc8] sm:$0xf]
  %v69 = vld [vmem:[%s0 + $0xcc] sm:$0xf]
  %v70 = vld [vmem:[%s0 + $0xd0] sm:$0xf]
  %v71 = vld [vmem:[%s0 + $0xd4] sm:$0xf]
  %v72 = vld [vmem:[%s0 + $0xd8] sm:$0xf]
  %v73 = vld [vmem:[%s0 + $0xdc] sm:$0xf]
  %v74 = vld [vmem:[%s0 + $0xe0] sm:$0xf]
  %v75 = vld [vmem:[%s0 + $0xe4] sm:$0xf]
  %v76 = vld [vmem:[%s0 + $0xe8] sm:$0xf]
  %v77 = vld [vmem:[%s0 + $0xec] sm:$0xf]
  %v78 = vld [vmem:[%s0 + $0xf0] sm:$0xf]
  %v79 = vld [vmem:[%s0 + $0xf4] sm:$0xf]
  %v80 = vld [vmem:[%s0 + $0xf8] sm:$0xf]
  %v81 = vld [vmem:[%s0 + $0xfc] sm:$0xf]
  %v82 = vld [vmem:[%s1] sm:$0xf]
  %v83 = vld [vmem:[%s1 + $0x4] sm:$0xf]
  %v84 = vld [vmem:[%s1 + $0x8] sm:$0xf]
  %v85 = vld [vmem:[%s1 + $0xc] sm:$0xf]
  %v86 = vld [vmem:[%s1 + $0x10] sm:$0xf]
  %v87 = vld [vmem:[%s1 + $0x14] sm:$0xf]
  %v88 = vld [vmem:[%s1 + $0x18] sm:$0xf]
  %v89 = vld [vmem:[%s1 + $0x1c] sm:$0xf]
  %v90 = vld [vmem:[%s1 + $0x20] sm:$0xf]
  %v91 = vld [vmem:[%s1 + $0x24] sm:$0xf]
  %v92 = vld [vmem:[%s1 + $0x28] sm:$0xf]
  %v93 = vld [vmem:[%s1 + $0x2c] sm:$0xf]
  %v94 = vld [vmem:[%s1 + $0x30] sm:$0xf]
  %v95 = vld [vmem:[%s1 + $0x34] sm:$0xf]
  %v96 = vld [vmem:[%s1 + $0x38] sm:$0xf]
  %v97 = vld [vmem:[%s1 + $0x3c] sm:$0xf]
  %v162 = vunpack.c.l.b16 %v18
  %v163 = vunpack.c.l.b16 %v19
  %v164 = vunpack.c.l.b16 %v20
  %v165 = vunpack.c.l.b16 %v21
  %v166 = vunpack.c.l.b16 %v22
  %v167 = vunpack.c.l.b16 %v23
  %v168 = vunpack.c.l.b16 %v24
  %v169 = vunpack.c.l.b16 %v25
  %v170 = vunpack.c.l.b16 %v26
  %v171 = vunpack.c.l.b16 %v27
  %v172 = vunpack.c.l.b16 %v28
  %v173 = vunpack.c.l.b16 %v29
  %v174 = vunpack.c.l.b16 %v30
  %v175 = vunpack.c.l.b16 %v31
  %v176 = vunpack.c.l.b16 %v32
  %v177 = vunpack.c.l.b16 %v33
  %v178 = vunpack.c.l.b16 %v34
  %v179 = vunpack.c.l.b16 %v35
  %v180 = vunpack.c.l.b16 %v36
  %v181 = vunpack.c.l.b16 %v37
  %v182 = vunpack.c.l.b16 %v38
  %v183 = vunpack.c.l.b16 %v39
  %v184 = vunpack.c.l.b16 %v40
  %v185 = vunpack.c.l.b16 %v41
  %v186 = vunpack.c.l.b16 %v42
  %v187 = vunpack.c.l.b16 %v43
  %v188 = vunpack.c.l.b16 %v44
  %v189 = vunpack.c.l.b16 %v45
  %v190 = vunpack.c.l.b16 %v46
  %v191 = vunpack.c.l.b16 %v47
  %v192 = vunpack.c.l.b16 %v48
  %v193 = vunpack.c.l.b16 %v49
  %v194 = vunpack.c.l.b16 %v50
  %v195 = vunpack.c.l.b16 %v51
  %v196 = vunpack.c.l.b16 %v52
  %v197 = vunpack.c.l.b16 %v53
  %v198 = vunpack.c.l.b16 %v54
  %v199 = vunpack.c.l.b16 %v55
  %v200 = vunpack.c.l.b16 %v56
  %v201 = vunpack.c.l.b16 %v57
  %v202 = vunpack.c.l.b16 %v58
  %v203 = vunpack.c.l.b16 %v59
  %v204 = vunpack.c.l.b16 %v60
  %v205 = vunpack.c.l.b16 %v61
  %v206 = vunpack.c.l.b16 %v62
  %v207 = vunpack.c.l.b16 %v63
  %v208 = vunpack.c.l.b16 %v64
  %v209 = vunpack.c.l.b16 %v65
  %v210 = vunpack.c.l.b16 %v66
  %v211 = vunpack.c.l.b16 %v67
  %v212 = vunpack.c.l.b16 %v68
  %v213 = vunpack.c.l.b16 %v69
  %v214 = vunpack.c.l.b16 %v70
  %v215 = vunpack.c.l.b16 %v71
  %v216 = vunpack.c.l.b16 %v72
  %v217 = vunpack.c.l.b16 %v73
  %v218 = vunpack.c.l.b16 %v74
  %v219 = vunpack.c.l.b16 %v75
  %v220 = vunpack.c.l.b16 %v76
  %v221 = vunpack.c.l.b16 %v77
  %v222 = vunpack.c.l.b16 %v78
  %v223 = vunpack.c.l.b16 %v79
  %v224 = vunpack.c.l.b16 %v80
  %v225 = vunpack.c.l.b16 %v81
  %v226 = vpack.c.b16 %v163, %v162
  %v227 = vpack.c.b16 %v165, %v164
  %v228 = vpack.c.b16 %v167, %v166
  %v229 = vpack.c.b16 %v169, %v168
  %v230 = vpack.c.b16 %v171, %v170
  %v231 = vpack.c.b16 %v173, %v172
  %v232 = vpack.c.b16 %v175, %v174
  %v233 = vpack.c.b16 %v177, %v176
  %v234 = vpack.c.b16 %v179, %v178
  %v235 = vpack.c.b16 %v181, %v180
  %v236 = vpack.c.b16 %v183, %v182
  %v237 = vpack.c.b16 %v185, %v184
  %v238 = vpack.c.b16 %v187, %v186
  %v239 = vpack.c.b16 %v189, %v188
  %v240 = vpack.c.b16 %v191, %v190
  %v241 = vpack.c.b16 %v193, %v192
  %v242 = vpack.c.b16 %v195, %v194
  %v243 = vpack.c.b16 %v197, %v196
  %v244 = vpack.c.b16 %v199, %v198
  %v245 = vpack.c.b16 %v201, %v200
  %v246 = vpack.c.b16 %v203, %v202
  %v247 = vpack.c.b16 %v205, %v204
  %v248 = vpack.c.b16 %v207, %v206
  %v249 = vpack.c.b16 %v209, %v208
  %v250 = vpack.c.b16 %v211, %v210
  %v251 = vpack.c.b16 %v213, %v212
  %v252 = vpack.c.b16 %v215, %v214
  %v253 = vpack.c.b16 %v217, %v216
  %v254 = vpack.c.b16 %v219, %v218
  %v255 = vpack.c.b16 %v221, %v220
  %v256 = vpack.c.b16 %v223, %v222
  %v257 = vpack.c.b16 %v225, %v224
  %v306 = vunpack.c.l.b16 %v82
  %v307 = vunpack.c.l.b16 %v83
  %v308 = vunpack.c.l.b16 %v84
  %v309 = vunpack.c.l.b16 %v85
  %v310 = vunpack.c.l.b16 %v86
  %v311 = vunpack.c.l.b16 %v87
  %v312 = vunpack.c.l.b16 %v88
  %v313 = vunpack.c.l.b16 %v89
  %v314 = vunpack.c.l.b16 %v90
  %v315 = vunpack.c.l.b16 %v91
  %v316 = vunpack.c.l.b16 %v92
  %v317 = vunpack.c.l.b16 %v93
  %v318 = vunpack.c.l.b16 %v94
  %v319 = vunpack.c.l.b16 %v95
  %v320 = vunpack.c.l.b16 %v96
  %v321 = vunpack.c.l.b16 %v97
  %v322 = vpack.c.b16 %v307, %v306
  %v323 = vpack.c.b16 %v309, %v308
  %v324 = vpack.c.b16 %v311, %v310
  %v325 = vpack.c.b16 %v313, %v312
  %v326 = vpack.c.b16 %v315, %v314
  %v327 = vpack.c.b16 %v317, %v316
  %v328 = vpack.c.b16 %v319, %v318
  %v329 = vpack.c.b16 %v321, %v320
  %338 = vmatprep.subr.bf16.mxu0 0
  %339 = vmatpush1.bf16.msra.mxu0 %v322
  %340 = vmatprep.subr.bf16.mxu0 0
  %341 = vmatpush1.bf16.msra.mxu0 %v323
  %342 = vmatprep.subr.bf16.mxu0 0
  %343 = vmatpush1.bf16.msra.mxu0 %v324
  %344 = vmatprep.subr.bf16.mxu0 0
  %345 = vmatpush1.bf16.msra.mxu0 %v325
  %346 = vmatprep.subr.bf16.mxu0 0
  %347 = vmatpush1.bf16.msra.mxu0 %v326
  %348 = vmatprep.subr.bf16.mxu0 0
  %349 = vmatpush1.bf16.msra.mxu0 %v327
  %350 = vmatprep.subr.bf16.mxu0 0
  %351 = vmatpush1.bf16.msra.mxu0 %v328
  %352 = vmatprep.subr.bf16.mxu0 0
  %353 = vmatpush1.bf16.msra.mxu0 %v329
  %354 = vmatprep.subr.bf16.mxu0 0
  %355 = vmatpush1.bf16.msra.mxu0 0
  %356 = vmatprep.subr.bf16.mxu0 0
  %357 = vmatpush1.bf16.msra.mxu0 0
  %358 = vmatprep.subr.bf16.mxu0 0
  %359 = vmatpush1.bf16.msra.mxu0 0
  %360 = vmatprep.subr.bf16.mxu0 0
  %361 = vmatpush1.bf16.msra.mxu0 0
  %362 = vmatprep.subr.bf16.mxu0 0
  %363 = vmatpush1.bf16.msra.mxu0 0
  %364 = vmatprep.subr.bf16.mxu0 0
  %365 = vmatpush1.bf16.msra.mxu0 0
  %366 = vmatprep.subr.bf16.mxu0 0
  %367 = vmatpush1.bf16.msra.mxu0 0
  %368 = vmatprep.subr.bf16.mxu0 0
  %369 = vmatpush1.bf16.msra.mxu0 0
  %370 = vmatprep.mubr.bf16.mxu0 0
  %371 = vmatmul.mubr.bf16.gmra.mrb[0].mxu0 %v226
  %v372 = vpop.f32.mrb[0].mxu0
  %v373 = vadd.f32 0.0, %v372
  %v374 = vpop.f32.mrb[0].mxu0
  %v375 = vpop.f32.mrb[0].mxu0
  %v376 = vadd.f32 0.0, %v375
  %v377 = vpop.f32.mrb[0].mxu0
  %378 = vmatprep.mubr.bf16.mxu0 0
  %379 = vmatmul.mubr.bf16.gmra.mrb[0].mxu0 %v227
  %v380 = vpop.f32.mrb[0].mxu0
  %v381 = vadd.f32 0.0, %v380
  %v382 = vpop.f32.mrb[0].mxu0
  %v383 = vpop.f32.mrb[0].mxu0
  %v384 = vadd.f32 0.0, %v383
  %v385 = vpop.f32.mrb[0].mxu0
  %386 = vmatprep.mubr.bf16.mxu0 0
  %387 = vmatmul.mubr.bf16.gmra.mrb[0].mxu0 %v228
  %v388 = vpop.f32.mrb[0].mxu0
  %v389 = vadd.f32 0.0, %v388
  %v390 = vpop.f32.mrb[0].mxu0
  %v391 = vpop.f32.mrb[0].mxu0
  %v392 = vadd.f32 0.0, %v391
  %v393 = vpop.f32.mrb[0].mxu0
  %394 = vmatprep.mubr.bf16.mxu0 0
  %395 = vmatmul.mubr.bf16.gmra.mrb[0].mxu0 %v229
  %v396 = vpop.f32.mrb[0].mxu0
  %v397 = vadd.f32 0.0, %v396
  %v398 = vpop.f32.mrb[0].mxu0
  %v399 = vpop.f32.mrb[0].mxu0
  %v400 = vadd.f32 0.0, %v399
  %v401 = vpop.f32.mrb[0].mxu0
  %402 = vmatprep.mubr.bf16.mxu0 0
  %403 = vmatmul.mubr.bf16.gmra.mrb[0].mxu0 %v230
  %v404 = vpop.f32.mrb[0].mxu0
  %v405 = vadd.f32 0.0, %v404
  %v406 = vpop.f32.mrb[0].mxu0
  %v407 = vpop.f32.mrb[0].mxu0
  %v408 = vadd.f32 0.0, %v407
  %v409 = vpop.f32.mrb[0].mxu0
  %410 = vmatprep.mubr.bf16.mxu0 0
  %411 = vmatmul.mubr.bf16.gmra.mrb[0].mxu0 %v231
  %v412 = vpop.f32.mrb[0].mxu0
  %v413 = vadd.f32 0.0, %v412
  %v414 = vpop.f32.mrb[0].mxu0
  %v415 = vpop.f32.mrb[0].mxu0
  %v416 = vadd.f32 0.0, %v415
  %v417 = vpop.f32.mrb[0].mxu0
  %418 = vmatprep.mubr.bf16.mxu0 0
  %419 = vmatmul.mubr.bf16.gmra.mrb[0].mxu0 %v232
  %v420 = vpop.f32.mrb[0].mxu0
  %v421 = vadd.f32 0.0, %v420
  %v422 = vpop.f32.mrb[0].mxu0
  %v423 = vpop.f32.mrb[0].mxu0
  %v424 = vadd.f32 0.0, %v423
  %v425 = vpop.f32.mrb[0].mxu0
  %426 = vmatprep.mubr.bf16.mxu0 0
  %427 = vmatmul.mubr.bf16.gmra.mrb[0].mxu0 %v233
  %v428 = vpop.f32.mrb[0].mxu0
  %v429 = vadd.f32 0.0, %v428
  %v430 = vpop.f32.mrb[0].mxu0
  %v431 = vpop.f32.mrb[0].mxu0
  %v432 = vadd.f32 0.0, %v431
  %v433 = vpop.f32.mrb[0].mxu0
  %434 = vmatprep.mubr.bf16.mxu0 0
  %435 = vmatmul.mubr.bf16.gmra.mrb[0].mxu0 %v234
  %v436 = vpop.f32.mrb[0].mxu0
  %v437 = vadd.f32 0.0, %v436
  %v438 = vpop.f32.mrb[0].mxu0
  %v439 = vpop.f32.mrb[0].mxu0
  %v440 = vadd.f32 0.0, %v439
  %v441 = vpop.f32.mrb[0].mxu0
  %442 = vmatprep.mubr.bf16.mxu0 0
  %443 = vmatmul.mubr.bf16.gmra.mrb[0].mxu0 %v235
  %v444 = vpop.f32.mrb[0].mxu0
  %v445 = vadd.f32 0.0, %v444
  %v446 = vpop.f32.mrb[0].mxu0
  %v447 = vpop.f32.mrb[0].mxu0
  %v448 = vadd.f32 0.0, %v447
  %v449 = vpop.f32.mrb[0].mxu0
  %450 = vmatprep.mubr.bf16.mxu0 0
  %451 = vmatmul.mubr.bf16.gmra.mrb[0].mxu0 %v236
  %v452 = vpop.f32.mrb[0].mxu0
  %v453 = vadd.f32 0.0, %v452
  %v454 = vpop.f32.mrb[0].mxu0
  %v455 = vpop.f32.mrb[0].mxu0
  %v456 = vadd.f32 0.0, %v455
  %v457 = vpop.f32.mrb[0].mxu0
  %458 = vmatprep.mubr.bf16.mxu0 0
  %459 = vmatmul.mubr.bf16.gmra.mrb[0].mxu0 %v237
  %v460 = vpop.f32.mrb[0].mxu0
  %v461 = vadd.f32 0.0, %v460
  %v462 = vpop.f32.mrb[0].mxu0
  %v463 = vpop.f32.mrb[0].mxu0
  %v464 = vadd.f32 0.0, %v463
  %v465 = vpop.f32.mrb[0].mxu0
  %466 = vmatprep.mubr.bf16.mxu0 0
  %467 = vmatmul.mubr.bf16.gmra.mrb[0].mxu0 %v238
  %v468 = vpop.f32.mrb[0].mxu0
  %v469 = vadd.f32 0.0, %v468
  %v470 = vpop.f32.mrb[0].mxu0
  %v471 = vpop.f32.mrb[0].mxu0
  %v472 = vadd.f32 0.0, %v471
  %v473 = vpop.f32.mrb[0].mxu0
  %474 = vmatprep.mubr.bf16.mxu0 0
  %475 = vmatmul.mubr.bf16.gmra.mrb[0].mxu0 %v239
  %v476 = vpop.f32.mrb[0].mxu0
  %v477 = vadd.f32 0.0, %v476
  %v478 = vpop.f32.mrb[0].mxu0
  %v479 = vpop.f32.mrb[0].mxu0
  %v480 = vadd.f32 0.0, %v479
  %v481 = vpop.f32.mrb[0].mxu0
  %482 = vmatprep.mubr.bf16.mxu0 0
  %483 = vmatmul.mubr.bf16.gmra.mrb[0].mxu0 %v240
  %v484 = vpop.f32.mrb[0].mxu0
  %v485 = vadd.f32 0.0, %v484
  %v486 = vpop.f32.mrb[0].mxu0
  %v487 = vpop.f32.mrb[0].mxu0
  %v488 = vadd.f32 0.0, %v487
  %v489 = vpop.f32.mrb[0].mxu0
  %490 = vmatprep.mubr.bf16.mxu0 0
  %491 = vmatmul.mubr.bf16.gmra.mrb[0].mxu0 %v241
  %v492 = vpop.f32.mrb[0].mxu0
  %v493 = vadd.f32 0.0, %v492
  %v494 = vpop.f32.mrb[0].mxu0
  %v495 = vpop.f32.mrb[0].mxu0
  %v496 = vadd.f32 0.0, %v495
  %v497 = vpop.f32.mrb[0].mxu0
  %498 = vmatprep.mubr.bf16.mxu0 0
  %499 = vmatmul.mubr.bf16.gmra.mrb[0].mxu0 %v242
  %v500 = vpop.f32.mrb[0].mxu0
  %v501 = vadd.f32 0.0, %v500
  %v502 = vpop.f32.mrb[0].mxu0
  %v503 = vpop.f32.mrb[0].mxu0
  %v504 = vadd.f32 0.0, %v503
  %v505 = vpop.f32.mrb[0].mxu0
  %506 = vmatprep.mubr.bf16.mxu0 0
  %507 = vmatmul.mubr.bf16.gmra.mrb[0].mxu0 %v243
  %v508 = vpop.f32.mrb[0].mxu0
  %v509 = vadd.f32 0.0, %v508
  %v510 = vpop.f32.mrb[0].mxu0
  %v511 = vpop.f32.mrb[0].mxu0
  %v512 = vadd.f32 0.0, %v511
  %v513 = vpop.f32.mrb[0].mxu0
  %514 = vmatprep.mubr.bf16.mxu0 0
  %515 = vmatmul.mubr.bf16.gmra.mrb[0].mxu0 %v244
  %v516 = vpop.f32.mrb[0].mxu0
  %v517 = vadd.f32 0.0, %v516
  %v518 = vpop.f32.mrb[0].mxu0
  %v519 = vpop.f32.mrb[0].mxu0
  %v520 = vadd.f32 0.0, %v519
  %v521 = vpop.f32.mrb[0].mxu0
  %522 = vmatprep.mubr.bf16.mxu0 0
  %523 = vmatmul.mubr.bf16.gmra.mrb[0].mxu0 %v245
  %v524 = vpop.f32.mrb[0].mxu0
  %v525 = vadd.f32 0.0, %v524
  %v526 = vpop.f32.mrb[0].mxu0
  %v527 = vpop.f32.mrb[0].mxu0
  %v528 = vadd.f32 0.0, %v527
  %v529 = vpop.f32.mrb[0].mxu0
  %530 = vmatprep.mubr.bf16.mxu0 0
  %531 = vmatmul.mubr.bf16.gmra.mrb[0].mxu0 %v246
  %v532 = vpop.f32.mrb[0].mxu0
  %v533 = vadd.f32 0.0, %v532
  %v534 = vpop.f32.mrb[0].mxu0
  %v535 = vpop.f32.mrb[0].mxu0
  %v536 = vadd.f32 0.0, %v535
  %v537 = vpop.f32.mrb[0].mxu0
  %538 = vmatprep.mubr.bf16.mxu0 0
  %539 = vmatmul.mubr.bf16.gmra.mrb[0].mxu0 %v247
  %v540 = vpop.f32.mrb[0].mxu0
  %v541 = vadd.f32 0.0, %v540
  %v542 = vpop.f32.mrb[0].mxu0
  %v543 = vpop.f32.mrb[0].mxu0
  %v544 = vadd.f32 0.0, %v543
  %v545 = vpop.f32.mrb[0].mxu0
  %546 = vmatprep.mubr.bf16.mxu0 0
  %547 = vmatmul.mubr.bf16.gmra.mrb[0].mxu0 %v248
  %v548 = vpop.f32.mrb[0].mxu0
  %v549 = vadd.f32 0.0, %v548
  %v550 = vpop.f32.mrb[0].mxu0
  %v551 = vpop.f32.mrb[0].mxu0
  %v552 = vadd.f32 0.0, %v551
  %v553 = vpop.f32.mrb[0].mxu0
  %554 = vmatprep.mubr.bf16.mxu0 0
  %555 = vmatmul.mubr.bf16.gmra.mrb[0].mxu0 %v249
  %v556 = vpop.f32.mrb[0].mxu0
  %v557 = vadd.f32 0.0, %v556
  %v558 = vpop.f32.mrb[0].mxu0
  %v559 = vpop.f32.mrb[0].mxu0
  %v560 = vadd.f32 0.0, %v559
  %v561 = vpop.f32.mrb[0].mxu0
  %562 = vmatprep.mubr.bf16.mxu0 0
  %563 = vmatmul.mubr.bf16.gmra.mrb[0].mxu0 %v250
  %v564 = vpop.f32.mrb[0].mxu0
  %v565 = vadd.f32 0.0, %v564
  %v566 = vpop.f32.mrb[0].mxu0
  %v567 = vpop.f32.mrb[0].mxu0
  %v568 = vadd.f32 0.0, %v567
  %v569 = vpop.f32.mrb[0].mxu0
  %570 = vmatprep.mubr.bf16.mxu0 0
  %571 = vmatmul.mubr.bf16.gmra.mrb[0].mxu0 %v251
  %v572 = vpop.f32.mrb[0].mxu0
  %v573 = vadd.f32 0.0, %v572
  %v574 = vpop.f32.mrb[0].mxu0
  %v575 = vpop.f32.mrb[0].mxu0
  %v576 = vadd.f32 0.0, %v575
  %v577 = vpop.f32.mrb[0].mxu0
  %578 = vmatprep.mubr.bf16.mxu0 0
  %579 = vmatmul.mubr.bf16.gmra.mrb[0].mxu0 %v252
  %v580 = vpop.f32.mrb[0].mxu0
  %v581 = vadd.f32 0.0, %v580
  %v582 = vpop.f32.mrb[0].mxu0
  %v583 = vpop.f32.mrb[0].mxu0
  %v584 = vadd.f32 0.0, %v583
  %v585 = vpop.f32.mrb[0].mxu0
  %586 = vmatprep.mubr.bf16.mxu0 0
  %587 = vmatmul.mubr.bf16.gmra.mrb[0].mxu0 %v253
  %v588 = vpop.f32.mrb[0].mxu0
  %v589 = vadd.f32 0.0, %v588
  %v590 = vpop.f32.mrb[0].mxu0
  %v591 = vpop.f32.mrb[0].mxu0
  %v592 = vadd.f32 0.0, %v591
  %v593 = vpop.f32.mrb[0].mxu0
  %594 = vmatprep.mubr.bf16.mxu0 0
  %595 = vmatmul.mubr.bf16.gmra.mrb[0].mxu0 %v254
  %v596 = vpop.f32.mrb[0].mxu0
  %v597 = vadd.f32 0.0, %v596
  %v598 = vpop.f32.mrb[0].mxu0
  %v599 = vpop.f32.mrb[0].mxu0
  %v600 = vadd.f32 0.0, %v599
  %v601 = vpop.f32.mrb[0].mxu0
  %602 = vmatprep.mubr.bf16.mxu0 0
  %603 = vmatmul.mubr.bf16.gmra.mrb[0].mxu0 %v255
  %v604 = vpop.f32.mrb[0].mxu0
  %v605 = vadd.f32 0.0, %v604
  %v606 = vpop.f32.mrb[0].mxu0
  %v607 = vpop.f32.mrb[0].mxu0
  %v608 = vadd.f32 0.0, %v607
  %v609 = vpop.f32.mrb[0].mxu0
  %610 = vmatprep.mubr.bf16.mxu0 0
  %611 = vmatmul.mubr.bf16.gmra.mrb[0].mxu0 %v256
  %v612 = vpop.f32.mrb[0].mxu0
  %v613 = vadd.f32 0.0, %v612
  %v614 = vpop.f32.mrb[0].mxu0
  %v615 = vpop.f32.mrb[0].mxu0
  %v616 = vadd.f32 0.0, %v615
  %v617 = vpop.f32.mrb[0].mxu0
  %618 = vmatprep.mubr.bf16.mxu0 0
  %619 = vmatmul.mubr.bf16.gmra.mrb[0].mxu0 %v257
  %v620 = vpop.f32.mrb[0].mxu0
  %v621 = vadd.f32 0.0, %v620
  %v622 = vpop.f32.mrb[0].mxu0
  %v623 = vpop.f32.mrb[0].mxu0
  %v624 = vadd.f32 0.0, %v623
  %v625 = vpop.f32.mrb[0].mxu0
  %626 = vdwg.mxu0
  %v627 = vld [vmem:[%s2] sm:$0x1]
  %v629 = vlaneseq
  %v630 = vshrl.u32 %v629, 7
  %v631 = vsub.s32 0, %v630
  %v632 = vrot.slane %v627, %v631
  %v634 = vmul.f32 %v373, %v632
  %v635 = vmul.f32 %v376, %v632
  %v636 = vmul.f32 %v381, %v632
  %v637 = vmul.f32 %v384, %v632
  %v638 = vmul.f32 %v389, %v632
  %v639 = vmul.f32 %v392, %v632
  %v640 = vmul.f32 %v397, %v632
  %v641 = vmul.f32 %v400, %v632
  %v642 = vmul.f32 %v405, %v632
  %v643 = vmul.f32 %v408, %v632
  %v644 = vmul.f32 %v413, %v632
  %v645 = vmul.f32 %v416, %v632
  %v646 = vmul.f32 %v421, %v632
  %v647 = vmul.f32 %v424, %v632
  %v648 = vmul.f32 %v429, %v632
  %v649 = vmul.f32 %v432, %v632
  %v650 = vmul.f32 %v437, %v632
  %v651 = vmul.f32 %v440, %v632
  %v652 = vmul.f32 %v445, %v632
  %v653 = vmul.f32 %v448, %v632
  %v654 = vmul.f32 %v453, %v632
  %v655 = vmul.f32 %v456, %v632
  %v656 = vmul.f32 %v461, %v632
  %v657 = vmul.f32 %v464, %v632
  %v658 = vmul.f32 %v469, %v632
  %v659 = vmul.f32 %v472, %v632
  %v660 = vmul.f32 %v477, %v632
  %v661 = vmul.f32 %v480, %v632
  %v662 = vmul.f32 %v485, %v632
  %v663 = vmul.f32 %v488, %v632
  %v664 = vmul.f32 %v493, %v632
  %v665 = vmul.f32 %v496, %v632
  %v666 = vmul.f32 %v501, %v632
  %v667 = vmul.f32 %v504, %v632
  %v668 = vmul.f32 %v509, %v632
  %v669 = vmul.f32 %v512, %v632
  %v670 = vmul.f32 %v517, %v632
  %v671 = vmul.f32 %v520, %v632
  %v672 = vmul.f32 %v525, %v632
  %v673 = vmul.f32 %v528, %v632
  %v674 = vmul.f32 %v533, %v632
  %v675 = vmul.f32 %v536, %v632
  %v676 = vmul.f32 %v541, %v632
  %v677 = vmul.f32 %v544, %v632
  %v678 = vmul.f32 %v549, %v632
  %v679 = vmul.f32 %v552, %v632
  %v680 = vmul.f32 %v557, %v632
  %v681 = vmul.f32 %v560, %v632
  %v682 = vmul.f32 %v565, %v632
  %v683 = vmul.f32 %v568, %v632
  %v684 = vmul.f32 %v573, %v632
  %v685 = vmul.f32 %v576, %v632
  %v686 = vmul.f32 %v581, %v632
  %v687 = vmul.f32 %v584, %v632
  %v688 = vmul.f32 %v589, %v632
  %v689 = vmul.f32 %v592, %v632
  %v690 = vmul.f32 %v597, %v632
  %v691 = vmul.f32 %v600, %v632
  %v692 = vmul.f32 %v605, %v632
  %v693 = vmul.f32 %v608, %v632
  %v694 = vmul.f32 %v613, %v632
  %v695 = vmul.f32 %v616, %v632
  %v696 = vmul.f32 %v621, %v632
  %v697 = vmul.f32 %v624, %v632
  %v698 = vld [vmem:[%s3] sm:$0x1]
  %v700 = vlaneseq
  %v701 = vshrl.u32 %v700, 7
  %v702 = vsub.s32 0, %v701
  %v703 = vrot.slane %v698, %v702
  %v705 = vadd.f32 %v634, %v703
  %v706 = vadd.f32 %v635, %v703
  %v707 = vadd.f32 %v636, %v703
  %v708 = vadd.f32 %v637, %v703
  %v709 = vadd.f32 %v638, %v703
  %v710 = vadd.f32 %v639, %v703
  %v711 = vadd.f32 %v640, %v703
  %v712 = vadd.f32 %v641, %v703
  %v713 = vadd.f32 %v642, %v703
  %v714 = vadd.f32 %v643, %v703
  %v715 = vadd.f32 %v644, %v703
  %v716 = vadd.f32 %v645, %v703
  %v717 = vadd.f32 %v646, %v703
  %v718 = vadd.f32 %v647, %v703
  %v719 = vadd.f32 %v648, %v703
  %v720 = vadd.f32 %v649, %v703
  %v721 = vadd.f32 %v650, %v703
  %v722 = vadd.f32 %v651, %v703
  %v723 = vadd.f32 %v652, %v703
  %v724 = vadd.f32 %v653, %v703
  %v725 = vadd.f32 %v654, %v703
  %v726 = vadd.f32 %v655, %v703
  %v727 = vadd.f32 %v656, %v703
  %v728 = vadd.f32 %v657, %v703
  %v729 = vadd.f32 %v658, %v703
  %v730 = vadd.f32 %v659, %v703
  %v731 = vadd.f32 %v660, %v703
  %v732 = vadd.f32 %v661, %v703
  %v733 = vadd.f32 %v662, %v703
  %v734 = vadd.f32 %v663, %v703
  %v735 = vadd.f32 %v664, %v703
  %v736 = vadd.f32 %v665, %v703
  %v737 = vadd.f32 %v666, %v703
  %v738 = vadd.f32 %v667, %v703
  %v739 = vadd.f32 %v668, %v703
  %v740 = vadd.f32 %v669, %v703
  %v741 = vadd.f32 %v670, %v703
  %v742 = vadd.f32 %v671, %v703
  %v743 = vadd.f32 %v672, %v703
  %v744 = vadd.f32 %v673, %v703
  %v745 = vadd.f32 %v674, %v703
  %v746 = vadd.f32 %v675, %v703
  %v747 = vadd.f32 %v676, %v703
  %v748 = vadd.f32 %v677, %v703
  %v749 = vadd.f32 %v678, %v703
  %v750 = vadd.f32 %v679, %v703
  %v751 = vadd.f32 %v680, %v703
  %v752 = vadd.f32 %v681, %v703
  %v753 = vadd.f32 %v682, %v703
  %v754 = vadd.f32 %v683, %v703
  %v755 = vadd.f32 %v684, %v703
  %v756 = vadd.f32 %v685, %v703
  %v757 = vadd.f32 %v686, %v703
  %v758 = vadd.f32 %v687, %v703
  %v759 = vadd.f32 %v688, %v703
  %v760 = vadd.f32 %v689, %v703
  %v761 = vadd.f32 %v690, %v703
  %v762 = vadd.f32 %v691, %v703
  %v763 = vadd.f32 %v692, %v703
  %v764 = vadd.f32 %v693, %v703
  %v765 = vadd.f32 %v694, %v703
  %v766 = vadd.f32 %v695, %v703
  %v767 = vadd.f32 %v696, %v703
  %v768 = vadd.f32 %v697, %v703
  %v769 = vxor.u32 %v705, 2147483648
  %v770 = vxor.u32 %v706, 2147483648
  %v771 = vxor.u32 %v707, 2147483648
  %v772 = vxor.u32 %v708, 2147483648
  %v773 = vxor.u32 %v709, 2147483648
  %v774 = vxor.u32 %v710, 2147483648
  %v775 = vxor.u32 %v711, 2147483648
  %v776 = vxor.u32 %v712, 2147483648
  %v777 = vxor.u32 %v713, 2147483648
  %v778 = vxor.u32 %v714, 2147483648
  %v779 = vxor.u32 %v715, 2147483648
  %v780 = vxor.u32 %v716, 2147483648
  %v781 = vxor.u32 %v717, 2147483648
  %v782 = vxor.u32 %v718, 2147483648
  %v783 = vxor.u32 %v719, 2147483648
  %v784 = vxor.u32 %v720, 2147483648
  %v785 = vxor.u32 %v721, 2147483648
  %v786 = vxor.u32 %v722, 2147483648
  %v787 = vxor.u32 %v723, 2147483648
  %v788 = vxor.u32 %v724, 2147483648
  %v789 = vxor.u32 %v725, 2147483648
  %v790 = vxor.u32 %v726, 2147483648
  %v791 = vxor.u32 %v727, 2147483648
  %v792 = vxor.u32 %v728, 2147483648
  %v793 = vxor.u32 %v729, 2147483648
  %v794 = vxor.u32 %v730, 2147483648
  %v795 = vxor.u32 %v731, 2147483648
  %v796 = vxor.u32 %v732, 2147483648
  %v797 = vxor.u32 %v733, 2147483648
  %v798 = vxor.u32 %v734, 2147483648
  %v799 = vxor.u32 %v735, 2147483648
  %v800 = vxor.u32 %v736, 2147483648
  %v801 = vxor.u32 %v737, 2147483648
  %v802 = vxor.u32 %v738, 2147483648
  %v803 = vxor.u32 %v739, 2147483648
  %v804 = vxor.u32 %v740, 2147483648
  %v805 = vxor.u32 %v741, 2147483648
  %v806 = vxor.u32 %v742, 2147483648
  %v807 = vxor.u32 %v743, 2147483648
  %v808 = vxor.u32 %v744, 2147483648
  %v809 = vxor.u32 %v745, 2147483648
  %v810 = vxor.u32 %v746, 2147483648
  %v811 = vxor.u32 %v747, 2147483648
  %v812 = vxor.u32 %v748, 2147483648
  %v813 = vxor.u32 %v749, 2147483648
  %v814 = vxor.u32 %v750, 2147483648
  %v815 = vxor.u32 %v751, 2147483648
  %v816 = vxor.u32 %v752, 2147483648
  %v817 = vxor.u32 %v753, 2147483648
  %v818 = vxor.u32 %v754, 2147483648
  %v819 = vxor.u32 %v755, 2147483648
  %v820 = vxor.u32 %v756, 2147483648
  %v821 = vxor.u32 %v757, 2147483648
  %v822 = vxor.u32 %v758, 2147483648
  %v823 = vxor.u32 %v759, 2147483648
  %v824 = vxor.u32 %v760, 2147483648
  %v825 = vxor.u32 %v761, 2147483648
  %v826 = vxor.u32 %v762, 2147483648
  %v827 = vxor.u32 %v763, 2147483648
  %v828 = vxor.u32 %v764, 2147483648
  %v829 = vxor.u32 %v765, 2147483648
  %v830 = vxor.u32 %v766, 2147483648
  %v831 = vxor.u32 %v767, 2147483648
  %v832 = vxor.u32 %v768, 2147483648
  %v833 = vmul.f32 %v769, 1.442695
  %v834 = vpow.pop %v833
  %v835 = vmul.f32 %v770, 1.442695
  %v836 = vpow.pop %v835
  %v837 = vmul.f32 %v771, 1.442695
  %v838 = vpow.pop %v837
  %v839 = vmul.f32 %v772, 1.442695
  %v840 = vpow.pop %v839
  %v841 = vmul.f32 %v773, 1.442695
  %v842 = vpow.pop %v841
  %v843 = vmul.f32 %v774, 1.442695
  %v844 = vpow.pop %v843
  %v845 = vmul.f32 %v775, 1.442695
  %v846 = vpow.pop %v845
  %v847 = vmul.f32 %v776, 1.442695
  %v848 = vpow.pop %v847
  %v849 = vmul.f32 %v777, 1.442695
  %v850 = vpow.pop %v849
  %v851 = vmul.f32 %v778, 1.442695
  %v852 = vpow.pop %v851
  %v853 = vmul.f32 %v779, 1.442695
  %v854 = vpow.pop %v853
  %v855 = vmul.f32 %v780, 1.442695
  %v856 = vpow.pop %v855
  %v857 = vmul.f32 %v781, 1.442695
  %v858 = vpow.pop %v857
  %v859 = vmul.f32 %v782, 1.442695
  %v860 = vpow.pop %v859
  %v861 = vmul.f32 %v783, 1.442695
  %v862 = vpow.pop %v861
  %v863 = vmul.f32 %v784, 1.442695
  %v864 = vpow.pop %v863
  %v865 = vmul.f32 %v785, 1.442695
  %v866 = vpow.pop %v865
  %v867 = vmul.f32 %v786, 1.442695
  %v868 = vpow.pop %v867
  %v869 = vmul.f32 %v787, 1.442695
  %v870 = vpow.pop %v869
  %v871 = vmul.f32 %v788, 1.442695
  %v872 = vpow.pop %v871
  %v873 = vmul.f32 %v789, 1.442695
  %v874 = vpow.pop %v873
  %v875 = vmul.f32 %v790, 1.442695
  %v876 = vpow.pop %v875
  %v877 = vmul.f32 %v791, 1.442695
  %v878 = vpow.pop %v877
  %v879 = vmul.f32 %v792, 1.442695
  %v880 = vpow.pop %v879
  %v881 = vmul.f32 %v793, 1.442695
  %v882 = vpow.pop %v881
  %v883 = vmul.f32 %v794, 1.442695
  %v884 = vpow.pop %v883
  %v885 = vmul.f32 %v795, 1.442695
  %v886 = vpow.pop %v885
  %v887 = vmul.f32 %v796, 1.442695
  %v888 = vpow.pop %v887
  %v889 = vmul.f32 %v797, 1.442695
  %v890 = vpow.pop %v889
  %v891 = vmul.f32 %v798, 1.442695
  %v892 = vpow.pop %v891
  %v893 = vmul.f32 %v799, 1.442695
  %v894 = vpow.pop %v893
  %v895 = vmul.f32 %v800, 1.442695
  %v896 = vpow.pop %v895
  %v897 = vmul.f32 %v801, 1.442695
  %v898 = vpow.pop %v897
  %v899 = vmul.f32 %v802, 1.442695
  %v900 = vpow.pop %v899
  %v901 = vmul.f32 %v803, 1.442695
  %v902 = vpow.pop %v901
  %v903 = vmul.f32 %v804, 1.442695
  %v904 = vpow.pop %v903
  %v905 = vmul.f32 %v805, 1.442695
  %v906 = vpow.pop %v905
  %v907 = vmul.f32 %v806, 1.442695
  %v908 = vpow.pop %v907
  %v909 = vmul.f32 %v807, 1.442695
  %v910 = vpow.pop %v909
  %v911 = vmul.f32 %v808, 1.442695
  %v912 = vpow.pop %v911
  %v913 = vmul.f32 %v809, 1.442695
  %v914 = vpow.pop %v913
  %v915 = vmul.f32 %v810, 1.442695
  %v916 = vpow.pop %v915
  %v917 = vmul.f32 %v811, 1.442695
  %v918 = vpow.pop %v917
  %v919 = vmul.f32 %v812, 1.442695
  %v920 = vpow.pop %v919
  %v921 = vmul.f32 %v813, 1.442695
  %v922 = vpow.pop %v921
  %v923 = vmul.f32 %v814, 1.442695
  %v924 = vpow.pop %v923
  %v925 = vmul.f32 %v815, 1.442695
  %v926 = vpow.pop %v925
  %v927 = vmul.f32 %v816, 1.442695
  %v928 = vpow.pop %v927
  %v929 = vmul.f32 %v817, 1.442695
  %v930 = vpow.pop %v929
  %v931 = vmul.f32 %v818, 1.442695
  %v932 = vpow.pop %v931
  %v933 = vmul.f32 %v819, 1.442695
  %v934 = vpow.pop %v933
  %v935 = vmul.f32 %v820, 1.442695
  %v936 = vpow.pop %v935
  %v937 = vmul.f32 %v821, 1.442695
  %v938 = vpow.pop %v937
  %v939 = vmul.f32 %v822, 1.442695
  %v940 = vpow.pop %v939
  %v941 = vmul.f32 %v823, 1.442695
  %v942 = vpow.pop %v941
  %v943 = vmul.f32 %v824, 1.442695
  %v944 = vpow.pop %v943
  %v945 = vmul.f32 %v825, 1.442695
  %v946 = vpow.pop %v945
  %v947 = vmul.f32 %v826, 1.442695
  %v948 = vpow.pop %v947
  %v949 = vmul.f32 %v827, 1.442695
  %v950 = vpow.pop %v949
  %v951 = vmul.f32 %v828, 1.442695
  %v952 = vpow.pop %v951
  %v953 = vmul.f32 %v829, 1.442695
  %v954 = vpow.pop %v953
  %v955 = vmul.f32 %v830, 1.442695
  %v956 = vpow.pop %v955
  %v957 = vmul.f32 %v831, 1.442695
  %v958 = vpow.pop %v957
  %v959 = vmul.f32 %v832, 1.442695
  %v960 = vpow.pop %v959
  %v961 = vadd.f32 %v834, 1.0
  %v962 = vadd.f32 %v836, 1.0
  %v963 = vadd.f32 %v838, 1.0
  %v964 = vadd.f32 %v840, 1.0
  %v965 = vadd.f32 %v842, 1.0
  %v966 = vadd.f32 %v844, 1.0
  %v967 = vadd.f32 %v846, 1.0
  %v968 = vadd.f32 %v848, 1.0
  %v969 = vadd.f32 %v850, 1.0
  %v970 = vadd.f32 %v852, 1.0
  %v971 = vadd.f32 %v854, 1.0
  %v972 = vadd.f32 %v856, 1.0
  %v973 = vadd.f32 %v858, 1.0
  %v974 = vadd.f32 %v860, 1.0
  %v975 = vadd.f32 %v862, 1.0
  %v976 = vadd.f32 %v864, 1.0
  %v977 = vadd.f32 %v866, 1.0
  %v978 = vadd.f32 %v868, 1.0
  %v979 = vadd.f32 %v870, 1.0
  %v980 = vadd.f32 %v872, 1.0
  %v981 = vadd.f32 %v874, 1.0
  %v982 = vadd.f32 %v876, 1.0
  %v983 = vadd.f32 %v878, 1.0
  %v984 = vadd.f32 %v880, 1.0
  %v985 = vadd.f32 %v882, 1.0
  %v986 = vadd.f32 %v884, 1.0
  %v987 = vadd.f32 %v886, 1.0
  %v988 = vadd.f32 %v888, 1.0
  %v989 = vadd.f32 %v890, 1.0
  %v990 = vadd.f32 %v892, 1.0
  %v991 = vadd.f32 %v894, 1.0
  %v992 = vadd.f32 %v896, 1.0
  %v993 = vadd.f32 %v898, 1.0
  %v994 = vadd.f32 %v900, 1.0
  %v995 = vadd.f32 %v902, 1.0
  %v996 = vadd.f32 %v904, 1.0
  %v997 = vadd.f32 %v906, 1.0
  %v998 = vadd.f32 %v908, 1.0
  %v999 = vadd.f32 %v910, 1.0
  %v1000 = vadd.f32 %v912, 1.0
  %v1001 = vadd.f32 %v914, 1.0
  %v1002 = vadd.f32 %v916, 1.0
  %v1003 = vadd.f32 %v918, 1.0
  %v1004 = vadd.f32 %v920, 1.0
  %v1005 = vadd.f32 %v922, 1.0
  %v1006 = vadd.f32 %v924, 1.0
  %v1007 = vadd.f32 %v926, 1.0
  %v1008 = vadd.f32 %v928, 1.0
  %v1009 = vadd.f32 %v930, 1.0
  %v1010 = vadd.f32 %v932, 1.0
  %v1011 = vadd.f32 %v934, 1.0
  %v1012 = vadd.f32 %v936, 1.0
  %v1013 = vadd.f32 %v938, 1.0
  %v1014 = vadd.f32 %v940, 1.0
  %v1015 = vadd.f32 %v942, 1.0
  %v1016 = vadd.f32 %v944, 1.0
  %v1017 = vadd.f32 %v946, 1.0
  %v1018 = vadd.f32 %v948, 1.0
  %v1019 = vadd.f32 %v950, 1.0
  %v1020 = vadd.f32 %v952, 1.0
  %v1021 = vadd.f32 %v954, 1.0
  %v1022 = vadd.f32 %v956, 1.0
  %v1023 = vadd.f32 %v958, 1.0
  %v1024 = vadd.f32 %v960, 1.0
  %v1025 = vrcp.pop %v961
  %v1026 = vmul.f32 1.0, %v1025
  %v1027 = vrcp.pop %v962
  %v1028 = vmul.f32 1.0, %v1027
  %v1029 = vrcp.pop %v963
  %v1030 = vmul.f32 1.0, %v1029
  %v1031 = vrcp.pop %v964
  %v1032 = vmul.f32 1.0, %v1031
  %v1033 = vrcp.pop %v965
  %v1034 = vmul.f32 1.0, %v1033
  %v1035 = vrcp.pop %v966
  %v1036 = vmul.f32 1.0, %v1035
  %v1037 = vrcp.pop %v967
  %v1038 = vmul.f32 1.0, %v1037
  %v1039 = vrcp.pop %v968
  %v1040 = vmul.f32 1.0, %v1039
  %v1041 = vrcp.pop %v969
  %v1042 = vmul.f32 1.0, %v1041
  %v1043 = vrcp.pop %v970
  %v1044 = vmul.f32 1.0, %v1043
  %v1045 = vrcp.pop %v971
  %v1046 = vmul.f32 1.0, %v1045
  %v1047 = vrcp.pop %v972
  %v1048 = vmul.f32 1.0, %v1047
  %v1049 = vrcp.pop %v973
  %v1050 = vmul.f32 1.0, %v1049
  %v1051 = vrcp.pop %v974
  %v1052 = vmul.f32 1.0, %v1051
  %v1053 = vrcp.pop %v975
  %v1054 = vmul.f32 1.0, %v1053
  %v1055 = vrcp.pop %v976
  %v1056 = vmul.f32 1.0, %v1055
  %v1057 = vrcp.pop %v977
  %v1058 = vmul.f32 1.0, %v1057
  %v1059 = vrcp.pop %v978
  %v1060 = vmul.f32 1.0, %v1059
  %v1061 = vrcp.pop %v979
  %v1062 = vmul.f32 1.0, %v1061
  %v1063 = vrcp.pop %v980
  %v1064 = vmul.f32 1.0, %v1063
  %v1065 = vrcp.pop %v981
  %v1066 = vmul.f32 1.0, %v1065
  %v1067 = vrcp.pop %v982
  %v1068 = vmul.f32 1.0, %v1067
  %v1069 = vrcp.pop %v983
  %v1070 = vmul.f32 1.0, %v1069
  %v1071 = vrcp.pop %v984
  %v1072 = vmul.f32 1.0, %v1071
  %v1073 = vrcp.pop %v985
  %v1074 = vmul.f32 1.0, %v1073
  %v1075 = vrcp.pop %v986
  %v1076 = vmul.f32 1.0, %v1075
  %v1077 = vrcp.pop %v987
  %v1078 = vmul.f32 1.0, %v1077
  %v1079 = vrcp.pop %v988
  %v1080 = vmul.f32 1.0, %v1079
  %v1081 = vrcp.pop %v989
  %v1082 = vmul.f32 1.0, %v1081
  %v1083 = vrcp.pop %v990
  %v1084 = vmul.f32 1.0, %v1083
  %v1085 = vrcp.pop %v991
  %v1086 = vmul.f32 1.0, %v1085
  %v1087 = vrcp.pop %v992
  %v1088 = vmul.f32 1.0, %v1087
  %v1089 = vrcp.pop %v993
  %v1090 = vmul.f32 1.0, %v1089
  %v1091 = vrcp.pop %v994
  %v1092 = vmul.f32 1.0, %v1091
  %v1093 = vrcp.pop %v995
  %v1094 = vmul.f32 1.0, %v1093
  %v1095 = vrcp.pop %v996
  %v1096 = vmul.f32 1.0, %v1095
  %v1097 = vrcp.pop %v997
  %v1098 = vmul.f32 1.0, %v1097
  %v1099 = vrcp.pop %v998
  %v1100 = vmul.f32 1.0, %v1099
  %v1101 = vrcp.pop %v999
  %v1102 = vmul.f32 1.0, %v1101
  %v1103 = vrcp.pop %v1000
  %v1104 = vmul.f32 1.0, %v1103
  %v1105 = vrcp.pop %v1001
  %v1106 = vmul.f32 1.0, %v1105
  %v1107 = vrcp.pop %v1002
  %v1108 = vmul.f32 1.0, %v1107
  %v1109 = vrcp.pop %v1003
  %v1110 = vmul.f32 1.0, %v1109
  %v1111 = vrcp.pop %v1004
  %v1112 = vmul.f32 1.0, %v1111
  %v1113 = vrcp.pop %v1005
  %v1114 = vmul.f32 1.0, %v1113
  %v1115 = vrcp.pop %v1006
  %v1116 = vmul.f32 1.0, %v1115
  %v1117 = vrcp.pop %v1007
  %v1118 = vmul.f32 1.0, %v1117
  %v1119 = vrcp.pop %v1008
  %v1120 = vmul.f32 1.0, %v1119
  %v1121 = vrcp.pop %v1009
  %v1122 = vmul.f32 1.0, %v1121
  %v1123 = vrcp.pop %v1010
  %v1124 = vmul.f32 1.0, %v1123
  %v1125 = vrcp.pop %v1011
  %v1126 = vmul.f32 1.0, %v1125
  %v1127 = vrcp.pop %v1012
  %v1128 = vmul.f32 1.0, %v1127
  %v1129 = vrcp.pop %v1013
  %v1130 = vmul.f32 1.0, %v1129
  %v1131 = vrcp.pop %v1014
  %v1132 = vmul.f32 1.0, %v1131
  %v1133 = vrcp.pop %v1015
  %v1134 = vmul.f32 1.0, %v1133
  %v1135 = vrcp.pop %v1016
  %v1136 = vmul.f32 1.0, %v1135
  %v1137 = vrcp.pop %v1017
  %v1138 = vmul.f32 1.0, %v1137
  %v1139 = vrcp.pop %v1018
  %v1140 = vmul.f32 1.0, %v1139
  %v1141 = vrcp.pop %v1019
  %v1142 = vmul.f32 1.0, %v1141
  %v1143 = vrcp.pop %v1020
  %v1144 = vmul.f32 1.0, %v1143
  %v1145 = vrcp.pop %v1021
  %v1146 = vmul.f32 1.0, %v1145
  %v1147 = vrcp.pop %v1022
  %v1148 = vmul.f32 1.0, %v1147
  %v1149 = vrcp.pop %v1023
  %v1150 = vmul.f32 1.0, %v1149
  %v1151 = vrcp.pop %v1024
  %v1152 = vmul.f32 1.0, %v1151
  %v1153 = vmul.f32 %v705, %v1026
  %v1154 = vmul.f32 %v706, %v1028
  %v1155 = vmul.f32 %v707, %v1030
  %v1156 = vmul.f32 %v708, %v1032
  %v1157 = vmul.f32 %v709, %v1034
  %v1158 = vmul.f32 %v710, %v1036
  %v1159 = vmul.f32 %v711, %v1038
  %v1160 = vmul.f32 %v712, %v1040
  %v1161 = vmul.f32 %v713, %v1042
  %v1162 = vmul.f32 %v714, %v1044
  %v1163 = vmul.f32 %v715, %v1046
  %v1164 = vmul.f32 %v716, %v1048
  %v1165 = vmul.f32 %v717, %v1050
  %v1166 = vmul.f32 %v718, %v1052
  %v1167 = vmul.f32 %v719, %v1054
  %v1168 = vmul.f32 %v720, %v1056
  %v1169 = vmul.f32 %v721, %v1058
  %v1170 = vmul.f32 %v722, %v1060
  %v1171 = vmul.f32 %v723, %v1062
  %v1172 = vmul.f32 %v724, %v1064
  %v1173 = vmul.f32 %v725, %v1066
  %v1174 = vmul.f32 %v726, %v1068
  %v1175 = vmul.f32 %v727, %v1070
  %v1176 = vmul.f32 %v728, %v1072
  %v1177 = vmul.f32 %v729, %v1074
  %v1178 = vmul.f32 %v730, %v1076
  %v1179 = vmul.f32 %v731, %v1078
  %v1180 = vmul.f32 %v732, %v1080
  %v1181 = vmul.f32 %v733, %v1082
  %v1182 = vmul.f32 %v734, %v1084
  %v1183 = vmul.f32 %v735, %v1086
  %v1184 = vmul.f32 %v736, %v1088
  %v1185 = vmul.f32 %v737, %v1090
  %v1186 = vmul.f32 %v738, %v1092
  %v1187 = vmul.f32 %v739, %v1094
  %v1188 = vmul.f32 %v740, %v1096
  %v1189 = vmul.f32 %v741, %v1098
  %v1190 = vmul.f32 %v742, %v1100
  %v1191 = vmul.f32 %v743, %v1102
  %v1192 = vmul.f32 %v744, %v1104
  %v1193 = vmul.f32 %v745, %v1106
  %v1194 = vmul.f32 %v746, %v1108
  %v1195 = vmul.f32 %v747, %v1110
  %v1196 = vmul.f32 %v748, %v1112
  %v1197 = vmul.f32 %v749, %v1114
  %v1198 = vmul.f32 %v750, %v1116
  %v1199 = vmul.f32 %v751, %v1118
  %v1200 = vmul.f32 %v752, %v1120
  %v1201 = vmul.f32 %v753, %v1122
  %v1202 = vmul.f32 %v754, %v1124
  %v1203 = vmul.f32 %v755, %v1126
  %v1204 = vmul.f32 %v756, %v1128
  %v1205 = vmul.f32 %v757, %v1130
  %v1206 = vmul.f32 %v758, %v1132
  %v1207 = vmul.f32 %v759, %v1134
  %v1208 = vmul.f32 %v760, %v1136
  %v1209 = vmul.f32 %v761, %v1138
  %v1210 = vmul.f32 %v762, %v1140
  %v1211 = vmul.f32 %v763, %v1142
  %v1212 = vmul.f32 %v764, %v1144
  %v1213 = vmul.f32 %v765, %v1146
  %v1214 = vmul.f32 %v766, %v1148
  %v1215 = vmul.f32 %v767, %v1150
  %v1216 = vmul.f32 %v768, %v1152
  %v1217 = vpack.c.bf16 %v1154, %v1153
  %v1218 = vpack.c.bf16 %v1156, %v1155
  %v1219 = vpack.c.bf16 %v1158, %v1157
  %v1220 = vpack.c.bf16 %v1160, %v1159
  %v1221 = vpack.c.bf16 %v1162, %v1161
  %v1222 = vpack.c.bf16 %v1164, %v1163
  %v1223 = vpack.c.bf16 %v1166, %v1165
  %v1224 = vpack.c.bf16 %v1168, %v1167
  %v1225 = vpack.c.bf16 %v1170, %v1169
  %v1226 = vpack.c.bf16 %v1172, %v1171
  %v1227 = vpack.c.bf16 %v1174, %v1173
  %v1228 = vpack.c.bf16 %v1176, %v1175
  %v1229 = vpack.c.bf16 %v1178, %v1177
  %v1230 = vpack.c.bf16 %v1180, %v1179
  %v1231 = vpack.c.bf16 %v1182, %v1181
  %v1232 = vpack.c.bf16 %v1184, %v1183
  %v1233 = vpack.c.bf16 %v1186, %v1185
  %v1234 = vpack.c.bf16 %v1188, %v1187
  %v1235 = vpack.c.bf16 %v1190, %v1189
  %v1236 = vpack.c.bf16 %v1192, %v1191
  %v1237 = vpack.c.bf16 %v1194, %v1193
  %v1238 = vpack.c.bf16 %v1196, %v1195
  %v1239 = vpack.c.bf16 %v1198, %v1197
  %v1240 = vpack.c.bf16 %v1200, %v1199
  %v1241 = vpack.c.bf16 %v1202, %v1201
  %v1242 = vpack.c.bf16 %v1204, %v1203
  %v1243 = vpack.c.bf16 %v1206, %v1205
  %v1244 = vpack.c.bf16 %v1208, %v1207
  %v1245 = vpack.c.bf16 %v1210, %v1209
  %v1246 = vpack.c.bf16 %v1212, %v1211
  %v1247 = vpack.c.bf16 %v1214, %v1213
  %v1248 = vpack.c.bf16 %v1216, %v1215
  %v1281 = vunpack.c.l.b16 %v1217
  %v1282 = vunpack.c.h.b16 %v1217
  %v1283 = vunpack.c.l.b16 %v1218
  %v1284 = vunpack.c.h.b16 %v1218
  %v1285 = vunpack.c.l.b16 %v1219
  %v1286 = vunpack.c.h.b16 %v1219
  %v1287 = vunpack.c.l.b16 %v1220
  %v1288 = vunpack.c.h.b16 %v1220
  %v1289 = vunpack.c.l.b16 %v1221
  %v1290 = vunpack.c.h.b16 %v1221
  %v1291 = vunpack.c.l.b16 %v1222
  %v1292 = vunpack.c.h.b16 %v1222
  %v1293 = vunpack.c.l.b16 %v1223
  %v1294 = vunpack.c.h.b16 %v1223
  %v1295 = vunpack.c.l.b16 %v1224
  %v1296 = vunpack.c.h.b16 %v1224
  %v1297 = vunpack.c.l.b16 %v1225
  %v1298 = vunpack.c.h.b16 %v1225
  %v1299 = vunpack.c.l.b16 %v1226
  %v1300 = vunpack.c.h.b16 %v1226
  %v1301 = vunpack.c.l.b16 %v1227
  %v1302 = vunpack.c.h.b16 %v1227
  %v1303 = vunpack.c.l.b16 %v1228
  %v1304 = vunpack.c.h.b16 %v1228
  %v1305 = vunpack.c.l.b16 %v1229
  %v1306 = vunpack.c.h.b16 %v1229
  %v1307 = vunpack.c.l.b16 %v1230
  %v1308 = vunpack.c.h.b16 %v1230
  %v1309 = vunpack.c.l.b16 %v1231
  %v1310 = vunpack.c.h.b16 %v1231
  %v1311 = vunpack.c.l.b16 %v1232
  %v1312 = vunpack.c.h.b16 %v1232
  %v1313 = vunpack.c.l.b16 %v1233
  %v1314 = vunpack.c.h.b16 %v1233
  %v1315 = vunpack.c.l.b16 %v1234
  %v1316 = vunpack.c.h.b16 %v1234
  %v1317 = vunpack.c.l.b16 %v1235
  %v1318 = vunpack.c.h.b16 %v1235
  %v1319 = vunpack.c.l.b16 %v1236
  %v1320 = vunpack.c.h.b16 %v1236
  %v1321 = vunpack.c.l.b16 %v1237
  %v1322 = vunpack.c.h.b16 %v1237
  %v1323 = vunpack.c.l.b16 %v1238
  %v1324 = vunpack.c.h.b16 %v1238
  %v1325 = vunpack.c.l.b16 %v1239
  %v1326 = vunpack.c.h.b16 %v1239
  %v1327 = vunpack.c.l.b16 %v1240
  %v1328 = vunpack.c.h.b16 %v1240
  %v1329 = vunpack.c.l.b16 %v1241
  %v1330 = vunpack.c.h.b16 %v1241
  %v1331 = vunpack.c.l.b16 %v1242
  %v1332 = vunpack.c.h.b16 %v1242
  %v1333 = vunpack.c.l.b16 %v1243
  %v1334 = vunpack.c.h.b16 %v1243
  %v1335 = vunpack.c.l.b16 %v1244
  %v1336 = vunpack.c.h.b16 %v1244
  %v1337 = vunpack.c.l.b16 %v1245
  %v1338 = vunpack.c.h.b16 %v1245
  %v1339 = vunpack.c.l.b16 %v1246
  %v1340 = vunpack.c.h.b16 %v1246
  %v1341 = vunpack.c.l.b16 %v1247
  %v1342 = vunpack.c.h.b16 %v1247
  %v1343 = vunpack.c.l.b16 %v1248
  %v1344 = vunpack.c.h.b16 %v1248
  %v1345 = vpack.c.b16 %v1281, %v1281
  %v1346 = vpack.c.b16 %v1282, %v1282
  %v1347 = vpack.c.b16 %v1283, %v1283
  %v1348 = vpack.c.b16 %v1284, %v1284
  %v1349 = vpack.c.b16 %v1285, %v1285
  %v1350 = vpack.c.b16 %v1286, %v1286
  %v1351 = vpack.c.b16 %v1287, %v1287
  %v1352 = vpack.c.b16 %v1288, %v1288
  %v1353 = vpack.c.b16 %v1289, %v1289
  %v1354 = vpack.c.b16 %v1290, %v1290
  %v1355 = vpack.c.b16 %v1291, %v1291
  %v1356 = vpack.c.b16 %v1292, %v1292
  %v1357 = vpack.c.b16 %v1293, %v1293
  %v1358 = vpack.c.b16 %v1294, %v1294
  %v1359 = vpack.c.b16 %v1295, %v1295
  %v1360 = vpack.c.b16 %v1296, %v1296
  %v1361 = vpack.c.b16 %v1297, %v1297
  %v1362 = vpack.c.b16 %v1298, %v1298
  %v1363 = vpack.c.b16 %v1299, %v1299
  %v1364 = vpack.c.b16 %v1300, %v1300
  %v1365 = vpack.c.b16 %v1301, %v1301
  %v1366 = vpack.c.b16 %v1302, %v1302
  %v1367 = vpack.c.b16 %v1303, %v1303
  %v1368 = vpack.c.b16 %v1304, %v1304
  %v1369 = vpack.c.b16 %v1305, %v1305
  %v1370 = vpack.c.b16 %v1306, %v1306
  %v1371 = vpack.c.b16 %v1307, %v1307
  %v1372 = vpack.c.b16 %v1308, %v1308
  %v1373 = vpack.c.b16 %v1309, %v1309
  %v1374 = vpack.c.b16 %v1310, %v1310
  %v1375 = vpack.c.b16 %v1311, %v1311
  %v1376 = vpack.c.b16 %v1312, %v1312
  %v1377 = vpack.c.b16 %v1313, %v1313
  %v1378 = vpack.c.b16 %v1314, %v1314
  %v1379 = vpack.c.b16 %v1315, %v1315
  %v1380 = vpack.c.b16 %v1316, %v1316
  %v1381 = vpack.c.b16 %v1317, %v1317
  %v1382 = vpack.c.b16 %v1318, %v1318
  %v1383 = vpack.c.b16 %v1319, %v1319
  %v1384 = vpack.c.b16 %v1320, %v1320
  %v1385 = vpack.c.b16 %v1321, %v1321
  %v1386 = vpack.c.b16 %v1322, %v1322
  %v1387 = vpack.c.b16 %v1323, %v1323
  %v1388 = vpack.c.b16 %v1324, %v1324
  %v1389 = vpack.c.b16 %v1325, %v1325
  %v1390 = vpack.c.b16 %v1326, %v1326
  %v1391 = vpack.c.b16 %v1327, %v1327
  %v1392 = vpack.c.b16 %v1328, %v1328
  %v1393 = vpack.c.b16 %v1329, %v1329
  %v1394 = vpack.c.b16 %v1330, %v1330
  %v1395 = vpack.c.b16 %v1331, %v1331
  %v1396 = vpack.c.b16 %v1332, %v1332
  %v1397 = vpack.c.b16 %v1333, %v1333
  %v1398 = vpack.c.b16 %v1334, %v1334
  %v1399 = vpack.c.b16 %v1335, %v1335
  %v1400 = vpack.c.b16 %v1336, %v1336
  %v1401 = vpack.c.b16 %v1337, %v1337
  %v1402 = vpack.c.b16 %v1338, %v1338
  %v1403 = vpack.c.b16 %v1339, %v1339
  %v1404 = vpack.c.b16 %v1340, %v1340
  %v1405 = vpack.c.b16 %v1341, %v1341
  %v1406 = vpack.c.b16 %v1342, %v1342
  %v1407 = vpack.c.b16 %v1343, %v1343
  %v1408 = vpack.c.b16 %v1344, %v1344
  %1473 = vst [vmem:[%s4] sm:$0xf] %v1345
  %1474 = vst [vmem:[%s4 + $0x4] sm:$0xf] %v1346
  %1475 = vst [vmem:[%s4 + $0x8] sm:$0xf] %v1347
  %1476 = vst [vmem:[%s4 + $0xc] sm:$0xf] %v1348
  %1477 = vst [vmem:[%s4 + $0x10] sm:$0xf] %v1349
  %1478 = vst [vmem:[%s4 + $0x14] sm:$0xf] %v1350
  %1479 = vst [vmem:[%s4 + $0x18] sm:$0xf] %v1351
  %1480 = vst [vmem:[%s4 + $0x1c] sm:$0xf] %v1352
  %1481 = vst [vmem:[%s4 + $0x20] sm:$0xf] %v1353
  %1482 = vst [vmem:[%s4 + $0x24] sm:$0xf] %v1354
  %1483 = vst [vmem:[%s4 + $0x28] sm:$0xf] %v1355
  %1484 = vst [vmem:[%s4 + $0x2c] sm:$0xf] %v1356
  %1485 = vst [vmem:[%s4 + $0x30] sm:$0xf] %v1357
  %1486 = vst [vmem:[%s4 + $0x34] sm:$0xf] %v1358
  %1487 = vst [vmem:[%s4 + $0x38] sm:$0xf] %v1359
  %1488 = vst [vmem:[%s4 + $0x3c] sm:$0xf] %v1360
  %1489 = vst [vmem:[%s4 + $0x40] sm:$0xf] %v1361
  %1490 = vst [vmem:[%s4 + $0x44] sm:$0xf] %v1362
  %1491 = vst [vmem:[%s4 + $0x48] sm:$0xf] %v1363
  %1492 = vst [vmem:[%s4 + $0x4c] sm:$0xf] %v1364
  %1493 = vst [vmem:[%s4 + $0x50] sm:$0xf] %v1365
  %1494 = vst [vmem:[%s4 + $0x54] sm:$0xf] %v1366
  %1495 = vst [vmem:[%s4 + $0x58] sm:$0xf] %v1367
  %1496 = vst [vmem:[%s4 + $0x5c] sm:$0xf] %v1368
  %1497 = vst [vmem:[%s4 + $0x60] sm:$0xf] %v1369
  %1498 = vst [vmem:[%s4 + $0x64] sm:$0xf] %v1370
  %1499 = vst [vmem:[%s4 + $0x68] sm:$0xf] %v1371
  %1500 = vst [vmem:[%s4 + $0x6c] sm:$0xf] %v1372
  %1501 = vst [vmem:[%s4 + $0x70] sm:$0xf] %v1373
  %1502 = vst [vmem:[%s4 + $0x74] sm:$0xf] %v1374
  %1503 = vst [vmem:[%s4 + $0x78] sm:$0xf] %v1375
  %1504 = vst [vmem:[%s4 + $0x7c] sm:$0xf] %v1376
  %1505 = vst [vmem:[%s4 + $0x80] sm:$0xf] %v1377
  %1506 = vst [vmem:[%s4 + $0x84] sm:$0xf] %v1378
  %1507 = vst [vmem:[%s4 + $0x88] sm:$0xf] %v1379
  %1508 = vst [vmem:[%s4 + $0x8c] sm:$0xf] %v1380
  %1509 = vst [vmem:[%s4 + $0x90] sm:$0xf] %v1381
  %1510 = vst [vmem:[%s4 + $0x94] sm:$0xf] %v1382
  %1511 = vst [vmem:[%s4 + $0x98] sm:$0xf] %v1383
  %1512 = vst [vmem:[%s4 + $0x9c] sm:$0xf] %v1384
  %1513 = vst [vmem:[%s4 + $0xa0] sm:$0xf] %v1385
  %1514 = vst [vmem:[%s4 + $0xa4] sm:$0xf] %v1386
  %1515 = vst [vmem:[%s4 + $0xa8] sm:$0xf] %v1387
  %1516 = vst [vmem:[%s4 + $0xac] sm:$0xf] %v1388
  %1517 = vst [vmem:[%s4 + $0xb0] sm:$0xf] %v1389
  %1518 = vst [vmem:[%s4 + $0xb4] sm:$0xf] %v1390
  %1519 = vst [vmem:[%s4 + $0xb8] sm:$0xf] %v1391
  %1520 = vst [vmem:[%s4 + $0xbc] sm:$0xf] %v1392
  %1521 = vst [vmem:[%s4 + $0xc0] sm:$0xf] %v1393
  %1522 = vst [vmem:[%s4 + $0xc4] sm:$0xf] %v1394
  %1523 = vst [vmem:[%s4 + $0xc8] sm:$0xf] %v1395
  %1524 = vst [vmem:[%s4 + $0xcc] sm:$0xf] %v1396
  %1525 = vst [vmem:[%s4 + $0xd0] sm:$0xf] %v1397
  %1526 = vst [vmem:[%s4 + $0xd4] sm:$0xf] %v1398
  %1527 = vst [vmem:[%s4 + $0xd8] sm:$0xf] %v1399
  %1528 = vst [vmem:[%s4 + $0xdc] sm:$0xf] %v1400
  %1529 = vst [vmem:[%s4 + $0xe0] sm:$0xf] %v1401
  %1530 = vst [vmem:[%s4 + $0xe4] sm:$0xf] %v1402
  %1531 = vst [vmem:[%s4 + $0xe8] sm:$0xf] %v1403
  %1532 = vst [vmem:[%s4 + $0xec] sm:$0xf] %v1404
  %1533 = vst [vmem:[%s4 + $0xf0] sm:$0xf] %v1405
  %1534 = vst [vmem:[%s4 + $0xf4] sm:$0xf] %v1406
  %1535 = vst [vmem:[%s4 + $0xf8] sm:$0xf] %v1407
  %1536 = vst [vmem:[%s4 + $0xfc] sm:$0xf] %v1408
  // Predicated region
  $region18: #{bengali_forward.8} parent=0 // pred_check
    _
  $region19: #{bengali_forward.8} parent=0 // pred_check_branch
    %1538 = sbr.rel (0) target = $region21
  $region20: #{bengali_forward.8} parent=0 // pred_region
    _
  $region21: #{bengali_forward.8} parent=0 // pred_fallthru
    _
  // Predicated region
  $region22: #{bengali_forward.8} parent=0 // pred_check
    _
  $region23: #{bengali_forward.8} parent=0 // pred_check_branch
    %1540 = sbr.rel (0) target = $region25
  $region24: #{bengali_forward.8} parent=0 // pred_region
    _
  $region25: #{bengali_forward.8} parent=0 // pred_fallthru
    _

// kernel: bengali_forward.6
$region0: #{bengali_forward.6}
  #allocation0 [shape = 'u32[]', space=smem, size = 0x4, offset = 0x4, fixed_abs, tag = 'smem constant byte address 0x4 - core index']
  #allocation1 [shape = 'u32[144,128]{1,0:T(1,128)}', space=vmem, size = 0x12000, scoped, tag = 'internal scratch']
  %s0 = inlined_call_operand.vmem [shape: bf16[512,27], index: 0, kind: input, shape index: {}]
  %s1 = inlined_call_operand.vmem [shape: bf16[27,128], index: 1, kind: input, shape index: {}]
  %s2 = inlined_call_operand.vmem [shape: f32[1,128], index: 2, kind: input, shape index: {}]
  %s3 = inlined_call_operand.vmem [shape: f32[1,128], index: 3, kind: input, shape index: {}]
  %s4 = inlined_call_operand.vmem [shape: bf16[512,128], index: 4, kind: output, shape index: {}]
  %s5 = sld [smem:[#allocation0]]
  $region26: #{bengali_forward.6} parent=0
    _
  %s7 = ssub.s32 1, %s5
  %s8 = scalar_select 0, %s7, %s5
  // Predicated region
  $region2: #{bengali_forward.6} parent=0 // pred_check
    _
  $region3: #{bengali_forward.6} parent=0 // pred_check_branch
    %10 = sbr.rel (0) target = $region5
  $region4: #{bengali_forward.6} parent=0 // pred_region
    _
  $region5: #{bengali_forward.6} parent=0 // pred_fallthru
    _
  // Predicated region
  $region6: #{bengali_forward.6} parent=0 // pred_check
    _
  $region7: #{bengali_forward.6} parent=0 // pred_check_branch
    %12 = sbr.rel (0) target = $region9
  $region8: #{bengali_forward.6} parent=0 // pred_region
    _
  $region9: #{bengali_forward.6} parent=0 // pred_fallthru
    _
  // Predicated region
  $region10: #{bengali_forward.6} parent=0 // pred_check
    _
  $region11: #{bengali_forward.6} parent=0 // pred_check_branch
    %14 = sbr.rel (0) target = $region13
  $region12: #{bengali_forward.6} parent=0 // pred_region
    _
  $region13: #{bengali_forward.6} parent=0 // pred_fallthru
    _
  // Predicated region
  $region14: #{bengali_forward.6} parent=0 // pred_check
    _
  $region15: #{bengali_forward.6} parent=0 // pred_check_branch
    %16 = sbr.rel (0) target = $region17
  $region16: #{bengali_forward.6} parent=0 // pred_region
    _
  $region17: #{bengali_forward.6} parent=0 // pred_fallthru
    _
  %v18 = vld [vmem:[%s0] sm:$0xf]
  %v19 = vld [vmem:[%s0 + $0x4] sm:$0xf]
  %v20 = vld [vmem:[%s0 + $0x8] sm:$0xf]
  %v21 = vld [vmem:[%s0 + $0xc] sm:$0xf]
  %v22 = vld [vmem:[%s0 + $0x10] sm:$0xf]
  %v23 = vld [vmem:[%s0 + $0x14] sm:$0xf]
  %v24 = vld [vmem:[%s0 + $0x18] sm:$0xf]
  %v25 = vld [vmem:[%s0 + $0x1c] sm:$0xf]
  %v26 = vld [vmem:[%s0 + $0x20] sm:$0xf]
  %v27 = vld [vmem:[%s0 + $0x24] sm:$0xf]
  %v28 = vld [vmem:[%s0 + $0x28] sm:$0xf]
  %v29 = vld [vmem:[%s0 + $0x2c] sm:$0xf]
  %v30 = vld [vmem:[%s0 + $0x30] sm:$0xf]
  %v31 = vld [vmem:[%s0 + $0x34] sm:$0xf]
  %v32 = vld [vmem:[%s0 + $0x38] sm:$0xf]
  %v33 = vld [vmem:[%s0 + $0x3c] sm:$0xf]
  %v34 = vld [vmem:[%s0 + $0x40] sm:$0xf]
  %v35 = vld [vmem:[%s0 + $0x44] sm:$0xf]
  %v36 = vld [vmem:[%s0 + $0x48] sm:$0xf]
  %v37 = vld [vmem:[%s0 + $0x4c] sm:$0xf]
  %v38 = vld [vmem:[%s0 + $0x50] sm:$0xf]
  %v39 = vld [vmem:[%s0 + $0x54] sm:$0xf]
  %v40 = vld [vmem:[%s0 + $0x58] sm:$0xf]
  %v41 = vld [vmem:[%s0 + $0x5c] sm:$0xf]
  %v42 = vld [vmem:[%s0 + $0x60] sm:$0xf]
  %v43 = vld [vmem:[%s0 + $0x64] sm:$0xf]
  %v44 = vld [vmem:[%s0 + $0x68] sm:$0xf]
  %v45 = vld [vmem:[%s0 + $0x6c] sm:$0xf]
  %v46 = vld [vmem:[%s0 + $0x70] sm:$0xf]
  %v47 = vld [vmem:[%s0 + $0x74] sm:$0xf]
  %v48 = vld [vmem:[%s0 + $0x78] sm:$0xf]
  %v49 = vld [vmem:[%s0 + $0x7c] sm:$0xf]
  %v50 = vld [vmem:[%s0 + $0x80] sm:$0xf]
  %v51 = vld [vmem:[%s0 + $0x84] sm:$0xf]
  %v52 = vld [vmem:[%s0 + $0x88] sm:$0xf]
  %v53 = vld [vmem:[%s0 + $0x8c] sm:$0xf]
  %v54 = vld [vmem:[%s0 + $0x90] sm:$0xf]
  %v55 = vld [vmem:[%s0 + $0x94] sm:$0xf]
  %v56 = vld [vmem:[%s0 + $0x98] sm:$0xf]
  %v57 = vld [vmem:[%s0 + $0x9c] sm:$0xf]
  %v58 = vld [vmem:[%s0 + $0xa0] sm:$0xf]
  %v59 = vld [vmem:[%s0 + $0xa4] sm:$0xf]
  %v60 = vld [vmem:[%s0 + $0xa8] sm:$0xf]
  %v61 = vld [vmem:[%s0 + $0xac] sm:$0xf]
  %v62 = vld [vmem:[%s0 + $0xb0] sm:$0xf]
  %v63 = vld [vmem:[%s0 + $0xb4] sm:$0xf]
  %v64 = vld [vmem:[%s0 + $0xb8] sm:$0xf]
  %v65 = vld [vmem:[%s0 + $0xbc] sm:$0xf]
  %v66 = vld [vmem:[%s0 + $0xc0] sm:$0xf]
  %v67 = vld [vmem:[%s0 + $0xc4] sm:$0xf]
  %v68 = vld [vmem:[%s0 + $0xc8] sm:$0xf]
  %v69 = vld [vmem:[%s0 + $0xcc] sm:$0xf]
  %v70 = vld [vmem:[%s0 + $0xd0] sm:$0xf]
  %v71 = vld [vmem:[%s0 + $0xd4] sm:$0xf]
  %v72 = vld [vmem:[%s0 + $0xd8] sm:$0xf]
  %v73 = vld [vmem:[%s0 + $0xdc] sm:$0xf]
  %v74 = vld [vmem:[%s0 + $0xe0] sm:$0xf]
  %v75 = vld [vmem:[%s0 + $0xe4] sm:$0xf]
  %v76 = vld [vmem:[%s0 + $0xe8] sm:$0xf]
  %v77 = vld [vmem:[%s0 + $0xec] sm:$0xf]
  %v78 = vld [vmem:[%s0 + $0xf0] sm:$0xf]
  %v79 = vld [vmem:[%s0 + $0xf4] sm:$0xf]
  %v80 = vld [vmem:[%s0 + $0xf8] sm:$0xf]
  %v81 = vld [vmem:[%s0 + $0xfc] sm:$0xf]
  %v82 = vld [vmem:[%s1] sm:$0xf]
  %v83 = vld [vmem:[%s1 + $0x4] sm:$0xf]
  %v84 = vld [vmem:[%s1 + $0x8] sm:$0xf]
  %v85 = vld [vmem:[%s1 + $0xc] sm:$0x3]
  %v150 = vunpack.c.l.b16 %v18
  %v151 = vunpack.c.l.b16 %v19
  %v152 = vunpack.c.l.b16 %v20
  %v153 = vunpack.c.l.b16 %v21
  %v154 = vunpack.c.l.b16 %v22
  %v155 = vunpack.c.l.b16 %v23
  %v156 = vunpack.c.l.b16 %v24
  %v157 = vunpack.c.l.b16 %v25
  %v158 = vunpack.c.l.b16 %v26
  %v159 = vunpack.c.l.b16 %v27
  %v160 = vunpack.c.l.b16 %v28
  %v161 = vunpack.c.l.b16 %v29
  %v162 = vunpack.c.l.b16 %v30
  %v163 = vunpack.c.l.b16 %v31
  %v164 = vunpack.c.l.b16 %v32
  %v165 = vunpack.c.l.b16 %v33
  %v166 = vunpack.c.l.b16 %v34
  %v167 = vunpack.c.l.b16 %v35
  %v168 = vunpack.c.l.b16 %v36
  %v169 = vunpack.c.l.b16 %v37
  %v170 = vunpack.c.l.b16 %v38
  %v171 = vunpack.c.l.b16 %v39
  %v172 = vunpack.c.l.b16 %v40
  %v173 = vunpack.c.l.b16 %v41
  %v174 = vunpack.c.l.b16 %v42
  %v175 = vunpack.c.l.b16 %v43
  %v176 = vunpack.c.l.b16 %v44
  %v177 = vunpack.c.l.b16 %v45
  %v178 = vunpack.c.l.b16 %v46
  %v179 = vunpack.c.l.b16 %v47
  %v180 = vunpack.c.l.b16 %v48
  %v181 = vunpack.c.l.b16 %v49
  %v182 = vunpack.c.l.b16 %v50
  %v183 = vunpack.c.l.b16 %v51
  %v184 = vunpack.c.l.b16 %v52
  %v185 = vunpack.c.l.b16 %v53
  %v186 = vunpack.c.l.b16 %v54
  %v187 = vunpack.c.l.b16 %v55
  %v188 = vunpack.c.l.b16 %v56
  %v189 = vunpack.c.l.b16 %v57
  %v190 = vunpack.c.l.b16 %v58
  %v191 = vunpack.c.l.b16 %v59
  %v192 = vunpack.c.l.b16 %v60
  %v193 = vunpack.c.l.b16 %v61
  %v194 = vunpack.c.l.b16 %v62
  %v195 = vunpack.c.l.b16 %v63
  %v196 = vunpack.c.l.b16 %v64
  %v197 = vunpack.c.l.b16 %v65
  %v198 = vunpack.c.l.b16 %v66
  %v199 = vunpack.c.l.b16 %v67
  %v200 = vunpack.c.l.b16 %v68
  %v201 = vunpack.c.l.b16 %v69
  %v202 = vunpack.c.l.b16 %v70
  %v203 = vunpack.c.l.b16 %v71
  %v204 = vunpack.c.l.b16 %v72
  %v205 = vunpack.c.l.b16 %v73
  %v206 = vunpack.c.l.b16 %v74
  %v207 = vunpack.c.l.b16 %v75
  %v208 = vunpack.c.l.b16 %v76
  %v209 = vunpack.c.l.b16 %v77
  %v210 = vunpack.c.l.b16 %v78
  %v211 = vunpack.c.l.b16 %v79
  %v212 = vunpack.c.l.b16 %v80
  %v213 = vunpack.c.l.b16 %v81
  %v214 = vpack.c.b16 %v151, %v150
  %v215 = vpack.c.b16 %v153, %v152
  %v216 = vpack.c.b16 %v155, %v154
  %v217 = vpack.c.b16 %v157, %v156
  %v218 = vpack.c.b16 %v159, %v158
  %v219 = vpack.c.b16 %v161, %v160
  %v220 = vpack.c.b16 %v163, %v162
  %v221 = vpack.c.b16 %v165, %v164
  %v222 = vpack.c.b16 %v167, %v166
  %v223 = vpack.c.b16 %v169, %v168
  %v224 = vpack.c.b16 %v171, %v170
  %v225 = vpack.c.b16 %v173, %v172
  %v226 = vpack.c.b16 %v175, %v174
  %v227 = vpack.c.b16 %v177, %v176
  %v228 = vpack.c.b16 %v179, %v178
  %v229 = vpack.c.b16 %v181, %v180
  %v230 = vpack.c.b16 %v183, %v182
  %v231 = vpack.c.b16 %v185, %v184
  %v232 = vpack.c.b16 %v187, %v186
  %v233 = vpack.c.b16 %v189, %v188
  %v234 = vpack.c.b16 %v191, %v190
  %v235 = vpack.c.b16 %v193, %v192
  %v236 = vpack.c.b16 %v195, %v194
  %v237 = vpack.c.b16 %v197, %v196
  %v238 = vpack.c.b16 %v199, %v198
  %v239 = vpack.c.b16 %v201, %v200
  %v240 = vpack.c.b16 %v203, %v202
  %v241 = vpack.c.b16 %v205, %v204
  %v242 = vpack.c.b16 %v207, %v206
  %v243 = vpack.c.b16 %v209, %v208
  %v244 = vpack.c.b16 %v211, %v210
  %v245 = vpack.c.b16 %v213, %v212
  %v250 = vunpack.c.l.b16 %v82
  %v251 = vunpack.c.l.b16 %v83
  %v252 = vunpack.c.l.b16 %v84
  %v253 = vunpack.c.l.b16 %v85
  %v254 = vpack.c.b16 %v251, %v250
  %v255 = vpack.c.b16 %v253, %v252
  %vm257 = vcmask 220160
  %v259 = vsel %vm257, %v214, 0
  %v262 = vsel %vm257, %v215, 0
  %v265 = vsel %vm257, %v216, 0
  %v268 = vsel %vm257, %v217, 0
  %v271 = vsel %vm257, %v218, 0
  %v274 = vsel %vm257, %v219, 0
  %v277 = vsel %vm257, %v220, 0
  %v280 = vsel %vm257, %v221, 0
  %v283 = vsel %vm257, %v222, 0
  %v286 = vsel %vm257, %v223, 0
  %v289 = vsel %vm257, %v224, 0
  %v292 = vsel %vm257, %v225, 0
  %v295 = vsel %vm257, %v226, 0
  %v298 = vsel %vm257, %v227, 0
  %v301 = vsel %vm257, %v228, 0
  %v304 = vsel %vm257, %v229, 0
  %v307 = vsel %vm257, %v230, 0
  %v310 = vsel %vm257, %v231, 0
  %v313 = vsel %vm257, %v232, 0
  %v316 = vsel %vm257, %v233, 0
  %v319 = vsel %vm257, %v234, 0
  %v322 = vsel %vm257, %v235, 0
  %v325 = vsel %vm257, %v236, 0
  %v328 = vsel %vm257, %v237, 0
  %v331 = vsel %vm257, %v238, 0
  %v334 = vsel %vm257, %v239, 0
  %v337 = vsel %vm257, %v240, 0
  %v340 = vsel %vm257, %v241, 0
  %v343 = vsel %vm257, %v242, 0
  %v346 = vsel %vm257, %v243, 0
  %v349 = vsel %vm257, %v244, 0
  %v352 = vsel %vm257, %v245, 0
  %vm354 = vcmask 1044480
  %vm355 = vcmask 1045504
  %v356 = vsel %vm354, 4294967295, 65535
  %v357 = vsel %vm355, %v356, 0
  %v359 = vand.u32 %v255, %v357
  %361 = vmatprep.subr.bf16.mxu0 0
  %362 = vmatpush1.bf16.msra.mxu0 %v254
  %363 = vmatprep.subr.bf16.mxu0 0
  %364 = vmatpush1.bf16.msra.mxu0 %v359
  %365 = vmatprep.subr.bf16.mxu0 0
  %366 = vmatpush1.bf16.msra.mxu0 0
  %367 = vmatprep.subr.bf16.mxu0 0
  %368 = vmatpush1.bf16.msra.mxu0 0
  %369 = vmatprep.subr.bf16.mxu0 0
  %370 = vmatpush1.bf16.msra.mxu0 0
  %371 = vmatprep.subr.bf16.mxu0 0
  %372 = vmatpush1.bf16.msra.mxu0 0
  %373 = vmatprep.subr.bf16.mxu0 0
  %374 = vmatpush1.bf16.msra.mxu0 0
  %375 = vmatprep.subr.bf16.mxu0 0
  %376 = vmatpush1.bf16.msra.mxu0 0
  %377 = vmatprep.subr.bf16.mxu0 0
  %378 = vmatpush1.bf16.msra.mxu0 0
  %379 = vmatprep.subr.bf16.mxu0 0
  %380 = vmatpush1.bf16.msra.mxu0 0
  %381 = vmatprep.subr.bf16.mxu0 0
  %382 = vmatpush1.bf16.msra.mxu0 0
  %383 = vmatprep.subr.bf16.mxu0 0
  %384 = vmatpush1.bf16.msra.mxu0 0
  %385 = vmatprep.subr.bf16.mxu0 0
  %386 = vmatpush1.bf16.msra.mxu0 0
  %387 = vmatprep.subr.bf16.mxu0 0
  %388 = vmatpush1.bf16.msra.mxu0 0
  %389 = vmatprep.subr.bf16.mxu0 0
  %390 = vmatpush1.bf16.msra.mxu0 0
  %391 = vmatprep.subr.bf16.mxu0 0
  %392 = vmatpush1.bf16.msra.mxu0 0
  %393 = vmatprep.mubr.bf16.mxu0 0
  %394 = vmatmul.mubr.bf16.gmra.mrb[0].mxu0 %v259
  %v395 = vpop.f32.mrb[0].mxu0
  %v396 = vadd.f32 0.0, %v395
  %v397 = vpop.f32.mrb[0].mxu0
  %v398 = vpop.f32.mrb[0].mxu0
  %v399 = vadd.f32 0.0, %v398
  %v400 = vpop.f32.mrb[0].mxu0
  %401 = vmatprep.mubr.bf16.mxu0 0
  %402 = vmatmul.mubr.bf16.gmra.mrb[0].mxu0 %v262
  %v403 = vpop.f32.mrb[0].mxu0
  %v404 = vadd.f32 0.0, %v403
  %v405 = vpop.f32.mrb[0].mxu0
  %v406 = vpop.f32.mrb[0].mxu0
  %v407 = vadd.f32 0.0, %v406
  %v408 = vpop.f32.mrb[0].mxu0
  %409 = vmatprep.mubr.bf16.mxu0 0
  %410 = vmatmul.mubr.bf16.gmra.mrb[0].mxu0 %v265
  %v411 = vpop.f32.mrb[0].mxu0
  %v412 = vadd.f32 0.0, %v411
  %v413 = vpop.f32.mrb[0].mxu0
  %v414 = vpop.f32.mrb[0].mxu0
  %v415 = vadd.f32 0.0, %v414
  %v416 = vpop.f32.mrb[0].mxu0
  %417 = vmatprep.mubr.bf16.mxu0 0
  %418 = vmatmul.mubr.bf16.gmra.mrb[0].mxu0 %v268
  %v419 = vpop.f32.mrb[0].mxu0
  %v420 = vadd.f32 0.0, %v419
  %v421 = vpop.f32.mrb[0].mxu0
  %v422 = vpop.f32.mrb[0].mxu0
  %v423 = vadd.f32 0.0, %v422
  %v424 = vpop.f32.mrb[0].mxu0
  %425 = vmatprep.mubr.bf16.mxu0 0
  %426 = vmatmul.mubr.bf16.gmra.mrb[0].mxu0 %v271
  %v427 = vpop.f32.mrb[0].mxu0
  %v428 = vadd.f32 0.0, %v427
  %v429 = vpop.f32.mrb[0].mxu0
  %v430 = vpop.f32.mrb[0].mxu0
  %v431 = vadd.f32 0.0, %v430
  %v432 = vpop.f32.mrb[0].mxu0
  %433 = vmatprep.mubr.bf16.mxu0 0
  %434 = vmatmul.mubr.bf16.gmra.mrb[0].mxu0 %v274
  %v435 = vpop.f32.mrb[0].mxu0
  %v436 = vadd.f32 0.0, %v435
  %v437 = vpop.f32.mrb[0].mxu0
  %v438 = vpop.f32.mrb[0].mxu0
  %v439 = vadd.f32 0.0, %v438
  %v440 = vpop.f32.mrb[0].mxu0
  %441 = vmatprep.mubr.bf16.mxu0 0
  %442 = vmatmul.mubr.bf16.gmra.mrb[0].mxu0 %v277
  %v443 = vpop.f32.mrb[0].mxu0
  %v444 = vadd.f32 0.0, %v443
  %v445 = vpop.f32.mrb[0].mxu0
  %v446 = vpop.f32.mrb[0].mxu0
  %v447 = vadd.f32 0.0, %v446
  %v448 = vpop.f32.mrb[0].mxu0
  %449 = vmatprep.mubr.bf16.mxu0 0
  %450 = vmatmul.mubr.bf16.gmra.mrb[0].mxu0 %v280
  %v451 = vpop.f32.mrb[0].mxu0
  %v452 = vadd.f32 0.0, %v451
  %v453 = vpop.f32.mrb[0].mxu0
  %v454 = vpop.f32.mrb[0].mxu0
  %v455 = vadd.f32 0.0, %v454
  %v456 = vpop.f32.mrb[0].mxu0
  %457 = vmatprep.mubr.bf16.mxu0 0
  %458 = vmatmul.mubr.bf16.gmra.mrb[0].mxu0 %v283
  %v459 = vpop.f32.mrb[0].mxu0
  %v460 = vadd.f32 0.0, %v459
  %v461 = vpop.f32.mrb[0].mxu0
  %v462 = vpop.f32.mrb[0].mxu0
  %v463 = vadd.f32 0.0, %v462
  %v464 = vpop.f32.mrb[0].mxu0
  %465 = vmatprep.mubr.bf16.mxu0 0
  %466 = vmatmul.mubr.bf16.gmra.mrb[0].mxu0 %v286
  %v467 = vpop.f32.mrb[0].mxu0
  %v468 = vadd.f32 0.0, %v467
  %v469 = vpop.f32.mrb[0].mxu0
  %v470 = vpop.f32.mrb[0].mxu0
  %v471 = vadd.f32 0.0, %v470
  %v472 = vpop.f32.mrb[0].mxu0
  %473 = vmatprep.mubr.bf16.mxu0 0
  %474 = vmatmul.mubr.bf16.gmra.mrb[0].mxu0 %v289
  %v475 = vpop.f32.mrb[0].mxu0
  %v476 = vadd.f32 0.0, %v475
  %v477 = vpop.f32.mrb[0].mxu0
  %v478 = vpop.f32.mrb[0].mxu0
  %v479 = vadd.f32 0.0, %v478
  %v480 = vpop.f32.mrb[0].mxu0
  %481 = vmatprep.mubr.bf16.mxu0 0
  %482 = vmatmul.mubr.bf16.gmra.mrb[0].mxu0 %v292
  %v483 = vpop.f32.mrb[0].mxu0
  %v484 = vadd.f32 0.0, %v483
  %v485 = vpop.f32.mrb[0].mxu0
  %v486 = vpop.f32.mrb[0].mxu0
  %v487 = vadd.f32 0.0, %v486
  %v488 = vpop.f32.mrb[0].mxu0
  %489 = vmatprep.mubr.bf16.mxu0 0
  %490 = vmatmul.mubr.bf16.gmra.mrb[0].mxu0 %v295
  %v491 = vpop.f32.mrb[0].mxu0
  %v492 = vadd.f32 0.0, %v491
  %v493 = vpop.f32.mrb[0].mxu0
  %v494 = vpop.f32.mrb[0].mxu0
  %v495 = vadd.f32 0.0, %v494
  %v496 = vpop.f32.mrb[0].mxu0
  %497 = vmatprep.mubr.bf16.mxu0 0
  %498 = vmatmul.mubr.bf16.gmra.mrb[0].mxu0 %v298
  %v499 = vpop.f32.mrb[0].mxu0
  %v500 = vadd.f32 0.0, %v499
  %v501 = vpop.f32.mrb[0].mxu0
  %v502 = vpop.f32.mrb[0].mxu0
  %v503 = vadd.f32 0.0, %v502
  %v504 = vpop.f32.mrb[0].mxu0
  %505 = vmatprep.mubr.bf16.mxu0 0
  %506 = vmatmul.mubr.bf16.gmra.mrb[0].mxu0 %v301
  %v507 = vpop.f32.mrb[0].mxu0
  %v508 = vadd.f32 0.0, %v507
  %v509 = vpop.f32.mrb[0].mxu0
  %v510 = vpop.f32.mrb[0].mxu0
  %v511 = vadd.f32 0.0, %v510
  %v512 = vpop.f32.mrb[0].mxu0
  %513 = vmatprep.mubr.bf16.mxu0 0
  %514 = vmatmul.mubr.bf16.gmra.mrb[0].mxu0 %v304
  %v515 = vpop.f32.mrb[0].mxu0
  %v516 = vadd.f32 0.0, %v515
  %v517 = vpop.f32.mrb[0].mxu0
  %v518 = vpop.f32.mrb[0].mxu0
  %v519 = vadd.f32 0.0, %v518
  %v520 = vpop.f32.mrb[0].mxu0
  %521 = vmatprep.mubr.bf16.mxu0 0
  %522 = vmatmul.mubr.bf16.gmra.mrb[0].mxu0 %v307
  %v523 = vpop.f32.mrb[0].mxu0
  %v524 = vadd.f32 0.0, %v523
  %v525 = vpop.f32.mrb[0].mxu0
  %v526 = vpop.f32.mrb[0].mxu0
  %v527 = vadd.f32 0.0, %v526
  %v528 = vpop.f32.mrb[0].mxu0
  %529 = vmatprep.mubr.bf16.mxu0 0
  %530 = vmatmul.mubr.bf16.gmra.mrb[0].mxu0 %v310
  %v531 = vpop.f32.mrb[0].mxu0
  %v532 = vadd.f32 0.0, %v531
  %v533 = vpop.f32.mrb[0].mxu0
  %v534 = vpop.f32.mrb[0].mxu0
  %v535 = vadd.f32 0.0, %v534
  %v536 = vpop.f32.mrb[0].mxu0
  %537 = vmatprep.mubr.bf16.mxu0 0
  %538 = vmatmul.mubr.bf16.gmra.mrb[0].mxu0 %v313
  %v539 = vpop.f32.mrb[0].mxu0
  %v540 = vadd.f32 0.0, %v539
  %v541 = vpop.f32.mrb[0].mxu0
  %v542 = vpop.f32.mrb[0].mxu0
  %v543 = vadd.f32 0.0, %v542
  %v544 = vpop.f32.mrb[0].mxu0
  %545 = vmatprep.mubr.bf16.mxu0 0
  %546 = vmatmul.mubr.bf16.gmra.mrb[0].mxu0 %v316
  %v547 = vpop.f32.mrb[0].mxu0
  %v548 = vadd.f32 0.0, %v547
  %v549 = vpop.f32.mrb[0].mxu0
  %v550 = vpop.f32.mrb[0].mxu0
  %v551 = vadd.f32 0.0, %v550
  %v552 = vpop.f32.mrb[0].mxu0
  %553 = vmatprep.mubr.bf16.mxu0 0
  %554 = vmatmul.mubr.bf16.gmra.mrb[0].mxu0 %v319
  %v555 = vpop.f32.mrb[0].mxu0
  %v556 = vadd.f32 0.0, %v555
  %v557 = vpop.f32.mrb[0].mxu0
  %v558 = vpop.f32.mrb[0].mxu0
  %v559 = vadd.f32 0.0, %v558
  %v560 = vpop.f32.mrb[0].mxu0
  %561 = vmatprep.mubr.bf16.mxu0 0
  %562 = vmatmul.mubr.bf16.gmra.mrb[0].mxu0 %v322
  %v563 = vpop.f32.mrb[0].mxu0
  %v564 = vadd.f32 0.0, %v563
  %v565 = vpop.f32.mrb[0].mxu0
  %v566 = vpop.f32.mrb[0].mxu0
  %v567 = vadd.f32 0.0, %v566
  %v568 = vpop.f32.mrb[0].mxu0
  %569 = vmatprep.mubr.bf16.mxu0 0
  %570 = vmatmul.mubr.bf16.gmra.mrb[0].mxu0 %v325
  %v571 = vpop.f32.mrb[0].mxu0
  %v572 = vadd.f32 0.0, %v571
  %v573 = vpop.f32.mrb[0].mxu0
  %v574 = vpop.f32.mrb[0].mxu0
  %v575 = vadd.f32 0.0, %v574
  %v576 = vpop.f32.mrb[0].mxu0
  %577 = vmatprep.mubr.bf16.mxu0 0
  %578 = vmatmul.mubr.bf16.gmra.mrb[0].mxu0 %v328
  %v579 = vpop.f32.mrb[0].mxu0
  %v580 = vadd.f32 0.0, %v579
  %v581 = vpop.f32.mrb[0].mxu0
  %v582 = vpop.f32.mrb[0].mxu0
  %v583 = vadd.f32 0.0, %v582
  %v584 = vpop.f32.mrb[0].mxu0
  %585 = vmatprep.mubr.bf16.mxu0 0
  %586 = vmatmul.mubr.bf16.gmra.mrb[0].mxu0 %v331
  %v587 = vpop.f32.mrb[0].mxu0
  %v588 = vadd.f32 0.0, %v587
  %v589 = vpop.f32.mrb[0].mxu0
  %v590 = vpop.f32.mrb[0].mxu0
  %v591 = vadd.f32 0.0, %v590
  %v592 = vpop.f32.mrb[0].mxu0
  %593 = vmatprep.mubr.bf16.mxu0 0
  %594 = vmatmul.mubr.bf16.gmra.mrb[0].mxu0 %v334
  %v595 = vpop.f32.mrb[0].mxu0
  %v596 = vadd.f32 0.0, %v595
  %v597 = vpop.f32.mrb[0].mxu0
  %v598 = vpop.f32.mrb[0].mxu0
  %v599 = vadd.f32 0.0, %v598
  %v600 = vpop.f32.mrb[0].mxu0
  %601 = vmatprep.mubr.bf16.mxu0 0
  %602 = vmatmul.mubr.bf16.gmra.mrb[0].mxu0 %v337
  %v603 = vpop.f32.mrb[0].mxu0
  %v604 = vadd.f32 0.0, %v603
  %v605 = vpop.f32.mrb[0].mxu0
  %v606 = vpop.f32.mrb[0].mxu0
  %v607 = vadd.f32 0.0, %v606
  %v608 = vpop.f32.mrb[0].mxu0
  %609 = vmatprep.mubr.bf16.mxu0 0
  %610 = vmatmul.mubr.bf16.gmra.mrb[0].mxu0 %v340
  %v611 = vpop.f32.mrb[0].mxu0
  %v612 = vadd.f32 0.0, %v611
  %v613 = vpop.f32.mrb[0].mxu0
  %v614 = vpop.f32.mrb[0].mxu0
  %v615 = vadd.f32 0.0, %v614
  %v616 = vpop.f32.mrb[0].mxu0
  %617 = vmatprep.mubr.bf16.mxu0 0
  %618 = vmatmul.mubr.bf16.gmra.mrb[0].mxu0 %v343
  %v619 = vpop.f32.mrb[0].mxu0
  %v620 = vadd.f32 0.0, %v619
  %v621 = vpop.f32.mrb[0].mxu0
  %v622 = vpop.f32.mrb[0].mxu0
  %v623 = vadd.f32 0.0, %v622
  %v624 = vpop.f32.mrb[0].mxu0
  %625 = vmatprep.mubr.bf16.mxu0 0
  %626 = vmatmul.mubr.bf16.gmra.mrb[0].mxu0 %v346
  %v627 = vpop.f32.mrb[0].mxu0
  %v628 = vadd.f32 0.0, %v627
  %v629 = vpop.f32.mrb[0].mxu0
  %v630 = vpop.f32.mrb[0].mxu0
  %v631 = vadd.f32 0.0, %v630
  %v632 = vpop.f32.mrb[0].mxu0
  %633 = vmatprep.mubr.bf16.mxu0 0
  %634 = vmatmul.mubr.bf16.gmra.mrb[0].mxu0 %v349
  %v635 = vpop.f32.mrb[0].mxu0
  %v636 = vadd.f32 0.0, %v635
  %v637 = vpop.f32.mrb[0].mxu0
  %v638 = vpop.f32.mrb[0].mxu0
  %v639 = vadd.f32 0.0, %v638
  %v640 = vpop.f32.mrb[0].mxu0
  %641 = vmatprep.mubr.bf16.mxu0 0
  %642 = vmatmul.mubr.bf16.gmra.mrb[0].mxu0 %v352
  %v643 = vpop.f32.mrb[0].mxu0
  %v644 = vadd.f32 0.0, %v643
  %v645 = vpop.f32.mrb[0].mxu0
  %v646 = vpop.f32.mrb[0].mxu0
  %v647 = vadd.f32 0.0, %v646
  %v648 = vpop.f32.mrb[0].mxu0
  %649 = vdwg.mxu0
  %v650 = vld [vmem:[%s2] sm:$0x1]
  %v652 = vlaneseq
  %v653 = vshrl.u32 %v652, 7
  %v654 = vsub.s32 0, %v653
  %v655 = vrot.slane %v650, %v654
  %v657 = vmul.f32 %v396, %v655
  %v658 = vmul.f32 %v399, %v655
  %v659 = vmul.f32 %v404, %v655
  %v660 = vmul.f32 %v407, %v655
  %v661 = vmul.f32 %v412, %v655
  %v662 = vmul.f32 %v415, %v655
  %v663 = vmul.f32 %v420, %v655
  %v664 = vmul.f32 %v423, %v655
  %v665 = vmul.f32 %v428, %v655
  %v666 = vmul.f32 %v431, %v655
  %v667 = vmul.f32 %v436, %v655
  %v668 = vmul.f32 %v439, %v655
  %v669 = vmul.f32 %v444, %v655
  %v670 = vmul.f32 %v447, %v655
  %v671 = vmul.f32 %v452, %v655
  %v672 = vmul.f32 %v455, %v655
  %v673 = vmul.f32 %v460, %v655
  %v674 = vmul.f32 %v463, %v655
  %v675 = vmul.f32 %v468, %v655
  %v676 = vmul.f32 %v471, %v655
  %v677 = vmul.f32 %v476, %v655
  %v678 = vmul.f32 %v479, %v655
  %v679 = vmul.f32 %v484, %v655
  %v680 = vmul.f32 %v487, %v655
  %v681 = vmul.f32 %v492, %v655
  %v682 = vmul.f32 %v495, %v655
  %v683 = vmul.f32 %v500, %v655
  %v684 = vmul.f32 %v503, %v655
  %v685 = vmul.f32 %v508, %v655
  %v686 = vmul.f32 %v511, %v655
  %v687 = vmul.f32 %v516, %v655
  %v688 = vmul.f32 %v519, %v655
  %v689 = vmul.f32 %v524, %v655
  %v690 = vmul.f32 %v527, %v655
  %v691 = vmul.f32 %v532, %v655
  %v692 = vmul.f32 %v535, %v655
  %v693 = vmul.f32 %v540, %v655
  %v694 = vmul.f32 %v543, %v655
  %v695 = vmul.f32 %v548, %v655
  %v696 = vmul.f32 %v551, %v655
  %v697 = vmul.f32 %v556, %v655
  %v698 = vmul.f32 %v559, %v655
  %v699 = vmul.f32 %v564, %v655
  %v700 = vmul.f32 %v567, %v655
  %v701 = vmul.f32 %v572, %v655
  %v702 = vmul.f32 %v575, %v655
  %v703 = vmul.f32 %v580, %v655
  %v704 = vmul.f32 %v583, %v655
  %v705 = vmul.f32 %v588, %v655
  %v706 = vmul.f32 %v591, %v655
  %v707 = vmul.f32 %v596, %v655
  %v708 = vmul.f32 %v599, %v655
  %v709 = vmul.f32 %v604, %v655
  %v710 = vmul.f32 %v607, %v655
  %v711 = vmul.f32 %v612, %v655
  %v712 = vmul.f32 %v615, %v655
  %v713 = vmul.f32 %v620, %v655
  %v714 = vmul.f32 %v623, %v655
  %v715 = vmul.f32 %v628, %v655
  %v716 = vmul.f32 %v631, %v655
  %v717 = vmul.f32 %v636, %v655
  %v718 = vmul.f32 %v639, %v655
  %v719 = vmul.f32 %v644, %v655
  %v720 = vmul.f32 %v647, %v655
  %v721 = vld [vmem:[%s3] sm:$0x1]
  %v723 = vlaneseq
  %v724 = vshrl.u32 %v723, 7
  %v725 = vsub.s32 0, %v724
  %v726 = vrot.slane %v721, %v725
  %v728 = vadd.f32 %v657, %v726
  %v729 = vadd.f32 %v658, %v726
  %v730 = vadd.f32 %v659, %v726
  %v731 = vadd.f32 %v660, %v726
  %v732 = vadd.f32 %v661, %v726
  %v733 = vadd.f32 %v662, %v726
  %v734 = vadd.f32 %v663, %v726
  %v735 = vadd.f32 %v664, %v726
  %v736 = vadd.f32 %v665, %v726
  %v737 = vadd.f32 %v666, %v726
  %v738 = vadd.f32 %v667, %v726
  %v739 = vadd.f32 %v668, %v726
  %v740 = vadd.f32 %v669, %v726
  %v741 = vadd.f32 %v670, %v726
  %v742 = vadd.f32 %v671, %v726
  %v743 = vadd.f32 %v672, %v726
  %v744 = vadd.f32 %v673, %v726
  %v745 = vadd.f32 %v674, %v726
  %v746 = vadd.f32 %v675, %v726
  %v747 = vadd.f32 %v676, %v726
  %v748 = vadd.f32 %v677, %v726
  %v749 = vadd.f32 %v678, %v726
  %v750 = vadd.f32 %v679, %v726
  %v751 = vadd.f32 %v680, %v726
  %v752 = vadd.f32 %v681, %v726
  %v753 = vadd.f32 %v682, %v726
  %v754 = vadd.f32 %v683, %v726
  %v755 = vadd.f32 %v684, %v726
  %v756 = vadd.f32 %v685, %v726
  %v757 = vadd.f32 %v686, %v726
  %v758 = vadd.f32 %v687, %v726
  %v759 = vadd.f32 %v688, %v726
  %v760 = vadd.f32 %v689, %v726
  %v761 = vadd.f32 %v690, %v726
  %v762 = vadd.f32 %v691, %v726
  %v763 = vadd.f32 %v692, %v726
  %v764 = vadd.f32 %v693, %v726
  %v765 = vadd.f32 %v694, %v726
  %v766 = vadd.f32 %v695, %v726
  %v767 = vadd.f32 %v696, %v726
  %v768 = vadd.f32 %v697, %v726
  %v769 = vadd.f32 %v698, %v726
  %v770 = vadd.f32 %v699, %v726
  %v771 = vadd.f32 %v700, %v726
  %v772 = vadd.f32 %v701, %v726
  %v773 = vadd.f32 %v702, %v726
  %v774 = vadd.f32 %v703, %v726
  %v775 = vadd.f32 %v704, %v726
  %v776 = vadd.f32 %v705, %v726
  %v777 = vadd.f32 %v706, %v726
  %v778 = vadd.f32 %v707, %v726
  %v779 = vadd.f32 %v708, %v726
  %v780 = vadd.f32 %v709, %v726
  %v781 = vadd.f32 %v710, %v726
  %v782 = vadd.f32 %v711, %v726
  %v783 = vadd.f32 %v712, %v726
  %v784 = vadd.f32 %v713, %v726
  %v785 = vadd.f32 %v714, %v726
  %v786 = vadd.f32 %v715, %v726
  %v787 = vadd.f32 %v716, %v726
  %v788 = vadd.f32 %v717, %v726
  %v789 = vadd.f32 %v718, %v726
  %v790 = vadd.f32 %v719, %v726
  %v791 = vadd.f32 %v720, %v726
  %v792 = vpack.c.bf16 %v729, %v728
  %v793 = vpack.c.bf16 %v731, %v730
  %v794 = vpack.c.bf16 %v733, %v732
  %v795 = vpack.c.bf16 %v735, %v734
  %v796 = vpack.c.bf16 %v737, %v736
  %v797 = vpack.c.bf16 %v739, %v738
  %v798 = vpack.c.bf16 %v741, %v740
  %v799 = vpack.c.bf16 %v743, %v742
  %v800 = vpack.c.bf16 %v745, %v744
  %v801 = vpack.c.bf16 %v747, %v746
  %v802 = vpack.c.bf16 %v749, %v748
  %v803 = vpack.c.bf16 %v751, %v750
  %v804 = vpack.c.bf16 %v753, %v752
  %v805 = vpack.c.bf16 %v755, %v754
  %v806 = vpack.c.bf16 %v757, %v756
  %v807 = vpack.c.bf16 %v759, %v758
  %v808 = vpack.c.bf16 %v761, %v760
  %v809 = vpack.c.bf16 %v763, %v762
  %v810 = vpack.c.bf16 %v765, %v764
  %v811 = vpack.c.bf16 %v767, %v766
  %v812 = vpack.c.bf16 %v769, %v768
  %v813 = vpack.c.bf16 %v771, %v770
  %v814 = vpack.c.bf16 %v773, %v772
  %v815 = vpack.c.bf16 %v775, %v774
  %v816 = vpack.c.bf16 %v777, %v776
  %v817 = vpack.c.bf16 %v779, %v778
  %v818 = vpack.c.bf16 %v781, %v780
  %v819 = vpack.c.bf16 %v783, %v782
  %v820 = vpack.c.bf16 %v785, %v784
  %v821 = vpack.c.bf16 %v787, %v786
  %v822 = vpack.c.bf16 %v789, %v788
  %v823 = vpack.c.bf16 %v791, %v790
  %v856 = vunpack.c.l.b16 %v792
  %v857 = vunpack.c.h.b16 %v792
  %v858 = vunpack.c.l.b16 %v793
  %v859 = vunpack.c.h.b16 %v793
  %v860 = vunpack.c.l.b16 %v794
  %v861 = vunpack.c.h.b16 %v794
  %v862 = vunpack.c.l.b16 %v795
  %v863 = vunpack.c.h.b16 %v795
  %v864 = vunpack.c.l.b16 %v796
  %v865 = vunpack.c.h.b16 %v796
  %v866 = vunpack.c.l.b16 %v797
  %v867 = vunpack.c.h.b16 %v797
  %v868 = vunpack.c.l.b16 %v798
  %v869 = vunpack.c.h.b16 %v798
  %v870 = vunpack.c.l.b16 %v799
  %v871 = vunpack.c.h.b16 %v799
  %v872 = vunpack.c.l.b16 %v800
  %v873 = vunpack.c.h.b16 %v800
  %v874 = vunpack.c.l.b16 %v801
  %v875 = vunpack.c.h.b16 %v801
  %v876 = vunpack.c.l.b16 %v802
  %v877 = vunpack.c.h.b16 %v802
  %v878 = vunpack.c.l.b16 %v803
  %v879 = vunpack.c.h.b16 %v803
  %v880 = vunpack.c.l.b16 %v804
  %v881 = vunpack.c.h.b16 %v804
  %v882 = vunpack.c.l.b16 %v805
  %v883 = vunpack.c.h.b16 %v805
  %v884 = vunpack.c.l.b16 %v806
  %v885 = vunpack.c.h.b16 %v806
  %v886 = vunpack.c.l.b16 %v807
  %v887 = vunpack.c.h.b16 %v807
  %v888 = vunpack.c.l.b16 %v808
  %v889 = vunpack.c.h.b16 %v808
  %v890 = vunpack.c.l.b16 %v809
  %v891 = vunpack.c.h.b16 %v809
  %v892 = vunpack.c.l.b16 %v810
  %v893 = vunpack.c.h.b16 %v810
  %v894 = vunpack.c.l.b16 %v811
  %v895 = vunpack.c.h.b16 %v811
  %v896 = vunpack.c.l.b16 %v812
  %v897 = vunpack.c.h.b16 %v812
  %v898 = vunpack.c.l.b16 %v813
  %v899 = vunpack.c.h.b16 %v813
  %v900 = vunpack.c.l.b16 %v814
  %v901 = vunpack.c.h.b16 %v814
  %v902 = vunpack.c.l.b16 %v815
  %v903 = vunpack.c.h.b16 %v815
  %v904 = vunpack.c.l.b16 %v816
  %v905 = vunpack.c.h.b16 %v816
  %v906 = vunpack.c.l.b16 %v817
  %v907 = vunpack.c.h.b16 %v817
  %v908 = vunpack.c.l.b16 %v818
  %v909 = vunpack.c.h.b16 %v818
  %v910 = vunpack.c.l.b16 %v819
  %v911 = vunpack.c.h.b16 %v819
  %v912 = vunpack.c.l.b16 %v820
  %v913 = vunpack.c.h.b16 %v820
  %v914 = vunpack.c.l.b16 %v821
  %v915 = vunpack.c.h.b16 %v821
  %v916 = vunpack.c.l.b16 %v822
  %v917 = vunpack.c.h.b16 %v822
  %v918 = vunpack.c.l.b16 %v823
  %v919 = vunpack.c.h.b16 %v823
  %v920 = vpack.c.b16 %v856, %v856
  %v921 = vpack.c.b16 %v857, %v857
  %v922 = vpack.c.b16 %v858, %v858
  %v923 = vpack.c.b16 %v859, %v859
  %v924 = vpack.c.b16 %v860, %v860
  %v925 = vpack.c.b16 %v861, %v861
  %v926 = vpack.c.b16 %v862, %v862
  %v927 = vpack.c.b16 %v863, %v863
  %v928 = vpack.c.b16 %v864, %v864
  %v929 = vpack.c.b16 %v865, %v865
  %v930 = vpack.c.b16 %v866, %v866
  %v931 = vpack.c.b16 %v867, %v867
  %v932 = vpack.c.b16 %v868, %v868
  %v933 = vpack.c.b16 %v869, %v869
  %v934 = vpack.c.b16 %v870, %v870
  %v935 = vpack.c.b16 %v871, %v871
  %v936 = vpack.c.b16 %v872, %v872
  %v937 = vpack.c.b16 %v873, %v873
  %v938 = vpack.c.b16 %v874, %v874
  %v939 = vpack.c.b16 %v875, %v875
  %v940 = vpack.c.b16 %v876, %v876
  %v941 = vpack.c.b16 %v877, %v877
  %v942 = vpack.c.b16 %v878, %v878
  %v943 = vpack.c.b16 %v879, %v879
  %v944 = vpack.c.b16 %v880, %v880
  %v945 = vpack.c.b16 %v881, %v881
  %v946 = vpack.c.b16 %v882, %v882
  %v947 = vpack.c.b16 %v883, %v883
  %v948 = vpack.c.b16 %v884, %v884
  %v949 = vpack.c.b16 %v885, %v885
  %v950 = vpack.c.b16 %v886, %v886
  %v951 = vpack.c.b16 %v887, %v887
  %v952 = vpack.c.b16 %v888, %v888
  %v953 = vpack.c.b16 %v889, %v889
  %v954 = vpack.c.b16 %v890, %v890
  %v955 = vpack.c.b16 %v891, %v891
  %v956 = vpack.c.b16 %v892, %v892
  %v957 = vpack.c.b16 %v893, %v893
  %v958 = vpack.c.b16 %v894, %v894
  %v959 = vpack.c.b16 %v895, %v895
  %v960 = vpack.c.b16 %v896, %v896
  %v961 = vpack.c.b16 %v897, %v897
  %v962 = vpack.c.b16 %v898, %v898
  %v963 = vpack.c.b16 %v899, %v899
  %v964 = vpack.c.b16 %v900, %v900
  %v965 = vpack.c.b16 %v901, %v901
  %v966 = vpack.c.b16 %v902, %v902
  %v967 = vpack.c.b16 %v903, %v903
  %v968 = vpack.c.b16 %v904, %v904
  %v969 = vpack.c.b16 %v905, %v905
  %v970 = vpack.c.b16 %v906, %v906
  %v971 = vpack.c.b16 %v907, %v907
  %v972 = vpack.c.b16 %v908, %v908
  %v973 = vpack.c.b16 %v909, %v909
  %v974 = vpack.c.b16 %v910, %v910
  %v975 = vpack.c.b16 %v911, %v911
  %v976 = vpack.c.b16 %v912, %v912
  %v977 = vpack.c.b16 %v913, %v913
  %v978 = vpack.c.b16 %v914, %v914
  %v979 = vpack.c.b16 %v915, %v915
  %v980 = vpack.c.b16 %v916, %v916
  %v981 = vpack.c.b16 %v917, %v917
  %v982 = vpack.c.b16 %v918, %v918
  %v983 = vpack.c.b16 %v919, %v919
  %1048 = vst [vmem:[%s4] sm:$0xf] %v920
  %1049 = vst [vmem:[%s4 + $0x4] sm:$0xf] %v921
  %1050 = vst [vmem:[%s4 + $0x8] sm:$0xf] %v922
  %1051 = vst [vmem:[%s4 + $0xc] sm:$0xf] %v923
  %1052 = vst [vmem:[%s4 + $0x10] sm:$0xf] %v924
  %1053 = vst [vmem:[%s4 + $0x14] sm:$0xf] %v925
  %1054 = vst [vmem:[%s4 + $0x18] sm:$0xf] %v926
  %1055 = vst [vmem:[%s4 + $0x1c] sm:$0xf] %v927
  %1056 = vst [vmem:[%s4 + $0x20] sm:$0xf] %v928
  %1057 = vst [vmem:[%s4 + $0x24] sm:$0xf] %v929
  %1058 = vst [vmem:[%s4 + $0x28] sm:$0xf] %v930
  %1059 = vst [vmem:[%s4 + $0x2c] sm:$0xf] %v931
  %1060 = vst [vmem:[%s4 + $0x30] sm:$0xf] %v932
  %1061 = vst [vmem:[%s4 + $0x34] sm:$0xf] %v933
  %1062 = vst [vmem:[%s4 + $0x38] sm:$0xf] %v934
  %1063 = vst [vmem:[%s4 + $0x3c] sm:$0xf] %v935
  %1064 = vst [vmem:[%s4 + $0x40] sm:$0xf] %v936
  %1065 = vst [vmem:[%s4 + $0x44] sm:$0xf] %v937
  %1066 = vst [vmem:[%s4 + $0x48] sm:$0xf] %v938
  %1067 = vst [vmem:[%s4 + $0x4c] sm:$0xf] %v939
  %1068 = vst [vmem:[%s4 + $0x50] sm:$0xf] %v940
  %1069 = vst [vmem:[%s4 + $0x54] sm:$0xf] %v941
  %1070 = vst [vmem:[%s4 + $0x58] sm:$0xf] %v942
  %1071 = vst [vmem:[%s4 + $0x5c] sm:$0xf] %v943
  %1072 = vst [vmem:[%s4 + $0x60] sm:$0xf] %v944
  %1073 = vst [vmem:[%s4 + $0x64] sm:$0xf] %v945
  %1074 = vst [vmem:[%s4 + $0x68] sm:$0xf] %v946
  %1075 = vst [vmem:[%s4 + $0x6c] sm:$0xf] %v947
  %1076 = vst [vmem:[%s4 + $0x70] sm:$0xf] %v948
  %1077 = vst [vmem:[%s4 + $0x74] sm:$0xf] %v949
  %1078 = vst [vmem:[%s4 + $0x78] sm:$0xf] %v950
  %1079 = vst [vmem:[%s4 + $0x7c] sm:$0xf] %v951
  %1080 = vst [vmem:[%s4 + $0x80] sm:$0xf] %v952
  %1081 = vst [vmem:[%s4 + $0x84] sm:$0xf] %v953
  %1082 = vst [vmem:[%s4 + $0x88] sm:$0xf] %v954
  %1083 = vst [vmem:[%s4 + $0x8c] sm:$0xf] %v955
  %1084 = vst [vmem:[%s4 + $0x90] sm:$0xf] %v956
  %1085 = vst [vmem:[%s4 + $0x94] sm:$0xf] %v957
  %1086 = vst [vmem:[%s4 + $0x98] sm:$0xf] %v958
  %1087 = vst [vmem:[%s4 + $0x9c] sm:$0xf] %v959
  %1088 = vst [vmem:[%s4 + $0xa0] sm:$0xf] %v960
  %1089 = vst [vmem:[%s4 + $0xa4] sm:$0xf] %v961
  %1090 = vst [vmem:[%s4 + $0xa8] sm:$0xf] %v962
  %1091 = vst [vmem:[%s4 + $0xac] sm:$0xf] %v963
  %1092 = vst [vmem:[%s4 + $0xb0] sm:$0xf] %v964
  %1093 = vst [vmem:[%s4 + $0xb4] sm:$0xf] %v965
  %1094 = vst [vmem:[%s4 + $0xb8] sm:$0xf] %v966
  %1095 = vst [vmem:[%s4 + $0xbc] sm:$0xf] %v967
  %1096 = vst [vmem:[%s4 + $0xc0] sm:$0xf] %v968
  %1097 = vst [vmem:[%s4 + $0xc4] sm:$0xf] %v969
  %1098 = vst [vmem:[%s4 + $0xc8] sm:$0xf] %v970
  %1099 = vst [vmem:[%s4 + $0xcc] sm:$0xf] %v971
  %1100 = vst [vmem:[%s4 + $0xd0] sm:$0xf] %v972
  %1101 = vst [vmem:[%s4 + $0xd4] sm:$0xf] %v973
  %1102 = vst [vmem:[%s4 + $0xd8] sm:$0xf] %v974
  %1103 = vst [vmem:[%s4 + $0xdc] sm:$0xf] %v975
  %1104 = vst [vmem:[%s4 + $0xe0] sm:$0xf] %v976
  %1105 = vst [vmem:[%s4 + $0xe4] sm:$0xf] %v977
  %1106 = vst [vmem:[%s4 + $0xe8] sm:$0xf] %v978
  %1107 = vst [vmem:[%s4 + $0xec] sm:$0xf] %v979
  %1108 = vst [vmem:[%s4 + $0xf0] sm:$0xf] %v980
  %1109 = vst [vmem:[%s4 + $0xf4] sm:$0xf] %v981
  %1110 = vst [vmem:[%s4 + $0xf8] sm:$0xf] %v982
  %1111 = vst [vmem:[%s4 + $0xfc] sm:$0xf] %v983
  // Predicated region
  $region18: #{bengali_forward.6} parent=0 // pred_check
    _
  $region19: #{bengali_forward.6} parent=0 // pred_check_branch
    %1113 = sbr.rel (0) target = $region21
  $region20: #{bengali_forward.6} parent=0 // pred_region
    _
  $region21: #{bengali_forward.6} parent=0 // pred_fallthru
    _
  // Predicated region
  $region22: #{bengali_forward.6} parent=0 // pred_check
    _
  $region23: #{bengali_forward.6} parent=0 // pred_check_branch
    %1115 = sbr.rel (0) target = $region25
  $region24: #{bengali_forward.6} parent=0 // pred_region
    _
  $region25: #{bengali_forward.6} parent=0 // pred_fallthru
    _

// kernel: bengali_forward.7
$region0: #{bengali_forward.7}
  #allocation0 [shape = 'u32[]', space=smem, size = 0x4, offset = 0x4, fixed_abs, tag = 'smem constant byte address 0x4 - core index']
  #allocation1 [shape = 'u32[144,128]{1,0:T(1,128)}', space=vmem, size = 0x12000, scoped, tag = 'internal scratch']
  #allocation2 [shape = 'f32[18,18,128]{2,1,0:T(8,128)}', space=vmem, size = 0x36000, scoped, tag = 'scratch operand']
  %s0 = inlined_call_operand.vmem [shape: bf16[2,16,16,128], index: 0, kind: input, shape index: {}]
  %s1 = inlined_call_operand.vmem [shape: f32[9,1,128], index: 1, kind: input, shape index: {}]
  %s2 = inlined_call_operand.vmem [shape: f32[1,128], index: 2, kind: input, shape index: {}]
  %s3 = inlined_call_operand.vmem [shape: f32[1,128], index: 3, kind: input, shape index: {}]
  %s4 = inlined_call_operand.vmem [shape: bf16[128,128], index: 4, kind: input, shape index: {}]
  %s5 = inlined_call_operand.vmem [shape: f32[1,128], index: 5, kind: input, shape index: {}]
  %s6 = inlined_call_operand.vmem [shape: bf16[128,128], index: 6, kind: input, shape index: {}]
  %s7 = inlined_call_operand.vmem [shape: f32[1,128], index: 7, kind: input, shape index: {}]
  %s8 = inlined_call_operand.vmem [shape: bf16[128,128], index: 8, kind: input, shape index: {}]
  %s9 = inlined_call_operand.vmem [shape: f32[1,128], index: 9, kind: input, shape index: {}]
  %s10 = inlined_call_operand.vmem [shape: f32[1,128], index: 10, kind: input, shape index: {}]
  %s11 = inlined_call_operand.vmem [shape: bf16[2,256,128], index: 11, kind: output, shape index: {}]
  %s12 = sld [smem:[#allocation0]]
  $region77: #{bengali_forward.7} parent=0
    _
  %s14 = ssub.s32 1, %s12
  %s15 = scalar_select 0, %s14, %s12
  loop: start=0, step=1, limit=4
  $region2: #{bengali_forward.7} parent=0 // loop_pre_header
    _
  $region3: #{bengali_forward.7} parent=0 // loop_header
    %s17 = sphi 0, %s21
    %p18 = scmp.ge.s32.totalorder %s17, 4
    %s27 = sphi 0, %s29
    %s30 = sphi 0, %s27
    %s31 = sphi 0, %s30
    %s47 = sphi 0, %s31
    %s51 = sphi 0, %s51
    %s53 = sphi 0, %s51
    %s54 = sphi 0, %s53
    %s68 = sphi 0, %s54
    %s72 = sphi 0, %s72
    %s74 = sphi 0, %s72
    %s75 = sphi 0, %s74
    %s89 = sphi 0, %s75
    %s93 = sphi 0, %s93
    %s95 = sphi 0, %s93
    %s96 = sphi 0, %s95
    %s110 = sphi 0, %s96
    %s114 = sphi 0, %s114
    %s116 = sphi 0, %s114
    %s117 = sphi 0, %s116
    %s131 = sphi 0, %s117
    %s135 = sphi 0, %s135
    %s137 = sphi 0, %s135
    %s138 = sphi 0, %s137
    %s152 = sphi 0, %s138
    %s156 = sphi 0, %s156
    %s158 = sphi 0, %s156
    %s159 = sphi 0, %s158
    %s173 = sphi 0, %s159
    %s177 = sphi 0, %s177
    %s179 = sphi 0, %s177
    %s180 = sphi 0, %s179
    %s194 = sphi 0, %s180
    %s198 = sphi 0, %s198
    %s200 = sphi 0, %s198
    %s201 = sphi 0, %s200
    %s215 = sphi 0, %s201
    %s219 = sphi 0, %s219
    %s221 = sphi 0, %s219
    %s222 = sphi 0, %s221
    %s236 = sphi 0, %s222
    %s240 = sphi 0, %s240
    %s242 = sphi 0, %s240
    %s243 = sphi 0, %s242
    %s257 = sphi 0, %s243
    %s263 = sphi 0, %s265
    %s266 = sphi 0, %s263
    %s267 = sphi 0, %s266
    %s283 = sphi 0, %s267
  $region4: #{bengali_forward.7} parent=0 // loop_header_branch
    %20 = sbr.rel (%p18) target = $region8
  $region5: #{bengali_forward.7} parent=0 // loop_body
    %s22 = ssub.s32 %s17, 1
    %s23 = ssub.s32 %s17, 2
    %s24 = sadd.s32 %s17, 1
    %s25 = ssub.s32 %s17, %s24
    %p26 = scmp.eq.s32.totalorder %s25, 0
    %s28 = sadd.s32 %s27, 1
    %s29 = scalar_select %p26, %s27, %s28
    %p32 = pneg %p26
    %p33 = scmp.eq.s32.totalorder %s17, 1
    %p34 = por %p32, %p33
    %p35 = scmp.ne.s32.totalorder %s27, %s30
    %p36 = scmp.eq.s32.totalorder %s17, 0
    %p37 = por %p35, %p36
    %p38 = scmp.ne.s32.totalorder %s27, %s30
    %p39 = scmp.eq.s32.totalorder %s22, 1
    %p40 = por %p38, %p39
    %p41 = scmp.ne.s32.totalorder %s30, %s31
    %p42 = scmp.eq.s32.totalorder %s22, 0
    %p43 = por %p41, %p42
    %p44 = scmp.ne.s32.totalorder %s30, %s31
    %p45 = scmp.eq.s32.totalorder %s23, 1
    %p46 = por %p44, %p45
    %p48 = scmp.ne.s32.totalorder %s31, %s47
    %p49 = scmp.eq.s32.totalorder %s23, 0
    %p50 = por %p48, %p49
    %s52 = sadd.s32 %s51, 1
    %p55 = scmp.eq.s32.totalorder %s17, 1
    %p56 = scmp.ne.s32.totalorder %s51, %s53
    %p57 = scmp.eq.s32.totalorder %s17, 0
    %p58 = por %p56, %p57
    %p59 = scmp.ne.s32.totalorder %s51, %s53
    %p60 = scmp.eq.s32.totalorder %s22, 1
    %p61 = por %p59, %p60
    %p62 = scmp.ne.s32.totalorder %s53, %s54
    %p63 = scmp.eq.s32.totalorder %s22, 0
    %p64 = por %p62, %p63
    %p65 = scmp.ne.s32.totalorder %s53, %s54
    %p66 = scmp.eq.s32.totalorder %s23, 1
    %p67 = por %p65, %p66
    %p69 = scmp.ne.s32.totalorder %s54, %s68
    %p70 = scmp.eq.s32.totalorder %s23, 0
    %p71 = por %p69, %p70
    %s73 = sadd.s32 %s72, 1
    %p76 = scmp.eq.s32.totalorder %s17, 1
    %p77 = scmp.ne.s32.totalorder %s72, %s74
    %p78 = scmp.eq.s32.totalorder %s17, 0
    %p79 = por %p77, %p78
    %p80 = scmp.ne.s32.totalorder %s72, %s74
    %p81 = scmp.eq.s32.totalorder %s22, 1
    %p82 = por %p80, %p81
    %p83 = scmp.ne.s32.totalorder %s74, %s75
    %p84 = scmp.eq.s32.totalorder %s22, 0
    %p85 = por %p83, %p84
    %p86 = scmp.ne.s32.totalorder %s74, %s75
    %p87 = scmp.eq.s32.totalorder %s23, 1
    %p88 = por %p86, %p87
    %p90 = scmp.ne.s32.totalorder %s75, %s89
    %p91 = scmp.eq.s32.totalorder %s23, 0
    %p92 = por %p90, %p91
    %s94 = sadd.s32 %s93, 1
    %p97 = scmp.eq.s32.totalorder %s17, 1
    %p98 = scmp.ne.s32.totalorder %s93, %s95
    %p99 = scmp.eq.s32.totalorder %s17, 0
    %p100 = por %p98, %p99
    %p101 = scmp.ne.s32.totalorder %s93, %s95
    %p102 = scmp.eq.s32.totalorder %s22, 1
    %p103 = por %p101, %p102
    %p104 = scmp.ne.s32.totalorder %s95, %s96
    %p105 = scmp.eq.s32.totalorder %s22, 0
    %p106 = por %p104, %p105
    %p107 = scmp.ne.s32.totalorder %s95, %s96
    %p108 = scmp.eq.s32.totalorder %s23, 1
    %p109 = por %p107, %p108
    %p111 = scmp.ne.s32.totalorder %s96, %s110
    %p112 = scmp.eq.s32.totalorder %s23, 0
    %p113 = por %p111, %p112
    %s115 = sadd.s32 %s114, 1
    %p118 = scmp.eq.s32.totalorder %s17, 1
    %p119 = scmp.ne.s32.totalorder %s114, %s116
    %p120 = scmp.eq.s32.totalorder %s17, 0
    %p121 = por %p119, %p120
    %p122 = scmp.ne.s32.totalorder %s114, %s116
    %p123 = scmp.eq.s32.totalorder %s22, 1
    %p124 = por %p122, %p123
    %p125 = scmp.ne.s32.totalorder %s116, %s117
    %p126 = scmp.eq.s32.totalorder %s22, 0
    %p127 = por %p125, %p126
    %p128 = scmp.ne.s32.totalorder %s116, %s117
    %p129 = scmp.eq.s32.totalorder %s23, 1
    %p130 = por %p128, %p129
    %p132 = scmp.ne.s32.totalorder %s117, %s131
    %p133 = scmp.eq.s32.totalorder %s23, 0
    %p134 = por %p132, %p133
    %s136 = sadd.s32 %s135, 1
    %p139 = scmp.eq.s32.totalorder %s17, 1
    %p140 = scmp.ne.s32.totalorder %s135, %s137
    %p141 = scmp.eq.s32.totalorder %s17, 0
    %p142 = por %p140, %p141
    %p143 = scmp.ne.s32.totalorder %s135, %s137
    %p144 = scmp.eq.s32.totalorder %s22, 1
    %p145 = por %p143, %p144
    %p146 = scmp.ne.s32.totalorder %s137, %s138
    %p147 = scmp.eq.s32.totalorder %s22, 0
    %p148 = por %p146, %p147
    %p149 = scmp.ne.s32.totalorder %s137, %s138
    %p150 = scmp.eq.s32.totalorder %s23, 1
    %p151 = por %p149, %p150
    %p153 = scmp.ne.s32.totalorder %s138, %s152
    %p154 = scmp.eq.s32.totalorder %s23, 0
    %p155 = por %p153, %p154
    %s157 = sadd.s32 %s156, 1
    %p160 = scmp.eq.s32.totalorder %s17, 1
    %p161 = scmp.ne.s32.totalorder %s156, %s158
    %p162 = scmp.eq.s32.totalorder %s17, 0
    %p163 = por %p161, %p162
    %p164 = scmp.ne.s32.totalorder %s156, %s158
    %p165 = scmp.eq.s32.totalorder %s22, 1
    %p166 = por %p164, %p165
    %p167 = scmp.ne.s32.totalorder %s158, %s159
    %p168 = scmp.eq.s32.totalorder %s22, 0
    %p169 = por %p167, %p168
    %p170 = scmp.ne.s32.totalorder %s158, %s159
    %p171 = scmp.eq.s32.totalorder %s23, 1
    %p172 = por %p170, %p171
    %p174 = scmp.ne.s32.totalorder %s159, %s173
    %p175 = scmp.eq.s32.totalorder %s23, 0
    %p176 = por %p174, %p175
    %s178 = sadd.s32 %s177, 1
    %p181 = scmp.eq.s32.totalorder %s17, 1
    %p182 = scmp.ne.s32.totalorder %s177, %s179
    %p183 = scmp.eq.s32.totalorder %s17, 0
    %p184 = por %p182, %p183
    %p185 = scmp.ne.s32.totalorder %s177, %s179
    %p186 = scmp.eq.s32.totalorder %s22, 1
    %p187 = por %p185, %p186
    %p188 = scmp.ne.s32.totalorder %s179, %s180
    %p189 = scmp.eq.s32.totalorder %s22, 0
    %p190 = por %p188, %p189
    %p191 = scmp.ne.s32.totalorder %s179, %s180
    %p192 = scmp.eq.s32.totalorder %s23, 1
    %p193 = por %p191, %p192
    %p195 = scmp.ne.s32.totalorder %s180, %s194
    %p196 = scmp.eq.s32.totalorder %s23, 0
    %p197 = por %p195, %p196
    %s199 = sadd.s32 %s198, 1
    %p202 = scmp.eq.s32.totalorder %s17, 1
    %p203 = scmp.ne.s32.totalorder %s198, %s200
    %p204 = scmp.eq.s32.totalorder %s17, 0
    %p205 = por %p203, %p204
    %p206 = scmp.ne.s32.totalorder %s198, %s200
    %p207 = scmp.eq.s32.totalorder %s22, 1
    %p208 = por %p206, %p207
    %p209 = scmp.ne.s32.totalorder %s200, %s201
    %p210 = scmp.eq.s32.totalorder %s22, 0
    %p211 = por %p209, %p210
    %p212 = scmp.ne.s32.totalorder %s200, %s201
    %p213 = scmp.eq.s32.totalorder %s23, 1
    %p214 = por %p212, %p213
    %p216 = scmp.ne.s32.totalorder %s201, %s215
    %p217 = scmp.eq.s32.totalorder %s23, 0
    %p218 = por %p216, %p217
    %s220 = sadd.s32 %s219, 1
    %p223 = scmp.eq.s32.totalorder %s17, 1
    %p224 = scmp.ne.s32.totalorder %s219, %s221
    %p225 = scmp.eq.s32.totalorder %s17, 0
    %p226 = por %p224, %p225
    %p227 = scmp.ne.s32.totalorder %s219, %s221
    %p228 = scmp.eq.s32.totalorder %s22, 1
    %p229 = por %p227, %p228
    %p230 = scmp.ne.s32.totalorder %s221, %s222
    %p231 = scmp.eq.s32.totalorder %s22, 0
    %p232 = por %p230, %p231
    %p233 = scmp.ne.s32.totalorder %s221, %s222
    %p234 = scmp.eq.s32.totalorder %s23, 1
    %p235 = por %p233, %p234
    %p237 = scmp.ne.s32.totalorder %s222, %s236
    %p238 = scmp.eq.s32.totalorder %s23, 0
    %p239 = por %p237, %p238
    %s241 = sadd.s32 %s240, 1
    %p244 = scmp.eq.s32.totalorder %s17, 1
    %p245 = scmp.ne.s32.totalorder %s240, %s242
    %p246 = scmp.eq.s32.totalorder %s17, 0
    %p247 = por %p245, %p246
    %p248 = scmp.ne.s32.totalorder %s240, %s242
    %p249 = scmp.eq.s32.totalorder %s22, 1
    %p250 = por %p248, %p249
    %p251 = scmp.ne.s32.totalorder %s242, %s243
    %p252 = scmp.eq.s32.totalorder %s22, 0
    %p253 = por %p251, %p252
    %p254 = scmp.ne.s32.totalorder %s242, %s243
    %p255 = scmp.eq.s32.totalorder %s23, 1
    %p256 = por %p254, %p255
    %p258 = scmp.ne.s32.totalorder %s243, %s257
    %p259 = scmp.eq.s32.totalorder %s23, 0
    %p260 = por %p258, %p259
    %s261 = ssub.s32 %s17, %s24
    %p262 = scmp.eq.s32.totalorder %s261, 0
    %s264 = sadd.s32 %s263, 1
    %s265 = scalar_select %p262, %s263, %s264
    %p268 = pneg %p262
    %p269 = scmp.eq.s32.totalorder %s17, 1
    %p270 = por %p268, %p269
    %p271 = scmp.ne.s32.totalorder %s263, %s266
    %p272 = scmp.eq.s32.totalorder %s17, 0
    %p273 = por %p271, %p272
    %p274 = scmp.ne.s32.totalorder %s263, %s266
    %p275 = scmp.eq.s32.totalorder %s22, 1
    %p276 = por %p274, %p275
    %p277 = scmp.ne.s32.totalorder %s266, %s267
    %p278 = scmp.eq.s32.totalorder %s22, 0
    %p279 = por %p277, %p278
    %p280 = scmp.ne.s32.totalorder %s266, %s267
    %p281 = scmp.eq.s32.totalorder %s23, 1
    %p282 = por %p280, %p281
    %p284 = scmp.ne.s32.totalorder %s267, %s283
    %p285 = scmp.eq.s32.totalorder %s23, 0
    %p286 = por %p284, %p285
    %p287 = scmp.le.s32.totalorder 1, %s17
    %p288 = scmp.lt.s32.totalorder %s17, 3
    %p289 = pnand %p287, %p288
    %p290 = pneg %p289
    // Predicated region
    $region9: #{bengali_forward.7} parent=5 // pred_check
      _
    $region10: #{bengali_forward.7} parent=5 // pred_check_branch
      %292 = sbr.rel (%p289) target = $region12
    $region11: #{bengali_forward.7} parent=5 // pred_region
      %s293 = ssub.s32 %s17, 1
      // Predicated region
      $region13: #{bengali_forward.7} parent=11 // pred_check
        %p294 = pneg %p64
      $region14: #{bengali_forward.7} parent=11 // pred_check_branch
        %296 = sbr.rel (%p294) target = $region16
      $region15: #{bengali_forward.7} parent=11 // pred_region
        _
      $region16: #{bengali_forward.7} parent=11 // pred_fallthru
        _
      // Predicated region
      $region17: #{bengali_forward.7} parent=11 // pred_check
        %p297 = pneg %p85
      $region18: #{bengali_forward.7} parent=11 // pred_check_branch
        %299 = sbr.rel (%p297) target = $region20
      $region19: #{bengali_forward.7} parent=11 // pred_region
        _
      $region20: #{bengali_forward.7} parent=11 // pred_fallthru
        _
      // Predicated region
      $region21: #{bengali_forward.7} parent=11 // pred_check
        %p300 = pneg %p106
      $region22: #{bengali_forward.7} parent=11 // pred_check_branch
        %302 = sbr.rel (%p300) target = $region24
      $region23: #{bengali_forward.7} parent=11 // pred_region
        _
      $region24: #{bengali_forward.7} parent=11 // pred_fallthru
        _
      // Predicated region
      $region25: #{bengali_forward.7} parent=11 // pred_check
        %p303 = pneg %p127
      $region26: #{bengali_forward.7} parent=11 // pred_check_branch
        %305 = sbr.rel (%p303) target = $region28
      $region27: #{bengali_forward.7} parent=11 // pred_region
        _
      $region28: #{bengali_forward.7} parent=11 // pred_fallthru
        _
      // Predicated region
      $region29: #{bengali_forward.7} parent=11 // pred_check
        %p306 = pneg %p148
      $region30: #{bengali_forward.7} parent=11 // pred_check_branch
        %308 = sbr.rel (%p306) target = $region32
      $region31: #{bengali_forward.7} parent=11 // pred_region
        _
      $region32: #{bengali_forward.7} parent=11 // pred_fallthru
        _
      // Predicated region
      $region33: #{bengali_forward.7} parent=11 // pred_check
        %p309 = pneg %p169
      $region34: #{bengali_forward.7} parent=11 // pred_check_branch
        %311 = sbr.rel (%p309) target = $region36
      $region35: #{bengali_forward.7} parent=11 // pred_region
        _
      $region36: #{bengali_forward.7} parent=11 // pred_fallthru
        _
      // Predicated region
      $region37: #{bengali_forward.7} parent=11 // pred_check
        %p312 = pneg %p190
      $region38: #{bengali_forward.7} parent=11 // pred_check_branch
        %314 = sbr.rel (%p312) target = $region40
      $region39: #{bengali_forward.7} parent=11 // pred_region
        _
      $region40: #{bengali_forward.7} parent=11 // pred_fallthru
        _
      // Predicated region
      $region41: #{bengali_forward.7} parent=11 // pred_check
        %p315 = pneg %p211
      $region42: #{bengali_forward.7} parent=11 // pred_check_branch
        %317 = sbr.rel (%p315) target = $region44
      $region43: #{bengali_forward.7} parent=11 // pred_region
        _
      $region44: #{bengali_forward.7} parent=11 // pred_fallthru
        _
      // Predicated region
      $region45: #{bengali_forward.7} parent=11 // pred_check
        %p318 = pneg %p232
      $region46: #{bengali_forward.7} parent=11 // pred_check_branch
        %320 = sbr.rel (%p318) target = $region48
      $region47: #{bengali_forward.7} parent=11 // pred_region
        _
      $region48: #{bengali_forward.7} parent=11 // pred_fallthru
        _
      // Predicated region
      $region49: #{bengali_forward.7} parent=11 // pred_check
        %p321 = pneg %p253
      $region50: #{bengali_forward.7} parent=11 // pred_check_branch
        %323 = sbr.rel (%p321) target = $region52
      $region51: #{bengali_forward.7} parent=11 // pred_region
        _
      $region52: #{bengali_forward.7} parent=11 // pred_fallthru
        _
    $region12: #{bengali_forward.7} parent=5 // pred_fallthru
      _
    %p324 = scmp.lt.s32.totalorder %s17, 2
    // Predicated region
    $region53: #{bengali_forward.7} parent=5 // pred_check
      %p325 = pneg %p324
    $region54: #{bengali_forward.7} parent=5 // pred_check_branch
      %327 = sbr.rel (%p325) target = $region56
    $region55: #{bengali_forward.7} parent=5 // pred_region
      // Predicated region
      $region57: #{bengali_forward.7} parent=55 // pred_check
        %p328 = pneg %p37
      $region58: #{bengali_forward.7} parent=55 // pred_check_branch
        %330 = sbr.rel (%p328) target = $region60
      $region59: #{bengali_forward.7} parent=55 // pred_region
        %p331 = scmp.lt.s32.totalorder %s17, 1
        %s332 = scalar_select %p331, %s17, 1
        %s333 = smul.addr %s332, 32
        %s334 = smul.addr %s333, 4
        %s335 = scalar_lea.vmem %s0, %s334
      $region60: #{bengali_forward.7} parent=55 // pred_fallthru
        _
    $region56: #{bengali_forward.7} parent=5 // pred_fallthru
      _
    %p336 = scmp.le.s32.totalorder 1, %s17
    %p337 = scmp.lt.s32.totalorder %s17, 3
    %p338 = pnand %p336, %p337
    %p339 = pneg %p338
    // Predicated region
    $region61: #{bengali_forward.7} parent=5 // pred_check
      _
    $region62: #{bengali_forward.7} parent=5 // pred_check_branch
      %341 = sbr.rel (%p338) target = $region64
    $region63: #{bengali_forward.7} parent=5 // pred_region
      %s342 = ssub.s32 %s17, 1
      %p343 = scmp.lt.s32.totalorder %s22, 1
      %s344 = scalar_select %p343, %s22, 1
      %s345 = smul.addr %s344, 32
      %s346 = smul.addr %s345, 4
      %s347 = scalar_lea.vmem %s0, %s346
      %p348 = pneg %p43
      %p349 = pneg %p40
      %p350 = pneg %p64
      %p351 = pneg %p61
      %p352 = pneg %p85
      %p353 = pneg %p82
      %p354 = pneg %p106
      %p355 = pneg %p103
      %p356 = pneg %p127
      %p357 = pneg %p124
      %p358 = pneg %p148
      %p359 = pneg %p145
      %p360 = pneg %p169
      %p361 = pneg %p166
      %p362 = pneg %p190
      %p363 = pneg %p187
      %p364 = pneg %p211
      %p365 = pneg %p208
      %p366 = pneg %p232
      %p367 = pneg %p229
      %p368 = pneg %p253
      %p369 = pneg %p250
      %p370 = pneg %p279
      %p371 = pneg %p276
      %p372 = scmp.lt.s32.totalorder %s22, 1
      %s373 = scalar_select %p372, %s22, 1
      %s374 = smul.addr %s373, 32
      %s375 = smul.addr %s374, 4
      %s376 = scalar_lea.vmem %s11, %s375
      %p377 = scmp.lt.s32.totalorder %s22, 1
      %s378 = scalar_select %p377, %s22, 1
      %s379 = smul.addr %s378, 32
      %s380 = smul.addr %s379, 4
      %s381 = scalar_lea.vmem %s0, %s380
      %p382 = scmp.lt.s32.totalorder %s22, 1
      %s383 = scalar_select %p382, %s22, 1
      %s384 = smul.addr %s383, 32
      %s385 = smul.addr %s384, 4
      %s386 = scalar_lea.vmem %s11, %s385
      %v388 = vld [vmem:[%s381] sm:$0xf]
      %v389 = vld [vmem:[%s381 + $0x4] sm:$0xf]
      %v390 = vld [vmem:[%s381 + $0x8] sm:$0xf]
      %v391 = vld [vmem:[%s381 + $0xc] sm:$0xf]
      %v392 = vld [vmem:[%s381 + $0x10] sm:$0xf]
      %v393 = vld [vmem:[%s381 + $0x14] sm:$0xf]
      %v394 = vld [vmem:[%s381 + $0x18] sm:$0xf]
      %v395 = vld [vmem:[%s381 + $0x1c] sm:$0xf]
      %v396 = vld [vmem:[%s381 + $0x20] sm:$0xf]
      %v397 = vld [vmem:[%s381 + $0x24] sm:$0xf]
      %v398 = vld [vmem:[%s381 + $0x28] sm:$0xf]
      %v399 = vld [vmem:[%s381 + $0x2c] sm:$0xf]
      %v400 = vld [vmem:[%s381 + $0x30] sm:$0xf]
      %v401 = vld [vmem:[%s381 + $0x34] sm:$0xf]
      %v402 = vld [vmem:[%s381 + $0x38] sm:$0xf]
      %v403 = vld [vmem:[%s381 + $0x3c] sm:$0xf]
      %v404 = vld [vmem:[%s381 + $0x40] sm:$0xf]
      %v405 = vld [vmem:[%s381 + $0x44] sm:$0xf]
      %v406 = vld [vmem:[%s381 + $0x48] sm:$0xf]
      %v407 = vld [vmem:[%s381 + $0x4c] sm:$0xf]
      %v408 = vld [vmem:[%s381 + $0x50] sm:$0xf]
      %v409 = vld [vmem:[%s381 + $0x54] sm:$0xf]
      %v410 = vld [vmem:[%s381 + $0x58] sm:$0xf]
      %v411 = vld [vmem:[%s381 + $0x5c] sm:$0xf]
      %v412 = vld [vmem:[%s381 + $0x60] sm:$0xf]
      %v413 = vld [vmem:[%s381 + $0x64] sm:$0xf]
      %v414 = vld [vmem:[%s381 + $0x68] sm:$0xf]
      %v415 = vld [vmem:[%s381 + $0x6c] sm:$0xf]
      %v416 = vld [vmem:[%s381 + $0x70] sm:$0xf]
      %v417 = vld [vmem:[%s381 + $0x74] sm:$0xf]
      %v418 = vld [vmem:[%s381 + $0x78] sm:$0xf]
      %v419 = vld [vmem:[%s381 + $0x7c] sm:$0xf]
      %v420 = vunpack.c.l.bf16 %v388
      %v421 = vunpack.c.l.bf16 %v389
      %v422 = vunpack.c.l.bf16 %v390
      %v423 = vunpack.c.l.bf16 %v391
      %v424 = vunpack.c.l.bf16 %v392
      %v425 = vunpack.c.l.bf16 %v393
      %v426 = vunpack.c.l.bf16 %v394
      %v427 = vunpack.c.l.bf16 %v395
      %v428 = vunpack.c.l.bf16 %v396
      %v429 = vunpack.c.l.bf16 %v397
      %v430 = vunpack.c.l.bf16 %v398
      %v431 = vunpack.c.l.bf16 %v399
      %v432 = vunpack.c.l.bf16 %v400
      %v433 = vunpack.c.l.bf16 %v401
      %v434 = vunpack.c.l.bf16 %v402
      %v435 = vunpack.c.l.bf16 %v403
      %v436 = vunpack.c.l.bf16 %v404
      %v437 = vunpack.c.l.bf16 %v405
      %v438 = vunpack.c.l.bf16 %v406
      %v439 = vunpack.c.l.bf16 %v407
      %v440 = vunpack.c.l.bf16 %v408
      %v441 = vunpack.c.l.bf16 %v409
      %v442 = vunpack.c.l.bf16 %v410
      %v443 = vunpack.c.l.bf16 %v411
      %v444 = vunpack.c.l.bf16 %v412
      %v445 = vunpack.c.l.bf16 %v413
      %v446 = vunpack.c.l.bf16 %v414
      %v447 = vunpack.c.l.bf16 %v415
      %v448 = vunpack.c.l.bf16 %v416
      %v449 = vunpack.c.l.bf16 %v417
      %v450 = vunpack.c.l.bf16 %v418
      %v451 = vunpack.c.l.bf16 %v419
      %452 = vst [vmem:[#allocation2] sm:$0xff] 0.0
      %453 = vst [vmem:[#allocation2 + $0x8] sm:$0xff] 0.0
      %454 = vst [vmem:[#allocation2 + $0x10] sm:$0x3] 0.0
      %455 = vst [vmem:[#allocation2 + $0x18] sm:$0xff] 0.0
      %456 = vst [vmem:[#allocation2 + $0x20] sm:$0xff] 0.0
      %457 = vst [vmem:[#allocation2 + $0x28] sm:$0x3] 0.0
      %458 = vst [vmem:[#allocation2 + $0x30] sm:$0xff] 0.0
      %459 = vst [vmem:[#allocation2 + $0x38] sm:$0xff] 0.0
      %460 = vst [vmem:[#allocation2 + $0x40] sm:$0x3] 0.0
      %461 = vst [vmem:[#allocation2 + $0x48] sm:$0xff] 0.0
      %462 = vst [vmem:[#allocation2 + $0x50] sm:$0xff] 0.0
      %463 = vst [vmem:[#allocation2 + $0x58] sm:$0x3] 0.0
      %464 = vst [vmem:[#allocation2 + $0x60] sm:$0xff] 0.0
      %465 = vst [vmem:[#allocation2 + $0x68] sm:$0xff] 0.0
      %466 = vst [vmem:[#allocation2 + $0x70] sm:$0x3] 0.0
      %467 = vst [vmem:[#allocation2 + $0x78] sm:$0xff] 0.0
      %468 = vst [vmem:[#allocation2 + $0x80] sm:$0xff] 0.0
      %469 = vst [vmem:[#allocation2 + $0x88] sm:$0x3] 0.0
      %470 = vst [vmem:[#allocation2 + $0x90] sm:$0xff] 0.0
      %471 = vst [vmem:[#allocation2 + $0x98] sm:$0xff] 0.0
      %472 = vst [vmem:[#allocation2 + $0xa0] sm:$0x3] 0.0
      %473 = vst [vmem:[#allocation2 + $0xa8] sm:$0xff] 0.0
      %474 = vst [vmem:[#allocation2 + $0xb0] sm:$0xff] 0.0
      %475 = vst [vmem:[#allocation2 + $0xb8] sm:$0x3] 0.0
      %476 = vst [vmem:[#allocation2 + $0xc0] sm:$0xff] 0.0
      %477 = vst [vmem:[#allocation2 + $0xc8] sm:$0xff] 0.0
      %478 = vst [vmem:[#allocation2 + $0xd0] sm:$0x3] 0.0
      %479 = vst [vmem:[#allocation2 + $0xd8] sm:$0xff] 0.0
      %480 = vst [vmem:[#allocation2 + $0xe0] sm:$0xff] 0.0
      %481 = vst [vmem:[#allocation2 + $0xe8] sm:$0x3] 0.0
      %482 = vst [vmem:[#allocation2 + $0xf0] sm:$0xff] 0.0
      %483 = vst [vmem:[#allocation2 + $0xf8] sm:$0xff] 0.0
      %484 = vst [vmem:[#allocation2 + $0x100] sm:$0x3] 0.0
      %485 = vst [vmem:[#allocation2 + $0x108] sm:$0xff] 0.0
      %486 = vst [vmem:[#allocation2 + $0x110] sm:$0xff] 0.0
      %487 = vst [vmem:[#allocation2 + $0x118] sm:$0x3] 0.0
      %488 = vst [vmem:[#allocation2 + $0x120] sm:$0xff] 0.0
      %489 = vst [vmem:[#allocation2 + $0x128] sm:$0xff] 0.0
      %490 = vst [vmem:[#allocation2 + $0x130] sm:$0x3] 0.0
      %491 = vst [vmem:[#allocation2 + $0x138] sm:$0xff] 0.0
      %492 = vst [vmem:[#allocation2 + $0x140] sm:$0xff] 0.0
      %493 = vst [vmem:[#allocation2 + $0x148] sm:$0x3] 0.0
      %494 = vst [vmem:[#allocation2 + $0x150] sm:$0xff] 0.0
      %495 = vst [vmem:[#allocation2 + $0x158] sm:$0xff] 0.0
      %496 = vst [vmem:[#allocation2 + $0x160] sm:$0x3] 0.0
      %497 = vst [vmem:[#allocation2 + $0x168] sm:$0xff] 0.0
      %498 = vst [vmem:[#allocation2 + $0x170] sm:$0xff] 0.0
      %499 = vst [vmem:[#allocation2 + $0x178] sm:$0x3] 0.0
      %500 = vst [vmem:[#allocation2 + $0x180] sm:$0xff] 0.0
      %501 = vst [vmem:[#allocation2 + $0x188] sm:$0xff] 0.0
      %502 = vst [vmem:[#allocation2 + $0x190] sm:$0x3] 0.0
      %503 = vst [vmem:[#allocation2 + $0x198] sm:$0xff] 0.0
      %504 = vst [vmem:[#allocation2 + $0x1a0] sm:$0xff] 0.0
      %505 = vst [vmem:[#allocation2 + $0x1a8] sm:$0x3] 0.0
      %s506 = scalar_lea.vmem [#allocation2], 24
      %507 = vst [vmem:[%s506 + $0x1] sm:$0xff] %v420
      %508 = vst [vmem:[%s506 + $0x9] sm:$0xff] %v421
      %509 = vst [vmem:[%s506 + $0x19] sm:$0xff] %v422
      %510 = vst [vmem:[%s506 + $0x21] sm:$0xff] %v423
      %511 = vst [vmem:[%s506 + $0x31] sm:$0xff] %v424
      %512 = vst [vmem:[%s506 + $0x39] sm:$0xff] %v425
      %513 = vst [vmem:[%s506 + $0x49] sm:$0xff] %v426
      %514 = vst [vmem:[%s506 + $0x51] sm:$0xff] %v427
      %515 = vst [vmem:[%s506 + $0x61] sm:$0xff] %v428
      %516 = vst [vmem:[%s506 + $0x69] sm:$0xff] %v429
      %517 = vst [vmem:[%s506 + $0x79] sm:$0xff] %v430
      %518 = vst [vmem:[%s506 + $0x81] sm:$0xff] %v431
      %519 = vst [vmem:[%s506 + $0x91] sm:$0xff] %v432
      %520 = vst [vmem:[%s506 + $0x99] sm:$0xff] %v433
      %521 = vst [vmem:[%s506 + $0xa9] sm:$0xff] %v434
      %522 = vst [vmem:[%s506 + $0xb1] sm:$0xff] %v435
      %523 = vst [vmem:[%s506 + $0xc1] sm:$0xff] %v436
      %524 = vst [vmem:[%s506 + $0xc9] sm:$0xff] %v437
      %525 = vst [vmem:[%s506 + $0xd9] sm:$0xff] %v438
      %526 = vst [vmem:[%s506 + $0xe1] sm:$0xff] %v439
      %527 = vst [vmem:[%s506 + $0xf1] sm:$0xff] %v440
      %528 = vst [vmem:[%s506 + $0xf9] sm:$0xff] %v441
      %529 = vst [vmem:[%s506 + $0x109] sm:$0xff] %v442
      %530 = vst [vmem:[%s506 + $0x111] sm:$0xff] %v443
      %531 = vst [vmem:[%s506 + $0x121] sm:$0xff] %v444
      %532 = vst [vmem:[%s506 + $0x129] sm:$0xff] %v445
      %533 = vst [vmem:[%s506 + $0x139] sm:$0xff] %v446
      %534 = vst [vmem:[%s506 + $0x141] sm:$0xff] %v447
      %535 = vst [vmem:[%s506 + $0x151] sm:$0xff] %v448
      %536 = vst [vmem:[%s506 + $0x159] sm:$0xff] %v449
      %537 = vst [vmem:[%s506 + $0x169] sm:$0xff] %v450
      %538 = vst [vmem:[%s506 + $0x171] sm:$0xff] %v451
      %v539 = vld [vmem:[#allocation2] sm:$0xff]
      %v540 = vld [vmem:[#allocation2 + $0x8] sm:$0xff]
      %v541 = vld [vmem:[#allocation2 + $0x18] sm:$0xff]
      %v542 = vld [vmem:[#allocation2 + $0x20] sm:$0xff]
      %v543 = vld [vmem:[#allocation2 + $0x30] sm:$0xff]
      %v544 = vld [vmem:[#allocation2 + $0x38] sm:$0xff]
      %v545 = vld [vmem:[#allocation2 + $0x48] sm:$0xff]
      %v546 = vld [vmem:[#allocation2 + $0x50] sm:$0xff]
      %v547 = vld [vmem:[#allocation2 + $0x60] sm:$0xff]
      %v548 = vld [vmem:[#allocation2 + $0x68] sm:$0xff]
      %v549 = vld [vmem:[#allocation2 + $0x78] sm:$0xff]
      %v550 = vld [vmem:[#allocation2 + $0x80] sm:$0xff]
      %v551 = vld [vmem:[#allocation2 + $0x90] sm:$0xff]
      %v552 = vld [vmem:[#allocation2 + $0x98] sm:$0xff]
      %v553 = vld [vmem:[#allocation2 + $0xa8] sm:$0xff]
      %v554 = vld [vmem:[#allocation2 + $0xb0] sm:$0xff]
      %v555 = vld [vmem:[#allocation2 + $0xc0] sm:$0xff]
      %v556 = vld [vmem:[#allocation2 + $0xc8] sm:$0xff]
      %v557 = vld [vmem:[#allocation2 + $0xd8] sm:$0xff]
      %v558 = vld [vmem:[#allocation2 + $0xe0] sm:$0xff]
      %v559 = vld [vmem:[#allocation2 + $0xf0] sm:$0xff]
      %v560 = vld [vmem:[#allocation2 + $0xf8] sm:$0xff]
      %v561 = vld [vmem:[#allocation2 + $0x108] sm:$0xff]
      %v562 = vld [vmem:[#allocation2 + $0x110] sm:$0xff]
      %v563 = vld [vmem:[#allocation2 + $0x120] sm:$0xff]
      %v564 = vld [vmem:[#allocation2 + $0x128] sm:$0xff]
      %v565 = vld [vmem:[#allocation2 + $0x138] sm:$0xff]
      %v566 = vld [vmem:[#allocation2 + $0x140] sm:$0xff]
      %v567 = vld [vmem:[#allocation2 + $0x150] sm:$0xff]
      %v568 = vld [vmem:[#allocation2 + $0x158] sm:$0xff]
      %v569 = vld [vmem:[#allocation2 + $0x168] sm:$0xff]
      %v570 = vld [vmem:[#allocation2 + $0x170] sm:$0xff]
      %v571 = vld [vmem:[%s1] sm:$0x1]
      %v573 = vlaneseq
      %v574 = vshrl.u32 %v573, 7
      %v575 = vsub.s32 0, %v574
      %v576 = vrot.slane %v571, %v575
      %v578 = vmul.f32 %v539, %v576
      %v579 = vmul.f32 %v540, %v576
      %v580 = vmul.f32 %v541, %v576
      %v581 = vmul.f32 %v542, %v576
      %v582 = vmul.f32 %v543, %v576
      %v583 = vmul.f32 %v544, %v576
      %v584 = vmul.f32 %v545, %v576
      %v585 = vmul.f32 %v546, %v576
      %v586 = vmul.f32 %v547, %v576
      %v587 = vmul.f32 %v548, %v576
      %v588 = vmul.f32 %v549, %v576
      %v589 = vmul.f32 %v550, %v576
      %v590 = vmul.f32 %v551, %v576
      %v591 = vmul.f32 %v552, %v576
      %v592 = vmul.f32 %v553, %v576
      %v593 = vmul.f32 %v554, %v576
      %v594 = vmul.f32 %v555, %v576
      %v595 = vmul.f32 %v556, %v576
      %v596 = vmul.f32 %v557, %v576
      %v597 = vmul.f32 %v558, %v576
      %v598 = vmul.f32 %v559, %v576
      %v599 = vmul.f32 %v560, %v576
      %v600 = vmul.f32 %v561, %v576
      %v601 = vmul.f32 %v562, %v576
      %v602 = vmul.f32 %v563, %v576
      %v603 = vmul.f32 %v564, %v576
      %v604 = vmul.f32 %v565, %v576
      %v605 = vmul.f32 %v566, %v576
      %v606 = vmul.f32 %v567, %v576
      %v607 = vmul.f32 %v568, %v576
      %v608 = vmul.f32 %v569, %v576
      %v609 = vmul.f32 %v570, %v576
      %v610 = vld [vmem:[#allocation2 + $0x1] sm:$0xff]
      %v611 = vld [vmem:[#allocation2 + $0x9] sm:$0xff]
      %v612 = vld [vmem:[#allocation2 + $0x19] sm:$0xff]
      %v613 = vld [vmem:[#allocation2 + $0x21] sm:$0xff]
      %v614 = vld [vmem:[#allocation2 + $0x31] sm:$0xff]
      %v615 = vld [vmem:[#allocation2 + $0x39] sm:$0xff]
      %v616 = vld [vmem:[#allocation2 + $0x49] sm:$0xff]
      %v617 = vld [vmem:[#allocation2 + $0x51] sm:$0xff]
      %v618 = vld [vmem:[#allocation2 + $0x61] sm:$0xff]
      %v619 = vld [vmem:[#allocation2 + $0x69] sm:$0xff]
      %v620 = vld [vmem:[#allocation2 + $0x79] sm:$0xff]
      %v621 = vld [vmem:[#allocation2 + $0x81] sm:$0xff]
      %v622 = vld [vmem:[#allocation2 + $0x91] sm:$0xff]
      %v623 = vld [vmem:[#allocation2 + $0x99] sm:$0xff]
      %v624 = vld [vmem:[#allocation2 + $0xa9] sm:$0xff]
      %v625 = vld [vmem:[#allocation2 + $0xb1] sm:$0xff]
      %v626 = vld [vmem:[#allocation2 + $0xc1] sm:$0xff]
      %v627 = vld [vmem:[#allocation2 + $0xc9] sm:$0xff]
      %v628 = vld [vmem:[#allocation2 + $0xd9] sm:$0xff]
      %v629 = vld [vmem:[#allocation2 + $0xe1] sm:$0xff]
      %v630 = vld [vmem:[#allocation2 + $0xf1] sm:$0xff]
      %v631 = vld [vmem:[#allocation2 + $0xf9] sm:$0xff]
      %v632 = vld [vmem:[#allocation2 + $0x109] sm:$0xff]
      %v633 = vld [vmem:[#allocation2 + $0x111] sm:$0xff]
      %v634 = vld [vmem:[#allocation2 + $0x121] sm:$0xff]
      %v635 = vld [vmem:[#allocation2 + $0x129] sm:$0xff]
      %v636 = vld [vmem:[#allocation2 + $0x139] sm:$0xff]
      %v637 = vld [vmem:[#allocation2 + $0x141] sm:$0xff]
      %v638 = vld [vmem:[#allocation2 + $0x151] sm:$0xff]
      %v639 = vld [vmem:[#allocation2 + $0x159] sm:$0xff]
      %v640 = vld [vmem:[#allocation2 + $0x169] sm:$0xff]
      %v641 = vld [vmem:[#allocation2 + $0x171] sm:$0xff]
      %s642 = scalar_lea.vmem %s1, 1
      %v643 = vld [vmem:[%s642] sm:$0x1]
      %v645 = vlaneseq
      %v646 = vshrl.u32 %v645, 7
      %v647 = vsub.s32 0, %v646
      %v648 = vrot.slane %v643, %v647
      %v650 = vmul.f32 %v610, %v648
      %v651 = vmul.f32 %v611, %v648
      %v652 = vmul.f32 %v612, %v648
      %v653 = vmul.f32 %v613, %v648
      %v654 = vmul.f32 %v614, %v648
      %v655 = vmul.f32 %v615, %v648
      %v656 = vmul.f32 %v616, %v648
      %v657 = vmul.f32 %v617, %v648
      %v658 = vmul.f32 %v618, %v648
      %v659 = vmul.f32 %v619, %v648
      %v660 = vmul.f32 %v620, %v648
      %v661 = vmul.f32 %v621, %v648
      %v662 = vmul.f32 %v622, %v648
      %v663 = vmul.f32 %v623, %v648
      %v664 = vmul.f32 %v624, %v648
      %v665 = vmul.f32 %v625, %v648
      %v666 = vmul.f32 %v626, %v648
      %v667 = vmul.f32 %v627, %v648
      %v668 = vmul.f32 %v628, %v648
      %v669 = vmul.f32 %v629, %v648
      %v670 = vmul.f32 %v630, %v648
      %v671 = vmul.f32 %v631, %v648
      %v672 = vmul.f32 %v632, %v648
      %v673 = vmul.f32 %v633, %v648
      %v674 = vmul.f32 %v634, %v648
      %v675 = vmul.f32 %v635, %v648
      %v676 = vmul.f32 %v636, %v648
      %v677 = vmul.f32 %v637, %v648
      %v678 = vmul.f32 %v638, %v648
      %v679 = vmul.f32 %v639, %v648
      %v680 = vmul.f32 %v640, %v648
      %v681 = vmul.f32 %v641, %v648
      %v682 = vadd.f32 %v578, %v650
      %v683 = vadd.f32 %v579, %v651
      %v684 = vadd.f32 %v580, %v652
      %v685 = vadd.f32 %v581, %v653
      %v686 = vadd.f32 %v582, %v654
      %v687 = vadd.f32 %v583, %v655
      %v688 = vadd.f32 %v584, %v656
      %v689 = vadd.f32 %v585, %v657
      %v690 = vadd.f32 %v586, %v658
      %v691 = vadd.f32 %v587, %v659
      %v692 = vadd.f32 %v588, %v660
      %v693 = vadd.f32 %v589, %v661
      %v694 = vadd.f32 %v590, %v662
      %v695 = vadd.f32 %v591, %v663
      %v696 = vadd.f32 %v592, %v664
      %v697 = vadd.f32 %v593, %v665
      %v698 = vadd.f32 %v594, %v666
      %v699 = vadd.f32 %v595, %v667
      %v700 = vadd.f32 %v596, %v668
      %v701 = vadd.f32 %v597, %v669
      %v702 = vadd.f32 %v598, %v670
      %v703 = vadd.f32 %v599, %v671
      %v704 = vadd.f32 %v600, %v672
      %v705 = vadd.f32 %v601, %v673
      %v706 = vadd.f32 %v602, %v674
      %v707 = vadd.f32 %v603, %v675
      %v708 = vadd.f32 %v604, %v676
      %v709 = vadd.f32 %v605, %v677
      %v710 = vadd.f32 %v606, %v678
      %v711 = vadd.f32 %v607, %v679
      %v712 = vadd.f32 %v608, %v680
      %v713 = vadd.f32 %v609, %v681
      %v714 = vld [vmem:[#allocation2 + $0x2] sm:$0xff]
      %v715 = vld [vmem:[#allocation2 + $0xa] sm:$0xff]
      %v716 = vld [vmem:[#allocation2 + $0x1a] sm:$0xff]
      %v717 = vld [vmem:[#allocation2 + $0x22] sm:$0xff]
      %v718 = vld [vmem:[#allocation2 + $0x32] sm:$0xff]
      %v719 = vld [vmem:[#allocation2 + $0x3a] sm:$0xff]
      %v720 = vld [vmem:[#allocation2 + $0x4a] sm:$0xff]
      %v721 = vld [vmem:[#allocation2 + $0x52] sm:$0xff]
      %v722 = vld [vmem:[#allocation2 + $0x62] sm:$0xff]
      %v723 = vld [vmem:[#allocation2 + $0x6a] sm:$0xff]
      %v724 = vld [vmem:[#allocation2 + $0x7a] sm:$0xff]
      %v725 = vld [vmem:[#allocation2 + $0x82] sm:$0xff]
      %v726 = vld [vmem:[#allocation2 + $0x92] sm:$0xff]
      %v727 = vld [vmem:[#allocation2 + $0x9a] sm:$0xff]
      %v728 = vld [vmem:[#allocation2 + $0xaa] sm:$0xff]
      %v729 = vld [vmem:[#allocation2 + $0xb2] sm:$0xff]
      %v730 = vld [vmem:[#allocation2 + $0xc2] sm:$0xff]
      %v731 = vld [vmem:[#allocation2 + $0xca] sm:$0xff]
      %v732 = vld [vmem:[#allocation2 + $0xda] sm:$0xff]
      %v733 = vld [vmem:[#allocation2 + $0xe2] sm:$0xff]
      %v734 = vld [vmem:[#allocation2 + $0xf2] sm:$0xff]
      %v735 = vld [vmem:[#allocation2 + $0xfa] sm:$0xff]
      %v736 = vld [vmem:[#allocation2 + $0x10a] sm:$0xff]
      %v737 = vld [vmem:[#allocation2 + $0x112] sm:$0xff]
      %v738 = vld [vmem:[#allocation2 + $0x122] sm:$0xff]
      %v739 = vld [vmem:[#allocation2 + $0x12a] sm:$0xff]
      %v740 = vld [vmem:[#allocation2 + $0x13a] sm:$0xff]
      %v741 = vld [vmem:[#allocation2 + $0x142] sm:$0xff]
      %v742 = vld [vmem:[#allocation2 + $0x152] sm:$0xff]
      %v743 = vld [vmem:[#allocation2 + $0x15a] sm:$0xff]
      %v744 = vld [vmem:[#allocation2 + $0x16a] sm:$0xff]
      %v745 = vld [vmem:[#allocation2 + $0x172] sm:$0xff]
      %s746 = scalar_lea.vmem %s1, 2
      %v747 = vld [vmem:[%s746] sm:$0x1]
      %v749 = vlaneseq
      %v750 = vshrl.u32 %v749, 7
      %v751 = vsub.s32 0, %v750
      %v752 = vrot.slane %v747, %v751
      %v754 = vmul.f32 %v714, %v752
      %v755 = vmul.f32 %v715, %v752
      %v756 = vmul.f32 %v716, %v752
      %v757 = vmul.f32 %v717, %v752
      %v758 = vmul.f32 %v718, %v752
      %v759 = vmul.f32 %v719, %v752
      %v760 = vmul.f32 %v720, %v752
      %v761 = vmul.f32 %v721, %v752
      %v762 = vmul.f32 %v722, %v752
      %v763 = vmul.f32 %v723, %v752
      %v764 = vmul.f32 %v724, %v752
      %v765 = vmul.f32 %v725, %v752
      %v766 = vmul.f32 %v726, %v752
      %v767 = vmul.f32 %v727, %v752
      %v768 = vmul.f32 %v728, %v752
      %v769 = vmul.f32 %v729, %v752
      %v770 = vmul.f32 %v730, %v752
      %v771 = vmul.f32 %v731, %v752
      %v772 = vmul.f32 %v732, %v752
      %v773 = vmul.f32 %v733, %v752
      %v774 = vmul.f32 %v734, %v752
      %v775 = vmul.f32 %v735, %v752
      %v776 = vmul.f32 %v736, %v752
      %v777 = vmul.f32 %v737, %v752
      %v778 = vmul.f32 %v738, %v752
      %v779 = vmul.f32 %v739, %v752
      %v780 = vmul.f32 %v740, %v752
      %v781 = vmul.f32 %v741, %v752
      %v782 = vmul.f32 %v742, %v752
      %v783 = vmul.f32 %v743, %v752
      %v784 = vmul.f32 %v744, %v752
      %v785 = vmul.f32 %v745, %v752
      %v786 = vadd.f32 %v682, %v754
      %v787 = vadd.f32 %v683, %v755
      %v788 = vadd.f32 %v684, %v756
      %v789 = vadd.f32 %v685, %v757
      %v790 = vadd.f32 %v686, %v758
      %v791 = vadd.f32 %v687, %v759
      %v792 = vadd.f32 %v688, %v760
      %v793 = vadd.f32 %v689, %v761
      %v794 = vadd.f32 %v690, %v762
      %v795 = vadd.f32 %v691, %v763
      %v796 = vadd.f32 %v692, %v764
      %v797 = vadd.f32 %v693, %v765
      %v798 = vadd.f32 %v694, %v766
      %v799 = vadd.f32 %v695, %v767
      %v800 = vadd.f32 %v696, %v768
      %v801 = vadd.f32 %v697, %v769
      %v802 = vadd.f32 %v698, %v770
      %v803 = vadd.f32 %v699, %v771
      %v804 = vadd.f32 %v700, %v772
      %v805 = vadd.f32 %v701, %v773
      %v806 = vadd.f32 %v702, %v774
      %v807 = vadd.f32 %v703, %v775
      %v808 = vadd.f32 %v704, %v776
      %v809 = vadd.f32 %v705, %v777
      %v810 = vadd.f32 %v706, %v778
      %v811 = vadd.f32 %v707, %v779
      %v812 = vadd.f32 %v708, %v780
      %v813 = vadd.f32 %v709, %v781
      %v814 = vadd.f32 %v710, %v782
      %v815 = vadd.f32 %v711, %v783
      %v816 = vadd.f32 %v712, %v784
      %v817 = vadd.f32 %v713, %v785
      %v818 = vld [vmem:[%s506] sm:$0xff]
      %v819 = vld [vmem:[%s506 + $0x8] sm:$0xff]
      %v820 = vld [vmem:[%s506 + $0x18] sm:$0xff]
      %v821 = vld [vmem:[%s506 + $0x20] sm:$0xff]
      %v822 = vld [vmem:[%s506 + $0x30] sm:$0xff]
      %v823 = vld [vmem:[%s506 + $0x38] sm:$0xff]
      %v824 = vld [vmem:[%s506 + $0x48] sm:$0xff]
      %v825 = vld [vmem:[%s506 + $0x50] sm:$0xff]
      %v826 = vld [vmem:[%s506 + $0x60] sm:$0xff]
      %v827 = vld [vmem:[%s506 + $0x68] sm:$0xff]
      %v828 = vld [vmem:[%s506 + $0x78] sm:$0xff]
      %v829 = vld [vmem:[%s506 + $0x80] sm:$0xff]
      %v830 = vld [vmem:[%s506 + $0x90] sm:$0xff]
      %v831 = vld [vmem:[%s506 + $0x98] sm:$0xff]
      %v832 = vld [vmem:[%s506 + $0xa8] sm:$0xff]
      %v833 = vld [vmem:[%s506 + $0xb0] sm:$0xff]
      %v834 = vld [vmem:[%s506 + $0xc0] sm:$0xff]
      %v835 = vld [vmem:[%s506 + $0xc8] sm:$0xff]
      %v836 = vld [vmem:[%s506 + $0xd8] sm:$0xff]
      %v837 = vld [vmem:[%s506 + $0xe0] sm:$0xff]
      %v838 = vld [vmem:[%s506 + $0xf0] sm:$0xff]
      %v839 = vld [vmem:[%s506 + $0xf8] sm:$0xff]
      %v840 = vld [vmem:[%s506 + $0x108] sm:$0xff]
      %v841 = vld [vmem:[%s506 + $0x110] sm:$0xff]
      %v842 = vld [vmem:[%s506 + $0x120] sm:$0xff]
      %v843 = vld [vmem:[%s506 + $0x128] sm:$0xff]
      %v844 = vld [vmem:[%s506 + $0x138] sm:$0xff]
      %v845 = vld [vmem:[%s506 + $0x140] sm:$0xff]
      %v846 = vld [vmem:[%s506 + $0x150] sm:$0xff]
      %v847 = vld [vmem:[%s506 + $0x158] sm:$0xff]
      %v848 = vld [vmem:[%s506 + $0x168] sm:$0xff]
      %v849 = vld [vmem:[%s506 + $0x170] sm:$0xff]
      %s850 = scalar_lea.vmem %s1, 3
      %v851 = vld [vmem:[%s850] sm:$0x1]
      %v853 = vlaneseq
      %v854 = vshrl.u32 %v853, 7
      %v855 = vsub.s32 0, %v854
      %v856 = vrot.slane %v851, %v855
      %v858 = vmul.f32 %v818, %v856
      %v859 = vmul.f32 %v819, %v856
      %v860 = vmul.f32 %v820, %v856
      %v861 = vmul.f32 %v821, %v856
      %v862 = vmul.f32 %v822, %v856
      %v863 = vmul.f32 %v823, %v856
      %v864 = vmul.f32 %v824, %v856
      %v865 = vmul.f32 %v825, %v856
      %v866 = vmul.f32 %v826, %v856
      %v867 = vmul.f32 %v827, %v856
      %v868 = vmul.f32 %v828, %v856
      %v869 = vmul.f32 %v829, %v856
      %v870 = vmul.f32 %v830, %v856
      %v871 = vmul.f32 %v831, %v856
      %v872 = vmul.f32 %v832, %v856
      %v873 = vmul.f32 %v833, %v856
      %v874 = vmul.f32 %v834, %v856
      %v875 = vmul.f32 %v835, %v856
      %v876 = vmul.f32 %v836, %v856
      %v877 = vmul.f32 %v837, %v856
      %v878 = vmul.f32 %v838, %v856
      %v879 = vmul.f32 %v839, %v856
      %v880 = vmul.f32 %v840, %v856
      %v881 = vmul.f32 %v841, %v856
      %v882 = vmul.f32 %v842, %v856
      %v883 = vmul.f32 %v843, %v856
      %v884 = vmul.f32 %v844, %v856
      %v885 = vmul.f32 %v845, %v856
      %v886 = vmul.f32 %v846, %v856
      %v887 = vmul.f32 %v847, %v856
      %v888 = vmul.f32 %v848, %v856
      %v889 = vmul.f32 %v849, %v856
      %v890 = vadd.f32 %v786, %v858
      %v891 = vadd.f32 %v787, %v859
      %v892 = vadd.f32 %v788, %v860
      %v893 = vadd.f32 %v789, %v861
      %v894 = vadd.f32 %v790, %v862
      %v895 = vadd.f32 %v791, %v863
      %v896 = vadd.f32 %v792, %v864
      %v897 = vadd.f32 %v793, %v865
      %v898 = vadd.f32 %v794, %v866
      %v899 = vadd.f32 %v795, %v867
      %v900 = vadd.f32 %v796, %v868
      %v901 = vadd.f32 %v797, %v869
      %v902 = vadd.f32 %v798, %v870
      %v903 = vadd.f32 %v799, %v871
      %v904 = vadd.f32 %v800, %v872
      %v905 = vadd.f32 %v801, %v873
      %v906 = vadd.f32 %v802, %v874
      %v907 = vadd.f32 %v803, %v875
      %v908 = vadd.f32 %v804, %v876
      %v909 = vadd.f32 %v805, %v877
      %v910 = vadd.f32 %v806, %v878
      %v911 = vadd.f32 %v807, %v879
      %v912 = vadd.f32 %v808, %v880
      %v913 = vadd.f32 %v809, %v881
      %v914 = vadd.f32 %v810, %v882
      %v915 = vadd.f32 %v811, %v883
      %v916 = vadd.f32 %v812, %v884
      %v917 = vadd.f32 %v813, %v885
      %v918 = vadd.f32 %v814, %v886
      %v919 = vadd.f32 %v815, %v887
      %v920 = vadd.f32 %v816, %v888
      %v921 = vadd.f32 %v817, %v889
      %v922 = vld [vmem:[%s506 + $0x1] sm:$0xff]
      %v923 = vld [vmem:[%s506 + $0x9] sm:$0xff]
      %v924 = vld [vmem:[%s506 + $0x19] sm:$0xff]
      %v925 = vld [vmem:[%s506 + $0x21] sm:$0xff]
      %v926 = vld [vmem:[%s506 + $0x31] sm:$0xff]
      %v927 = vld [vmem:[%s506 + $0x39] sm:$0xff]
      %v928 = vld [vmem:[%s506 + $0x49] sm:$0xff]
      %v929 = vld [vmem:[%s506 + $0x51] sm:$0xff]
      %v930 = vld [vmem:[%s506 + $0x61] sm:$0xff]
      %v931 = vld [vmem:[%s506 + $0x69] sm:$0xff]
      %v932 = vld [vmem:[%s506 + $0x79] sm:$0xff]
      %v933 = vld [vmem:[%s506 + $0x81] sm:$0xff]
      %v934 = vld [vmem:[%s506 + $0x91] sm:$0xff]
      %v935 = vld [vmem:[%s506 + $0x99] sm:$0xff]
      %v936 = vld [vmem:[%s506 + $0xa9] sm:$0xff]
      %v937 = vld [vmem:[%s506 + $0xb1] sm:$0xff]
      %v938 = vld [vmem:[%s506 + $0xc1] sm:$0xff]
      %v939 = vld [vmem:[%s506 + $0xc9] sm:$0xff]
      %v940 = vld [vmem:[%s506 + $0xd9] sm:$0xff]
      %v941 = vld [vmem:[%s506 + $0xe1] sm:$0xff]
      %v942 = vld [vmem:[%s506 + $0xf1] sm:$0xff]
      %v943 = vld [vmem:[%s506 + $0xf9] sm:$0xff]
      %v944 = vld [vmem:[%s506 + $0x109] sm:$0xff]
      %v945 = vld [vmem:[%s506 + $0x111] sm:$0xff]
      %v946 = vld [vmem:[%s506 + $0x121] sm:$0xff]
      %v947 = vld [vmem:[%s506 + $0x129] sm:$0xff]
      %v948 = vld [vmem:[%s506 + $0x139] sm:$0xff]
      %v949 = vld [vmem:[%s506 + $0x141] sm:$0xff]
      %v950 = vld [vmem:[%s506 + $0x151] sm:$0xff]
      %v951 = vld [vmem:[%s506 + $0x159] sm:$0xff]
      %v952 = vld [vmem:[%s506 + $0x169] sm:$0xff]
      %v953 = vld [vmem:[%s506 + $0x171] sm:$0xff]
      %s954 = scalar_lea.vmem %s1, 4
      %v955 = vld [vmem:[%s954] sm:$0x1]
      %v957 = vlaneseq
      %v958 = vshrl.u32 %v957, 7
      %v959 = vsub.s32 0, %v958
      %v960 = vrot.slane %v955, %v959
      %v962 = vmul.f32 %v922, %v960
      %v963 = vmul.f32 %v923, %v960
      %v964 = vmul.f32 %v924, %v960
      %v965 = vmul.f32 %v925, %v960
      %v966 = vmul.f32 %v926, %v960
      %v967 = vmul.f32 %v927, %v960
      %v968 = vmul.f32 %v928, %v960
      %v969 = vmul.f32 %v929, %v960
      %v970 = vmul.f32 %v930, %v960
      %v971 = vmul.f32 %v931, %v960
      %v972 = vmul.f32 %v932, %v960
      %v973 = vmul.f32 %v933, %v960
      %v974 = vmul.f32 %v934, %v960
      %v975 = vmul.f32 %v935, %v960
      %v976 = vmul.f32 %v936, %v960
      %v977 = vmul.f32 %v937, %v960
      %v978 = vmul.f32 %v938, %v960
      %v979 = vmul.f32 %v939, %v960
      %v980 = vmul.f32 %v940, %v960
      %v981 = vmul.f32 %v941, %v960
      %v982 = vmul.f32 %v942, %v960
      %v983 = vmul.f32 %v943, %v960
      %v984 = vmul.f32 %v944, %v960
      %v985 = vmul.f32 %v945, %v960
      %v986 = vmul.f32 %v946, %v960
      %v987 = vmul.f32 %v947, %v960
      %v988 = vmul.f32 %v948, %v960
      %v989 = vmul.f32 %v949, %v960
      %v990 = vmul.f32 %v950, %v960
      %v991 = vmul.f32 %v951, %v960
      %v992 = vmul.f32 %v952, %v960
      %v993 = vmul.f32 %v953, %v960
      %v994 = vadd.f32 %v890, %v962
      %v995 = vadd.f32 %v891, %v963
      %v996 = vadd.f32 %v892, %v964
      %v997 = vadd.f32 %v893, %v965
      %v998 = vadd.f32 %v894, %v966
      %v999 = vadd.f32 %v895, %v967
      %v1000 = vadd.f32 %v896, %v968
      %v1001 = vadd.f32 %v897, %v969
      %v1002 = vadd.f32 %v898, %v970
      %v1003 = vadd.f32 %v899, %v971
      %v1004 = vadd.f32 %v900, %v972
      %v1005 = vadd.f32 %v901, %v973
      %v1006 = vadd.f32 %v902, %v974
      %v1007 = vadd.f32 %v903, %v975
      %v1008 = vadd.f32 %v904, %v976
      %v1009 = vadd.f32 %v905, %v977
      %v1010 = vadd.f32 %v906, %v978
      %v1011 = vadd.f32 %v907, %v979
      %v1012 = vadd.f32 %v908, %v980
      %v1013 = vadd.f32 %v909, %v981
      %v1014 = vadd.f32 %v910, %v982
      %v1015 = vadd.f32 %v911, %v983
      %v1016 = vadd.f32 %v912, %v984
      %v1017 = vadd.f32 %v913, %v985
      %v1018 = vadd.f32 %v914, %v986
      %v1019 = vadd.f32 %v915, %v987
      %v1020 = vadd.f32 %v916, %v988
      %v1021 = vadd.f32 %v917, %v989
      %v1022 = vadd.f32 %v918, %v990
      %v1023 = vadd.f32 %v919, %v991
      %v1024 = vadd.f32 %v920, %v992
      %v1025 = vadd.f32 %v921, %v993
      %v1026 = vld [vmem:[%s506 + $0x2] sm:$0xff]
      %v1027 = vld [vmem:[%s506 + $0xa] sm:$0xff]
      %v1028 = vld [vmem:[%s506 + $0x1a] sm:$0xff]
      %v1029 = vld [vmem:[%s506 + $0x22] sm:$0xff]
      %v1030 = vld [vmem:[%s506 + $0x32] sm:$0xff]
      %v1031 = vld [vmem:[%s506 + $0x3a] sm:$0xff]
      %v1032 = vld [vmem:[%s506 + $0x4a] sm:$0xff]
      %v1033 = vld [vmem:[%s506 + $0x52] sm:$0xff]
      %v1034 = vld [vmem:[%s506 + $0x62] sm:$0xff]
      %v1035 = vld [vmem:[%s506 + $0x6a] sm:$0xff]
      %v1036 = vld [vmem:[%s506 + $0x7a] sm:$0xff]
      %v1037 = vld [vmem:[%s506 + $0x82] sm:$0xff]
      %v1038 = vld [vmem:[%s506 + $0x92] sm:$0xff]
      %v1039 = vld [vmem:[%s506 + $0x9a] sm:$0xff]
      %v1040 = vld [vmem:[%s506 + $0xaa] sm:$0xff]
      %v1041 = vld [vmem:[%s506 + $0xb2] sm:$0xff]
      %v1042 = vld [vmem:[%s506 + $0xc2] sm:$0xff]
      %v1043 = vld [vmem:[%s506 + $0xca] sm:$0xff]
      %v1044 = vld [vmem:[%s506 + $0xda] sm:$0xff]
      %v1045 = vld [vmem:[%s506 + $0xe2] sm:$0xff]
      %v1046 = vld [vmem:[%s506 + $0xf2] sm:$0xff]
      %v1047 = vld [vmem:[%s506 + $0xfa] sm:$0xff]
      %v1048 = vld [vmem:[%s506 + $0x10a] sm:$0xff]
      %v1049 = vld [vmem:[%s506 + $0x112] sm:$0xff]
      %v1050 = vld [vmem:[%s506 + $0x122] sm:$0xff]
      %v1051 = vld [vmem:[%s506 + $0x12a] sm:$0xff]
      %v1052 = vld [vmem:[%s506 + $0x13a] sm:$0xff]
      %v1053 = vld [vmem:[%s506 + $0x142] sm:$0xff]
      %v1054 = vld [vmem:[%s506 + $0x152] sm:$0xff]
      %v1055 = vld [vmem:[%s506 + $0x15a] sm:$0xff]
      %v1056 = vld [vmem:[%s506 + $0x16a] sm:$0xff]
      %v1057 = vld [vmem:[%s506 + $0x172] sm:$0xff]
      %s1058 = scalar_lea.vmem %s1, 5
      %v1059 = vld [vmem:[%s1058] sm:$0x1]
      %v1061 = vlaneseq
      %v1062 = vshrl.u32 %v1061, 7
      %v1063 = vsub.s32 0, %v1062
      %v1064 = vrot.slane %v1059, %v1063
      %v1066 = vmul.f32 %v1026, %v1064
      %v1067 = vmul.f32 %v1027, %v1064
      %v1068 = vmul.f32 %v1028, %v1064
      %v1069 = vmul.f32 %v1029, %v1064
      %v1070 = vmul.f32 %v1030, %v1064
      %v1071 = vmul.f32 %v1031, %v1064
      %v1072 = vmul.f32 %v1032, %v1064
      %v1073 = vmul.f32 %v1033, %v1064
      %v1074 = vmul.f32 %v1034, %v1064
      %v1075 = vmul.f32 %v1035, %v1064
      %v1076 = vmul.f32 %v1036, %v1064
      %v1077 = vmul.f32 %v1037, %v1064
      %v1078 = vmul.f32 %v1038, %v1064
      %v1079 = vmul.f32 %v1039, %v1064
      %v1080 = vmul.f32 %v1040, %v1064
      %v1081 = vmul.f32 %v1041, %v1064
      %v1082 = vmul.f32 %v1042, %v1064
      %v1083 = vmul.f32 %v1043, %v1064
      %v1084 = vmul.f32 %v1044, %v1064
      %v1085 = vmul.f32 %v1045, %v1064
      %v1086 = vmul.f32 %v1046, %v1064
      %v1087 = vmul.f32 %v1047, %v1064
      %v1088 = vmul.f32 %v1048, %v1064
      %v1089 = vmul.f32 %v1049, %v1064
      %v1090 = vmul.f32 %v1050, %v1064
      %v1091 = vmul.f32 %v1051, %v1064
      %v1092 = vmul.f32 %v1052, %v1064
      %v1093 = vmul.f32 %v1053, %v1064
      %v1094 = vmul.f32 %v1054, %v1064
      %v1095 = vmul.f32 %v1055, %v1064
      %v1096 = vmul.f32 %v1056, %v1064
      %v1097 = vmul.f32 %v1057, %v1064
      %v1098 = vadd.f32 %v994, %v1066
      %v1099 = vadd.f32 %v995, %v1067
      %v1100 = vadd.f32 %v996, %v1068
      %v1101 = vadd.f32 %v997, %v1069
      %v1102 = vadd.f32 %v998, %v1070
      %v1103 = vadd.f32 %v999, %v1071
      %v1104 = vadd.f32 %v1000, %v1072
      %v1105 = vadd.f32 %v1001, %v1073
      %v1106 = vadd.f32 %v1002, %v1074
      %v1107 = vadd.f32 %v1003, %v1075
      %v1108 = vadd.f32 %v1004, %v1076
      %v1109 = vadd.f32 %v1005, %v1077
      %v1110 = vadd.f32 %v1006, %v1078
      %v1111 = vadd.f32 %v1007, %v1079
      %v1112 = vadd.f32 %v1008, %v1080
      %v1113 = vadd.f32 %v1009, %v1081
      %v1114 = vadd.f32 %v1010, %v1082
      %v1115 = vadd.f32 %v1011, %v1083
      %v1116 = vadd.f32 %v1012, %v1084
      %v1117 = vadd.f32 %v1013, %v1085
      %v1118 = vadd.f32 %v1014, %v1086
      %v1119 = vadd.f32 %v1015, %v1087
      %v1120 = vadd.f32 %v1016, %v1088
      %v1121 = vadd.f32 %v1017, %v1089
      %v1122 = vadd.f32 %v1018, %v1090
      %v1123 = vadd.f32 %v1019, %v1091
      %v1124 = vadd.f32 %v1020, %v1092
      %v1125 = vadd.f32 %v1021, %v1093
      %v1126 = vadd.f32 %v1022, %v1094
      %v1127 = vadd.f32 %v1023, %v1095
      %v1128 = vadd.f32 %v1024, %v1096
      %v1129 = vadd.f32 %v1025, %v1097
      %s1130 = scalar_lea.vmem [#allocation2], 48
      %v1131 = vld [vmem:[%s1130] sm:$0xff]
      %v1132 = vld [vmem:[%s1130 + $0x8] sm:$0xff]
      %v1133 = vld [vmem:[%s1130 + $0x18] sm:$0xff]
      %v1134 = vld [vmem:[%s1130 + $0x20] sm:$0xff]
      %v1135 = vld [vmem:[%s1130 + $0x30] sm:$0xff]
      %v1136 = vld [vmem:[%s1130 + $0x38] sm:$0xff]
      %v1137 = vld [vmem:[%s1130 + $0x48] sm:$0xff]
      %v1138 = vld [vmem:[%s1130 + $0x50] sm:$0xff]
      %v1139 = vld [vmem:[%s1130 + $0x60] sm:$0xff]
      %v1140 = vld [vmem:[%s1130 + $0x68] sm:$0xff]
      %v1141 = vld [vmem:[%s1130 + $0x78] sm:$0xff]
      %v1142 = vld [vmem:[%s1130 + $0x80] sm:$0xff]
      %v1143 = vld [vmem:[%s1130 + $0x90] sm:$0xff]
      %v1144 = vld [vmem:[%s1130 + $0x98] sm:$0xff]
      %v1145 = vld [vmem:[%s1130 + $0xa8] sm:$0xff]
      %v1146 = vld [vmem:[%s1130 + $0xb0] sm:$0xff]
      %v1147 = vld [vmem:[%s1130 + $0xc0] sm:$0xff]
      %v1148 = vld [vmem:[%s1130 + $0xc8] sm:$0xff]
      %v1149 = vld [vmem:[%s1130 + $0xd8] sm:$0xff]
      %v1150 = vld [vmem:[%s1130 + $0xe0] sm:$0xff]
      %v1151 = vld [vmem:[%s1130 + $0xf0] sm:$0xff]
      %v1152 = vld [vmem:[%s1130 + $0xf8] sm:$0xff]
      %v1153 = vld [vmem:[%s1130 + $0x108] sm:$0xff]
      %v1154 = vld [vmem:[%s1130 + $0x110] sm:$0xff]
      %v1155 = vld [vmem:[%s1130 + $0x120] sm:$0xff]
      %v1156 = vld [vmem:[%s1130 + $0x128] sm:$0xff]
      %v1157 = vld [vmem:[%s1130 + $0x138] sm:$0xff]
      %v1158 = vld [vmem:[%s1130 + $0x140] sm:$0xff]
      %v1159 = vld [vmem:[%s1130 + $0x150] sm:$0xff]
      %v1160 = vld [vmem:[%s1130 + $0x158] sm:$0xff]
      %v1161 = vld [vmem:[%s1130 + $0x168] sm:$0xff]
      %v1162 = vld [vmem:[%s1130 + $0x170] sm:$0xff]
      %s1163 = scalar_lea.vmem %s1, 6
      %v1164 = vld [vmem:[%s1163] sm:$0x1]
      %v1166 = vlaneseq
      %v1167 = vshrl.u32 %v1166, 7
      %v1168 = vsub.s32 0, %v1167
      %v1169 = vrot.slane %v1164, %v1168
      %v1171 = vmul.f32 %v1131, %v1169
      %v1172 = vmul.f32 %v1132, %v1169
      %v1173 = vmul.f32 %v1133, %v1169
      %v1174 = vmul.f32 %v1134, %v1169
      %v1175 = vmul.f32 %v1135, %v1169
      %v1176 = vmul.f32 %v1136, %v1169
      %v1177 = vmul.f32 %v1137, %v1169
      %v1178 = vmul.f32 %v1138, %v1169
      %v1179 = vmul.f32 %v1139, %v1169
      %v1180 = vmul.f32 %v1140, %v1169
      %v1181 = vmul.f32 %v1141, %v1169
      %v1182 = vmul.f32 %v1142, %v1169
      %v1183 = vmul.f32 %v1143, %v1169
      %v1184 = vmul.f32 %v1144, %v1169
      %v1185 = vmul.f32 %v1145, %v1169
      %v1186 = vmul.f32 %v1146, %v1169
      %v1187 = vmul.f32 %v1147, %v1169
      %v1188 = vmul.f32 %v1148, %v1169
      %v1189 = vmul.f32 %v1149, %v1169
      %v1190 = vmul.f32 %v1150, %v1169
      %v1191 = vmul.f32 %v1151, %v1169
      %v1192 = vmul.f32 %v1152, %v1169
      %v1193 = vmul.f32 %v1153, %v1169
      %v1194 = vmul.f32 %v1154, %v1169
      %v1195 = vmul.f32 %v1155, %v1169
      %v1196 = vmul.f32 %v1156, %v1169
      %v1197 = vmul.f32 %v1157, %v1169
      %v1198 = vmul.f32 %v1158, %v1169
      %v1199 = vmul.f32 %v1159, %v1169
      %v1200 = vmul.f32 %v1160, %v1169
      %v1201 = vmul.f32 %v1161, %v1169
      %v1202 = vmul.f32 %v1162, %v1169
      %v1203 = vadd.f32 %v1098, %v1171
      %v1204 = vadd.f32 %v1099, %v1172
      %v1205 = vadd.f32 %v1100, %v1173
      %v1206 = vadd.f32 %v1101, %v1174
      %v1207 = vadd.f32 %v1102, %v1175
      %v1208 = vadd.f32 %v1103, %v1176
      %v1209 = vadd.f32 %v1104, %v1177
      %v1210 = vadd.f32 %v1105, %v1178
      %v1211 = vadd.f32 %v1106, %v1179
      %v1212 = vadd.f32 %v1107, %v1180
      %v1213 = vadd.f32 %v1108, %v1181
      %v1214 = vadd.f32 %v1109, %v1182
      %v1215 = vadd.f32 %v1110, %v1183
      %v1216 = vadd.f32 %v1111, %v1184
      %v1217 = vadd.f32 %v1112, %v1185
      %v1218 = vadd.f32 %v1113, %v1186
      %v1219 = vadd.f32 %v1114, %v1187
      %v1220 = vadd.f32 %v1115, %v1188
      %v1221 = vadd.f32 %v1116, %v1189
      %v1222 = vadd.f32 %v1117, %v1190
      %v1223 = vadd.f32 %v1118, %v1191
      %v1224 = vadd.f32 %v1119, %v1192
      %v1225 = vadd.f32 %v1120, %v1193
      %v1226 = vadd.f32 %v1121, %v1194
      %v1227 = vadd.f32 %v1122, %v1195
      %v1228 = vadd.f32 %v1123, %v1196
      %v1229 = vadd.f32 %v1124, %v1197
      %v1230 = vadd.f32 %v1125, %v1198
      %v1231 = vadd.f32 %v1126, %v1199
      %v1232 = vadd.f32 %v1127, %v1200
      %v1233 = vadd.f32 %v1128, %v1201
      %v1234 = vadd.f32 %v1129, %v1202
      %v1235 = vld [vmem:[%s1130 + $0x1] sm:$0xff]
      %v1236 = vld [vmem:[%s1130 + $0x9] sm:$0xff]
      %v1237 = vld [vmem:[%s1130 + $0x19] sm:$0xff]
      %v1238 = vld [vmem:[%s1130 + $0x21] sm:$0xff]
      %v1239 = vld [vmem:[%s1130 + $0x31] sm:$0xff]
      %v1240 = vld [vmem:[%s1130 + $0x39] sm:$0xff]
      %v1241 = vld [vmem:[%s1130 + $0x49] sm:$0xff]
      %v1242 = vld [vmem:[%s1130 + $0x51] sm:$0xff]
      %v1243 = vld [vmem:[%s1130 + $0x61] sm:$0xff]
      %v1244 = vld [vmem:[%s1130 + $0x69] sm:$0xff]
      %v1245 = vld [vmem:[%s1130 + $0x79] sm:$0xff]
      %v1246 = vld [vmem:[%s1130 + $0x81] sm:$0xff]
      %v1247 = vld [vmem:[%s1130 + $0x91] sm:$0xff]
      %v1248 = vld [vmem:[%s1130 + $0x99] sm:$0xff]
      %v1249 = vld [vmem:[%s1130 + $0xa9] sm:$0xff]
      %v1250 = vld [vmem:[%s1130 + $0xb1] sm:$0xff]
      %v1251 = vld [vmem:[%s1130 + $0xc1] sm:$0xff]
      %v1252 = vld [vmem:[%s1130 + $0xc9] sm:$0xff]
      %v1253 = vld [vmem:[%s1130 + $0xd9] sm:$0xff]
      %v1254 = vld [vmem:[%s1130 + $0xe1] sm:$0xff]
      %v1255 = vld [vmem:[%s1130 + $0xf1] sm:$0xff]
      %v1256 = vld [vmem:[%s1130 + $0xf9] sm:$0xff]
      %v1257 = vld [vmem:[%s1130 + $0x109] sm:$0xff]
      %v1258 = vld [vmem:[%s1130 + $0x111] sm:$0xff]
      %v1259 = vld [vmem:[%s1130 + $0x121] sm:$0xff]
      %v1260 = vld [vmem:[%s1130 + $0x129] sm:$0xff]
      %v1261 = vld [vmem:[%s1130 + $0x139] sm:$0xff]
      %v1262 = vld [vmem:[%s1130 + $0x141] sm:$0xff]
      %v1263 = vld [vmem:[%s1130 + $0x151] sm:$0xff]
      %v1264 = vld [vmem:[%s1130 + $0x159] sm:$0xff]
      %v1265 = vld [vmem:[%s1130 + $0x169] sm:$0xff]
      %v1266 = vld [vmem:[%s1130 + $0x171] sm:$0xff]
      %s1267 = scalar_lea.vmem %s1, 7
      %v1268 = vld [vmem:[%s1267] sm:$0x1]
      %v1270 = vlaneseq
      %v1271 = vshrl.u32 %v1270, 7
      %v1272 = vsub.s32 0, %v1271
      %v1273 = vrot.slane %v1268, %v1272
      %v1275 = vmul.f32 %v1235, %v1273
      %v1276 = vmul.f32 %v1236, %v1273
      %v1277 = vmul.f32 %v1237, %v1273
      %v1278 = vmul.f32 %v1238, %v1273
      %v1279 = vmul.f32 %v1239, %v1273
      %v1280 = vmul.f32 %v1240, %v1273
      %v1281 = vmul.f32 %v1241, %v1273
      %v1282 = vmul.f32 %v1242, %v1273
      %v1283 = vmul.f32 %v1243, %v1273
      %v1284 = vmul.f32 %v1244, %v1273
      %v1285 = vmul.f32 %v1245, %v1273
      %v1286 = vmul.f32 %v1246, %v1273
      %v1287 = vmul.f32 %v1247, %v1273
      %v1288 = vmul.f32 %v1248, %v1273
      %v1289 = vmul.f32 %v1249, %v1273
      %v1290 = vmul.f32 %v1250, %v1273
      %v1291 = vmul.f32 %v1251, %v1273
      %v1292 = vmul.f32 %v1252, %v1273
      %v1293 = vmul.f32 %v1253, %v1273
      %v1294 = vmul.f32 %v1254, %v1273
      %v1295 = vmul.f32 %v1255, %v1273
      %v1296 = vmul.f32 %v1256, %v1273
      %v1297 = vmul.f32 %v1257, %v1273
      %v1298 = vmul.f32 %v1258, %v1273
      %v1299 = vmul.f32 %v1259, %v1273
      %v1300 = vmul.f32 %v1260, %v1273
      %v1301 = vmul.f32 %v1261, %v1273
      %v1302 = vmul.f32 %v1262, %v1273
      %v1303 = vmul.f32 %v1263, %v1273
      %v1304 = vmul.f32 %v1264, %v1273
      %v1305 = vmul.f32 %v1265, %v1273
      %v1306 = vmul.f32 %v1266, %v1273
      %v1307 = vadd.f32 %v1203, %v1275
      %v1308 = vadd.f32 %v1204, %v1276
      %v1309 = vadd.f32 %v1205, %v1277
      %v1310 = vadd.f32 %v1206, %v1278
      %v1311 = vadd.f32 %v1207, %v1279
      %v1312 = vadd.f32 %v1208, %v1280
      %v1313 = vadd.f32 %v1209, %v1281
      %v1314 = vadd.f32 %v1210, %v1282
      %v1315 = vadd.f32 %v1211, %v1283
      %v1316 = vadd.f32 %v1212, %v1284
      %v1317 = vadd.f32 %v1213, %v1285
      %v1318 = vadd.f32 %v1214, %v1286
      %v1319 = vadd.f32 %v1215, %v1287
      %v1320 = vadd.f32 %v1216, %v1288
      %v1321 = vadd.f32 %v1217, %v1289
      %v1322 = vadd.f32 %v1218, %v1290
      %v1323 = vadd.f32 %v1219, %v1291
      %v1324 = vadd.f32 %v1220, %v1292
      %v1325 = vadd.f32 %v1221, %v1293
      %v1326 = vadd.f32 %v1222, %v1294
      %v1327 = vadd.f32 %v1223, %v1295
      %v1328 = vadd.f32 %v1224, %v1296
      %v1329 = vadd.f32 %v1225, %v1297
      %v1330 = vadd.f32 %v1226, %v1298
      %v1331 = vadd.f32 %v1227, %v1299
      %v1332 = vadd.f32 %v1228, %v1300
      %v1333 = vadd.f32 %v1229, %v1301
      %v1334 = vadd.f32 %v1230, %v1302
      %v1335 = vadd.f32 %v1231, %v1303
      %v1336 = vadd.f32 %v1232, %v1304
      %v1337 = vadd.f32 %v1233, %v1305
      %v1338 = vadd.f32 %v1234, %v1306
      %v1339 = vld [vmem:[%s1130 + $0x2] sm:$0xff]
      %v1340 = vld [vmem:[%s1130 + $0xa] sm:$0xff]
      %v1341 = vld [vmem:[%s1130 + $0x1a] sm:$0xff]
      %v1342 = vld [vmem:[%s1130 + $0x22] sm:$0xff]
      %v1343 = vld [vmem:[%s1130 + $0x32] sm:$0xff]
      %v1344 = vld [vmem:[%s1130 + $0x3a] sm:$0xff]
      %v1345 = vld [vmem:[%s1130 + $0x4a] sm:$0xff]
      %v1346 = vld [vmem:[%s1130 + $0x52] sm:$0xff]
      %v1347 = vld [vmem:[%s1130 + $0x62] sm:$0xff]
      %v1348 = vld [vmem:[%s1130 + $0x6a] sm:$0xff]
      %v1349 = vld [vmem:[%s1130 + $0x7a] sm:$0xff]
      %v1350 = vld [vmem:[%s1130 + $0x82] sm:$0xff]
      %v1351 = vld [vmem:[%s1130 + $0x92] sm:$0xff]
      %v1352 = vld [vmem:[%s1130 + $0x9a] sm:$0xff]
      %v1353 = vld [vmem:[%s1130 + $0xaa] sm:$0xff]
      %v1354 = vld [vmem:[%s1130 + $0xb2] sm:$0xff]
      %v1355 = vld [vmem:[%s1130 + $0xc2] sm:$0xff]
      %v1356 = vld [vmem:[%s1130 + $0xca] sm:$0xff]
      %v1357 = vld [vmem:[%s1130 + $0xda] sm:$0xff]
      %v1358 = vld [vmem:[%s1130 + $0xe2] sm:$0xff]
      %v1359 = vld [vmem:[%s1130 + $0xf2] sm:$0xff]
      %v1360 = vld [vmem:[%s1130 + $0xfa] sm:$0xff]
      %v1361 = vld [vmem:[%s1130 + $0x10a] sm:$0xff]
      %v1362 = vld [vmem:[%s1130 + $0x112] sm:$0xff]
      %v1363 = vld [vmem:[%s1130 + $0x122] sm:$0xff]
      %v1364 = vld [vmem:[%s1130 + $0x12a] sm:$0xff]
      %v1365 = vld [vmem:[%s1130 + $0x13a] sm:$0xff]
      %v1366 = vld [vmem:[%s1130 + $0x142] sm:$0xff]
      %v1367 = vld [vmem:[%s1130 + $0x152] sm:$0xff]
      %v1368 = vld [vmem:[%s1130 + $0x15a] sm:$0xff]
      %v1369 = vld [vmem:[%s1130 + $0x16a] sm:$0xff]
      %v1370 = vld [vmem:[%s1130 + $0x172] sm:$0xff]
      %s1371 = scalar_lea.vmem %s1, 8
      %v1372 = vld [vmem:[%s1371] sm:$0x1]
      %v1374 = vlaneseq
      %v1375 = vshrl.u32 %v1374, 7
      %v1376 = vsub.s32 0, %v1375
      %v1377 = vrot.slane %v1372, %v1376
      %v1379 = vmul.f32 %v1339, %v1377
      %v1380 = vmul.f32 %v1340, %v1377
      %v1381 = vmul.f32 %v1341, %v1377
      %v1382 = vmul.f32 %v1342, %v1377
      %v1383 = vmul.f32 %v1343, %v1377
      %v1384 = vmul.f32 %v1344, %v1377
      %v1385 = vmul.f32 %v1345, %v1377
      %v1386 = vmul.f32 %v1346, %v1377
      %v1387 = vmul.f32 %v1347, %v1377
      %v1388 = vmul.f32 %v1348, %v1377
      %v1389 = vmul.f32 %v1349, %v1377
      %v1390 = vmul.f32 %v1350, %v1377
      %v1391 = vmul.f32 %v1351, %v1377
      %v1392 = vmul.f32 %v1352, %v1377
      %v1393 = vmul.f32 %v1353, %v1377
      %v1394 = vmul.f32 %v1354, %v1377
      %v1395 = vmul.f32 %v1355, %v1377
      %v1396 = vmul.f32 %v1356, %v1377
      %v1397 = vmul.f32 %v1357, %v1377
      %v1398 = vmul.f32 %v1358, %v1377
      %v1399 = vmul.f32 %v1359, %v1377
      %v1400 = vmul.f32 %v1360, %v1377
      %v1401 = vmul.f32 %v1361, %v1377
      %v1402 = vmul.f32 %v1362, %v1377
      %v1403 = vmul.f32 %v1363, %v1377
      %v1404 = vmul.f32 %v1364, %v1377
      %v1405 = vmul.f32 %v1365, %v1377
      %v1406 = vmul.f32 %v1366, %v1377
      %v1407 = vmul.f32 %v1367, %v1377
      %v1408 = vmul.f32 %v1368, %v1377
      %v1409 = vmul.f32 %v1369, %v1377
      %v1410 = vmul.f32 %v1370, %v1377
      %v1411 = vadd.f32 %v1307, %v1379
      %v1412 = vadd.f32 %v1308, %v1380
      %v1413 = vadd.f32 %v1309, %v1381
      %v1414 = vadd.f32 %v1310, %v1382
      %v1415 = vadd.f32 %v1311, %v1383
      %v1416 = vadd.f32 %v1312, %v1384
      %v1417 = vadd.f32 %v1313, %v1385
      %v1418 = vadd.f32 %v1314, %v1386
      %v1419 = vadd.f32 %v1315, %v1387
      %v1420 = vadd.f32 %v1316, %v1388
      %v1421 = vadd.f32 %v1317, %v1389
      %v1422 = vadd.f32 %v1318, %v1390
      %v1423 = vadd.f32 %v1319, %v1391
      %v1424 = vadd.f32 %v1320, %v1392
      %v1425 = vadd.f32 %v1321, %v1393
      %v1426 = vadd.f32 %v1322, %v1394
      %v1427 = vadd.f32 %v1323, %v1395
      %v1428 = vadd.f32 %v1324, %v1396
      %v1429 = vadd.f32 %v1325, %v1397
      %v1430 = vadd.f32 %v1326, %v1398
      %v1431 = vadd.f32 %v1327, %v1399
      %v1432 = vadd.f32 %v1328, %v1400
      %v1433 = vadd.f32 %v1329, %v1401
      %v1434 = vadd.f32 %v1330, %v1402
      %v1435 = vadd.f32 %v1331, %v1403
      %v1436 = vadd.f32 %v1332, %v1404
      %v1437 = vadd.f32 %v1333, %v1405
      %v1438 = vadd.f32 %v1334, %v1406
      %v1439 = vadd.f32 %v1335, %v1407
      %v1440 = vadd.f32 %v1336, %v1408
      %v1441 = vadd.f32 %v1337, %v1409
      %v1442 = vadd.f32 %v1338, %v1410
      %v1443 = vld [vmem:[%s2] sm:$0x1]
      %v1445 = vlaneseq
      %v1446 = vshrl.u32 %v1445, 7
      %v1447 = vsub.s32 0, %v1446
      %v1448 = vrot.slane %v1443, %v1447
      %v1450 = vmul.f32 %v1411, %v1448
      %v1451 = vmul.f32 %v1412, %v1448
      %v1452 = vmul.f32 %v1413, %v1448
      %v1453 = vmul.f32 %v1414, %v1448
      %v1454 = vmul.f32 %v1415, %v1448
      %v1455 = vmul.f32 %v1416, %v1448
      %v1456 = vmul.f32 %v1417, %v1448
      %v1457 = vmul.f32 %v1418, %v1448
      %v1458 = vmul.f32 %v1419, %v1448
      %v1459 = vmul.f32 %v1420, %v1448
      %v1460 = vmul.f32 %v1421, %v1448
      %v1461 = vmul.f32 %v1422, %v1448
      %v1462 = vmul.f32 %v1423, %v1448
      %v1463 = vmul.f32 %v1424, %v1448
      %v1464 = vmul.f32 %v1425, %v1448
      %v1465 = vmul.f32 %v1426, %v1448
      %v1466 = vmul.f32 %v1427, %v1448
      %v1467 = vmul.f32 %v1428, %v1448
      %v1468 = vmul.f32 %v1429, %v1448
      %v1469 = vmul.f32 %v1430, %v1448
      %v1470 = vmul.f32 %v1431, %v1448
      %v1471 = vmul.f32 %v1432, %v1448
      %v1472 = vmul.f32 %v1433, %v1448
      %v1473 = vmul.f32 %v1434, %v1448
      %v1474 = vmul.f32 %v1435, %v1448
      %v1475 = vmul.f32 %v1436, %v1448
      %v1476 = vmul.f32 %v1437, %v1448
      %v1477 = vmul.f32 %v1438, %v1448
      %v1478 = vmul.f32 %v1439, %v1448
      %v1479 = vmul.f32 %v1440, %v1448
      %v1480 = vmul.f32 %v1441, %v1448
      %v1481 = vmul.f32 %v1442, %v1448
      %v1482 = vld [vmem:[%s3] sm:$0x1]
      %v1484 = vlaneseq
      %v1485 = vshrl.u32 %v1484, 7
      %v1486 = vsub.s32 0, %v1485
      %v1487 = vrot.slane %v1482, %v1486
      %v1489 = vadd.f32 %v1450, %v1487
      %v1490 = vadd.f32 %v1451, %v1487
      %v1491 = vadd.f32 %v1452, %v1487
      %v1492 = vadd.f32 %v1453, %v1487
      %v1493 = vadd.f32 %v1454, %v1487
      %v1494 = vadd.f32 %v1455, %v1487
      %v1495 = vadd.f32 %v1456, %v1487
      %v1496 = vadd.f32 %v1457, %v1487
      %v1497 = vadd.f32 %v1458, %v1487
      %v1498 = vadd.f32 %v1459, %v1487
      %v1499 = vadd.f32 %v1460, %v1487
      %v1500 = vadd.f32 %v1461, %v1487
      %v1501 = vadd.f32 %v1462, %v1487
      %v1502 = vadd.f32 %v1463, %v1487
      %v1503 = vadd.f32 %v1464, %v1487
      %v1504 = vadd.f32 %v1465, %v1487
      %v1505 = vadd.f32 %v1466, %v1487
      %v1506 = vadd.f32 %v1467, %v1487
      %v1507 = vadd.f32 %v1468, %v1487
      %v1508 = vadd.f32 %v1469, %v1487
      %v1509 = vadd.f32 %v1470, %v1487
      %v1510 = vadd.f32 %v1471, %v1487
      %v1511 = vadd.f32 %v1472, %v1487
      %v1512 = vadd.f32 %v1473, %v1487
      %v1513 = vadd.f32 %v1474, %v1487
      %v1514 = vadd.f32 %v1475, %v1487
      %v1515 = vadd.f32 %v1476, %v1487
      %v1516 = vadd.f32 %v1477, %v1487
      %v1517 = vadd.f32 %v1478, %v1487
      %v1518 = vadd.f32 %v1479, %v1487
      %v1519 = vadd.f32 %v1480, %v1487
      %v1520 = vadd.f32 %v1481, %v1487
      %v1521 = vxor.u32 %v1489, 2147483648
      %v1522 = vxor.u32 %v1490, 2147483648
      %v1523 = vxor.u32 %v1491, 2147483648
      %v1524 = vxor.u32 %v1492, 2147483648
      %v1525 = vxor.u32 %v1493, 2147483648
      %v1526 = vxor.u32 %v1494, 2147483648
      %v1527 = vxor.u32 %v1495, 2147483648
      %v1528 = vxor.u32 %v1496, 2147483648
      %v1529 = vxor.u32 %v1497, 2147483648
      %v1530 = vxor.u32 %v1498, 2147483648
      %v1531 = vxor.u32 %v1499, 2147483648
      %v1532 = vxor.u32 %v1500, 2147483648
      %v1533 = vxor.u32 %v1501, 2147483648
      %v1534 = vxor.u32 %v1502, 2147483648
      %v1535 = vxor.u32 %v1503, 2147483648
      %v1536 = vxor.u32 %v1504, 2147483648
      %v1537 = vxor.u32 %v1505, 2147483648
      %v1538 = vxor.u32 %v1506, 2147483648
      %v1539 = vxor.u32 %v1507, 2147483648
      %v1540 = vxor.u32 %v1508, 2147483648
      %v1541 = vxor.u32 %v1509, 2147483648
      %v1542 = vxor.u32 %v1510, 2147483648
      %v1543 = vxor.u32 %v1511, 2147483648
      %v1544 = vxor.u32 %v1512, 2147483648
      %v1545 = vxor.u32 %v1513, 2147483648
      %v1546 = vxor.u32 %v1514, 2147483648
      %v1547 = vxor.u32 %v1515, 2147483648
      %v1548 = vxor.u32 %v1516, 2147483648
      %v1549 = vxor.u32 %v1517, 2147483648
      %v1550 = vxor.u32 %v1518, 2147483648
      %v1551 = vxor.u32 %v1519, 2147483648
      %v1552 = vxor.u32 %v1520, 2147483648
      %v1553 = vmul.f32 %v1521, 1.442695
      %v1554 = vpow.pop %v1553
      %v1555 = vmul.f32 %v1522, 1.442695
      %v1556 = vpow.pop %v1555
      %v1557 = vmul.f32 %v1523, 1.442695
      %v1558 = vpow.pop %v1557
      %v1559 = vmul.f32 %v1524, 1.442695
      %v1560 = vpow.pop %v1559
      %v1561 = vmul.f32 %v1525, 1.442695
      %v1562 = vpow.pop %v1561
      %v1563 = vmul.f32 %v1526, 1.442695
      %v1564 = vpow.pop %v1563
      %v1565 = vmul.f32 %v1527, 1.442695
      %v1566 = vpow.pop %v1565
      %v1567 = vmul.f32 %v1528, 1.442695
      %v1568 = vpow.pop %v1567
      %v1569 = vmul.f32 %v1529, 1.442695
      %v1570 = vpow.pop %v1569
      %v1571 = vmul.f32 %v1530, 1.442695
      %v1572 = vpow.pop %v1571
      %v1573 = vmul.f32 %v1531, 1.442695
      %v1574 = vpow.pop %v1573
      %v1575 = vmul.f32 %v1532, 1.442695
      %v1576 = vpow.pop %v1575
      %v1577 = vmul.f32 %v1533, 1.442695
      %v1578 = vpow.pop %v1577
      %v1579 = vmul.f32 %v1534, 1.442695
      %v1580 = vpow.pop %v1579
      %v1581 = vmul.f32 %v1535, 1.442695
      %v1582 = vpow.pop %v1581
      %v1583 = vmul.f32 %v1536, 1.442695
      %v1584 = vpow.pop %v1583
      %v1585 = vmul.f32 %v1537, 1.442695
      %v1586 = vpow.pop %v1585
      %v1587 = vmul.f32 %v1538, 1.442695
      %v1588 = vpow.pop %v1587
      %v1589 = vmul.f32 %v1539, 1.442695
      %v1590 = vpow.pop %v1589
      %v1591 = vmul.f32 %v1540, 1.442695
      %v1592 = vpow.pop %v1591
      %v1593 = vmul.f32 %v1541, 1.442695
      %v1594 = vpow.pop %v1593
      %v1595 = vmul.f32 %v1542, 1.442695
      %v1596 = vpow.pop %v1595
      %v1597 = vmul.f32 %v1543, 1.442695
      %v1598 = vpow.pop %v1597
      %v1599 = vmul.f32 %v1544, 1.442695
      %v1600 = vpow.pop %v1599
      %v1601 = vmul.f32 %v1545, 1.442695
      %v1602 = vpow.pop %v1601
      %v1603 = vmul.f32 %v1546, 1.442695
      %v1604 = vpow.pop %v1603
      %v1605 = vmul.f32 %v1547, 1.442695
      %v1606 = vpow.pop %v1605
      %v1607 = vmul.f32 %v1548, 1.442695
      %v1608 = vpow.pop %v1607
      %v1609 = vmul.f32 %v1549, 1.442695
      %v1610 = vpow.pop %v1609
      %v1611 = vmul.f32 %v1550, 1.442695
      %v1612 = vpow.pop %v1611
      %v1613 = vmul.f32 %v1551, 1.442695
      %v1614 = vpow.pop %v1613
      %v1615 = vmul.f32 %v1552, 1.442695
      %v1616 = vpow.pop %v1615
      %v1617 = vadd.f32 %v1554, 1.0
      %v1618 = vadd.f32 %v1556, 1.0
      %v1619 = vadd.f32 %v1558, 1.0
      %v1620 = vadd.f32 %v1560, 1.0
      %v1621 = vadd.f32 %v1562, 1.0
      %v1622 = vadd.f32 %v1564, 1.0
      %v1623 = vadd.f32 %v1566, 1.0
      %v1624 = vadd.f32 %v1568, 1.0
      %v1625 = vadd.f32 %v1570, 1.0
      %v1626 = vadd.f32 %v1572, 1.0
      %v1627 = vadd.f32 %v1574, 1.0
      %v1628 = vadd.f32 %v1576, 1.0
      %v1629 = vadd.f32 %v1578, 1.0
      %v1630 = vadd.f32 %v1580, 1.0
      %v1631 = vadd.f32 %v1582, 1.0
      %v1632 = vadd.f32 %v1584, 1.0
      %v1633 = vadd.f32 %v1586, 1.0
      %v1634 = vadd.f32 %v1588, 1.0
      %v1635 = vadd.f32 %v1590, 1.0
      %v1636 = vadd.f32 %v1592, 1.0
      %v1637 = vadd.f32 %v1594, 1.0
      %v1638 = vadd.f32 %v1596, 1.0
      %v1639 = vadd.f32 %v1598, 1.0
      %v1640 = vadd.f32 %v1600, 1.0
      %v1641 = vadd.f32 %v1602, 1.0
      %v1642 = vadd.f32 %v1604, 1.0
      %v1643 = vadd.f32 %v1606, 1.0
      %v1644 = vadd.f32 %v1608, 1.0
      %v1645 = vadd.f32 %v1610, 1.0
      %v1646 = vadd.f32 %v1612, 1.0
      %v1647 = vadd.f32 %v1614, 1.0
      %v1648 = vadd.f32 %v1616, 1.0
      %v1649 = vrcp.pop %v1617
      %v1650 = vmul.f32 1.0, %v1649
      %v1651 = vrcp.pop %v1618
      %v1652 = vmul.f32 1.0, %v1651
      %v1653 = vrcp.pop %v1619
      %v1654 = vmul.f32 1.0, %v1653
      %v1655 = vrcp.pop %v1620
      %v1656 = vmul.f32 1.0, %v1655
      %v1657 = vrcp.pop %v1621
      %v1658 = vmul.f32 1.0, %v1657
      %v1659 = vrcp.pop %v1622
      %v1660 = vmul.f32 1.0, %v1659
      %v1661 = vrcp.pop %v1623
      %v1662 = vmul.f32 1.0, %v1661
      %v1663 = vrcp.pop %v1624
      %v1664 = vmul.f32 1.0, %v1663
      %v1665 = vrcp.pop %v1625
      %v1666 = vmul.f32 1.0, %v1665
      %v1667 = vrcp.pop %v1626
      %v1668 = vmul.f32 1.0, %v1667
      %v1669 = vrcp.pop %v1627
      %v1670 = vmul.f32 1.0, %v1669
      %v1671 = vrcp.pop %v1628
      %v1672 = vmul.f32 1.0, %v1671
      %v1673 = vrcp.pop %v1629
      %v1674 = vmul.f32 1.0, %v1673
      %v1675 = vrcp.pop %v1630
      %v1676 = vmul.f32 1.0, %v1675
      %v1677 = vrcp.pop %v1631
      %v1678 = vmul.f32 1.0, %v1677
      %v1679 = vrcp.pop %v1632
      %v1680 = vmul.f32 1.0, %v1679
      %v1681 = vrcp.pop %v1633
      %v1682 = vmul.f32 1.0, %v1681
      %v1683 = vrcp.pop %v1634
      %v1684 = vmul.f32 1.0, %v1683
      %v1685 = vrcp.pop %v1635
      %v1686 = vmul.f32 1.0, %v1685
      %v1687 = vrcp.pop %v1636
      %v1688 = vmul.f32 1.0, %v1687
      %v1689 = vrcp.pop %v1637
      %v1690 = vmul.f32 1.0, %v1689
      %v1691 = vrcp.pop %v1638
      %v1692 = vmul.f32 1.0, %v1691
      %v1693 = vrcp.pop %v1639
      %v1694 = vmul.f32 1.0, %v1693
      %v1695 = vrcp.pop %v1640
      %v1696 = vmul.f32 1.0, %v1695
      %v1697 = vrcp.pop %v1641
      %v1698 = vmul.f32 1.0, %v1697
      %v1699 = vrcp.pop %v1642
      %v1700 = vmul.f32 1.0, %v1699
      %v1701 = vrcp.pop %v1643
      %v1702 = vmul.f32 1.0, %v1701
      %v1703 = vrcp.pop %v1644
      %v1704 = vmul.f32 1.0, %v1703
      %v1705 = vrcp.pop %v1645
      %v1706 = vmul.f32 1.0, %v1705
      %v1707 = vrcp.pop %v1646
      %v1708 = vmul.f32 1.0, %v1707
      %v1709 = vrcp.pop %v1647
      %v1710 = vmul.f32 1.0, %v1709
      %v1711 = vrcp.pop %v1648
      %v1712 = vmul.f32 1.0, %v1711
      %v1713 = vmul.f32 %v1489, %v1650
      %v1714 = vmul.f32 %v1490, %v1652
      %v1715 = vmul.f32 %v1491, %v1654
      %v1716 = vmul.f32 %v1492, %v1656
      %v1717 = vmul.f32 %v1493, %v1658
      %v1718 = vmul.f32 %v1494, %v1660
      %v1719 = vmul.f32 %v1495, %v1662
      %v1720 = vmul.f32 %v1496, %v1664
      %v1721 = vmul.f32 %v1497, %v1666
      %v1722 = vmul.f32 %v1498, %v1668
      %v1723 = vmul.f32 %v1499, %v1670
      %v1724 = vmul.f32 %v1500, %v1672
      %v1725 = vmul.f32 %v1501, %v1674
      %v1726 = vmul.f32 %v1502, %v1676
      %v1727 = vmul.f32 %v1503, %v1678
      %v1728 = vmul.f32 %v1504, %v1680
      %v1729 = vmul.f32 %v1505, %v1682
      %v1730 = vmul.f32 %v1506, %v1684
      %v1731 = vmul.f32 %v1507, %v1686
      %v1732 = vmul.f32 %v1508, %v1688
      %v1733 = vmul.f32 %v1509, %v1690
      %v1734 = vmul.f32 %v1510, %v1692
      %v1735 = vmul.f32 %v1511, %v1694
      %v1736 = vmul.f32 %v1512, %v1696
      %v1737 = vmul.f32 %v1513, %v1698
      %v1738 = vmul.f32 %v1514, %v1700
      %v1739 = vmul.f32 %v1515, %v1702
      %v1740 = vmul.f32 %v1516, %v1704
      %v1741 = vmul.f32 %v1517, %v1706
      %v1742 = vmul.f32 %v1518, %v1708
      %v1743 = vmul.f32 %v1519, %v1710
      %v1744 = vmul.f32 %v1520, %v1712
      %v1745 = vadd.f32 %v1713, %v1715
      %v1746 = vadd.f32 %v1745, %v1717
      %v1747 = vadd.f32 %v1746, %v1719
      %v1748 = vadd.f32 %v1747, %v1721
      %v1749 = vadd.f32 %v1748, %v1723
      %v1750 = vadd.f32 %v1749, %v1725
      %v1751 = vadd.f32 %v1750, %v1727
      %v1752 = vadd.f32 %v1751, %v1729
      %v1753 = vadd.f32 %v1752, %v1731
      %v1754 = vadd.f32 %v1753, %v1733
      %v1755 = vadd.f32 %v1754, %v1735
      %v1756 = vadd.f32 %v1755, %v1737
      %v1757 = vadd.f32 %v1756, %v1739
      %v1758 = vadd.f32 %v1757, %v1741
      %v1759 = vadd.f32 %v1758, %v1743
      %v1760 = vadd.f32 %v1714, %v1716
      %v1761 = vadd.f32 %v1760, %v1718
      %v1762 = vadd.f32 %v1761, %v1720
      %v1763 = vadd.f32 %v1762, %v1722
      %v1764 = vadd.f32 %v1763, %v1724
      %v1765 = vadd.f32 %v1764, %v1726
      %v1766 = vadd.f32 %v1765, %v1728
      %v1767 = vadd.f32 %v1766, %v1730
      %v1768 = vadd.f32 %v1767, %v1732
      %v1769 = vadd.f32 %v1768, %v1734
      %v1770 = vadd.f32 %v1769, %v1736
      %v1771 = vadd.f32 %v1770, %v1738
      %v1772 = vadd.f32 %v1771, %v1740
      %v1773 = vadd.f32 %v1772, %v1742
      %v1774 = vadd.f32 %v1773, %v1744
      %v1775 = vadd.f32 %v1759, %v1774
      %v1776 = vrot.slane %v1775, 4
      %v1777 = vadd.f32 %v1775, %v1776
      %v1778 = vrot.slane %v1777, 2
      %v1779 = vadd.f32 %v1777, %v1778
      %v1780 = vrot.slane %v1779, 1
      %v1781 = vadd.f32 %v1779, %v1780
      %v1782 = vmul.f32 %v1781, 0.00390625
      %v1783 = vpack.c.bf16 %v1782, %v1782
      %v1784 = vld [vmem:[%s4] sm:$0xf]
      %v1785 = vld [vmem:[%s4 + $0x4] sm:$0xf]
      %v1786 = vld [vmem:[%s4 + $0x8] sm:$0xf]
      %v1787 = vld [vmem:[%s4 + $0xc] sm:$0xf]
      %v1788 = vld [vmem:[%s4 + $0x10] sm:$0xf]
      %v1789 = vld [vmem:[%s4 + $0x14] sm:$0xf]
      %v1790 = vld [vmem:[%s4 + $0x18] sm:$0xf]
      %v1791 = vld [vmem:[%s4 + $0x1c] sm:$0xf]
      %v1792 = vld [vmem:[%s4 + $0x20] sm:$0xf]
      %v1793 = vld [vmem:[%s4 + $0x24] sm:$0xf]
      %v1794 = vld [vmem:[%s4 + $0x28] sm:$0xf]
      %v1795 = vld [vmem:[%s4 + $0x2c] sm:$0xf]
      %v1796 = vld [vmem:[%s4 + $0x30] sm:$0xf]
      %v1797 = vld [vmem:[%s4 + $0x34] sm:$0xf]
      %v1798 = vld [vmem:[%s4 + $0x38] sm:$0xf]
      %v1799 = vld [vmem:[%s4 + $0x3c] sm:$0xf]
      %v1800 = vld [vmem:[%s5] sm:$0x1]
      %v1817 = vunpack.c.l.b16 %v1784
      %v1818 = vunpack.c.l.b16 %v1785
      %v1819 = vunpack.c.l.b16 %v1786
      %v1820 = vunpack.c.l.b16 %v1787
      %v1821 = vunpack.c.l.b16 %v1788
      %v1822 = vunpack.c.l.b16 %v1789
      %v1823 = vunpack.c.l.b16 %v1790
      %v1824 = vunpack.c.l.b16 %v1791
      %v1825 = vunpack.c.l.b16 %v1792
      %v1826 = vunpack.c.l.b16 %v1793
      %v1827 = vunpack.c.l.b16 %v1794
      %v1828 = vunpack.c.l.b16 %v1795
      %v1829 = vunpack.c.l.b16 %v1796
      %v1830 = vunpack.c.l.b16 %v1797
      %v1831 = vunpack.c.l.b16 %v1798
      %v1832 = vunpack.c.l.b16 %v1799
      %v1833 = vpack.c.b16 %v1818, %v1817
      %v1834 = vpack.c.b16 %v1820, %v1819
      %v1835 = vpack.c.b16 %v1822, %v1821
      %v1836 = vpack.c.b16 %v1824, %v1823
      %v1837 = vpack.c.b16 %v1826, %v1825
      %v1838 = vpack.c.b16 %v1828, %v1827
      %v1839 = vpack.c.b16 %v1830, %v1829
      %v1840 = vpack.c.b16 %v1832, %v1831
      %1849 = vmatprep.subr.bf16.mxu0 0
      %1850 = vmatpush1.bf16.msra.mxu0 %v1833
      %1851 = vmatprep.subr.bf16.mxu0 0
      %1852 = vmatpush1.bf16.msra.mxu0 %v1834
      %1853 = vmatprep.subr.bf16.mxu0 0
      %1854 = vmatpush1.bf16.msra.mxu0 %v1835
      %1855 = vmatprep.subr.bf16.mxu0 0
      %1856 = vmatpush1.bf16.msra.mxu0 %v1836
      %1857 = vmatprep.subr.bf16.mxu0 0
      %1858 = vmatpush1.bf16.msra.mxu0 %v1837
      %1859 = vmatprep.subr.bf16.mxu0 0
      %1860 = vmatpush1.bf16.msra.mxu0 %v1838
      %1861 = vmatprep.subr.bf16.mxu0 0
      %1862 = vmatpush1.bf16.msra.mxu0 %v1839
      %1863 = vmatprep.subr.bf16.mxu0 0
      %1864 = vmatpush1.bf16.msra.mxu0 %v1840
      %1865 = vmatprep.subr.bf16.mxu0 0
      %1866 = vmatpush1.bf16.msra.mxu0 0
      %1867 = vmatprep.subr.bf16.mxu0 0
      %1868 = vmatpush1.bf16.msra.mxu0 0
      %1869 = vmatprep.subr.bf16.mxu0 0
      %1870 = vmatpush1.bf16.msra.mxu0 0
      %1871 = vmatprep.subr.bf16.mxu0 0
      %1872 = vmatpush1.bf16.msra.mxu0 0
      %1873 = vmatprep.subr.bf16.mxu0 0
      %1874 = vmatpush1.bf16.msra.mxu0 0
      %1875 = vmatprep.subr.bf16.mxu0 0
      %1876 = vmatpush1.bf16.msra.mxu0 0
      %1877 = vmatprep.subr.bf16.mxu0 0
      %1878 = vmatpush1.bf16.msra.mxu0 0
      %1879 = vmatprep.subr.bf16.mxu0 0
      %1880 = vmatpush1.bf16.msra.mxu0 0
      %1881 = vmatprep.mubr.bf16.mxu0 0
      %1882 = vmatmul.mubr.bf16.gmra.mrb[0].mxu0 %v1783
      %v1883 = vpop.f32.mrb[0].mxu0
      %v1884 = vadd.f32 %v1800, %v1883
      %v1885 = vpop.f32.mrb[0].mxu0
      %v1886 = vpop.f32.mrb[0].mxu0
      %v1887 = vpop.f32.mrb[0].mxu0
      %1888 = vdwg.mxu0
      %v1889 = vxor.u32 %v1884, 2147483648
      %v1890 = vmul.f32 %v1889, 1.442695
      %v1891 = vpow.pop %v1890
      %v1892 = vadd.f32 %v1891, 1.0
      %v1893 = vrcp.pop %v1892
      %v1894 = vmul.f32 1.0, %v1893
      %v1895 = vmul.f32 %v1884, %v1894
      %v1896 = vpack.c.bf16 %v1895, %v1895
      %v1897 = vld [vmem:[%s6] sm:$0xf]
      %v1898 = vld [vmem:[%s6 + $0x4] sm:$0xf]
      %v1899 = vld [vmem:[%s6 + $0x8] sm:$0xf]
      %v1900 = vld [vmem:[%s6 + $0xc] sm:$0xf]
      %v1901 = vld [vmem:[%s6 + $0x10] sm:$0xf]
      %v1902 = vld [vmem:[%s6 + $0x14] sm:$0xf]
      %v1903 = vld [vmem:[%s6 + $0x18] sm:$0xf]
      %v1904 = vld [vmem:[%s6 + $0x1c] sm:$0xf]
      %v1905 = vld [vmem:[%s6 + $0x20] sm:$0xf]
      %v1906 = vld [vmem:[%s6 + $0x24] sm:$0xf]
      %v1907 = vld [vmem:[%s6 + $0x28] sm:$0xf]
      %v1908 = vld [vmem:[%s6 + $0x2c] sm:$0xf]
      %v1909 = vld [vmem:[%s6 + $0x30] sm:$0xf]
      %v1910 = vld [vmem:[%s6 + $0x34] sm:$0xf]
      %v1911 = vld [vmem:[%s6 + $0x38] sm:$0xf]
      %v1912 = vld [vmem:[%s6 + $0x3c] sm:$0xf]
      %v1913 = vld [vmem:[%s7] sm:$0x1]
      %v1930 = vunpack.c.l.b16 %v1897
      %v1931 = vunpack.c.l.b16 %v1898
      %v1932 = vunpack.c.l.b16 %v1899
      %v1933 = vunpack.c.l.b16 %v1900
      %v1934 = vunpack.c.l.b16 %v1901
      %v1935 = vunpack.c.l.b16 %v1902
      %v1936 = vunpack.c.l.b16 %v1903
      %v1937 = vunpack.c.l.b16 %v1904
      %v1938 = vunpack.c.l.b16 %v1905
      %v1939 = vunpack.c.l.b16 %v1906
      %v1940 = vunpack.c.l.b16 %v1907
      %v1941 = vunpack.c.l.b16 %v1908
      %v1942 = vunpack.c.l.b16 %v1909
      %v1943 = vunpack.c.l.b16 %v1910
      %v1944 = vunpack.c.l.b16 %v1911
      %v1945 = vunpack.c.l.b16 %v1912
      %v1946 = vpack.c.b16 %v1931, %v1930
      %v1947 = vpack.c.b16 %v1933, %v1932
      %v1948 = vpack.c.b16 %v1935, %v1934
      %v1949 = vpack.c.b16 %v1937, %v1936
      %v1950 = vpack.c.b16 %v1939, %v1938
      %v1951 = vpack.c.b16 %v1941, %v1940
      %v1952 = vpack.c.b16 %v1943, %v1942
      %v1953 = vpack.c.b16 %v1945, %v1944
      %1962 = vmatprep.subr.bf16.mxu0 0
      %1963 = vmatpush1.bf16.msra.mxu0 %v1946
      %1964 = vmatprep.subr.bf16.mxu0 0
      %1965 = vmatpush1.bf16.msra.mxu0 %v1947
      %1966 = vmatprep.subr.bf16.mxu0 0
      %1967 = vmatpush1.bf16.msra.mxu0 %v1948
      %1968 = vmatprep.subr.bf16.mxu0 0
      %1969 = vmatpush1.bf16.msra.mxu0 %v1949
      %1970 = vmatprep.subr.bf16.mxu0 0
      %1971 = vmatpush1.bf16.msra.mxu0 %v1950
      %1972 = vmatprep.subr.bf16.mxu0 0
      %1973 = vmatpush1.bf16.msra.mxu0 %v1951
      %1974 = vmatprep.subr.bf16.mxu0 0
      %1975 = vmatpush1.bf16.msra.mxu0 %v1952
      %1976 = vmatprep.subr.bf16.mxu0 0
      %1977 = vmatpush1.bf16.msra.mxu0 %v1953
      %1978 = vmatprep.subr.bf16.mxu0 0
      %1979 = vmatpush1.bf16.msra.mxu0 0
      %1980 = vmatprep.subr.bf16.mxu0 0
      %1981 = vmatpush1.bf16.msra.mxu0 0
      %1982 = vmatprep.subr.bf16.mxu0 0
      %1983 = vmatpush1.bf16.msra.mxu0 0
      %1984 = vmatprep.subr.bf16.mxu0 0
      %1985 = vmatpush1.bf16.msra.mxu0 0
      %1986 = vmatprep.subr.bf16.mxu0 0
      %1987 = vmatpush1.bf16.msra.mxu0 0
      %1988 = vmatprep.subr.bf16.mxu0 0
      %1989 = vmatpush1.bf16.msra.mxu0 0
      %1990 = vmatprep.subr.bf16.mxu0 0
      %1991 = vmatpush1.bf16.msra.mxu0 0
      %1992 = vmatprep.subr.bf16.mxu0 0
      %1993 = vmatpush1.bf16.msra.mxu0 0
      %1994 = vmatprep.mubr.bf16.mxu0 0
      %1995 = vmatmul.mubr.bf16.gmra.mrb[0].mxu0 %v1896
      %v1996 = vpop.f32.mrb[0].mxu0
      %v1997 = vadd.f32 %v1913, %v1996
      %v1998 = vpop.f32.mrb[0].mxu0
      %v1999 = vpop.f32.mrb[0].mxu0
      %v2000 = vpop.f32.mrb[0].mxu0
      %2001 = vdwg.mxu0
      %v2002 = vxor.u32 %v1997, 2147483648
      %v2003 = vmul.f32 %v2002, 1.442695
      %v2004 = vpow.pop %v2003
      %v2005 = vadd.f32 %v2004, 1.0
      %v2006 = vrcp.pop %v2005
      %v2007 = vmul.f32 1.0, %v2006
      %v2008 = vlaneseq
      %v2009 = vshrl.u32 %v2008, 7
      %v2010 = vsub.s32 0, %v2009
      %v2011 = vrot.slane %v2007, %v2010
      %v2012 = vmul.f32 %v1713, %v2011
      %v2013 = vmul.f32 %v1714, %v2011
      %v2014 = vmul.f32 %v1715, %v2011
      %v2015 = vmul.f32 %v1716, %v2011
      %v2016 = vmul.f32 %v1717, %v2011
      %v2017 = vmul.f32 %v1718, %v2011
      %v2018 = vmul.f32 %v1719, %v2011
      %v2019 = vmul.f32 %v1720, %v2011
      %v2020 = vmul.f32 %v1721, %v2011
      %v2021 = vmul.f32 %v1722, %v2011
      %v2022 = vmul.f32 %v1723, %v2011
      %v2023 = vmul.f32 %v1724, %v2011
      %v2024 = vmul.f32 %v1725, %v2011
      %v2025 = vmul.f32 %v1726, %v2011
      %v2026 = vmul.f32 %v1727, %v2011
      %v2027 = vmul.f32 %v1728, %v2011
      %v2028 = vmul.f32 %v1729, %v2011
      %v2029 = vmul.f32 %v1730, %v2011
      %v2030 = vmul.f32 %v1731, %v2011
      %v2031 = vmul.f32 %v1732, %v2011
      %v2032 = vmul.f32 %v1733, %v2011
      %v2033 = vmul.f32 %v1734, %v2011
      %v2034 = vmul.f32 %v1735, %v2011
      %v2035 = vmul.f32 %v1736, %v2011
      %v2036 = vmul.f32 %v1737, %v2011
      %v2037 = vmul.f32 %v1738, %v2011
      %v2038 = vmul.f32 %v1739, %v2011
      %v2039 = vmul.f32 %v1740, %v2011
      %v2040 = vmul.f32 %v1741, %v2011
      %v2041 = vmul.f32 %v1742, %v2011
      %v2042 = vmul.f32 %v1743, %v2011
      %v2043 = vmul.f32 %v1744, %v2011
      %v2044 = vpack.c.bf16 %v2013, %v2012
      %v2045 = vpack.c.bf16 %v2015, %v2014
      %v2046 = vpack.c.bf16 %v2017, %v2016
      %v2047 = vpack.c.bf16 %v2019, %v2018
      %v2048 = vpack.c.bf16 %v2021, %v2020
      %v2049 = vpack.c.bf16 %v2023, %v2022
      %v2050 = vpack.c.bf16 %v2025, %v2024
      %v2051 = vpack.c.bf16 %v2027, %v2026
      %v2052 = vpack.c.bf16 %v2029, %v2028
      %v2053 = vpack.c.bf16 %v2031, %v2030
      %v2054 = vpack.c.bf16 %v2033, %v2032
      %v2055 = vpack.c.bf16 %v2035, %v2034
      %v2056 = vpack.c.bf16 %v2037, %v2036
      %v2057 = vpack.c.bf16 %v2039, %v2038
      %v2058 = vpack.c.bf16 %v2041, %v2040
      %v2059 = vpack.c.bf16 %v2043, %v2042
      %v2060 = vld [vmem:[%s8] sm:$0xf]
      %v2061 = vld [vmem:[%s8 + $0x4] sm:$0xf]
      %v2062 = vld [vmem:[%s8 + $0x8] sm:$0xf]
      %v2063 = vld [vmem:[%s8 + $0xc] sm:$0xf]
      %v2064 = vld [vmem:[%s8 + $0x10] sm:$0xf]
      %v2065 = vld [vmem:[%s8 + $0x14] sm:$0xf]
      %v2066 = vld [vmem:[%s8 + $0x18] sm:$0xf]
      %v2067 = vld [vmem:[%s8 + $0x1c] sm:$0xf]
      %v2068 = vld [vmem:[%s8 + $0x20] sm:$0xf]
      %v2069 = vld [vmem:[%s8 + $0x24] sm:$0xf]
      %v2070 = vld [vmem:[%s8 + $0x28] sm:$0xf]
      %v2071 = vld [vmem:[%s8 + $0x2c] sm:$0xf]
      %v2072 = vld [vmem:[%s8 + $0x30] sm:$0xf]
      %v2073 = vld [vmem:[%s8 + $0x34] sm:$0xf]
      %v2074 = vld [vmem:[%s8 + $0x38] sm:$0xf]
      %v2075 = vld [vmem:[%s8 + $0x3c] sm:$0xf]
      %v2092 = vunpack.c.l.b16 %v2060
      %v2093 = vunpack.c.l.b16 %v2061
      %v2094 = vunpack.c.l.b16 %v2062
      %v2095 = vunpack.c.l.b16 %v2063
      %v2096 = vunpack.c.l.b16 %v2064
      %v2097 = vunpack.c.l.b16 %v2065
      %v2098 = vunpack.c.l.b16 %v2066
      %v2099 = vunpack.c.l.b16 %v2067
      %v2100 = vunpack.c.l.b16 %v2068
      %v2101 = vunpack.c.l.b16 %v2069
      %v2102 = vunpack.c.l.b16 %v2070
      %v2103 = vunpack.c.l.b16 %v2071
      %v2104 = vunpack.c.l.b16 %v2072
      %v2105 = vunpack.c.l.b16 %v2073
      %v2106 = vunpack.c.l.b16 %v2074
      %v2107 = vunpack.c.l.b16 %v2075
      %v2108 = vpack.c.b16 %v2093, %v2092
      %v2109 = vpack.c.b16 %v2095, %v2094
      %v2110 = vpack.c.b16 %v2097, %v2096
      %v2111 = vpack.c.b16 %v2099, %v2098
      %v2112 = vpack.c.b16 %v2101, %v2100
      %v2113 = vpack.c.b16 %v2103, %v2102
      %v2114 = vpack.c.b16 %v2105, %v2104
      %v2115 = vpack.c.b16 %v2107, %v2106
      %2124 = vmatprep.subr.bf16.mxu0 0
      %2125 = vmatpush1.bf16.msra.mxu0 %v2108
      %2126 = vmatprep.subr.bf16.mxu0 0
      %2127 = vmatpush1.bf16.msra.mxu0 %v2109
      %2128 = vmatprep.subr.bf16.mxu0 0
      %2129 = vmatpush1.bf16.msra.mxu0 %v2110
      %2130 = vmatprep.subr.bf16.mxu0 0
      %2131 = vmatpush1.bf16.msra.mxu0 %v2111
      %2132 = vmatprep.subr.bf16.mxu0 0
      %2133 = vmatpush1.bf16.msra.mxu0 %v2112
      %2134 = vmatprep.subr.bf16.mxu0 0
      %2135 = vmatpush1.bf16.msra.mxu0 %v2113
      %2136 = vmatprep.subr.bf16.mxu0 0
      %2137 = vmatpush1.bf16.msra.mxu0 %v2114
      %2138 = vmatprep.subr.bf16.mxu0 0
      %2139 = vmatpush1.bf16.msra.mxu0 %v2115
      %2140 = vmatprep.subr.bf16.mxu0 0
      %2141 = vmatpush1.bf16.msra.mxu0 0
      %2142 = vmatprep.subr.bf16.mxu0 0
      %2143 = vmatpush1.bf16.msra.mxu0 0
      %2144 = vmatprep.subr.bf16.mxu0 0
      %2145 = vmatpush1.bf16.msra.mxu0 0
      %2146 = vmatprep.subr.bf16.mxu0 0
      %2147 = vmatpush1.bf16.msra.mxu0 0
      %2148 = vmatprep.subr.bf16.mxu0 0
      %2149 = vmatpush1.bf16.msra.mxu0 0
      %2150 = vmatprep.subr.bf16.mxu0 0
      %2151 = vmatpush1.bf16.msra.mxu0 0
      %2152 = vmatprep.subr.bf16.mxu0 0
      %2153 = vmatpush1.bf16.msra.mxu0 0
      %2154 = vmatprep.subr.bf16.mxu0 0
      %2155 = vmatpush1.bf16.msra.mxu0 0
      %2156 = vmatprep.mubr.bf16.mxu0 0
      %2157 = vmatmul.mubr.bf16.gmra.mrb[0].mxu0 %v2044
      %v2158 = vpop.f32.mrb[0].mxu0
      %v2159 = vadd.f32 0.0, %v2158
      %v2160 = vpop.f32.mrb[0].mxu0
      %v2161 = vpop.f32.mrb[0].mxu0
      %v2162 = vadd.f32 0.0, %v2161
      %v2163 = vpop.f32.mrb[0].mxu0
      %2164 = vmatprep.mubr.bf16.mxu0 0
      %2165 = vmatmul.mubr.bf16.gmra.mrb[0].mxu0 %v2045
      %v2166 = vpop.f32.mrb[0].mxu0
      %v2167 = vadd.f32 0.0, %v2166
      %v2168 = vpop.f32.mrb[0].mxu0
      %v2169 = vpop.f32.mrb[0].mxu0
      %v2170 = vadd.f32 0.0, %v2169
      %v2171 = vpop.f32.mrb[0].mxu0
      %2172 = vmatprep.mubr.bf16.mxu0 0
      %2173 = vmatmul.mubr.bf16.gmra.mrb[0].mxu0 %v2046
      %v2174 = vpop.f32.mrb[0].mxu0
      %v2175 = vadd.f32 0.0, %v2174
      %v2176 = vpop.f32.mrb[0].mxu0
      %v2177 = vpop.f32.mrb[0].mxu0
      %v2178 = vadd.f32 0.0, %v2177
      %v2179 = vpop.f32.mrb[0].mxu0
      %2180 = vmatprep.mubr.bf16.mxu0 0
      %2181 = vmatmul.mubr.bf16.gmra.mrb[0].mxu0 %v2047
      %v2182 = vpop.f32.mrb[0].mxu0
      %v2183 = vadd.f32 0.0, %v2182
      %v2184 = vpop.f32.mrb[0].mxu0
      %v2185 = vpop.f32.mrb[0].mxu0
      %v2186 = vadd.f32 0.0, %v2185
      %v2187 = vpop.f32.mrb[0].mxu0
      %2188 = vmatprep.mubr.bf16.mxu0 0
      %2189 = vmatmul.mubr.bf16.gmra.mrb[0].mxu0 %v2048
      %v2190 = vpop.f32.mrb[0].mxu0
      %v2191 = vadd.f32 0.0, %v2190
      %v2192 = vpop.f32.mrb[0].mxu0
      %v2193 = vpop.f32.mrb[0].mxu0
      %v2194 = vadd.f32 0.0, %v2193
      %v2195 = vpop.f32.mrb[0].mxu0
      %2196 = vmatprep.mubr.bf16.mxu0 0
      %2197 = vmatmul.mubr.bf16.gmra.mrb[0].mxu0 %v2049
      %v2198 = vpop.f32.mrb[0].mxu0
      %v2199 = vadd.f32 0.0, %v2198
      %v2200 = vpop.f32.mrb[0].mxu0
      %v2201 = vpop.f32.mrb[0].mxu0
      %v2202 = vadd.f32 0.0, %v2201
      %v2203 = vpop.f32.mrb[0].mxu0
      %2204 = vmatprep.mubr.bf16.mxu0 0
      %2205 = vmatmul.mubr.bf16.gmra.mrb[0].mxu0 %v2050
      %v2206 = vpop.f32.mrb[0].mxu0
      %v2207 = vadd.f32 0.0, %v2206
      %v2208 = vpop.f32.mrb[0].mxu0
      %v2209 = vpop.f32.mrb[0].mxu0
      %v2210 = vadd.f32 0.0, %v2209
      %v2211 = vpop.f32.mrb[0].mxu0
      %2212 = vmatprep.mubr.bf16.mxu0 0
      %2213 = vmatmul.mubr.bf16.gmra.mrb[0].mxu0 %v2051
      %v2214 = vpop.f32.mrb[0].mxu0
      %v2215 = vadd.f32 0.0, %v2214
      %v2216 = vpop.f32.mrb[0].mxu0
      %v2217 = vpop.f32.mrb[0].mxu0
      %v2218 = vadd.f32 0.0, %v2217
      %v2219 = vpop.f32.mrb[0].mxu0
      %2220 = vmatprep.mubr.bf16.mxu0 0
      %2221 = vmatmul.mubr.bf16.gmra.mrb[0].mxu0 %v2052
      %v2222 = vpop.f32.mrb[0].mxu0
      %v2223 = vadd.f32 0.0, %v2222
      %v2224 = vpop.f32.mrb[0].mxu0
      %v2225 = vpop.f32.mrb[0].mxu0
      %v2226 = vadd.f32 0.0, %v2225
      %v2227 = vpop.f32.mrb[0].mxu0
      %2228 = vmatprep.mubr.bf16.mxu0 0
      %2229 = vmatmul.mubr.bf16.gmra.mrb[0].mxu0 %v2053
      %v2230 = vpop.f32.mrb[0].mxu0
      %v2231 = vadd.f32 0.0, %v2230
      %v2232 = vpop.f32.mrb[0].mxu0
      %v2233 = vpop.f32.mrb[0].mxu0
      %v2234 = vadd.f32 0.0, %v2233
      %v2235 = vpop.f32.mrb[0].mxu0
      %2236 = vmatprep.mubr.bf16.mxu0 0
      %2237 = vmatmul.mubr.bf16.gmra.mrb[0].mxu0 %v2054
      %v2238 = vpop.f32.mrb[0].mxu0
      %v2239 = vadd.f32 0.0, %v2238
      %v2240 = vpop.f32.mrb[0].mxu0
      %v2241 = vpop.f32.mrb[0].mxu0
      %v2242 = vadd.f32 0.0, %v2241
      %v2243 = vpop.f32.mrb[0].mxu0
      %2244 = vmatprep.mubr.bf16.mxu0 0
      %2245 = vmatmul.mubr.bf16.gmra.mrb[0].mxu0 %v2055
      %v2246 = vpop.f32.mrb[0].mxu0
      %v2247 = vadd.f32 0.0, %v2246
      %v2248 = vpop.f32.mrb[0].mxu0
      %v2249 = vpop.f32.mrb[0].mxu0
      %v2250 = vadd.f32 0.0, %v2249
      %v2251 = vpop.f32.mrb[0].mxu0
      %2252 = vmatprep.mubr.bf16.mxu0 0
      %2253 = vmatmul.mubr.bf16.gmra.mrb[0].mxu0 %v2056
      %v2254 = vpop.f32.mrb[0].mxu0
      %v2255 = vadd.f32 0.0, %v2254
      %v2256 = vpop.f32.mrb[0].mxu0
      %v2257 = vpop.f32.mrb[0].mxu0
      %v2258 = vadd.f32 0.0, %v2257
      %v2259 = vpop.f32.mrb[0].mxu0
      %2260 = vmatprep.mubr.bf16.mxu0 0
      %2261 = vmatmul.mubr.bf16.gmra.mrb[0].mxu0 %v2057
      %v2262 = vpop.f32.mrb[0].mxu0
      %v2263 = vadd.f32 0.0, %v2262
      %v2264 = vpop.f32.mrb[0].mxu0
      %v2265 = vpop.f32.mrb[0].mxu0
      %v2266 = vadd.f32 0.0, %v2265
      %v2267 = vpop.f32.mrb[0].mxu0
      %2268 = vmatprep.mubr.bf16.mxu0 0
      %2269 = vmatmul.mubr.bf16.gmra.mrb[0].mxu0 %v2058
      %v2270 = vpop.f32.mrb[0].mxu0
      %v2271 = vadd.f32 0.0, %v2270
      %v2272 = vpop.f32.mrb[0].mxu0
      %v2273 = vpop.f32.mrb[0].mxu0
      %v2274 = vadd.f32 0.0, %v2273
      %v2275 = vpop.f32.mrb[0].mxu0
      %2276 = vmatprep.mubr.bf16.mxu0 0
      %2277 = vmatmul.mubr.bf16.gmra.mrb[0].mxu0 %v2059
      %v2278 = vpop.f32.mrb[0].mxu0
      %v2279 = vadd.f32 0.0, %v2278
      %v2280 = vpop.f32.mrb[0].mxu0
      %v2281 = vpop.f32.mrb[0].mxu0
      %v2282 = vadd.f32 0.0, %v2281
      %v2283 = vpop.f32.mrb[0].mxu0
      %2284 = vdwg.mxu0
      %v2285 = vld [vmem:[%s9] sm:$0x1]
      %v2287 = vlaneseq
      %v2288 = vshrl.u32 %v2287, 7
      %v2289 = vsub.s32 0, %v2288
      %v2290 = vrot.slane %v2285, %v2289
      %v2292 = vmul.f32 %v2159, %v2290
      %v2293 = vmul.f32 %v2162, %v2290
      %v2294 = vmul.f32 %v2167, %v2290
      %v2295 = vmul.f32 %v2170, %v2290
      %v2296 = vmul.f32 %v2175, %v2290
      %v2297 = vmul.f32 %v2178, %v2290
      %v2298 = vmul.f32 %v2183, %v2290
      %v2299 = vmul.f32 %v2186, %v2290
      %v2300 = vmul.f32 %v2191, %v2290
      %v2301 = vmul.f32 %v2194, %v2290
      %v2302 = vmul.f32 %v2199, %v2290
      %v2303 = vmul.f32 %v2202, %v2290
      %v2304 = vmul.f32 %v2207, %v2290
      %v2305 = vmul.f32 %v2210, %v2290
      %v2306 = vmul.f32 %v2215, %v2290
      %v2307 = vmul.f32 %v2218, %v2290
      %v2308 = vmul.f32 %v2223, %v2290
      %v2309 = vmul.f32 %v2226, %v2290
      %v2310 = vmul.f32 %v2231, %v2290
      %v2311 = vmul.f32 %v2234, %v2290
      %v2312 = vmul.f32 %v2239, %v2290
      %v2313 = vmul.f32 %v2242, %v2290
      %v2314 = vmul.f32 %v2247, %v2290
      %v2315 = vmul.f32 %v2250, %v2290
      %v2316 = vmul.f32 %v2255, %v2290
      %v2317 = vmul.f32 %v2258, %v2290
      %v2318 = vmul.f32 %v2263, %v2290
      %v2319 = vmul.f32 %v2266, %v2290
      %v2320 = vmul.f32 %v2271, %v2290
      %v2321 = vmul.f32 %v2274, %v2290
      %v2322 = vmul.f32 %v2279, %v2290
      %v2323 = vmul.f32 %v2282, %v2290
      %v2324 = vld [vmem:[%s10] sm:$0x1]
      %v2326 = vlaneseq
      %v2327 = vshrl.u32 %v2326, 7
      %v2328 = vsub.s32 0, %v2327
      %v2329 = vrot.slane %v2324, %v2328
      %v2331 = vadd.f32 %v2292, %v2329
      %v2332 = vadd.f32 %v2293, %v2329
      %v2333 = vadd.f32 %v2294, %v2329
      %v2334 = vadd.f32 %v2295, %v2329
      %v2335 = vadd.f32 %v2296, %v2329
      %v2336 = vadd.f32 %v2297, %v2329
      %v2337 = vadd.f32 %v2298, %v2329
      %v2338 = vadd.f32 %v2299, %v2329
      %v2339 = vadd.f32 %v2300, %v2329
      %v2340 = vadd.f32 %v2301, %v2329
      %v2341 = vadd.f32 %v2302, %v2329
      %v2342 = vadd.f32 %v2303, %v2329
      %v2343 = vadd.f32 %v2304, %v2329
      %v2344 = vadd.f32 %v2305, %v2329
      %v2345 = vadd.f32 %v2306, %v2329
      %v2346 = vadd.f32 %v2307, %v2329
      %v2347 = vadd.f32 %v2308, %v2329
      %v2348 = vadd.f32 %v2309, %v2329
      %v2349 = vadd.f32 %v2310, %v2329
      %v2350 = vadd.f32 %v2311, %v2329
      %v2351 = vadd.f32 %v2312, %v2329
      %v2352 = vadd.f32 %v2313, %v2329
      %v2353 = vadd.f32 %v2314, %v2329
      %v2354 = vadd.f32 %v2315, %v2329
      %v2355 = vadd.f32 %v2316, %v2329
      %v2356 = vadd.f32 %v2317, %v2329
      %v2357 = vadd.f32 %v2318, %v2329
      %v2358 = vadd.f32 %v2319, %v2329
      %v2359 = vadd.f32 %v2320, %v2329
      %v2360 = vadd.f32 %v2321, %v2329
      %v2361 = vadd.f32 %v2322, %v2329
      %v2362 = vadd.f32 %v2323, %v2329
      %v2363 = vadd.f32 %v2331, %v420
      %v2364 = vadd.f32 %v2332, %v421
      %v2365 = vadd.f32 %v2333, %v422
      %v2366 = vadd.f32 %v2334, %v423
      %v2367 = vadd.f32 %v2335, %v424
      %v2368 = vadd.f32 %v2336, %v425
      %v2369 = vadd.f32 %v2337, %v426
      %v2370 = vadd.f32 %v2338, %v427
      %v2371 = vadd.f32 %v2339, %v428
      %v2372 = vadd.f32 %v2340, %v429
      %v2373 = vadd.f32 %v2341, %v430
      %v2374 = vadd.f32 %v2342, %v431
      %v2375 = vadd.f32 %v2343, %v432
      %v2376 = vadd.f32 %v2344, %v433
      %v2377 = vadd.f32 %v2345, %v434
      %v2378 = vadd.f32 %v2346, %v435
      %v2379 = vadd.f32 %v2347, %v436
      %v2380 = vadd.f32 %v2348, %v437
      %v2381 = vadd.f32 %v2349, %v438
      %v2382 = vadd.f32 %v2350, %v439
      %v2383 = vadd.f32 %v2351, %v440
      %v2384 = vadd.f32 %v2352, %v441
      %v2385 = vadd.f32 %v2353, %v442
      %v2386 = vadd.f32 %v2354, %v443
      %v2387 = vadd.f32 %v2355, %v444
      %v2388 = vadd.f32 %v2356, %v445
      %v2389 = vadd.f32 %v2357, %v446
      %v2390 = vadd.f32 %v2358, %v447
      %v2391 = vadd.f32 %v2359, %v448
      %v2392 = vadd.f32 %v2360, %v449
      %v2393 = vadd.f32 %v2361, %v450
      %v2394 = vadd.f32 %v2362, %v451
      %v2395 = vpack.c.bf16 %v2364, %v2363
      %v2396 = vpack.c.bf16 %v2366, %v2365
      %v2397 = vpack.c.bf16 %v2368, %v2367
      %v2398 = vpack.c.bf16 %v2370, %v2369
      %v2399 = vpack.c.bf16 %v2372, %v2371
      %v2400 = vpack.c.bf16 %v2374, %v2373
      %v2401 = vpack.c.bf16 %v2376, %v2375
      %v2402 = vpack.c.bf16 %v2378, %v2377
      %v2403 = vpack.c.bf16 %v2380, %v2379
      %v2404 = vpack.c.bf16 %v2382, %v2381
      %v2405 = vpack.c.bf16 %v2384, %v2383
      %v2406 = vpack.c.bf16 %v2386, %v2385
      %v2407 = vpack.c.bf16 %v2388, %v2387
      %v2408 = vpack.c.bf16 %v2390, %v2389
      %v2409 = vpack.c.bf16 %v2392, %v2391
      %v2410 = vpack.c.bf16 %v2394, %v2393
      %v2427 = vunpack.c.l.b16 %v2395
      %v2428 = vunpack.c.h.b16 %v2395
      %v2429 = vunpack.c.l.b16 %v2396
      %v2430 = vunpack.c.h.b16 %v2396
      %v2431 = vunpack.c.l.b16 %v2397
      %v2432 = vunpack.c.h.b16 %v2397
      %v2433 = vunpack.c.l.b16 %v2398
      %v2434 = vunpack.c.h.b16 %v2398
      %v2435 = vunpack.c.l.b16 %v2399
      %v2436 = vunpack.c.h.b16 %v2399
      %v2437 = vunpack.c.l.b16 %v2400
      %v2438 = vunpack.c.h.b16 %v2400
      %v2439 = vunpack.c.l.b16 %v2401
      %v2440 = vunpack.c.h.b16 %v2401
      %v2441 = vunpack.c.l.b16 %v2402
      %v2442 = vunpack.c.h.b16 %v2402
      %v2443 = vunpack.c.l.b16 %v2403
      %v2444 = vunpack.c.h.b16 %v2403
      %v2445 = vunpack.c.l.b16 %v2404
      %v2446 = vunpack.c.h.b16 %v2404
      %v2447 = vunpack.c.l.b16 %v2405
      %v2448 = vunpack.c.h.b16 %v2405
      %v2449 = vunpack.c.l.b16 %v2406
      %v2450 = vunpack.c.h.b16 %v2406
      %v2451 = vunpack.c.l.b16 %v2407
      %v2452 = vunpack.c.h.b16 %v2407
      %v2453 = vunpack.c.l.b16 %v2408
      %v2454 = vunpack.c.h.b16 %v2408
      %v2455 = vunpack.c.l.b16 %v2409
      %v2456 = vunpack.c.h.b16 %v2409
      %v2457 = vunpack.c.l.b16 %v2410
      %v2458 = vunpack.c.h.b16 %v2410
      %v2459 = vpack.c.b16 %v2427, %v2427
      %v2460 = vpack.c.b16 %v2428, %v2428
      %v2461 = vpack.c.b16 %v2429, %v2429
      %v2462 = vpack.c.b16 %v2430, %v2430
      %v2463 = vpack.c.b16 %v2431, %v2431
      %v2464 = vpack.c.b16 %v2432, %v2432
      %v2465 = vpack.c.b16 %v2433, %v2433
      %v2466 = vpack.c.b16 %v2434, %v2434
      %v2467 = vpack.c.b16 %v2435, %v2435
      %v2468 = vpack.c.b16 %v2436, %v2436
      %v2469 = vpack.c.b16 %v2437, %v2437
      %v2470 = vpack.c.b16 %v2438, %v2438
      %v2471 = vpack.c.b16 %v2439, %v2439
      %v2472 = vpack.c.b16 %v2440, %v2440
      %v2473 = vpack.c.b16 %v2441, %v2441
      %v2474 = vpack.c.b16 %v2442, %v2442
      %v2475 = vpack.c.b16 %v2443, %v2443
      %v2476 = vpack.c.b16 %v2444, %v2444
      %v2477 = vpack.c.b16 %v2445, %v2445
      %v2478 = vpack.c.b16 %v2446, %v2446
      %v2479 = vpack.c.b16 %v2447, %v2447
      %v2480 = vpack.c.b16 %v2448, %v2448
      %v2481 = vpack.c.b16 %v2449, %v2449
      %v2482 = vpack.c.b16 %v2450, %v2450
      %v2483 = vpack.c.b16 %v2451, %v2451
      %v2484 = vpack.c.b16 %v2452, %v2452
      %v2485 = vpack.c.b16 %v2453, %v2453
      %v2486 = vpack.c.b16 %v2454, %v2454
      %v2487 = vpack.c.b16 %v2455, %v2455
      %v2488 = vpack.c.b16 %v2456, %v2456
      %v2489 = vpack.c.b16 %v2457, %v2457
      %v2490 = vpack.c.b16 %v2458, %v2458
      %2523 = vst [vmem:[%s386] sm:$0xf] %v2459
      %2524 = vst [vmem:[%s386 + $0x4] sm:$0xf] %v2460
      %2525 = vst [vmem:[%s386 + $0x8] sm:$0xf] %v2461
      %2526 = vst [vmem:[%s386 + $0xc] sm:$0xf] %v2462
      %2527 = vst [vmem:[%s386 + $0x10] sm:$0xf] %v2463
      %2528 = vst [vmem:[%s386 + $0x14] sm:$0xf] %v2464
      %2529 = vst [vmem:[%s386 + $0x18] sm:$0xf] %v2465
      %2530 = vst [vmem:[%s386 + $0x1c] sm:$0xf] %v2466
      %2531 = vst [vmem:[%s386 + $0x20] sm:$0xf] %v2467
      %2532 = vst [vmem:[%s386 + $0x24] sm:$0xf] %v2468
      %2533 = vst [vmem:[%s386 + $0x28] sm:$0xf] %v2469
      %2534 = vst [vmem:[%s386 + $0x2c] sm:$0xf] %v2470
      %2535 = vst [vmem:[%s386 + $0x30] sm:$0xf] %v2471
      %2536 = vst [vmem:[%s386 + $0x34] sm:$0xf] %v2472
      %2537 = vst [vmem:[%s386 + $0x38] sm:$0xf] %v2473
      %2538 = vst [vmem:[%s386 + $0x3c] sm:$0xf] %v2474
      %2539 = vst [vmem:[%s386 + $0x40] sm:$0xf] %v2475
      %2540 = vst [vmem:[%s386 + $0x44] sm:$0xf] %v2476
      %2541 = vst [vmem:[%s386 + $0x48] sm:$0xf] %v2477
      %2542 = vst [vmem:[%s386 + $0x4c] sm:$0xf] %v2478
      %2543 = vst [vmem:[%s386 + $0x50] sm:$0xf] %v2479
      %2544 = vst [vmem:[%s386 + $0x54] sm:$0xf] %v2480
      %2545 = vst [vmem:[%s386 + $0x58] sm:$0xf] %v2481
      %2546 = vst [vmem:[%s386 + $0x5c] sm:$0xf] %v2482
      %2547 = vst [vmem:[%s386 + $0x60] sm:$0xf] %v2483
      %2548 = vst [vmem:[%s386 + $0x64] sm:$0xf] %v2484
      %2549 = vst [vmem:[%s386 + $0x68] sm:$0xf] %v2485
      %2550 = vst [vmem:[%s386 + $0x6c] sm:$0xf] %v2486
      %2551 = vst [vmem:[%s386 + $0x70] sm:$0xf] %v2487
      %2552 = vst [vmem:[%s386 + $0x74] sm:$0xf] %v2488
      %2553 = vst [vmem:[%s386 + $0x78] sm:$0xf] %v2489
      %2554 = vst [vmem:[%s386 + $0x7c] sm:$0xf] %v2490
      %p2555 = scmp.lt.s32.totalorder %s22, 1
      %s2556 = scalar_select %p2555, %s22, 1
      %s2557 = smul.addr %s2556, 32
      %s2558 = smul.addr %s2557, 4
      %s2559 = scalar_lea.vmem %s11, %s2558
      // Predicated region
      $region65: #{bengali_forward.7} parent=63 // pred_check
        %p2560 = pneg %p276
      $region66: #{bengali_forward.7} parent=63 // pred_check_branch
        %2562 = sbr.rel (%p2560) target = $region68
      $region67: #{bengali_forward.7} parent=63 // pred_region
        _
      $region68: #{bengali_forward.7} parent=63 // pred_fallthru
        _
    $region64: #{bengali_forward.7} parent=5 // pred_fallthru
      _
    %p2563 = scmp.le.s32.totalorder 2, %s17
    // Predicated region
    $region69: #{bengali_forward.7} parent=5 // pred_check
      %p2564 = pneg %p2563
    $region70: #{bengali_forward.7} parent=5 // pred_check_branch
      %2566 = sbr.rel (%p2564) target = $region72
    $region71: #{bengali_forward.7} parent=5 // pred_region
      %s2567 = ssub.s32 %s17, 2
      // Predicated region
      $region73: #{bengali_forward.7} parent=71 // pred_check
        %p2568 = pneg %p282
      $region74: #{bengali_forward.7} parent=71 // pred_check_branch
        %2570 = sbr.rel (%p2568) target = $region76
      $region75: #{bengali_forward.7} parent=71 // pred_region
        %p2571 = scmp.lt.s32.totalorder %s23, 1
        %s2572 = scalar_select %p2571, %s23, 1
        %s2573 = smul.addr %s2572, 32
        %s2574 = smul.addr %s2573, 4
        %s2575 = scalar_lea.vmem %s11, %s2574
      $region76: #{bengali_forward.7} parent=71 // pred_fallthru
        _
    $region72: #{bengali_forward.7} parent=5 // pred_fallthru
      _
  $region6: #{bengali_forward.7} parent=0 // loop_footer
    %s21 = sadd.s32 1, %s17
  $region7: #{bengali_forward.7} parent=0 // loop_footer_branch
    %16 = sbr.rel target = $region3
  $region8: #{bengali_forward.7} parent=0 // loop_exit
    _

// kernel: bengali_forward.9
$region0: #{bengali_forward.9}
  #allocation0 [shape = 'u32[]', space=smem, size = 0x4, offset = 0x4, fixed_abs, tag = 'smem constant byte address 0x4 - core index']
  #allocation1 [shape = 'u32[144,128]{1,0:T(1,128)}', space=vmem, size = 0x12000, scoped, tag = 'internal scratch']
  %s0 = inlined_call_operand.vmem [shape: bf16[2,4,9,9,128], index: 0, kind: input, shape index: {}]
  %s1 = inlined_call_operand.vmem [shape: f32[9,1,128], index: 1, kind: input, shape index: {}]
  %s2 = inlined_call_operand.vmem [shape: f32[1,128], index: 2, kind: input, shape index: {}]
  %s3 = inlined_call_operand.vmem [shape: f32[1,128], index: 3, kind: input, shape index: {}]
  %s4 = inlined_call_operand.vmem [shape: bf16[128,128], index: 4, kind: input, shape index: {}]
  %s5 = inlined_call_operand.vmem [shape: f32[1,128], index: 5, kind: input, shape index: {}]
  %s6 = inlined_call_operand.vmem [shape: bf16[128,128], index: 6, kind: input, shape index: {}]
  %s7 = inlined_call_operand.vmem [shape: f32[1,128], index: 7, kind: input, shape index: {}]
  %s8 = inlined_call_operand.vmem [shape: bf16[128,128], index: 8, kind: input, shape index: {}]
  %s9 = inlined_call_operand.vmem [shape: f32[1,128], index: 9, kind: input, shape index: {}]
  %s10 = inlined_call_operand.vmem [shape: f32[1,128], index: 10, kind: input, shape index: {}]
  %s11 = inlined_call_operand.vmem [shape: bf16[2,64,128], index: 11, kind: output, shape index: {}]
  %s12 = sld [smem:[#allocation0]]
  $region77: #{bengali_forward.9} parent=0
    _
  %s14 = ssub.s32 1, %s12
  %s15 = scalar_select 0, %s14, %s12
  loop: start=0, step=1, limit=4
  $region2: #{bengali_forward.9} parent=0 // loop_pre_header
    _
  $region3: #{bengali_forward.9} parent=0 // loop_header
    %s17 = sphi 0, %s21
    %p18 = scmp.ge.s32.totalorder %s17, 4
    %s27 = sphi 0, %s29
    %s30 = sphi 0, %s27
    %s31 = sphi 0, %s30
    %s47 = sphi 0, %s31
    %s51 = sphi 0, %s51
    %s53 = sphi 0, %s51
    %s54 = sphi 0, %s53
    %s68 = sphi 0, %s54
    %s72 = sphi 0, %s72
    %s74 = sphi 0, %s72
    %s75 = sphi 0, %s74
    %s89 = sphi 0, %s75
    %s93 = sphi 0, %s93
    %s95 = sphi 0, %s93
    %s96 = sphi 0, %s95
    %s110 = sphi 0, %s96
    %s114 = sphi 0, %s114
    %s116 = sphi 0, %s114
    %s117 = sphi 0, %s116
    %s131 = sphi 0, %s117
    %s135 = sphi 0, %s135
    %s137 = sphi 0, %s135
    %s138 = sphi 0, %s137
    %s152 = sphi 0, %s138
    %s156 = sphi 0, %s156
    %s158 = sphi 0, %s156
    %s159 = sphi 0, %s158
    %s173 = sphi 0, %s159
    %s177 = sphi 0, %s177
    %s179 = sphi 0, %s177
    %s180 = sphi 0, %s179
    %s194 = sphi 0, %s180
    %s198 = sphi 0, %s198
    %s200 = sphi 0, %s198
    %s201 = sphi 0, %s200
    %s215 = sphi 0, %s201
    %s219 = sphi 0, %s219
    %s221 = sphi 0, %s219
    %s222 = sphi 0, %s221
    %s236 = sphi 0, %s222
    %s240 = sphi 0, %s240
    %s242 = sphi 0, %s240
    %s243 = sphi 0, %s242
    %s257 = sphi 0, %s243
    %s263 = sphi 0, %s265
    %s266 = sphi 0, %s263
    %s267 = sphi 0, %s266
    %s283 = sphi 0, %s267
  $region4: #{bengali_forward.9} parent=0 // loop_header_branch
    %20 = sbr.rel (%p18) target = $region8
  $region5: #{bengali_forward.9} parent=0 // loop_body
    %s22 = ssub.s32 %s17, 1
    %s23 = ssub.s32 %s17, 2
    %s24 = sadd.s32 %s17, 1
    %s25 = ssub.s32 %s17, %s24
    %p26 = scmp.eq.s32.totalorder %s25, 0
    %s28 = sadd.s32 %s27, 1
    %s29 = scalar_select %p26, %s27, %s28
    %p32 = pneg %p26
    %p33 = scmp.eq.s32.totalorder %s17, 1
    %p34 = por %p32, %p33
    %p35 = scmp.ne.s32.totalorder %s27, %s30
    %p36 = scmp.eq.s32.totalorder %s17, 0
    %p37 = por %p35, %p36
    %p38 = scmp.ne.s32.totalorder %s27, %s30
    %p39 = scmp.eq.s32.totalorder %s22, 1
    %p40 = por %p38, %p39
    %p41 = scmp.ne.s32.totalorder %s30, %s31
    %p42 = scmp.eq.s32.totalorder %s22, 0
    %p43 = por %p41, %p42
    %p44 = scmp.ne.s32.totalorder %s30, %s31
    %p45 = scmp.eq.s32.totalorder %s23, 1
    %p46 = por %p44, %p45
    %p48 = scmp.ne.s32.totalorder %s31, %s47
    %p49 = scmp.eq.s32.totalorder %s23, 0
    %p50 = por %p48, %p49
    %s52 = sadd.s32 %s51, 1
    %p55 = scmp.eq.s32.totalorder %s17, 1
    %p56 = scmp.ne.s32.totalorder %s51, %s53
    %p57 = scmp.eq.s32.totalorder %s17, 0
    %p58 = por %p56, %p57
    %p59 = scmp.ne.s32.totalorder %s51, %s53
    %p60 = scmp.eq.s32.totalorder %s22, 1
    %p61 = por %p59, %p60
    %p62 = scmp.ne.s32.totalorder %s53, %s54
    %p63 = scmp.eq.s32.totalorder %s22, 0
    %p64 = por %p62, %p63
    %p65 = scmp.ne.s32.totalorder %s53, %s54
    %p66 = scmp.eq.s32.totalorder %s23, 1
    %p67 = por %p65, %p66
    %p69 = scmp.ne.s32.totalorder %s54, %s68
    %p70 = scmp.eq.s32.totalorder %s23, 0
    %p71 = por %p69, %p70
    %s73 = sadd.s32 %s72, 1
    %p76 = scmp.eq.s32.totalorder %s17, 1
    %p77 = scmp.ne.s32.totalorder %s72, %s74
    %p78 = scmp.eq.s32.totalorder %s17, 0
    %p79 = por %p77, %p78
    %p80 = scmp.ne.s32.totalorder %s72, %s74
    %p81 = scmp.eq.s32.totalorder %s22, 1
    %p82 = por %p80, %p81
    %p83 = scmp.ne.s32.totalorder %s74, %s75
    %p84 = scmp.eq.s32.totalorder %s22, 0
    %p85 = por %p83, %p84
    %p86 = scmp.ne.s32.totalorder %s74, %s75
    %p87 = scmp.eq.s32.totalorder %s23, 1
    %p88 = por %p86, %p87
    %p90 = scmp.ne.s32.totalorder %s75, %s89
    %p91 = scmp.eq.s32.totalorder %s23, 0
    %p92 = por %p90, %p91
    %s94 = sadd.s32 %s93, 1
    %p97 = scmp.eq.s32.totalorder %s17, 1
    %p98 = scmp.ne.s32.totalorder %s93, %s95
    %p99 = scmp.eq.s32.totalorder %s17, 0
    %p100 = por %p98, %p99
    %p101 = scmp.ne.s32.totalorder %s93, %s95
    %p102 = scmp.eq.s32.totalorder %s22, 1
    %p103 = por %p101, %p102
    %p104 = scmp.ne.s32.totalorder %s95, %s96
    %p105 = scmp.eq.s32.totalorder %s22, 0
    %p106 = por %p104, %p105
    %p107 = scmp.ne.s32.totalorder %s95, %s96
    %p108 = scmp.eq.s32.totalorder %s23, 1
    %p109 = por %p107, %p108
    %p111 = scmp.ne.s32.totalorder %s96, %s110
    %p112 = scmp.eq.s32.totalorder %s23, 0
    %p113 = por %p111, %p112
    %s115 = sadd.s32 %s114, 1
    %p118 = scmp.eq.s32.totalorder %s17, 1
    %p119 = scmp.ne.s32.totalorder %s114, %s116
    %p120 = scmp.eq.s32.totalorder %s17, 0
    %p121 = por %p119, %p120
    %p122 = scmp.ne.s32.totalorder %s114, %s116
    %p123 = scmp.eq.s32.totalorder %s22, 1
    %p124 = por %p122, %p123
    %p125 = scmp.ne.s32.totalorder %s116, %s117
    %p126 = scmp.eq.s32.totalorder %s22, 0
    %p127 = por %p125, %p126
    %p128 = scmp.ne.s32.totalorder %s116, %s117
    %p129 = scmp.eq.s32.totalorder %s23, 1
    %p130 = por %p128, %p129
    %p132 = scmp.ne.s32.totalorder %s117, %s131
    %p133 = scmp.eq.s32.totalorder %s23, 0
    %p134 = por %p132, %p133
    %s136 = sadd.s32 %s135, 1
    %p139 = scmp.eq.s32.totalorder %s17, 1
    %p140 = scmp.ne.s32.totalorder %s135, %s137
    %p141 = scmp.eq.s32.totalorder %s17, 0
    %p142 = por %p140, %p141
    %p143 = scmp.ne.s32.totalorder %s135, %s137
    %p144 = scmp.eq.s32.totalorder %s22, 1
    %p145 = por %p143, %p144
    %p146 = scmp.ne.s32.totalorder %s137, %s138
    %p147 = scmp.eq.s32.totalorder %s22, 0
    %p148 = por %p146, %p147
    %p149 = scmp.ne.s32.totalorder %s137, %s138
    %p150 = scmp.eq.s32.totalorder %s23, 1
    %p151 = por %p149, %p150
    %p153 = scmp.ne.s32.totalorder %s138, %s152
    %p154 = scmp.eq.s32.totalorder %s23, 0
    %p155 = por %p153, %p154
    %s157 = sadd.s32 %s156, 1
    %p160 = scmp.eq.s32.totalorder %s17, 1
    %p161 = scmp.ne.s32.totalorder %s156, %s158
    %p162 = scmp.eq.s32.totalorder %s17, 0
    %p163 = por %p161, %p162
    %p164 = scmp.ne.s32.totalorder %s156, %s158
    %p165 = scmp.eq.s32.totalorder %s22, 1
    %p166 = por %p164, %p165
    %p167 = scmp.ne.s32.totalorder %s158, %s159
    %p168 = scmp.eq.s32.totalorder %s22, 0
    %p169 = por %p167, %p168
    %p170 = scmp.ne.s32.totalorder %s158, %s159
    %p171 = scmp.eq.s32.totalorder %s23, 1
    %p172 = por %p170, %p171
    %p174 = scmp.ne.s32.totalorder %s159, %s173
    %p175 = scmp.eq.s32.totalorder %s23, 0
    %p176 = por %p174, %p175
    %s178 = sadd.s32 %s177, 1
    %p181 = scmp.eq.s32.totalorder %s17, 1
    %p182 = scmp.ne.s32.totalorder %s177, %s179
    %p183 = scmp.eq.s32.totalorder %s17, 0
    %p184 = por %p182, %p183
    %p185 = scmp.ne.s32.totalorder %s177, %s179
    %p186 = scmp.eq.s32.totalorder %s22, 1
    %p187 = por %p185, %p186
    %p188 = scmp.ne.s32.totalorder %s179, %s180
    %p189 = scmp.eq.s32.totalorder %s22, 0
    %p190 = por %p188, %p189
    %p191 = scmp.ne.s32.totalorder %s179, %s180
    %p192 = scmp.eq.s32.totalorder %s23, 1
    %p193 = por %p191, %p192
    %p195 = scmp.ne.s32.totalorder %s180, %s194
    %p196 = scmp.eq.s32.totalorder %s23, 0
    %p197 = por %p195, %p196
    %s199 = sadd.s32 %s198, 1
    %p202 = scmp.eq.s32.totalorder %s17, 1
    %p203 = scmp.ne.s32.totalorder %s198, %s200
    %p204 = scmp.eq.s32.totalorder %s17, 0
    %p205 = por %p203, %p204
    %p206 = scmp.ne.s32.totalorder %s198, %s200
    %p207 = scmp.eq.s32.totalorder %s22, 1
    %p208 = por %p206, %p207
    %p209 = scmp.ne.s32.totalorder %s200, %s201
    %p210 = scmp.eq.s32.totalorder %s22, 0
    %p211 = por %p209, %p210
    %p212 = scmp.ne.s32.totalorder %s200, %s201
    %p213 = scmp.eq.s32.totalorder %s23, 1
    %p214 = por %p212, %p213
    %p216 = scmp.ne.s32.totalorder %s201, %s215
    %p217 = scmp.eq.s32.totalorder %s23, 0
    %p218 = por %p216, %p217
    %s220 = sadd.s32 %s219, 1
    %p223 = scmp.eq.s32.totalorder %s17, 1
    %p224 = scmp.ne.s32.totalorder %s219, %s221
    %p225 = scmp.eq.s32.totalorder %s17, 0
    %p226 = por %p224, %p225
    %p227 = scmp.ne.s32.totalorder %s219, %s221
    %p228 = scmp.eq.s32.totalorder %s22, 1
    %p229 = por %p227, %p228
    %p230 = scmp.ne.s32.totalorder %s221, %s222
    %p231 = scmp.eq.s32.totalorder %s22, 0
    %p232 = por %p230, %p231
    %p233 = scmp.ne.s32.totalorder %s221, %s222
    %p234 = scmp.eq.s32.totalorder %s23, 1
    %p235 = por %p233, %p234
    %p237 = scmp.ne.s32.totalorder %s222, %s236
    %p238 = scmp.eq.s32.totalorder %s23, 0
    %p239 = por %p237, %p238
    %s241 = sadd.s32 %s240, 1
    %p244 = scmp.eq.s32.totalorder %s17, 1
    %p245 = scmp.ne.s32.totalorder %s240, %s242
    %p246 = scmp.eq.s32.totalorder %s17, 0
    %p247 = por %p245, %p246
    %p248 = scmp.ne.s32.totalorder %s240, %s242
    %p249 = scmp.eq.s32.totalorder %s22, 1
    %p250 = por %p248, %p249
    %p251 = scmp.ne.s32.totalorder %s242, %s243
    %p252 = scmp.eq.s32.totalorder %s22, 0
    %p253 = por %p251, %p252
    %p254 = scmp.ne.s32.totalorder %s242, %s243
    %p255 = scmp.eq.s32.totalorder %s23, 1
    %p256 = por %p254, %p255
    %p258 = scmp.ne.s32.totalorder %s243, %s257
    %p259 = scmp.eq.s32.totalorder %s23, 0
    %p260 = por %p258, %p259
    %s261 = ssub.s32 %s17, %s24
    %p262 = scmp.eq.s32.totalorder %s261, 0
    %s264 = sadd.s32 %s263, 1
    %s265 = scalar_select %p262, %s263, %s264
    %p268 = pneg %p262
    %p269 = scmp.eq.s32.totalorder %s17, 1
    %p270 = por %p268, %p269
    %p271 = scmp.ne.s32.totalorder %s263, %s266
    %p272 = scmp.eq.s32.totalorder %s17, 0
    %p273 = por %p271, %p272
    %p274 = scmp.ne.s32.totalorder %s263, %s266
    %p275 = scmp.eq.s32.totalorder %s22, 1
    %p276 = por %p274, %p275
    %p277 = scmp.ne.s32.totalorder %s266, %s267
    %p278 = scmp.eq.s32.totalorder %s22, 0
    %p279 = por %p277, %p278
    %p280 = scmp.ne.s32.totalorder %s266, %s267
    %p281 = scmp.eq.s32.totalorder %s23, 1
    %p282 = por %p280, %p281
    %p284 = scmp.ne.s32.totalorder %s267, %s283
    %p285 = scmp.eq.s32.totalorder %s23, 0
    %p286 = por %p284, %p285
    %p287 = scmp.le.s32.totalorder 1, %s17
    %p288 = scmp.lt.s32.totalorder %s17, 3
    %p289 = pnand %p287, %p288
    %p290 = pneg %p289
    // Predicated region
    $region9: #{bengali_forward.9} parent=5 // pred_check
      _
    $region10: #{bengali_forward.9} parent=5 // pred_check_branch
      %292 = sbr.rel (%p289) target = $region12
    $region11: #{bengali_forward.9} parent=5 // pred_region
      %s293 = ssub.s32 %s17, 1
      // Predicated region
      $region13: #{bengali_forward.9} parent=11 // pred_check
        %p294 = pneg %p64
      $region14: #{bengali_forward.9} parent=11 // pred_check_branch
        %296 = sbr.rel (%p294) target = $region16
      $region15: #{bengali_forward.9} parent=11 // pred_region
        _
      $region16: #{bengali_forward.9} parent=11 // pred_fallthru
        _
      // Predicated region
      $region17: #{bengali_forward.9} parent=11 // pred_check
        %p297 = pneg %p85
      $region18: #{bengali_forward.9} parent=11 // pred_check_branch
        %299 = sbr.rel (%p297) target = $region20
      $region19: #{bengali_forward.9} parent=11 // pred_region
        _
      $region20: #{bengali_forward.9} parent=11 // pred_fallthru
        _
      // Predicated region
      $region21: #{bengali_forward.9} parent=11 // pred_check
        %p300 = pneg %p106
      $region22: #{bengali_forward.9} parent=11 // pred_check_branch
        %302 = sbr.rel (%p300) target = $region24
      $region23: #{bengali_forward.9} parent=11 // pred_region
        _
      $region24: #{bengali_forward.9} parent=11 // pred_fallthru
        _
      // Predicated region
      $region25: #{bengali_forward.9} parent=11 // pred_check
        %p303 = pneg %p127
      $region26: #{bengali_forward.9} parent=11 // pred_check_branch
        %305 = sbr.rel (%p303) target = $region28
      $region27: #{bengali_forward.9} parent=11 // pred_region
        _
      $region28: #{bengali_forward.9} parent=11 // pred_fallthru
        _
      // Predicated region
      $region29: #{bengali_forward.9} parent=11 // pred_check
        %p306 = pneg %p148
      $region30: #{bengali_forward.9} parent=11 // pred_check_branch
        %308 = sbr.rel (%p306) target = $region32
      $region31: #{bengali_forward.9} parent=11 // pred_region
        _
      $region32: #{bengali_forward.9} parent=11 // pred_fallthru
        _
      // Predicated region
      $region33: #{bengali_forward.9} parent=11 // pred_check
        %p309 = pneg %p169
      $region34: #{bengali_forward.9} parent=11 // pred_check_branch
        %311 = sbr.rel (%p309) target = $region36
      $region35: #{bengali_forward.9} parent=11 // pred_region
        _
      $region36: #{bengali_forward.9} parent=11 // pred_fallthru
        _
      // Predicated region
      $region37: #{bengali_forward.9} parent=11 // pred_check
        %p312 = pneg %p190
      $region38: #{bengali_forward.9} parent=11 // pred_check_branch
        %314 = sbr.rel (%p312) target = $region40
      $region39: #{bengali_forward.9} parent=11 // pred_region
        _
      $region40: #{bengali_forward.9} parent=11 // pred_fallthru
        _
      // Predicated region
      $region41: #{bengali_forward.9} parent=11 // pred_check
        %p315 = pneg %p211
      $region42: #{bengali_forward.9} parent=11 // pred_check_branch
        %317 = sbr.rel (%p315) target = $region44
      $region43: #{bengali_forward.9} parent=11 // pred_region
        _
      $region44: #{bengali_forward.9} parent=11 // pred_fallthru
        _
      // Predicated region
      $region45: #{bengali_forward.9} parent=11 // pred_check
        %p318 = pneg %p232
      $region46: #{bengali_forward.9} parent=11 // pred_check_branch
        %320 = sbr.rel (%p318) target = $region48
      $region47: #{bengali_forward.9} parent=11 // pred_region
        _
      $region48: #{bengali_forward.9} parent=11 // pred_fallthru
        _
      // Predicated region
      $region49: #{bengali_forward.9} parent=11 // pred_check
        %p321 = pneg %p253
      $region50: #{bengali_forward.9} parent=11 // pred_check_branch
        %323 = sbr.rel (%p321) target = $region52
      $region51: #{bengali_forward.9} parent=11 // pred_region
        _
      $region52: #{bengali_forward.9} parent=11 // pred_fallthru
        _
    $region12: #{bengali_forward.9} parent=5 // pred_fallthru
      _
    %p324 = scmp.lt.s32.totalorder %s17, 2
    // Predicated region
    $region53: #{bengali_forward.9} parent=5 // pred_check
      %p325 = pneg %p324
    $region54: #{bengali_forward.9} parent=5 // pred_check_branch
      %327 = sbr.rel (%p325) target = $region56
    $region55: #{bengali_forward.9} parent=5 // pred_region
      // Predicated region
      $region57: #{bengali_forward.9} parent=55 // pred_check
        %p328 = pneg %p37
      $region58: #{bengali_forward.9} parent=55 // pred_check_branch
        %330 = sbr.rel (%p328) target = $region60
      $region59: #{bengali_forward.9} parent=55 // pred_region
        %p331 = scmp.lt.s32.totalorder %s17, 1
        %s332 = scalar_select %p331, %s17, 1
        %s333 = smul.addr %s332, 72
        %s334 = smul.addr %s333, 4
        %s335 = scalar_lea.vmem %s0, %s334
      $region60: #{bengali_forward.9} parent=55 // pred_fallthru
        _
    $region56: #{bengali_forward.9} parent=5 // pred_fallthru
      _
    %p336 = scmp.le.s32.totalorder 1, %s17
    %p337 = scmp.lt.s32.totalorder %s17, 3
    %p338 = pnand %p336, %p337
    %p339 = pneg %p338
    // Predicated region
    $region61: #{bengali_forward.9} parent=5 // pred_check
      _
    $region62: #{bengali_forward.9} parent=5 // pred_check_branch
      %341 = sbr.rel (%p338) target = $region64
    $region63: #{bengali_forward.9} parent=5 // pred_region
      %s342 = ssub.s32 %s17, 1
      %p343 = scmp.lt.s32.totalorder %s22, 1
      %s344 = scalar_select %p343, %s22, 1
      %s345 = smul.addr %s344, 72
      %s346 = smul.addr %s345, 4
      %s347 = scalar_lea.vmem %s0, %s346
      %p348 = pneg %p43
      %p349 = pneg %p40
      %p350 = pneg %p64
      %p351 = pneg %p61
      %p352 = pneg %p85
      %p353 = pneg %p82
      %p354 = pneg %p106
      %p355 = pneg %p103
      %p356 = pneg %p127
      %p357 = pneg %p124
      %p358 = pneg %p148
      %p359 = pneg %p145
      %p360 = pneg %p169
      %p361 = pneg %p166
      %p362 = pneg %p190
      %p363 = pneg %p187
      %p364 = pneg %p211
      %p365 = pneg %p208
      %p366 = pneg %p232
      %p367 = pneg %p229
      %p368 = pneg %p253
      %p369 = pneg %p250
      %p370 = pneg %p279
      %p371 = pneg %p276
      %p372 = scmp.lt.s32.totalorder %s22, 1
      %s373 = scalar_select %p372, %s22, 1
      %s374 = smul.addr %s373, 8
      %s375 = smul.addr %s374, 4
      %s376 = scalar_lea.vmem %s11, %s375
      %p377 = scmp.lt.s32.totalorder %s22, 1
      %s378 = scalar_select %p377, %s22, 1
      %s379 = smul.addr %s378, 72
      %s380 = smul.addr %s379, 4
      %s381 = scalar_lea.vmem %s0, %s380
      %p382 = scmp.lt.s32.totalorder %s22, 1
      %s383 = scalar_select %p382, %s22, 1
      %s384 = smul.addr %s383, 8
      %s385 = smul.addr %s384, 4
      %s386 = scalar_lea.vmem %s11, %s385
      %v388 = vld [vmem:[%s381] sm:$0xf]
      %v389 = vld [vmem:[%s381 + $0x4] sm:$0x1]
      %v390 = vld [vmem:[%s381 + $0x8] sm:$0xf]
      %v391 = vld [vmem:[%s381 + $0xc] sm:$0x1]
      %v392 = vld [vmem:[%s381 + $0x10] sm:$0xf]
      %v393 = vld [vmem:[%s381 + $0x14] sm:$0x1]
      %v394 = vld [vmem:[%s381 + $0x18] sm:$0xf]
      %v395 = vld [vmem:[%s381 + $0x1c] sm:$0x1]
      %v396 = vld [vmem:[%s381 + $0x20] sm:$0xf]
      %v397 = vld [vmem:[%s381 + $0x24] sm:$0x1]
      %v398 = vld [vmem:[%s381 + $0x28] sm:$0xf]
      %v399 = vld [vmem:[%s381 + $0x2c] sm:$0x1]
      %v400 = vld [vmem:[%s381 + $0x30] sm:$0xf]
      %v401 = vld [vmem:[%s381 + $0x34] sm:$0x1]
      %v402 = vld [vmem:[%s381 + $0x38] sm:$0xf]
      %v403 = vld [vmem:[%s381 + $0x3c] sm:$0x1]
      %v404 = vld [vmem:[%s381 + $0x40] sm:$0xf]
      %v405 = vld [vmem:[%s381 + $0x44] sm:$0x1]
      %v406 = vld [vmem:[%s381 + $0x48] sm:$0xf]
      %v407 = vld [vmem:[%s381 + $0x50] sm:$0xf]
      %v408 = vld [vmem:[%s381 + $0x58] sm:$0xf]
      %v409 = vld [vmem:[%s381 + $0x60] sm:$0xf]
      %v410 = vld [vmem:[%s381 + $0x68] sm:$0xf]
      %v411 = vld [vmem:[%s381 + $0x70] sm:$0xf]
      %v412 = vld [vmem:[%s381 + $0x78] sm:$0xf]
      %v413 = vld [vmem:[%s381 + $0x80] sm:$0xf]
      %v414 = vld [vmem:[%s381 + $0x88] sm:$0xf]
      %v415 = vld [vmem:[%s381 + $0x90] sm:$0xf]
      %v416 = vld [vmem:[%s381 + $0x94] sm:$0x1]
      %v417 = vld [vmem:[%s381 + $0x98] sm:$0xf]
      %v418 = vld [vmem:[%s381 + $0x9c] sm:$0x1]
      %v419 = vld [vmem:[%s381 + $0xa0] sm:$0xf]
      %v420 = vld [vmem:[%s381 + $0xa4] sm:$0x1]
      %v421 = vld [vmem:[%s381 + $0xa8] sm:$0xf]
      %v422 = vld [vmem:[%s381 + $0xac] sm:$0x1]
      %v423 = vld [vmem:[%s381 + $0xb0] sm:$0xf]
      %v424 = vld [vmem:[%s381 + $0xb4] sm:$0x1]
      %v425 = vld [vmem:[%s381 + $0xb8] sm:$0xf]
      %v426 = vld [vmem:[%s381 + $0xbc] sm:$0x1]
      %v427 = vld [vmem:[%s381 + $0xc0] sm:$0xf]
      %v428 = vld [vmem:[%s381 + $0xc4] sm:$0x1]
      %v429 = vld [vmem:[%s381 + $0xc8] sm:$0xf]
      %v430 = vld [vmem:[%s381 + $0xcc] sm:$0x1]
      %v431 = vld [vmem:[%s381 + $0xd8] sm:$0xf]
      %v432 = vld [vmem:[%s381 + $0xe0] sm:$0xf]
      %v433 = vld [vmem:[%s381 + $0xe8] sm:$0xf]
      %v434 = vld [vmem:[%s381 + $0xf0] sm:$0xf]
      %v435 = vld [vmem:[%s381 + $0xf8] sm:$0xf]
      %v436 = vld [vmem:[%s381 + $0x100] sm:$0xf]
      %v437 = vld [vmem:[%s381 + $0x108] sm:$0xf]
      %v438 = vld [vmem:[%s381 + $0x110] sm:$0xf]
      %v439 = vunpack.c.l.bf16 %v388
      %v440 = vunpack.c.l.bf16 %v390
      %v441 = vunpack.c.l.bf16 %v392
      %v442 = vunpack.c.l.bf16 %v394
      %v443 = vunpack.c.l.bf16 %v396
      %v444 = vunpack.c.l.bf16 %v398
      %v445 = vunpack.c.l.bf16 %v400
      %v446 = vunpack.c.l.bf16 %v402
      %v447 = vld [vmem:[%s1] sm:$0x1]
      %v449 = vlaneseq
      %v450 = vshrl.u32 %v449, 7
      %v451 = vsub.s32 0, %v450
      %v452 = vrot.slane %v447, %v451
      %v454 = vmul.f32 %v439, %v452
      %v455 = vmul.f32 %v440, %v452
      %v456 = vmul.f32 %v441, %v452
      %v457 = vmul.f32 %v442, %v452
      %v458 = vmul.f32 %v443, %v452
      %v459 = vmul.f32 %v444, %v452
      %v460 = vmul.f32 %v445, %v452
      %v461 = vmul.f32 %v446, %v452
      %v462 = vunpack.c.l.bf16 %v406
      %v463 = vunpack.c.l.bf16 %v407
      %v464 = vunpack.c.l.bf16 %v408
      %v465 = vunpack.c.l.bf16 %v409
      %v466 = vunpack.c.l.bf16 %v410
      %v467 = vunpack.c.l.bf16 %v411
      %v468 = vunpack.c.l.bf16 %v412
      %v469 = vunpack.c.l.bf16 %v413
      %s470 = scalar_lea.vmem %s1, 1
      %v471 = vld [vmem:[%s470] sm:$0x1]
      %v473 = vlaneseq
      %v474 = vshrl.u32 %v473, 7
      %v475 = vsub.s32 0, %v474
      %v476 = vrot.slane %v471, %v475
      %v478 = vmul.f32 %v462, %v476
      %v479 = vmul.f32 %v463, %v476
      %v480 = vmul.f32 %v464, %v476
      %v481 = vmul.f32 %v465, %v476
      %v482 = vmul.f32 %v466, %v476
      %v483 = vmul.f32 %v467, %v476
      %v484 = vmul.f32 %v468, %v476
      %v485 = vmul.f32 %v469, %v476
      %v486 = vadd.f32 %v454, %v478
      %v487 = vadd.f32 %v455, %v479
      %v488 = vadd.f32 %v456, %v480
      %v489 = vadd.f32 %v457, %v481
      %v490 = vadd.f32 %v458, %v482
      %v491 = vadd.f32 %v459, %v483
      %v492 = vadd.f32 %v460, %v484
      %v493 = vadd.f32 %v461, %v485
      %v494 = vunpack.c.l.bf16 %v389
      %v495 = vunpack.c.l.bf16 %v391
      %v496 = vunpack.c.l.bf16 %v393
      %v497 = vunpack.c.l.bf16 %v395
      %v498 = vunpack.c.l.bf16 %v397
      %v499 = vunpack.c.l.bf16 %v399
      %v500 = vunpack.c.l.bf16 %v401
      %v501 = vunpack.c.l.bf16 %v403
      %s502 = scalar_lea.vmem %s1, 2
      %v503 = vld [vmem:[%s502] sm:$0x1]
      %v505 = vlaneseq
      %v506 = vshrl.u32 %v505, 7
      %v507 = vsub.s32 0, %v506
      %v508 = vrot.slane %v503, %v507
      %v510 = vmul.f32 %v439, %v508
      %v511 = vmul.f32 %v494, %v508
      %v512 = vmul.f32 %v440, %v508
      %v513 = vmul.f32 %v495, %v508
      %v514 = vmul.f32 %v441, %v508
      %v515 = vmul.f32 %v496, %v508
      %v516 = vmul.f32 %v442, %v508
      %v517 = vmul.f32 %v497, %v508
      %v518 = vmul.f32 %v443, %v508
      %v519 = vmul.f32 %v498, %v508
      %v520 = vmul.f32 %v444, %v508
      %v521 = vmul.f32 %v499, %v508
      %v522 = vmul.f32 %v445, %v508
      %v523 = vmul.f32 %v500, %v508
      %v524 = vmul.f32 %v446, %v508
      %v525 = vmul.f32 %v501, %v508
      %vm542 = vcmask 1046528
      %v543 = vrot.slane %v510, 1
      %v544 = vrot.slane %v511, 1
      %v545 = vsel %vm542, %v543, %v544
      %v546 = vrot.slane %v512, 1
      %v547 = vrot.slane %v513, 1
      %v548 = vsel %vm542, %v546, %v547
      %v549 = vrot.slane %v514, 1
      %v550 = vrot.slane %v515, 1
      %v551 = vsel %vm542, %v549, %v550
      %v552 = vrot.slane %v516, 1
      %v553 = vrot.slane %v517, 1
      %v554 = vsel %vm542, %v552, %v553
      %v555 = vrot.slane %v518, 1
      %v556 = vrot.slane %v519, 1
      %v557 = vsel %vm542, %v555, %v556
      %v558 = vrot.slane %v520, 1
      %v559 = vrot.slane %v521, 1
      %v560 = vsel %vm542, %v558, %v559
      %v561 = vrot.slane %v522, 1
      %v562 = vrot.slane %v523, 1
      %v563 = vsel %vm542, %v561, %v562
      %v564 = vrot.slane %v524, 1
      %v565 = vrot.slane %v525, 1
      %v566 = vsel %vm542, %v564, %v565
      %v575 = vadd.f32 %v486, %v545
      %v576 = vadd.f32 %v487, %v548
      %v577 = vadd.f32 %v488, %v551
      %v578 = vadd.f32 %v489, %v554
      %v579 = vadd.f32 %v490, %v557
      %v580 = vadd.f32 %v491, %v560
      %v581 = vadd.f32 %v492, %v563
      %v582 = vadd.f32 %v493, %v566
      %v583 = vunpack.c.l.bf16 %v415
      %v584 = vunpack.c.l.bf16 %v417
      %v585 = vunpack.c.l.bf16 %v419
      %v586 = vunpack.c.l.bf16 %v421
      %v587 = vunpack.c.l.bf16 %v423
      %v588 = vunpack.c.l.bf16 %v425
      %v589 = vunpack.c.l.bf16 %v427
      %v590 = vunpack.c.l.bf16 %v429
      %s591 = scalar_lea.vmem %s1, 3
      %v592 = vld [vmem:[%s591] sm:$0x1]
      %v594 = vlaneseq
      %v595 = vshrl.u32 %v594, 7
      %v596 = vsub.s32 0, %v595
      %v597 = vrot.slane %v592, %v596
      %v599 = vmul.f32 %v583, %v597
      %v600 = vmul.f32 %v584, %v597
      %v601 = vmul.f32 %v585, %v597
      %v602 = vmul.f32 %v586, %v597
      %v603 = vmul.f32 %v587, %v597
      %v604 = vmul.f32 %v588, %v597
      %v605 = vmul.f32 %v589, %v597
      %v606 = vmul.f32 %v590, %v597
      %v607 = vadd.f32 %v575, %v599
      %v608 = vadd.f32 %v576, %v600
      %v609 = vadd.f32 %v577, %v601
      %v610 = vadd.f32 %v578, %v602
      %v611 = vadd.f32 %v579, %v603
      %v612 = vadd.f32 %v580, %v604
      %v613 = vadd.f32 %v581, %v605
      %v614 = vadd.f32 %v582, %v606
      %v615 = vunpack.c.l.bf16 %v431
      %v616 = vunpack.c.l.bf16 %v432
      %v617 = vunpack.c.l.bf16 %v433
      %v618 = vunpack.c.l.bf16 %v434
      %v619 = vunpack.c.l.bf16 %v435
      %v620 = vunpack.c.l.bf16 %v436
      %v621 = vunpack.c.l.bf16 %v437
      %v622 = vunpack.c.l.bf16 %v438
      %s623 = scalar_lea.vmem %s1, 4
      %v624 = vld [vmem:[%s623] sm:$0x1]
      %v626 = vlaneseq
      %v627 = vshrl.u32 %v626, 7
      %v628 = vsub.s32 0, %v627
      %v629 = vrot.slane %v624, %v628
      %v631 = vmul.f32 %v615, %v629
      %v632 = vmul.f32 %v616, %v629
      %v633 = vmul.f32 %v617, %v629
      %v634 = vmul.f32 %v618, %v629
      %v635 = vmul.f32 %v619, %v629
      %v636 = vmul.f32 %v620, %v629
      %v637 = vmul.f32 %v621, %v629
      %v638 = vmul.f32 %v622, %v629
      %v639 = vadd.f32 %v607, %v631
      %v640 = vadd.f32 %v608, %v632
      %v641 = vadd.f32 %v609, %v633
      %v642 = vadd.f32 %v610, %v634
      %v643 = vadd.f32 %v611, %v635
      %v644 = vadd.f32 %v612, %v636
      %v645 = vadd.f32 %v613, %v637
      %v646 = vadd.f32 %v614, %v638
      %v647 = vunpack.c.l.bf16 %v416
      %v648 = vunpack.c.l.bf16 %v418
      %v649 = vunpack.c.l.bf16 %v420
      %v650 = vunpack.c.l.bf16 %v422
      %v651 = vunpack.c.l.bf16 %v424
      %v652 = vunpack.c.l.bf16 %v426
      %v653 = vunpack.c.l.bf16 %v428
      %v654 = vunpack.c.l.bf16 %v430
      %s655 = scalar_lea.vmem %s1, 5
      %v656 = vld [vmem:[%s655] sm:$0x1]
      %v658 = vlaneseq
      %v659 = vshrl.u32 %v658, 7
      %v660 = vsub.s32 0, %v659
      %v661 = vrot.slane %v656, %v660
      %v663 = vmul.f32 %v583, %v661
      %v664 = vmul.f32 %v647, %v661
      %v665 = vmul.f32 %v584, %v661
      %v666 = vmul.f32 %v648, %v661
      %v667 = vmul.f32 %v585, %v661
      %v668 = vmul.f32 %v649, %v661
      %v669 = vmul.f32 %v586, %v661
      %v670 = vmul.f32 %v650, %v661
      %v671 = vmul.f32 %v587, %v661
      %v672 = vmul.f32 %v651, %v661
      %v673 = vmul.f32 %v588, %v661
      %v674 = vmul.f32 %v652, %v661
      %v675 = vmul.f32 %v589, %v661
      %v676 = vmul.f32 %v653, %v661
      %v677 = vmul.f32 %v590, %v661
      %v678 = vmul.f32 %v654, %v661
      %v695 = vrot.slane %v663, 1
      %v696 = vrot.slane %v664, 1
      %v697 = vsel %vm542, %v695, %v696
      %v698 = vrot.slane %v665, 1
      %v699 = vrot.slane %v666, 1
      %v700 = vsel %vm542, %v698, %v699
      %v701 = vrot.slane %v667, 1
      %v702 = vrot.slane %v668, 1
      %v703 = vsel %vm542, %v701, %v702
      %v704 = vrot.slane %v669, 1
      %v705 = vrot.slane %v670, 1
      %v706 = vsel %vm542, %v704, %v705
      %v707 = vrot.slane %v671, 1
      %v708 = vrot.slane %v672, 1
      %v709 = vsel %vm542, %v707, %v708
      %v710 = vrot.slane %v673, 1
      %v711 = vrot.slane %v674, 1
      %v712 = vsel %vm542, %v710, %v711
      %v713 = vrot.slane %v675, 1
      %v714 = vrot.slane %v676, 1
      %v715 = vsel %vm542, %v713, %v714
      %v716 = vrot.slane %v677, 1
      %v717 = vrot.slane %v678, 1
      %v718 = vsel %vm542, %v716, %v717
      %v727 = vadd.f32 %v639, %v697
      %v728 = vadd.f32 %v640, %v700
      %v729 = vadd.f32 %v641, %v703
      %v730 = vadd.f32 %v642, %v706
      %v731 = vadd.f32 %v643, %v709
      %v732 = vadd.f32 %v644, %v712
      %v733 = vadd.f32 %v645, %v715
      %v734 = vadd.f32 %v646, %v718
      %v735 = vunpack.c.l.bf16 %v404
      %s736 = scalar_lea.vmem %s1, 6
      %v737 = vld [vmem:[%s736] sm:$0x1]
      %v739 = vlaneseq
      %v740 = vshrl.u32 %v739, 7
      %v741 = vsub.s32 0, %v740
      %v742 = vrot.slane %v737, %v741
      %v744 = vmul.f32 %v440, %v742
      %v745 = vmul.f32 %v441, %v742
      %v746 = vmul.f32 %v442, %v742
      %v747 = vmul.f32 %v443, %v742
      %v748 = vmul.f32 %v444, %v742
      %v749 = vmul.f32 %v445, %v742
      %v750 = vmul.f32 %v446, %v742
      %v751 = vmul.f32 %v735, %v742
      %v752 = vadd.f32 %v727, %v744
      %v753 = vadd.f32 %v728, %v745
      %v754 = vadd.f32 %v729, %v746
      %v755 = vadd.f32 %v730, %v747
      %v756 = vadd.f32 %v731, %v748
      %v757 = vadd.f32 %v732, %v749
      %v758 = vadd.f32 %v733, %v750
      %v759 = vadd.f32 %v734, %v751
      %v760 = vunpack.c.l.bf16 %v414
      %s761 = scalar_lea.vmem %s1, 7
      %v762 = vld [vmem:[%s761] sm:$0x1]
      %v764 = vlaneseq
      %v765 = vshrl.u32 %v764, 7
      %v766 = vsub.s32 0, %v765
      %v767 = vrot.slane %v762, %v766
      %v769 = vmul.f32 %v463, %v767
      %v770 = vmul.f32 %v464, %v767
      %v771 = vmul.f32 %v465, %v767
      %v772 = vmul.f32 %v466, %v767
      %v773 = vmul.f32 %v467, %v767
      %v774 = vmul.f32 %v468, %v767
      %v775 = vmul.f32 %v469, %v767
      %v776 = vmul.f32 %v760, %v767
      %v777 = vadd.f32 %v752, %v769
      %v778 = vadd.f32 %v753, %v770
      %v779 = vadd.f32 %v754, %v771
      %v780 = vadd.f32 %v755, %v772
      %v781 = vadd.f32 %v756, %v773
      %v782 = vadd.f32 %v757, %v774
      %v783 = vadd.f32 %v758, %v775
      %v784 = vadd.f32 %v759, %v776
      %v785 = vunpack.c.l.bf16 %v405
      %s786 = scalar_lea.vmem %s1, 8
      %v787 = vld [vmem:[%s786] sm:$0x1]
      %v789 = vlaneseq
      %v790 = vshrl.u32 %v789, 7
      %v791 = vsub.s32 0, %v790
      %v792 = vrot.slane %v787, %v791
      %v794 = vmul.f32 %v440, %v792
      %v795 = vmul.f32 %v495, %v792
      %v796 = vmul.f32 %v441, %v792
      %v797 = vmul.f32 %v496, %v792
      %v798 = vmul.f32 %v442, %v792
      %v799 = vmul.f32 %v497, %v792
      %v800 = vmul.f32 %v443, %v792
      %v801 = vmul.f32 %v498, %v792
      %v802 = vmul.f32 %v444, %v792
      %v803 = vmul.f32 %v499, %v792
      %v804 = vmul.f32 %v445, %v792
      %v805 = vmul.f32 %v500, %v792
      %v806 = vmul.f32 %v446, %v792
      %v807 = vmul.f32 %v501, %v792
      %v808 = vmul.f32 %v735, %v792
      %v809 = vmul.f32 %v785, %v792
      %v826 = vrot.slane %v794, 1
      %v827 = vrot.slane %v795, 1
      %v828 = vsel %vm542, %v826, %v827
      %v829 = vrot.slane %v796, 1
      %v830 = vrot.slane %v797, 1
      %v831 = vsel %vm542, %v829, %v830
      %v832 = vrot.slane %v798, 1
      %v833 = vrot.slane %v799, 1
      %v834 = vsel %vm542, %v832, %v833
      %v835 = vrot.slane %v800, 1
      %v836 = vrot.slane %v801, 1
      %v837 = vsel %vm542, %v835, %v836
      %v838 = vrot.slane %v802, 1
      %v839 = vrot.slane %v803, 1
      %v840 = vsel %vm542, %v838, %v839
      %v841 = vrot.slane %v804, 1
      %v842 = vrot.slane %v805, 1
      %v843 = vsel %vm542, %v841, %v842
      %v844 = vrot.slane %v806, 1
      %v845 = vrot.slane %v807, 1
      %v846 = vsel %vm542, %v844, %v845
      %v847 = vrot.slane %v808, 1
      %v848 = vrot.slane %v809, 1
      %v849 = vsel %vm542, %v847, %v848
      %v858 = vadd.f32 %v777, %v828
      %v859 = vadd.f32 %v778, %v831
      %v860 = vadd.f32 %v779, %v834
      %v861 = vadd.f32 %v780, %v837
      %v862 = vadd.f32 %v781, %v840
      %v863 = vadd.f32 %v782, %v843
      %v864 = vadd.f32 %v783, %v846
      %v865 = vadd.f32 %v784, %v849
      %v866 = vld [vmem:[%s2] sm:$0x1]
      %v868 = vlaneseq
      %v869 = vshrl.u32 %v868, 7
      %v870 = vsub.s32 0, %v869
      %v871 = vrot.slane %v866, %v870
      %v873 = vmul.f32 %v858, %v871
      %v874 = vmul.f32 %v859, %v871
      %v875 = vmul.f32 %v860, %v871
      %v876 = vmul.f32 %v861, %v871
      %v877 = vmul.f32 %v862, %v871
      %v878 = vmul.f32 %v863, %v871
      %v879 = vmul.f32 %v864, %v871
      %v880 = vmul.f32 %v865, %v871
      %v881 = vld [vmem:[%s3] sm:$0x1]
      %v883 = vlaneseq
      %v884 = vshrl.u32 %v883, 7
      %v885 = vsub.s32 0, %v884
      %v886 = vrot.slane %v881, %v885
      %v888 = vadd.f32 %v873, %v886
      %v889 = vadd.f32 %v874, %v886
      %v890 = vadd.f32 %v875, %v886
      %v891 = vadd.f32 %v876, %v886
      %v892 = vadd.f32 %v877, %v886
      %v893 = vadd.f32 %v878, %v886
      %v894 = vadd.f32 %v879, %v886
      %v895 = vadd.f32 %v880, %v886
      %v896 = vxor.u32 %v888, 2147483648
      %v897 = vxor.u32 %v889, 2147483648
      %v898 = vxor.u32 %v890, 2147483648
      %v899 = vxor.u32 %v891, 2147483648
      %v900 = vxor.u32 %v892, 2147483648
      %v901 = vxor.u32 %v893, 2147483648
      %v902 = vxor.u32 %v894, 2147483648
      %v903 = vxor.u32 %v895, 2147483648
      %v904 = vmul.f32 %v896, 1.442695
      %v905 = vpow.pop %v904
      %v906 = vmul.f32 %v897, 1.442695
      %v907 = vpow.pop %v906
      %v908 = vmul.f32 %v898, 1.442695
      %v909 = vpow.pop %v908
      %v910 = vmul.f32 %v899, 1.442695
      %v911 = vpow.pop %v910
      %v912 = vmul.f32 %v900, 1.442695
      %v913 = vpow.pop %v912
      %v914 = vmul.f32 %v901, 1.442695
      %v915 = vpow.pop %v914
      %v916 = vmul.f32 %v902, 1.442695
      %v917 = vpow.pop %v916
      %v918 = vmul.f32 %v903, 1.442695
      %v919 = vpow.pop %v918
      %v920 = vadd.f32 %v905, 1.0
      %v921 = vadd.f32 %v907, 1.0
      %v922 = vadd.f32 %v909, 1.0
      %v923 = vadd.f32 %v911, 1.0
      %v924 = vadd.f32 %v913, 1.0
      %v925 = vadd.f32 %v915, 1.0
      %v926 = vadd.f32 %v917, 1.0
      %v927 = vadd.f32 %v919, 1.0
      %v928 = vrcp.pop %v920
      %v929 = vmul.f32 1.0, %v928
      %v930 = vrcp.pop %v921
      %v931 = vmul.f32 1.0, %v930
      %v932 = vrcp.pop %v922
      %v933 = vmul.f32 1.0, %v932
      %v934 = vrcp.pop %v923
      %v935 = vmul.f32 1.0, %v934
      %v936 = vrcp.pop %v924
      %v937 = vmul.f32 1.0, %v936
      %v938 = vrcp.pop %v925
      %v939 = vmul.f32 1.0, %v938
      %v940 = vrcp.pop %v926
      %v941 = vmul.f32 1.0, %v940
      %v942 = vrcp.pop %v927
      %v943 = vmul.f32 1.0, %v942
      %v944 = vmul.f32 %v888, %v929
      %v945 = vmul.f32 %v889, %v931
      %v946 = vmul.f32 %v890, %v933
      %v947 = vmul.f32 %v891, %v935
      %v948 = vmul.f32 %v892, %v937
      %v949 = vmul.f32 %v893, %v939
      %v950 = vmul.f32 %v894, %v941
      %v951 = vmul.f32 %v895, %v943
      %v952 = vadd.f32 %v944, %v945
      %v953 = vadd.f32 %v952, %v946
      %v954 = vadd.f32 %v953, %v947
      %v955 = vadd.f32 %v954, %v948
      %v956 = vadd.f32 %v955, %v949
      %v957 = vadd.f32 %v956, %v950
      %v958 = vadd.f32 %v957, %v951
      %v959 = vrot.slane %v958, 4
      %v960 = vadd.f32 %v958, %v959
      %v961 = vrot.slane %v960, 2
      %v962 = vadd.f32 %v960, %v961
      %v963 = vrot.slane %v962, 1
      %v964 = vadd.f32 %v962, %v963
      %v965 = vmul.f32 %v964, 0.015625
      %v966 = vpack.c.bf16 %v965, %v965
      %v967 = vld [vmem:[%s4] sm:$0xf]
      %v968 = vld [vmem:[%s4 + $0x4] sm:$0xf]
      %v969 = vld [vmem:[%s4 + $0x8] sm:$0xf]
      %v970 = vld [vmem:[%s4 + $0xc] sm:$0xf]
      %v971 = vld [vmem:[%s4 + $0x10] sm:$0xf]
      %v972 = vld [vmem:[%s4 + $0x14] sm:$0xf]
      %v973 = vld [vmem:[%s4 + $0x18] sm:$0xf]
      %v974 = vld [vmem:[%s4 + $0x1c] sm:$0xf]
      %v975 = vld [vmem:[%s4 + $0x20] sm:$0xf]
      %v976 = vld [vmem:[%s4 + $0x24] sm:$0xf]
      %v977 = vld [vmem:[%s4 + $0x28] sm:$0xf]
      %v978 = vld [vmem:[%s4 + $0x2c] sm:$0xf]
      %v979 = vld [vmem:[%s4 + $0x30] sm:$0xf]
      %v980 = vld [vmem:[%s4 + $0x34] sm:$0xf]
      %v981 = vld [vmem:[%s4 + $0x38] sm:$0xf]
      %v982 = vld [vmem:[%s4 + $0x3c] sm:$0xf]
      %v983 = vld [vmem:[%s5] sm:$0x1]
      %v1000 = vunpack.c.l.b16 %v967
      %v1001 = vunpack.c.l.b16 %v968
      %v1002 = vunpack.c.l.b16 %v969
      %v1003 = vunpack.c.l.b16 %v970
      %v1004 = vunpack.c.l.b16 %v971
      %v1005 = vunpack.c.l.b16 %v972
      %v1006 = vunpack.c.l.b16 %v973
      %v1007 = vunpack.c.l.b16 %v974
      %v1008 = vunpack.c.l.b16 %v975
      %v1009 = vunpack.c.l.b16 %v976
      %v1010 = vunpack.c.l.b16 %v977
      %v1011 = vunpack.c.l.b16 %v978
      %v1012 = vunpack.c.l.b16 %v979
      %v1013 = vunpack.c.l.b16 %v980
      %v1014 = vunpack.c.l.b16 %v981
      %v1015 = vunpack.c.l.b16 %v982
      %v1016 = vpack.c.b16 %v1001, %v1000
      %v1017 = vpack.c.b16 %v1003, %v1002
      %v1018 = vpack.c.b16 %v1005, %v1004
      %v1019 = vpack.c.b16 %v1007, %v1006
      %v1020 = vpack.c.b16 %v1009, %v1008
      %v1021 = vpack.c.b16 %v1011, %v1010
      %v1022 = vpack.c.b16 %v1013, %v1012
      %v1023 = vpack.c.b16 %v1015, %v1014
      %1032 = vmatprep.subr.bf16.mxu0 0
      %1033 = vmatpush1.bf16.msra.mxu0 %v1016
      %1034 = vmatprep.subr.bf16.mxu0 0
      %1035 = vmatpush1.bf16.msra.mxu0 %v1017
      %1036 = vmatprep.subr.bf16.mxu0 0
      %1037 = vmatpush1.bf16.msra.mxu0 %v1018
      %1038 = vmatprep.subr.bf16.mxu0 0
      %1039 = vmatpush1.bf16.msra.mxu0 %v1019
      %1040 = vmatprep.subr.bf16.mxu0 0
      %1041 = vmatpush1.bf16.msra.mxu0 %v1020
      %1042 = vmatprep.subr.bf16.mxu0 0
      %1043 = vmatpush1.bf16.msra.mxu0 %v1021
      %1044 = vmatprep.subr.bf16.mxu0 0
      %1045 = vmatpush1.bf16.msra.mxu0 %v1022
      %1046 = vmatprep.subr.bf16.mxu0 0
      %1047 = vmatpush1.bf16.msra.mxu0 %v1023
      %1048 = vmatprep.subr.bf16.mxu0 0
      %1049 = vmatpush1.bf16.msra.mxu0 0
      %1050 = vmatprep.subr.bf16.mxu0 0
      %1051 = vmatpush1.bf16.msra.mxu0 0
      %1052 = vmatprep.subr.bf16.mxu0 0
      %1053 = vmatpush1.bf16.msra.mxu0 0
      %1054 = vmatprep.subr.bf16.mxu0 0
      %1055 = vmatpush1.bf16.msra.mxu0 0
      %1056 = vmatprep.subr.bf16.mxu0 0
      %1057 = vmatpush1.bf16.msra.mxu0 0
      %1058 = vmatprep.subr.bf16.mxu0 0
      %1059 = vmatpush1.bf16.msra.mxu0 0
      %1060 = vmatprep.subr.bf16.mxu0 0
      %1061 = vmatpush1.bf16.msra.mxu0 0
      %1062 = vmatprep.subr.bf16.mxu0 0
      %1063 = vmatpush1.bf16.msra.mxu0 0
      %1064 = vmatprep.mubr.bf16.mxu0 0
      %1065 = vmatmul.mubr.bf16.gmra.mrb[0].mxu0 %v966
      %v1066 = vpop.f32.mrb[0].mxu0
      %v1067 = vadd.f32 %v983, %v1066
      %v1068 = vpop.f32.mrb[0].mxu0
      %v1069 = vpop.f32.mrb[0].mxu0
      %v1070 = vpop.f32.mrb[0].mxu0
      %1071 = vdwg.mxu0
      %v1072 = vxor.u32 %v1067, 2147483648
      %v1073 = vmul.f32 %v1072, 1.442695
      %v1074 = vpow.pop %v1073
      %v1075 = vadd.f32 %v1074, 1.0
      %v1076 = vrcp.pop %v1075
      %v1077 = vmul.f32 1.0, %v1076
      %v1078 = vmul.f32 %v1067, %v1077
      %v1079 = vpack.c.bf16 %v1078, %v1078
      %v1080 = vld [vmem:[%s6] sm:$0xf]
      %v1081 = vld [vmem:[%s6 + $0x4] sm:$0xf]
      %v1082 = vld [vmem:[%s6 + $0x8] sm:$0xf]
      %v1083 = vld [vmem:[%s6 + $0xc] sm:$0xf]
      %v1084 = vld [vmem:[%s6 + $0x10] sm:$0xf]
      %v1085 = vld [vmem:[%s6 + $0x14] sm:$0xf]
      %v1086 = vld [vmem:[%s6 + $0x18] sm:$0xf]
      %v1087 = vld [vmem:[%s6 + $0x1c] sm:$0xf]
      %v1088 = vld [vmem:[%s6 + $0x20] sm:$0xf]
      %v1089 = vld [vmem:[%s6 + $0x24] sm:$0xf]
      %v1090 = vld [vmem:[%s6 + $0x28] sm:$0xf]
      %v1091 = vld [vmem:[%s6 + $0x2c] sm:$0xf]
      %v1092 = vld [vmem:[%s6 + $0x30] sm:$0xf]
      %v1093 = vld [vmem:[%s6 + $0x34] sm:$0xf]
      %v1094 = vld [vmem:[%s6 + $0x38] sm:$0xf]
      %v1095 = vld [vmem:[%s6 + $0x3c] sm:$0xf]
      %v1096 = vld [vmem:[%s7] sm:$0x1]
      %v1113 = vunpack.c.l.b16 %v1080
      %v1114 = vunpack.c.l.b16 %v1081
      %v1115 = vunpack.c.l.b16 %v1082
      %v1116 = vunpack.c.l.b16 %v1083
      %v1117 = vunpack.c.l.b16 %v1084
      %v1118 = vunpack.c.l.b16 %v1085
      %v1119 = vunpack.c.l.b16 %v1086
      %v1120 = vunpack.c.l.b16 %v1087
      %v1121 = vunpack.c.l.b16 %v1088
      %v1122 = vunpack.c.l.b16 %v1089
      %v1123 = vunpack.c.l.b16 %v1090
      %v1124 = vunpack.c.l.b16 %v1091
      %v1125 = vunpack.c.l.b16 %v1092
      %v1126 = vunpack.c.l.b16 %v1093
      %v1127 = vunpack.c.l.b16 %v1094
      %v1128 = vunpack.c.l.b16 %v1095
      %v1129 = vpack.c.b16 %v1114, %v1113
      %v1130 = vpack.c.b16 %v1116, %v1115
      %v1131 = vpack.c.b16 %v1118, %v1117
      %v1132 = vpack.c.b16 %v1120, %v1119
      %v1133 = vpack.c.b16 %v1122, %v1121
      %v1134 = vpack.c.b16 %v1124, %v1123
      %v1135 = vpack.c.b16 %v1126, %v1125
      %v1136 = vpack.c.b16 %v1128, %v1127
      %1145 = vmatprep.subr.bf16.mxu0 0
      %1146 = vmatpush1.bf16.msra.mxu0 %v1129
      %1147 = vmatprep.subr.bf16.mxu0 0
      %1148 = vmatpush1.bf16.msra.mxu0 %v1130
      %1149 = vmatprep.subr.bf16.mxu0 0
      %1150 = vmatpush1.bf16.msra.mxu0 %v1131
      %1151 = vmatprep.subr.bf16.mxu0 0
      %1152 = vmatpush1.bf16.msra.mxu0 %v1132
      %1153 = vmatprep.subr.bf16.mxu0 0
      %1154 = vmatpush1.bf16.msra.mxu0 %v1133
      %1155 = vmatprep.subr.bf16.mxu0 0
      %1156 = vmatpush1.bf16.msra.mxu0 %v1134
      %1157 = vmatprep.subr.bf16.mxu0 0
      %1158 = vmatpush1.bf16.msra.mxu0 %v1135
      %1159 = vmatprep.subr.bf16.mxu0 0
      %1160 = vmatpush1.bf16.msra.mxu0 %v1136
      %1161 = vmatprep.subr.bf16.mxu0 0
      %1162 = vmatpush1.bf16.msra.mxu0 0
      %1163 = vmatprep.subr.bf16.mxu0 0
      %1164 = vmatpush1.bf16.msra.mxu0 0
      %1165 = vmatprep.subr.bf16.mxu0 0
      %1166 = vmatpush1.bf16.msra.mxu0 0
      %1167 = vmatprep.subr.bf16.mxu0 0
      %1168 = vmatpush1.bf16.msra.mxu0 0
      %1169 = vmatprep.subr.bf16.mxu0 0
      %1170 = vmatpush1.bf16.msra.mxu0 0
      %1171 = vmatprep.subr.bf16.mxu0 0
      %1172 = vmatpush1.bf16.msra.mxu0 0
      %1173 = vmatprep.subr.bf16.mxu0 0
      %1174 = vmatpush1.bf16.msra.mxu0 0
      %1175 = vmatprep.subr.bf16.mxu0 0
      %1176 = vmatpush1.bf16.msra.mxu0 0
      %1177 = vmatprep.mubr.bf16.mxu0 0
      %1178 = vmatmul.mubr.bf16.gmra.mrb[0].mxu0 %v1079
      %v1179 = vpop.f32.mrb[0].mxu0
      %v1180 = vadd.f32 %v1096, %v1179
      %v1181 = vpop.f32.mrb[0].mxu0
      %v1182 = vpop.f32.mrb[0].mxu0
      %v1183 = vpop.f32.mrb[0].mxu0
      %1184 = vdwg.mxu0
      %v1185 = vxor.u32 %v1180, 2147483648
      %v1186 = vmul.f32 %v1185, 1.442695
      %v1187 = vpow.pop %v1186
      %v1188 = vadd.f32 %v1187, 1.0
      %v1189 = vrcp.pop %v1188
      %v1190 = vmul.f32 1.0, %v1189
      %v1191 = vlaneseq
      %v1192 = vshrl.u32 %v1191, 7
      %v1193 = vsub.s32 0, %v1192
      %v1194 = vrot.slane %v1190, %v1193
      %v1195 = vmul.f32 %v944, %v1194
      %v1196 = vmul.f32 %v945, %v1194
      %v1197 = vmul.f32 %v946, %v1194
      %v1198 = vmul.f32 %v947, %v1194
      %v1199 = vmul.f32 %v948, %v1194
      %v1200 = vmul.f32 %v949, %v1194
      %v1201 = vmul.f32 %v950, %v1194
      %v1202 = vmul.f32 %v951, %v1194
      %v1203 = vpack.c.bf16 %v1196, %v1195
      %v1204 = vpack.c.bf16 %v1198, %v1197
      %v1205 = vpack.c.bf16 %v1200, %v1199
      %v1206 = vpack.c.bf16 %v1202, %v1201
      %v1207 = vld [vmem:[%s8] sm:$0xf]
      %v1208 = vld [vmem:[%s8 + $0x4] sm:$0xf]
      %v1209 = vld [vmem:[%s8 + $0x8] sm:$0xf]
      %v1210 = vld [vmem:[%s8 + $0xc] sm:$0xf]
      %v1211 = vld [vmem:[%s8 + $0x10] sm:$0xf]
      %v1212 = vld [vmem:[%s8 + $0x14] sm:$0xf]
      %v1213 = vld [vmem:[%s8 + $0x18] sm:$0xf]
      %v1214 = vld [vmem:[%s8 + $0x1c] sm:$0xf]
      %v1215 = vld [vmem:[%s8 + $0x20] sm:$0xf]
      %v1216 = vld [vmem:[%s8 + $0x24] sm:$0xf]
      %v1217 = vld [vmem:[%s8 + $0x28] sm:$0xf]
      %v1218 = vld [vmem:[%s8 + $0x2c] sm:$0xf]
      %v1219 = vld [vmem:[%s8 + $0x30] sm:$0xf]
      %v1220 = vld [vmem:[%s8 + $0x34] sm:$0xf]
      %v1221 = vld [vmem:[%s8 + $0x38] sm:$0xf]
      %v1222 = vld [vmem:[%s8 + $0x3c] sm:$0xf]
      %v1239 = vunpack.c.l.b16 %v1207
      %v1240 = vunpack.c.l.b16 %v1208
      %v1241 = vunpack.c.l.b16 %v1209
      %v1242 = vunpack.c.l.b16 %v1210
      %v1243 = vunpack.c.l.b16 %v1211
      %v1244 = vunpack.c.l.b16 %v1212
      %v1245 = vunpack.c.l.b16 %v1213
      %v1246 = vunpack.c.l.b16 %v1214
      %v1247 = vunpack.c.l.b16 %v1215
      %v1248 = vunpack.c.l.b16 %v1216
      %v1249 = vunpack.c.l.b16 %v1217
      %v1250 = vunpack.c.l.b16 %v1218
      %v1251 = vunpack.c.l.b16 %v1219
      %v1252 = vunpack.c.l.b16 %v1220
      %v1253 = vunpack.c.l.b16 %v1221
      %v1254 = vunpack.c.l.b16 %v1222
      %v1255 = vpack.c.b16 %v1240, %v1239
      %v1256 = vpack.c.b16 %v1242, %v1241
      %v1257 = vpack.c.b16 %v1244, %v1243
      %v1258 = vpack.c.b16 %v1246, %v1245
      %v1259 = vpack.c.b16 %v1248, %v1247
      %v1260 = vpack.c.b16 %v1250, %v1249
      %v1261 = vpack.c.b16 %v1252, %v1251
      %v1262 = vpack.c.b16 %v1254, %v1253
      %1271 = vmatprep.subr.bf16.mxu0 0
      %1272 = vmatpush1.bf16.msra.mxu0 %v1255
      %1273 = vmatprep.subr.bf16.mxu0 0
      %1274 = vmatpush1.bf16.msra.mxu0 %v1256
      %1275 = vmatprep.subr.bf16.mxu0 0
      %1276 = vmatpush1.bf16.msra.mxu0 %v1257
      %1277 = vmatprep.subr.bf16.mxu0 0
      %1278 = vmatpush1.bf16.msra.mxu0 %v1258
      %1279 = vmatprep.subr.bf16.mxu0 0
      %1280 = vmatpush1.bf16.msra.mxu0 %v1259
      %1281 = vmatprep.subr.bf16.mxu0 0
      %1282 = vmatpush1.bf16.msra.mxu0 %v1260
      %1283 = vmatprep.subr.bf16.mxu0 0
      %1284 = vmatpush1.bf16.msra.mxu0 %v1261
      %1285 = vmatprep.subr.bf16.mxu0 0
      %1286 = vmatpush1.bf16.msra.mxu0 %v1262
      %1287 = vmatprep.subr.bf16.mxu0 0
      %1288 = vmatpush1.bf16.msra.mxu0 0
      %1289 = vmatprep.subr.bf16.mxu0 0
      %1290 = vmatpush1.bf16.msra.mxu0 0
      %1291 = vmatprep.subr.bf16.mxu0 0
      %1292 = vmatpush1.bf16.msra.mxu0 0
      %1293 = vmatprep.subr.bf16.mxu0 0
      %1294 = vmatpush1.bf16.msra.mxu0 0
      %1295 = vmatprep.subr.bf16.mxu0 0
      %1296 = vmatpush1.bf16.msra.mxu0 0
      %1297 = vmatprep.subr.bf16.mxu0 0
      %1298 = vmatpush1.bf16.msra.mxu0 0
      %1299 = vmatprep.subr.bf16.mxu0 0
      %1300 = vmatpush1.bf16.msra.mxu0 0
      %1301 = vmatprep.subr.bf16.mxu0 0
      %1302 = vmatpush1.bf16.msra.mxu0 0
      %1303 = vmatprep.mubr.bf16.mxu0 0
      %1304 = vmatmul.mubr.bf16.gmra.mrb[0].mxu0 %v1203
      %v1305 = vpop.f32.mrb[0].mxu0
      %v1306 = vadd.f32 0.0, %v1305
      %v1307 = vpop.f32.mrb[0].mxu0
      %v1308 = vpop.f32.mrb[0].mxu0
      %v1309 = vadd.f32 0.0, %v1308
      %v1310 = vpop.f32.mrb[0].mxu0
      %1311 = vmatprep.mubr.bf16.mxu0 0
      %1312 = vmatmul.mubr.bf16.gmra.mrb[0].mxu0 %v1204
      %v1313 = vpop.f32.mrb[0].mxu0
      %v1314 = vadd.f32 0.0, %v1313
      %v1315 = vpop.f32.mrb[0].mxu0
      %v1316 = vpop.f32.mrb[0].mxu0
      %v1317 = vadd.f32 0.0, %v1316
      %v1318 = vpop.f32.mrb[0].mxu0
      %1319 = vmatprep.mubr.bf16.mxu0 0
      %1320 = vmatmul.mubr.bf16.gmra.mrb[0].mxu0 %v1205
      %v1321 = vpop.f32.mrb[0].mxu0
      %v1322 = vadd.f32 0.0, %v1321
      %v1323 = vpop.f32.mrb[0].mxu0
      %v1324 = vpop.f32.mrb[0].mxu0
      %v1325 = vadd.f32 0.0, %v1324
      %v1326 = vpop.f32.mrb[0].mxu0
      %1327 = vmatprep.mubr.bf16.mxu0 0
      %1328 = vmatmul.mubr.bf16.gmra.mrb[0].mxu0 %v1206
      %v1329 = vpop.f32.mrb[0].mxu0
      %v1330 = vadd.f32 0.0, %v1329
      %v1331 = vpop.f32.mrb[0].mxu0
      %v1332 = vpop.f32.mrb[0].mxu0
      %v1333 = vadd.f32 0.0, %v1332
      %v1334 = vpop.f32.mrb[0].mxu0
      %1335 = vdwg.mxu0
      %v1336 = vld [vmem:[%s9] sm:$0x1]
      %v1338 = vlaneseq
      %v1339 = vshrl.u32 %v1338, 7
      %v1340 = vsub.s32 0, %v1339
      %v1341 = vrot.slane %v1336, %v1340
      %v1343 = vmul.f32 %v1306, %v1341
      %v1344 = vmul.f32 %v1309, %v1341
      %v1345 = vmul.f32 %v1314, %v1341
      %v1346 = vmul.f32 %v1317, %v1341
      %v1347 = vmul.f32 %v1322, %v1341
      %v1348 = vmul.f32 %v1325, %v1341
      %v1349 = vmul.f32 %v1330, %v1341
      %v1350 = vmul.f32 %v1333, %v1341
      %v1351 = vld [vmem:[%s10] sm:$0x1]
      %v1353 = vlaneseq
      %v1354 = vshrl.u32 %v1353, 7
      %v1355 = vsub.s32 0, %v1354
      %v1356 = vrot.slane %v1351, %v1355
      %v1358 = vadd.f32 %v1343, %v1356
      %v1359 = vadd.f32 %v1344, %v1356
      %v1360 = vadd.f32 %v1345, %v1356
      %v1361 = vadd.f32 %v1346, %v1356
      %v1362 = vadd.f32 %v1347, %v1356
      %v1363 = vadd.f32 %v1348, %v1356
      %v1364 = vadd.f32 %v1349, %v1356
      %v1365 = vadd.f32 %v1350, %v1356
      %v1366 = vpack.c.bf16 %v1359, %v1358
      %v1367 = vpack.c.bf16 %v1361, %v1360
      %v1368 = vpack.c.bf16 %v1363, %v1362
      %v1369 = vpack.c.bf16 %v1365, %v1364
      %v1374 = vunpack.c.l.b16 %v1366
      %v1375 = vunpack.c.h.b16 %v1366
      %v1376 = vunpack.c.l.b16 %v1367
      %v1377 = vunpack.c.h.b16 %v1367
      %v1378 = vunpack.c.l.b16 %v1368
      %v1379 = vunpack.c.h.b16 %v1368
      %v1380 = vunpack.c.l.b16 %v1369
      %v1381 = vunpack.c.h.b16 %v1369
      %v1382 = vpack.c.b16 %v1374, %v1374
      %v1383 = vpack.c.b16 %v1375, %v1375
      %v1384 = vpack.c.b16 %v1376, %v1376
      %v1385 = vpack.c.b16 %v1377, %v1377
      %v1386 = vpack.c.b16 %v1378, %v1378
      %v1387 = vpack.c.b16 %v1379, %v1379
      %v1388 = vpack.c.b16 %v1380, %v1380
      %v1389 = vpack.c.b16 %v1381, %v1381
      %1398 = vst [vmem:[%s386] sm:$0xf] %v1382
      %1399 = vst [vmem:[%s386 + $0x4] sm:$0xf] %v1383
      %1400 = vst [vmem:[%s386 + $0x8] sm:$0xf] %v1384
      %1401 = vst [vmem:[%s386 + $0xc] sm:$0xf] %v1385
      %1402 = vst [vmem:[%s386 + $0x10] sm:$0xf] %v1386
      %1403 = vst [vmem:[%s386 + $0x14] sm:$0xf] %v1387
      %1404 = vst [vmem:[%s386 + $0x18] sm:$0xf] %v1388
      %1405 = vst [vmem:[%s386 + $0x1c] sm:$0xf] %v1389
      %p1406 = scmp.lt.s32.totalorder %s22, 1
      %s1407 = scalar_select %p1406, %s22, 1
      %s1408 = smul.addr %s1407, 8
      %s1409 = smul.addr %s1408, 4
      %s1410 = scalar_lea.vmem %s11, %s1409
      // Predicated region
      $region65: #{bengali_forward.9} parent=63 // pred_check
        %p1411 = pneg %p276
      $region66: #{bengali_forward.9} parent=63 // pred_check_branch
        %1413 = sbr.rel (%p1411) target = $region68
      $region67: #{bengali_forward.9} parent=63 // pred_region
        _
      $region68: #{bengali_forward.9} parent=63 // pred_fallthru
        _
    $region64: #{bengali_forward.9} parent=5 // pred_fallthru
      _
    %p1414 = scmp.le.s32.totalorder 2, %s17
    // Predicated region
    $region69: #{bengali_forward.9} parent=5 // pred_check
      %p1415 = pneg %p1414
    $region70: #{bengali_forward.9} parent=5 // pred_check_branch
      %1417 = sbr.rel (%p1415) target = $region72
    $region71: #{bengali_forward.9} parent=5 // pred_region
      %s1418 = ssub.s32 %s17, 2
      // Predicated region
      $region73: #{bengali_forward.9} parent=71 // pred_check
        %p1419 = pneg %p282
      $region74: #{bengali_forward.9} parent=71 // pred_check_branch
        %1421 = sbr.rel (%p1419) target = $region76
      $region75: #{bengali_forward.9} parent=71 // pred_region
        %p1422 = scmp.lt.s32.totalorder %s23, 1
        %s1423 = scalar_select %p1422, %s23, 1
        %s1424 = smul.addr %s1423, 8
        %s1425 = smul.addr %s1424, 4
        %s1426 = scalar_lea.vmem %s11, %s1425
      $region76: #{bengali_forward.9} parent=71 // pred_fallthru
        _
    $region72: #{bengali_forward.9} parent=5 // pred_fallthru
      _
  $region6: #{bengali_forward.9} parent=0 // loop_footer
    %s21 = sadd.s32 1, %s17
  $region7: #{bengali_forward.9} parent=0 // loop_footer_branch
    %16 = sbr.rel target = $region3
  $region8: #{bengali_forward.9} parent=0 // loop_exit
    _

// kernel: bengali_forward.11
$region0: #{bengali_forward.11}
  #allocation0 [shape = 'u32[]', space=smem, size = 0x4, offset = 0x4, fixed_abs, tag = 'smem constant byte address 0x4 - core index']
  #allocation1 [shape = 'u32[144,128]{1,0:T(1,128)}', space=vmem, size = 0x12000, scoped, tag = 'internal scratch']
  %s0 = inlined_call_operand.vmem [shape: bf16[2,64,128], index: 0, kind: input, shape index: {}]
  %s1 = inlined_call_operand.vmem [shape: bf16[128,128], index: 1, kind: input, shape index: {}]
  %s2 = inlined_call_operand.vmem [shape: f32[1,128], index: 2, kind: input, shape index: {}]
  %s3 = inlined_call_operand.vmem [shape: f32[1,128], index: 3, kind: input, shape index: {}]
  %s4 = inlined_call_operand.vmem [shape: bf16[128,256], index: 4, kind: input, shape index: {}]
  %s5 = inlined_call_operand.vmem [shape: f32[1,256], index: 5, kind: input, shape index: {}]
  %s6 = inlined_call_operand.vmem [shape: f32[2,256], index: 6, kind: output, shape index: {}]
  %s7 = sld [smem:[#allocation0]]
  $region34: #{bengali_forward.11} parent=0
    _
  %s9 = ssub.s32 1, %s7
  %s10 = scalar_select 0, %s9, %s7
  // Predicated region
  $region2: #{bengali_forward.11} parent=0 // pred_check
    _
  $region3: #{bengali_forward.11} parent=0 // pred_check_branch
    %12 = sbr.rel (0) target = $region5
  $region4: #{bengali_forward.11} parent=0 // pred_region
    _
  $region5: #{bengali_forward.11} parent=0 // pred_fallthru
    _
  // Predicated region
  $region6: #{bengali_forward.11} parent=0 // pred_check
    _
  $region7: #{bengali_forward.11} parent=0 // pred_check_branch
    %14 = sbr.rel (0) target = $region9
  $region8: #{bengali_forward.11} parent=0 // pred_region
    _
  $region9: #{bengali_forward.11} parent=0 // pred_fallthru
    _
  // Predicated region
  $region10: #{bengali_forward.11} parent=0 // pred_check
    _
  $region11: #{bengali_forward.11} parent=0 // pred_check_branch
    %16 = sbr.rel (0) target = $region13
  $region12: #{bengali_forward.11} parent=0 // pred_region
    _
  $region13: #{bengali_forward.11} parent=0 // pred_fallthru
    _
  // Predicated region
  $region14: #{bengali_forward.11} parent=0 // pred_check
    _
  $region15: #{bengali_forward.11} parent=0 // pred_check_branch
    %18 = sbr.rel (0) target = $region17
  $region16: #{bengali_forward.11} parent=0 // pred_region
    _
  $region17: #{bengali_forward.11} parent=0 // pred_fallthru
    _
  // Predicated region
  $region18: #{bengali_forward.11} parent=0 // pred_check
    _
  $region19: #{bengali_forward.11} parent=0 // pred_check_branch
    %20 = sbr.rel (0) target = $region21
  $region20: #{bengali_forward.11} parent=0 // pred_region
    _
  $region21: #{bengali_forward.11} parent=0 // pred_fallthru
    _
  // Predicated region
  $region22: #{bengali_forward.11} parent=0 // pred_check
    _
  $region23: #{bengali_forward.11} parent=0 // pred_check_branch
    %22 = sbr.rel (0) target = $region25
  $region24: #{bengali_forward.11} parent=0 // pred_region
    _
  $region25: #{bengali_forward.11} parent=0 // pred_fallthru
    _
  %v24 = vld [vmem:[%s0] sm:$0xf]
  %v25 = vld [vmem:[%s0 + $0x4] sm:$0xf]
  %v26 = vld [vmem:[%s0 + $0x8] sm:$0xf]
  %v27 = vld [vmem:[%s0 + $0xc] sm:$0xf]
  %v28 = vld [vmem:[%s0 + $0x10] sm:$0xf]
  %v29 = vld [vmem:[%s0 + $0x14] sm:$0xf]
  %v30 = vld [vmem:[%s0 + $0x18] sm:$0xf]
  %v31 = vld [vmem:[%s0 + $0x1c] sm:$0xf]
  %v32 = vld [vmem:[%s0 + $0x20] sm:$0xf]
  %v33 = vld [vmem:[%s0 + $0x24] sm:$0xf]
  %v34 = vld [vmem:[%s0 + $0x28] sm:$0xf]
  %v35 = vld [vmem:[%s0 + $0x2c] sm:$0xf]
  %v36 = vld [vmem:[%s0 + $0x30] sm:$0xf]
  %v37 = vld [vmem:[%s0 + $0x34] sm:$0xf]
  %v38 = vld [vmem:[%s0 + $0x38] sm:$0xf]
  %v39 = vld [vmem:[%s0 + $0x3c] sm:$0xf]
  %v40 = vunpack.c.l.bf16 %v24
  %v41 = vunpack.c.l.bf16 %v25
  %v42 = vunpack.c.l.bf16 %v26
  %v43 = vunpack.c.l.bf16 %v27
  %v44 = vunpack.c.l.bf16 %v28
  %v45 = vunpack.c.l.bf16 %v29
  %v46 = vunpack.c.l.bf16 %v30
  %v47 = vunpack.c.l.bf16 %v31
  %v48 = vunpack.c.l.bf16 %v32
  %v49 = vunpack.c.l.bf16 %v33
  %v50 = vunpack.c.l.bf16 %v34
  %v51 = vunpack.c.l.bf16 %v35
  %v52 = vunpack.c.l.bf16 %v36
  %v53 = vunpack.c.l.bf16 %v37
  %v54 = vunpack.c.l.bf16 %v38
  %v55 = vunpack.c.l.bf16 %v39
  %v56 = vadd.f32 %v40, %v41
  %v57 = vadd.f32 %v56, %v42
  %v58 = vadd.f32 %v57, %v43
  %v59 = vadd.f32 %v58, %v44
  %v60 = vadd.f32 %v59, %v45
  %v61 = vadd.f32 %v60, %v46
  %v62 = vadd.f32 %v61, %v47
  %v63 = vrot.slane %v62, 4
  %v64 = vadd.f32 %v62, %v63
  %v65 = vrot.slane %v64, 2
  %v66 = vadd.f32 %v64, %v65
  %v67 = vrot.slane %v66, 1
  %v68 = vadd.f32 %v66, %v67
  %v69 = vadd.f32 %v48, %v49
  %v70 = vadd.f32 %v69, %v50
  %v71 = vadd.f32 %v70, %v51
  %v72 = vadd.f32 %v71, %v52
  %v73 = vadd.f32 %v72, %v53
  %v74 = vadd.f32 %v73, %v54
  %v75 = vadd.f32 %v74, %v55
  %v76 = vrot.slane %v75, 4
  %v77 = vadd.f32 %v75, %v76
  %v78 = vrot.slane %v77, 2
  %v79 = vadd.f32 %v77, %v78
  %v80 = vrot.slane %v79, 1
  %v81 = vadd.f32 %v79, %v80
  %v82 = vmul.f32 %v68, 0.015625
  %v83 = vmul.f32 %v81, 0.015625
  %v84 = vpack.c.bf16 %v82, %v82
  %v85 = vpack.c.bf16 %v83, %v83
  %v86 = vld [vmem:[%s1] sm:$0xf]
  %v87 = vld [vmem:[%s1 + $0x4] sm:$0xf]
  %v88 = vld [vmem:[%s1 + $0x8] sm:$0xf]
  %v89 = vld [vmem:[%s1 + $0xc] sm:$0xf]
  %v90 = vld [vmem:[%s1 + $0x10] sm:$0xf]
  %v91 = vld [vmem:[%s1 + $0x14] sm:$0xf]
  %v92 = vld [vmem:[%s1 + $0x18] sm:$0xf]
  %v93 = vld [vmem:[%s1 + $0x1c] sm:$0xf]
  %v94 = vld [vmem:[%s1 + $0x20] sm:$0xf]
  %v95 = vld [vmem:[%s1 + $0x24] sm:$0xf]
  %v96 = vld [vmem:[%s1 + $0x28] sm:$0xf]
  %v97 = vld [vmem:[%s1 + $0x2c] sm:$0xf]
  %v98 = vld [vmem:[%s1 + $0x30] sm:$0xf]
  %v99 = vld [vmem:[%s1 + $0x34] sm:$0xf]
  %v100 = vld [vmem:[%s1 + $0x38] sm:$0xf]
  %v101 = vld [vmem:[%s1 + $0x3c] sm:$0xf]
  %v104 = vunpack.c.l.b16 %v84
  %v105 = vunpack.c.l.b16 %v85
  %vm106 = vcmask 1041409
  %v107 = vsel %vm106, %v105, %v104
  %v108 = vpack.c.b16 %v107, %v107
  %v126 = vunpack.c.l.b16 %v86
  %v127 = vunpack.c.l.b16 %v87
  %v128 = vunpack.c.l.b16 %v88
  %v129 = vunpack.c.l.b16 %v89
  %v130 = vunpack.c.l.b16 %v90
  %v131 = vunpack.c.l.b16 %v91
  %v132 = vunpack.c.l.b16 %v92
  %v133 = vunpack.c.l.b16 %v93
  %v134 = vunpack.c.l.b16 %v94
  %v135 = vunpack.c.l.b16 %v95
  %v136 = vunpack.c.l.b16 %v96
  %v137 = vunpack.c.l.b16 %v97
  %v138 = vunpack.c.l.b16 %v98
  %v139 = vunpack.c.l.b16 %v99
  %v140 = vunpack.c.l.b16 %v100
  %v141 = vunpack.c.l.b16 %v101
  %v142 = vpack.c.b16 %v127, %v126
  %v143 = vpack.c.b16 %v129, %v128
  %v144 = vpack.c.b16 %v131, %v130
  %v145 = vpack.c.b16 %v133, %v132
  %v146 = vpack.c.b16 %v135, %v134
  %v147 = vpack.c.b16 %v137, %v136
  %v148 = vpack.c.b16 %v139, %v138
  %v149 = vpack.c.b16 %v141, %v140
  %158 = vmatprep.subr.bf16.mxu0 0
  %159 = vmatpush1.bf16.msra.mxu0 %v142
  %160 = vmatprep.subr.bf16.mxu0 0
  %161 = vmatpush1.bf16.msra.mxu0 %v143
  %162 = vmatprep.subr.bf16.mxu0 0
  %163 = vmatpush1.bf16.msra.mxu0 %v144
  %164 = vmatprep.subr.bf16.mxu0 0
  %165 = vmatpush1.bf16.msra.mxu0 %v145
  %166 = vmatprep.subr.bf16.mxu0 0
  %167 = vmatpush1.bf16.msra.mxu0 %v146
  %168 = vmatprep.subr.bf16.mxu0 0
  %169 = vmatpush1.bf16.msra.mxu0 %v147
  %170 = vmatprep.subr.bf16.mxu0 0
  %171 = vmatpush1.bf16.msra.mxu0 %v148
  %172 = vmatprep.subr.bf16.mxu0 0
  %173 = vmatpush1.bf16.msra.mxu0 %v149
  %174 = vmatprep.subr.bf16.mxu0 0
  %175 = vmatpush1.bf16.msra.mxu0 0
  %176 = vmatprep.subr.bf16.mxu0 0
  %177 = vmatpush1.bf16.msra.mxu0 0
  %178 = vmatprep.subr.bf16.mxu0 0
  %179 = vmatpush1.bf16.msra.mxu0 0
  %180 = vmatprep.subr.bf16.mxu0 0
  %181 = vmatpush1.bf16.msra.mxu0 0
  %182 = vmatprep.subr.bf16.mxu0 0
  %183 = vmatpush1.bf16.msra.mxu0 0
  %184 = vmatprep.subr.bf16.mxu0 0
  %185 = vmatpush1.bf16.msra.mxu0 0
  %186 = vmatprep.subr.bf16.mxu0 0
  %187 = vmatpush1.bf16.msra.mxu0 0
  %188 = vmatprep.subr.bf16.mxu0 0
  %189 = vmatpush1.bf16.msra.mxu0 0
  %190 = vmatprep.mubr.bf16.mxu0 0
  %191 = vmatmul.mubr.bf16.gmra.mrb[0].mxu0 %v108
  %v192 = vpop.f32.mrb[0].mxu0
  %v193 = vadd.f32 0.0, %v192
  %v194 = vpop.f32.mrb[0].mxu0
  %v195 = vpop.f32.mrb[0].mxu0
  %v196 = vpop.f32.mrb[0].mxu0
  %197 = vdwg.mxu0
  %v198 = vld [vmem:[%s2] sm:$0x1]
  %v200 = vlaneseq
  %v201 = vshrl.u32 %v200, 7
  %v202 = vsub.s32 0, %v201
  %v203 = vrot.slane %v198, %v202
  %v205 = vmul.f32 %v193, %v203
  %v206 = vld [vmem:[%s3] sm:$0x1]
  %v208 = vlaneseq
  %v209 = vshrl.u32 %v208, 7
  %v210 = vsub.s32 0, %v209
  %v211 = vrot.slane %v206, %v210
  %v213 = vadd.f32 %v205, %v211
  %v214 = vpack.c.bf16 %v213, %v213
  %v215 = vld [vmem:[%s4] sm:$0xff]
  %v216 = vld [vmem:[%s4 + $0x8] sm:$0xff]
  %v217 = vld [vmem:[%s4 + $0x10] sm:$0xff]
  %v218 = vld [vmem:[%s4 + $0x18] sm:$0xff]
  %v219 = vld [vmem:[%s4 + $0x20] sm:$0xff]
  %v220 = vld [vmem:[%s4 + $0x28] sm:$0xff]
  %v221 = vld [vmem:[%s4 + $0x30] sm:$0xff]
  %v222 = vld [vmem:[%s4 + $0x38] sm:$0xff]
  %v223 = vld [vmem:[%s4 + $0x40] sm:$0xff]
  %v224 = vld [vmem:[%s4 + $0x48] sm:$0xff]
  %v225 = vld [vmem:[%s4 + $0x50] sm:$0xff]
  %v226 = vld [vmem:[%s4 + $0x58] sm:$0xff]
  %v227 = vld [vmem:[%s4 + $0x60] sm:$0xff]
  %v228 = vld [vmem:[%s4 + $0x68] sm:$0xff]
  %v229 = vld [vmem:[%s4 + $0x70] sm:$0xff]
  %v230 = vld [vmem:[%s4 + $0x78] sm:$0xff]
  %v231 = vld [vmem:[%s5] sm:$0x3]
  %v233 = vlaneseq
  %v234 = vshrl.u32 %v233, 7
  %v235 = vsub.s32 0, %v234
  %v236 = vrot.slane %v231, %v235
  %v237 = vlaneseq
  %v238 = vshrl.u32 %v237, 7
  %v239 = vsub.s32 1, %v238
  %v240 = vrot.slane %v231, %v239
  %v259 = vunpack.c.l.b16 %v215
  %v260 = vunpack.c.h.b16 %v215
  %v261 = vunpack.c.l.b16 %v216
  %v262 = vunpack.c.h.b16 %v216
  %v263 = vunpack.c.l.b16 %v217
  %v264 = vunpack.c.h.b16 %v217
  %v265 = vunpack.c.l.b16 %v218
  %v266 = vunpack.c.h.b16 %v218
  %v267 = vunpack.c.l.b16 %v219
  %v268 = vunpack.c.h.b16 %v219
  %v269 = vunpack.c.l.b16 %v220
  %v270 = vunpack.c.h.b16 %v220
  %v271 = vunpack.c.l.b16 %v221
  %v272 = vunpack.c.h.b16 %v221
  %v273 = vunpack.c.l.b16 %v222
  %v274 = vunpack.c.h.b16 %v222
  %v275 = vunpack.c.l.b16 %v223
  %v276 = vunpack.c.h.b16 %v223
  %v277 = vunpack.c.l.b16 %v224
  %v278 = vunpack.c.h.b16 %v224
  %v279 = vunpack.c.l.b16 %v225
  %v280 = vunpack.c.h.b16 %v225
  %v281 = vunpack.c.l.b16 %v226
  %v282 = vunpack.c.h.b16 %v226
  %v283 = vunpack.c.l.b16 %v227
  %v284 = vunpack.c.h.b16 %v227
  %v285 = vunpack.c.l.b16 %v228
  %v286 = vunpack.c.h.b16 %v228
  %v287 = vunpack.c.l.b16 %v229
  %v288 = vunpack.c.h.b16 %v229
  %v289 = vunpack.c.l.b16 %v230
  %v290 = vunpack.c.h.b16 %v230
  %v291 = vpack.c.b16 %v261, %v259
  %v292 = vpack.c.b16 %v262, %v260
  %v293 = vpack.c.b16 %v265, %v263
  %v294 = vpack.c.b16 %v266, %v264
  %v295 = vpack.c.b16 %v269, %v267
  %v296 = vpack.c.b16 %v270, %v268
  %v297 = vpack.c.b16 %v273, %v271
  %v298 = vpack.c.b16 %v274, %v272
  %v299 = vpack.c.b16 %v277, %v275
  %v300 = vpack.c.b16 %v278, %v276
  %v301 = vpack.c.b16 %v281, %v279
  %v302 = vpack.c.b16 %v282, %v280
  %v303 = vpack.c.b16 %v285, %v283
  %v304 = vpack.c.b16 %v286, %v284
  %v305 = vpack.c.b16 %v289, %v287
  %v306 = vpack.c.b16 %v290, %v288
  %323 = vmatprep.subr.bf16.mxu0 %v292
  %324 = vmatpush1.bf16.msra.mxu0 %v291
  %325 = vmatprep.subr.bf16.mxu0 %v294
  %326 = vmatpush1.bf16.msra.mxu0 %v293
  %327 = vmatprep.subr.bf16.mxu0 %v296
  %328 = vmatpush1.bf16.msra.mxu0 %v295
  %329 = vmatprep.subr.bf16.mxu0 %v298
  %330 = vmatpush1.bf16.msra.mxu0 %v297
  %331 = vmatprep.subr.bf16.mxu0 %v300
  %332 = vmatpush1.bf16.msra.mxu0 %v299
  %333 = vmatprep.subr.bf16.mxu0 %v302
  %334 = vmatpush1.bf16.msra.mxu0 %v301
  %335 = vmatprep.subr.bf16.mxu0 %v304
  %336 = vmatpush1.bf16.msra.mxu0 %v303
  %337 = vmatprep.subr.bf16.mxu0 %v306
  %338 = vmatpush1.bf16.msra.mxu0 %v305
  %339 = vmatprep.subr.bf16.mxu0 0
  %340 = vmatpush1.bf16.msra.mxu0 0
  %341 = vmatprep.subr.bf16.mxu0 0
  %342 = vmatpush1.bf16.msra.mxu0 0
  %343 = vmatprep.subr.bf16.mxu0 0
  %344 = vmatpush1.bf16.msra.mxu0 0
  %345 = vmatprep.subr.bf16.mxu0 0
  %346 = vmatpush1.bf16.msra.mxu0 0
  %347 = vmatprep.subr.bf16.mxu0 0
  %348 = vmatpush1.bf16.msra.mxu0 0
  %349 = vmatprep.subr.bf16.mxu0 0
  %350 = vmatpush1.bf16.msra.mxu0 0
  %351 = vmatprep.subr.bf16.mxu0 0
  %352 = vmatpush1.bf16.msra.mxu0 0
  %353 = vmatprep.subr.bf16.mxu0 0
  %354 = vmatpush1.bf16.msra.mxu0 0
  %355 = vmatprep.mubr.bf16.mxu0 0
  %356 = vmatmul.mubr.bf16.gmra.mrb[0].mxu0 %v214
  %v357 = vpop.f32.mrb[0].mxu0
  %v358 = vadd.f32 %v236, %v357
  %v359 = vpop.f32.mrb[0].mxu0
  %v360 = vadd.f32 %v240, %v359
  %v361 = vpop.f32.mrb[0].mxu0
  %v362 = vpop.f32.mrb[0].mxu0
  %363 = vdwg.mxu0
  %v366 = vcombine.low %v358, %v360
  %v368 = vunpack.c.l.s4 1983009808
  %v369 = vunpack.c.0.s8 %v368
  %v370 = vlaneseq
  %v371 = vshrl.u32 %v370, 7
  %v372 = vsub.s32 %v369, %v371
  %v373 = vrot.slane %v366, %v372
  %375 = vst [vmem:[%s6] sm:$0xf] %v373
  // Predicated region
  $region26: #{bengali_forward.11} parent=0 // pred_check
    _
  $region27: #{bengali_forward.11} parent=0 // pred_check_branch
    %377 = sbr.rel (0) target = $region29
  $region28: #{bengali_forward.11} parent=0 // pred_region
    _
  $region29: #{bengali_forward.11} parent=0 // pred_fallthru
    _
  // Predicated region
  $region30: #{bengali_forward.11} parent=0 // pred_check
    _
  $region31: #{bengali_forward.11} parent=0 // pred_check_branch
    %379 = sbr.rel (0) target = $region33
  $region32: #{bengali_forward.11} parent=0 // pred_region
    _
  $region33: #{bengali_forward.11} parent=0 // pred_fallthru
    _

// kernel: bengali_forward.10
$region0: #{bengali_forward.10}
  #allocation0 [shape = 'u32[]', space=smem, size = 0x4, offset = 0x4, fixed_abs, tag = 'smem constant byte address 0x4 - core index']
  #allocation1 [shape = 'u32[144,128]{1,0:T(1,128)}', space=vmem, size = 0x12000, scoped, tag = 'internal scratch']
  #allocation2 [shape = 'f32[10,10,256]{2,1,0:T(8,128)}', space=vmem, size = 0x28000, scoped, tag = 'scratch operand']
  %s0 = inlined_call_operand.vmem [shape: bf16[2,8,8,128], index: 0, kind: input, shape index: {}]
  %s1 = inlined_call_operand.vmem [shape: bf16[128,256], index: 1, kind: input, shape index: {}]
  %s2 = inlined_call_operand.vmem [shape: f32[1,256], index: 2, kind: input, shape index: {}]
  %s3 = inlined_call_operand.vmem [shape: f32[1,256], index: 3, kind: input, shape index: {}]
  %s4 = inlined_call_operand.vmem [shape: f32[9,1,256], index: 4, kind: input, shape index: {}]
  %s5 = inlined_call_operand.vmem [shape: f32[1,256], index: 5, kind: input, shape index: {}]
  %s6 = inlined_call_operand.vmem [shape: f32[1,256], index: 6, kind: input, shape index: {}]
  %s7 = inlined_call_operand.vmem [shape: bf16[256,128], index: 7, kind: input, shape index: {}]
  %s8 = inlined_call_operand.vmem [shape: f32[1,128], index: 8, kind: input, shape index: {}]
  %s9 = inlined_call_operand.vmem [shape: bf16[128,256], index: 9, kind: input, shape index: {}]
  %s10 = inlined_call_operand.vmem [shape: f32[1,256], index: 10, kind: input, shape index: {}]
  %s11 = inlined_call_operand.vmem [shape: bf16[256,128], index: 11, kind: input, shape index: {}]
  %s12 = inlined_call_operand.vmem [shape: f32[1,128], index: 12, kind: input, shape index: {}]
  %s13 = inlined_call_operand.vmem [shape: f32[1,128], index: 13, kind: input, shape index: {}]
  %s14 = inlined_call_operand.vmem [shape: bf16[2,64,128], index: 14, kind: output, shape index: {}]
  %s15 = sld [smem:[#allocation0]]
  $region89: #{bengali_forward.10} parent=0
    _
  %s17 = ssub.s32 1, %s15
  %s18 = scalar_select 0, %s17, %s15
  loop: start=0, step=1, limit=4
  $region2: #{bengali_forward.10} parent=0 // loop_pre_header
    _
  $region3: #{bengali_forward.10} parent=0 // loop_header
    %s20 = sphi 0, %s24
    %p21 = scmp.ge.s32.totalorder %s20, 4
    %s30 = sphi 0, %s32
    %s33 = sphi 0, %s30
    %s34 = sphi 0, %s33
    %s50 = sphi 0, %s34
    %s54 = sphi 0, %s54
    %s56 = sphi 0, %s54
    %s57 = sphi 0, %s56
    %s71 = sphi 0, %s57
    %s75 = sphi 0, %s75
    %s77 = sphi 0, %s75
    %s78 = sphi 0, %s77
    %s92 = sphi 0, %s78
    %s96 = sphi 0, %s96
    %s98 = sphi 0, %s96
    %s99 = sphi 0, %s98
    %s113 = sphi 0, %s99
    %s117 = sphi 0, %s117
    %s119 = sphi 0, %s117
    %s120 = sphi 0, %s119
    %s134 = sphi 0, %s120
    %s138 = sphi 0, %s138
    %s140 = sphi 0, %s138
    %s141 = sphi 0, %s140
    %s155 = sphi 0, %s141
    %s159 = sphi 0, %s159
    %s161 = sphi 0, %s159
    %s162 = sphi 0, %s161
    %s176 = sphi 0, %s162
    %s180 = sphi 0, %s180
    %s182 = sphi 0, %s180
    %s183 = sphi 0, %s182
    %s197 = sphi 0, %s183
    %s201 = sphi 0, %s201
    %s203 = sphi 0, %s201
    %s204 = sphi 0, %s203
    %s218 = sphi 0, %s204
    %s222 = sphi 0, %s222
    %s224 = sphi 0, %s222
    %s225 = sphi 0, %s224
    %s239 = sphi 0, %s225
    %s243 = sphi 0, %s243
    %s245 = sphi 0, %s243
    %s246 = sphi 0, %s245
    %s260 = sphi 0, %s246
    %s264 = sphi 0, %s264
    %s266 = sphi 0, %s264
    %s267 = sphi 0, %s266
    %s281 = sphi 0, %s267
    %s285 = sphi 0, %s285
    %s287 = sphi 0, %s285
    %s288 = sphi 0, %s287
    %s302 = sphi 0, %s288
    %s306 = sphi 0, %s306
    %s308 = sphi 0, %s306
    %s309 = sphi 0, %s308
    %s323 = sphi 0, %s309
    %s329 = sphi 0, %s331
    %s332 = sphi 0, %s329
    %s333 = sphi 0, %s332
    %s349 = sphi 0, %s333
  $region4: #{bengali_forward.10} parent=0 // loop_header_branch
    %23 = sbr.rel (%p21) target = $region8
  $region5: #{bengali_forward.10} parent=0 // loop_body
    %s25 = ssub.s32 %s20, 1
    %s26 = ssub.s32 %s20, 2
    %s27 = sadd.s32 %s20, 1
    %s28 = ssub.s32 %s20, %s27
    %p29 = scmp.eq.s32.totalorder %s28, 0
    %s31 = sadd.s32 %s30, 1
    %s32 = scalar_select %p29, %s30, %s31
    %p35 = pneg %p29
    %p36 = scmp.eq.s32.totalorder %s20, 1
    %p37 = por %p35, %p36
    %p38 = scmp.ne.s32.totalorder %s30, %s33
    %p39 = scmp.eq.s32.totalorder %s20, 0
    %p40 = por %p38, %p39
    %p41 = scmp.ne.s32.totalorder %s30, %s33
    %p42 = scmp.eq.s32.totalorder %s25, 1
    %p43 = por %p41, %p42
    %p44 = scmp.ne.s32.totalorder %s33, %s34
    %p45 = scmp.eq.s32.totalorder %s25, 0
    %p46 = por %p44, %p45
    %p47 = scmp.ne.s32.totalorder %s33, %s34
    %p48 = scmp.eq.s32.totalorder %s26, 1
    %p49 = por %p47, %p48
    %p51 = scmp.ne.s32.totalorder %s34, %s50
    %p52 = scmp.eq.s32.totalorder %s26, 0
    %p53 = por %p51, %p52
    %s55 = sadd.s32 %s54, 1
    %p58 = scmp.eq.s32.totalorder %s20, 1
    %p59 = scmp.ne.s32.totalorder %s54, %s56
    %p60 = scmp.eq.s32.totalorder %s20, 0
    %p61 = por %p59, %p60
    %p62 = scmp.ne.s32.totalorder %s54, %s56
    %p63 = scmp.eq.s32.totalorder %s25, 1
    %p64 = por %p62, %p63
    %p65 = scmp.ne.s32.totalorder %s56, %s57
    %p66 = scmp.eq.s32.totalorder %s25, 0
    %p67 = por %p65, %p66
    %p68 = scmp.ne.s32.totalorder %s56, %s57
    %p69 = scmp.eq.s32.totalorder %s26, 1
    %p70 = por %p68, %p69
    %p72 = scmp.ne.s32.totalorder %s57, %s71
    %p73 = scmp.eq.s32.totalorder %s26, 0
    %p74 = por %p72, %p73
    %s76 = sadd.s32 %s75, 1
    %p79 = scmp.eq.s32.totalorder %s20, 1
    %p80 = scmp.ne.s32.totalorder %s75, %s77
    %p81 = scmp.eq.s32.totalorder %s20, 0
    %p82 = por %p80, %p81
    %p83 = scmp.ne.s32.totalorder %s75, %s77
    %p84 = scmp.eq.s32.totalorder %s25, 1
    %p85 = por %p83, %p84
    %p86 = scmp.ne.s32.totalorder %s77, %s78
    %p87 = scmp.eq.s32.totalorder %s25, 0
    %p88 = por %p86, %p87
    %p89 = scmp.ne.s32.totalorder %s77, %s78
    %p90 = scmp.eq.s32.totalorder %s26, 1
    %p91 = por %p89, %p90
    %p93 = scmp.ne.s32.totalorder %s78, %s92
    %p94 = scmp.eq.s32.totalorder %s26, 0
    %p95 = por %p93, %p94
    %s97 = sadd.s32 %s96, 1
    %p100 = scmp.eq.s32.totalorder %s20, 1
    %p101 = scmp.ne.s32.totalorder %s96, %s98
    %p102 = scmp.eq.s32.totalorder %s20, 0
    %p103 = por %p101, %p102
    %p104 = scmp.ne.s32.totalorder %s96, %s98
    %p105 = scmp.eq.s32.totalorder %s25, 1
    %p106 = por %p104, %p105
    %p107 = scmp.ne.s32.totalorder %s98, %s99
    %p108 = scmp.eq.s32.totalorder %s25, 0
    %p109 = por %p107, %p108
    %p110 = scmp.ne.s32.totalorder %s98, %s99
    %p111 = scmp.eq.s32.totalorder %s26, 1
    %p112 = por %p110, %p111
    %p114 = scmp.ne.s32.totalorder %s99, %s113
    %p115 = scmp.eq.s32.totalorder %s26, 0
    %p116 = por %p114, %p115
    %s118 = sadd.s32 %s117, 1
    %p121 = scmp.eq.s32.totalorder %s20, 1
    %p122 = scmp.ne.s32.totalorder %s117, %s119
    %p123 = scmp.eq.s32.totalorder %s20, 0
    %p124 = por %p122, %p123
    %p125 = scmp.ne.s32.totalorder %s117, %s119
    %p126 = scmp.eq.s32.totalorder %s25, 1
    %p127 = por %p125, %p126
    %p128 = scmp.ne.s32.totalorder %s119, %s120
    %p129 = scmp.eq.s32.totalorder %s25, 0
    %p130 = por %p128, %p129
    %p131 = scmp.ne.s32.totalorder %s119, %s120
    %p132 = scmp.eq.s32.totalorder %s26, 1
    %p133 = por %p131, %p132
    %p135 = scmp.ne.s32.totalorder %s120, %s134
    %p136 = scmp.eq.s32.totalorder %s26, 0
    %p137 = por %p135, %p136
    %s139 = sadd.s32 %s138, 1
    %p142 = scmp.eq.s32.totalorder %s20, 1
    %p143 = scmp.ne.s32.totalorder %s138, %s140
    %p144 = scmp.eq.s32.totalorder %s20, 0
    %p145 = por %p143, %p144
    %p146 = scmp.ne.s32.totalorder %s138, %s140
    %p147 = scmp.eq.s32.totalorder %s25, 1
    %p148 = por %p146, %p147
    %p149 = scmp.ne.s32.totalorder %s140, %s141
    %p150 = scmp.eq.s32.totalorder %s25, 0
    %p151 = por %p149, %p150
    %p152 = scmp.ne.s32.totalorder %s140, %s141
    %p153 = scmp.eq.s32.totalorder %s26, 1
    %p154 = por %p152, %p153
    %p156 = scmp.ne.s32.totalorder %s141, %s155
    %p157 = scmp.eq.s32.totalorder %s26, 0
    %p158 = por %p156, %p157
    %s160 = sadd.s32 %s159, 1
    %p163 = scmp.eq.s32.totalorder %s20, 1
    %p164 = scmp.ne.s32.totalorder %s159, %s161
    %p165 = scmp.eq.s32.totalorder %s20, 0
    %p166 = por %p164, %p165
    %p167 = scmp.ne.s32.totalorder %s159, %s161
    %p168 = scmp.eq.s32.totalorder %s25, 1
    %p169 = por %p167, %p168
    %p170 = scmp.ne.s32.totalorder %s161, %s162
    %p171 = scmp.eq.s32.totalorder %s25, 0
    %p172 = por %p170, %p171
    %p173 = scmp.ne.s32.totalorder %s161, %s162
    %p174 = scmp.eq.s32.totalorder %s26, 1
    %p175 = por %p173, %p174
    %p177 = scmp.ne.s32.totalorder %s162, %s176
    %p178 = scmp.eq.s32.totalorder %s26, 0
    %p179 = por %p177, %p178
    %s181 = sadd.s32 %s180, 1
    %p184 = scmp.eq.s32.totalorder %s20, 1
    %p185 = scmp.ne.s32.totalorder %s180, %s182
    %p186 = scmp.eq.s32.totalorder %s20, 0
    %p187 = por %p185, %p186
    %p188 = scmp.ne.s32.totalorder %s180, %s182
    %p189 = scmp.eq.s32.totalorder %s25, 1
    %p190 = por %p188, %p189
    %p191 = scmp.ne.s32.totalorder %s182, %s183
    %p192 = scmp.eq.s32.totalorder %s25, 0
    %p193 = por %p191, %p192
    %p194 = scmp.ne.s32.totalorder %s182, %s183
    %p195 = scmp.eq.s32.totalorder %s26, 1
    %p196 = por %p194, %p195
    %p198 = scmp.ne.s32.totalorder %s183, %s197
    %p199 = scmp.eq.s32.totalorder %s26, 0
    %p200 = por %p198, %p199
    %s202 = sadd.s32 %s201, 1
    %p205 = scmp.eq.s32.totalorder %s20, 1
    %p206 = scmp.ne.s32.totalorder %s201, %s203
    %p207 = scmp.eq.s32.totalorder %s20, 0
    %p208 = por %p206, %p207
    %p209 = scmp.ne.s32.totalorder %s201, %s203
    %p210 = scmp.eq.s32.totalorder %s25, 1
    %p211 = por %p209, %p210
    %p212 = scmp.ne.s32.totalorder %s203, %s204
    %p213 = scmp.eq.s32.totalorder %s25, 0
    %p214 = por %p212, %p213
    %p215 = scmp.ne.s32.totalorder %s203, %s204
    %p216 = scmp.eq.s32.totalorder %s26, 1
    %p217 = por %p215, %p216
    %p219 = scmp.ne.s32.totalorder %s204, %s218
    %p220 = scmp.eq.s32.totalorder %s26, 0
    %p221 = por %p219, %p220
    %s223 = sadd.s32 %s222, 1
    %p226 = scmp.eq.s32.totalorder %s20, 1
    %p227 = scmp.ne.s32.totalorder %s222, %s224
    %p228 = scmp.eq.s32.totalorder %s20, 0
    %p229 = por %p227, %p228
    %p230 = scmp.ne.s32.totalorder %s222, %s224
    %p231 = scmp.eq.s32.totalorder %s25, 1
    %p232 = por %p230, %p231
    %p233 = scmp.ne.s32.totalorder %s224, %s225
    %p234 = scmp.eq.s32.totalorder %s25, 0
    %p235 = por %p233, %p234
    %p236 = scmp.ne.s32.totalorder %s224, %s225
    %p237 = scmp.eq.s32.totalorder %s26, 1
    %p238 = por %p236, %p237
    %p240 = scmp.ne.s32.totalorder %s225, %s239
    %p241 = scmp.eq.s32.totalorder %s26, 0
    %p242 = por %p240, %p241
    %s244 = sadd.s32 %s243, 1
    %p247 = scmp.eq.s32.totalorder %s20, 1
    %p248 = scmp.ne.s32.totalorder %s243, %s245
    %p249 = scmp.eq.s32.totalorder %s20, 0
    %p250 = por %p248, %p249
    %p251 = scmp.ne.s32.totalorder %s243, %s245
    %p252 = scmp.eq.s32.totalorder %s25, 1
    %p253 = por %p251, %p252
    %p254 = scmp.ne.s32.totalorder %s245, %s246
    %p255 = scmp.eq.s32.totalorder %s25, 0
    %p256 = por %p254, %p255
    %p257 = scmp.ne.s32.totalorder %s245, %s246
    %p258 = scmp.eq.s32.totalorder %s26, 1
    %p259 = por %p257, %p258
    %p261 = scmp.ne.s32.totalorder %s246, %s260
    %p262 = scmp.eq.s32.totalorder %s26, 0
    %p263 = por %p261, %p262
    %s265 = sadd.s32 %s264, 1
    %p268 = scmp.eq.s32.totalorder %s20, 1
    %p269 = scmp.ne.s32.totalorder %s264, %s266
    %p270 = scmp.eq.s32.totalorder %s20, 0
    %p271 = por %p269, %p270
    %p272 = scmp.ne.s32.totalorder %s264, %s266
    %p273 = scmp.eq.s32.totalorder %s25, 1
    %p274 = por %p272, %p273
    %p275 = scmp.ne.s32.totalorder %s266, %s267
    %p276 = scmp.eq.s32.totalorder %s25, 0
    %p277 = por %p275, %p276
    %p278 = scmp.ne.s32.totalorder %s266, %s267
    %p279 = scmp.eq.s32.totalorder %s26, 1
    %p280 = por %p278, %p279
    %p282 = scmp.ne.s32.totalorder %s267, %s281
    %p283 = scmp.eq.s32.totalorder %s26, 0
    %p284 = por %p282, %p283
    %s286 = sadd.s32 %s285, 1
    %p289 = scmp.eq.s32.totalorder %s20, 1
    %p290 = scmp.ne.s32.totalorder %s285, %s287
    %p291 = scmp.eq.s32.totalorder %s20, 0
    %p292 = por %p290, %p291
    %p293 = scmp.ne.s32.totalorder %s285, %s287
    %p294 = scmp.eq.s32.totalorder %s25, 1
    %p295 = por %p293, %p294
    %p296 = scmp.ne.s32.totalorder %s287, %s288
    %p297 = scmp.eq.s32.totalorder %s25, 0
    %p298 = por %p296, %p297
    %p299 = scmp.ne.s32.totalorder %s287, %s288
    %p300 = scmp.eq.s32.totalorder %s26, 1
    %p301 = por %p299, %p300
    %p303 = scmp.ne.s32.totalorder %s288, %s302
    %p304 = scmp.eq.s32.totalorder %s26, 0
    %p305 = por %p303, %p304
    %s307 = sadd.s32 %s306, 1
    %p310 = scmp.eq.s32.totalorder %s20, 1
    %p311 = scmp.ne.s32.totalorder %s306, %s308
    %p312 = scmp.eq.s32.totalorder %s20, 0
    %p313 = por %p311, %p312
    %p314 = scmp.ne.s32.totalorder %s306, %s308
    %p315 = scmp.eq.s32.totalorder %s25, 1
    %p316 = por %p314, %p315
    %p317 = scmp.ne.s32.totalorder %s308, %s309
    %p318 = scmp.eq.s32.totalorder %s25, 0
    %p319 = por %p317, %p318
    %p320 = scmp.ne.s32.totalorder %s308, %s309
    %p321 = scmp.eq.s32.totalorder %s26, 1
    %p322 = por %p320, %p321
    %p324 = scmp.ne.s32.totalorder %s309, %s323
    %p325 = scmp.eq.s32.totalorder %s26, 0
    %p326 = por %p324, %p325
    %s327 = ssub.s32 %s20, %s27
    %p328 = scmp.eq.s32.totalorder %s327, 0
    %s330 = sadd.s32 %s329, 1
    %s331 = scalar_select %p328, %s329, %s330
    %p334 = pneg %p328
    %p335 = scmp.eq.s32.totalorder %s20, 1
    %p336 = por %p334, %p335
    %p337 = scmp.ne.s32.totalorder %s329, %s332
    %p338 = scmp.eq.s32.totalorder %s20, 0
    %p339 = por %p337, %p338
    %p340 = scmp.ne.s32.totalorder %s329, %s332
    %p341 = scmp.eq.s32.totalorder %s25, 1
    %p342 = por %p340, %p341
    %p343 = scmp.ne.s32.totalorder %s332, %s333
    %p344 = scmp.eq.s32.totalorder %s25, 0
    %p345 = por %p343, %p344
    %p346 = scmp.ne.s32.totalorder %s332, %s333
    %p347 = scmp.eq.s32.totalorder %s26, 1
    %p348 = por %p346, %p347
    %p350 = scmp.ne.s32.totalorder %s333, %s349
    %p351 = scmp.eq.s32.totalorder %s26, 0
    %p352 = por %p350, %p351
    %p353 = scmp.le.s32.totalorder 1, %s20
    %p354 = scmp.lt.s32.totalorder %s20, 3
    %p355 = pnand %p353, %p354
    %p356 = pneg %p355
    // Predicated region
    $region9: #{bengali_forward.10} parent=5 // pred_check
      _
    $region10: #{bengali_forward.10} parent=5 // pred_check_branch
      %358 = sbr.rel (%p355) target = $region12
    $region11: #{bengali_forward.10} parent=5 // pred_region
      %s359 = ssub.s32 %s20, 1
      // Predicated region
      $region13: #{bengali_forward.10} parent=11 // pred_check
        %p360 = pneg %p67
      $region14: #{bengali_forward.10} parent=11 // pred_check_branch
        %362 = sbr.rel (%p360) target = $region16
      $region15: #{bengali_forward.10} parent=11 // pred_region
        _
      $region16: #{bengali_forward.10} parent=11 // pred_fallthru
        _
      // Predicated region
      $region17: #{bengali_forward.10} parent=11 // pred_check
        %p363 = pneg %p88
      $region18: #{bengali_forward.10} parent=11 // pred_check_branch
        %365 = sbr.rel (%p363) target = $region20
      $region19: #{bengali_forward.10} parent=11 // pred_region
        _
      $region20: #{bengali_forward.10} parent=11 // pred_fallthru
        _
      // Predicated region
      $region21: #{bengali_forward.10} parent=11 // pred_check
        %p366 = pneg %p109
      $region22: #{bengali_forward.10} parent=11 // pred_check_branch
        %368 = sbr.rel (%p366) target = $region24
      $region23: #{bengali_forward.10} parent=11 // pred_region
        _
      $region24: #{bengali_forward.10} parent=11 // pred_fallthru
        _
      // Predicated region
      $region25: #{bengali_forward.10} parent=11 // pred_check
        %p369 = pneg %p130
      $region26: #{bengali_forward.10} parent=11 // pred_check_branch
        %371 = sbr.rel (%p369) target = $region28
      $region27: #{bengali_forward.10} parent=11 // pred_region
        _
      $region28: #{bengali_forward.10} parent=11 // pred_fallthru
        _
      // Predicated region
      $region29: #{bengali_forward.10} parent=11 // pred_check
        %p372 = pneg %p151
      $region30: #{bengali_forward.10} parent=11 // pred_check_branch
        %374 = sbr.rel (%p372) target = $region32
      $region31: #{bengali_forward.10} parent=11 // pred_region
        _
      $region32: #{bengali_forward.10} parent=11 // pred_fallthru
        _
      // Predicated region
      $region33: #{bengali_forward.10} parent=11 // pred_check
        %p375 = pneg %p172
      $region34: #{bengali_forward.10} parent=11 // pred_check_branch
        %377 = sbr.rel (%p375) target = $region36
      $region35: #{bengali_forward.10} parent=11 // pred_region
        _
      $region36: #{bengali_forward.10} parent=11 // pred_fallthru
        _
      // Predicated region
      $region37: #{bengali_forward.10} parent=11 // pred_check
        %p378 = pneg %p193
      $region38: #{bengali_forward.10} parent=11 // pred_check_branch
        %380 = sbr.rel (%p378) target = $region40
      $region39: #{bengali_forward.10} parent=11 // pred_region
        _
      $region40: #{bengali_forward.10} parent=11 // pred_fallthru
        _
      // Predicated region
      $region41: #{bengali_forward.10} parent=11 // pred_check
        %p381 = pneg %p214
      $region42: #{bengali_forward.10} parent=11 // pred_check_branch
        %383 = sbr.rel (%p381) target = $region44
      $region43: #{bengali_forward.10} parent=11 // pred_region
        _
      $region44: #{bengali_forward.10} parent=11 // pred_fallthru
        _
      // Predicated region
      $region45: #{bengali_forward.10} parent=11 // pred_check
        %p384 = pneg %p235
      $region46: #{bengali_forward.10} parent=11 // pred_check_branch
        %386 = sbr.rel (%p384) target = $region48
      $region47: #{bengali_forward.10} parent=11 // pred_region
        _
      $region48: #{bengali_forward.10} parent=11 // pred_fallthru
        _
      // Predicated region
      $region49: #{bengali_forward.10} parent=11 // pred_check
        %p387 = pneg %p256
      $region50: #{bengali_forward.10} parent=11 // pred_check_branch
        %389 = sbr.rel (%p387) target = $region52
      $region51: #{bengali_forward.10} parent=11 // pred_region
        _
      $region52: #{bengali_forward.10} parent=11 // pred_fallthru
        _
      // Predicated region
      $region53: #{bengali_forward.10} parent=11 // pred_check
        %p390 = pneg %p277
      $region54: #{bengali_forward.10} parent=11 // pred_check_branch
        %392 = sbr.rel (%p390) target = $region56
      $region55: #{bengali_forward.10} parent=11 // pred_region
        _
      $region56: #{bengali_forward.10} parent=11 // pred_fallthru
        _
      // Predicated region
      $region57: #{bengali_forward.10} parent=11 // pred_check
        %p393 = pneg %p298
      $region58: #{bengali_forward.10} parent=11 // pred_check_branch
        %395 = sbr.rel (%p393) target = $region60
      $region59: #{bengali_forward.10} parent=11 // pred_region
        _
      $region60: #{bengali_forward.10} parent=11 // pred_fallthru
        _
      // Predicated region
      $region61: #{bengali_forward.10} parent=11 // pred_check
        %p396 = pneg %p319
      $region62: #{bengali_forward.10} parent=11 // pred_check_branch
        %398 = sbr.rel (%p396) target = $region64
      $region63: #{bengali_forward.10} parent=11 // pred_region
        _
      $region64: #{bengali_forward.10} parent=11 // pred_fallthru
        _
    $region12: #{bengali_forward.10} parent=5 // pred_fallthru
      _
    %p399 = scmp.lt.s32.totalorder %s20, 2
    // Predicated region
    $region65: #{bengali_forward.10} parent=5 // pred_check
      %p400 = pneg %p399
    $region66: #{bengali_forward.10} parent=5 // pred_check_branch
      %402 = sbr.rel (%p400) target = $region68
    $region67: #{bengali_forward.10} parent=5 // pred_region
      // Predicated region
      $region69: #{bengali_forward.10} parent=67 // pred_check
        %p403 = pneg %p40
      $region70: #{bengali_forward.10} parent=67 // pred_check_branch
        %405 = sbr.rel (%p403) target = $region72
      $region71: #{bengali_forward.10} parent=67 // pred_region
        %p406 = scmp.lt.s32.totalorder %s20, 1
        %s407 = scalar_select %p406, %s20, 1
        %s408 = smul.addr %s407, 8
        %s409 = smul.addr %s408, 4
        %s410 = scalar_lea.vmem %s0, %s409
      $region72: #{bengali_forward.10} parent=67 // pred_fallthru
        _
    $region68: #{bengali_forward.10} parent=5 // pred_fallthru
      _
    %p411 = scmp.le.s32.totalorder 1, %s20
    %p412 = scmp.lt.s32.totalorder %s20, 3
    %p413 = pnand %p411, %p412
    %p414 = pneg %p413
    // Predicated region
    $region73: #{bengali_forward.10} parent=5 // pred_check
      _
    $region74: #{bengali_forward.10} parent=5 // pred_check_branch
      %416 = sbr.rel (%p413) target = $region76
    $region75: #{bengali_forward.10} parent=5 // pred_region
      %s417 = ssub.s32 %s20, 1
      %p418 = scmp.lt.s32.totalorder %s25, 1
      %s419 = scalar_select %p418, %s25, 1
      %s420 = smul.addr %s419, 8
      %s421 = smul.addr %s420, 4
      %s422 = scalar_lea.vmem %s0, %s421
      %p423 = pneg %p46
      %p424 = pneg %p43
      %p425 = pneg %p67
      %p426 = pneg %p64
      %p427 = pneg %p88
      %p428 = pneg %p85
      %p429 = pneg %p109
      %p430 = pneg %p106
      %p431 = pneg %p130
      %p432 = pneg %p127
      %p433 = pneg %p151
      %p434 = pneg %p148
      %p435 = pneg %p172
      %p436 = pneg %p169
      %p437 = pneg %p193
      %p438 = pneg %p190
      %p439 = pneg %p214
      %p440 = pneg %p211
      %p441 = pneg %p235
      %p442 = pneg %p232
      %p443 = pneg %p256
      %p444 = pneg %p253
      %p445 = pneg %p277
      %p446 = pneg %p274
      %p447 = pneg %p298
      %p448 = pneg %p295
      %p449 = pneg %p319
      %p450 = pneg %p316
      %p451 = pneg %p345
      %p452 = pneg %p342
      %p453 = scmp.lt.s32.totalorder %s25, 1
      %s454 = scalar_select %p453, %s25, 1
      %s455 = smul.addr %s454, 8
      %s456 = smul.addr %s455, 4
      %s457 = scalar_lea.vmem %s14, %s456
      %p458 = scmp.lt.s32.totalorder %s25, 1
      %s459 = scalar_select %p458, %s25, 1
      %s460 = smul.addr %s459, 8
      %s461 = smul.addr %s460, 4
      %s462 = scalar_lea.vmem %s0, %s461
      %p463 = scmp.lt.s32.totalorder %s25, 1
      %s464 = scalar_select %p463, %s25, 1
      %s465 = smul.addr %s464, 8
      %s466 = smul.addr %s465, 4
      %s467 = scalar_lea.vmem %s14, %s466
      %v469 = vld [vmem:[%s462] sm:$0xf]
      %v470 = vld [vmem:[%s462 + $0x4] sm:$0xf]
      %v471 = vld [vmem:[%s462 + $0x8] sm:$0xf]
      %v472 = vld [vmem:[%s462 + $0xc] sm:$0xf]
      %v473 = vld [vmem:[%s462 + $0x10] sm:$0xf]
      %v474 = vld [vmem:[%s462 + $0x14] sm:$0xf]
      %v475 = vld [vmem:[%s462 + $0x18] sm:$0xf]
      %v476 = vld [vmem:[%s462 + $0x1c] sm:$0xf]
      %v477 = vld [vmem:[%s1] sm:$0xff]
      %v478 = vld [vmem:[%s1 + $0x8] sm:$0xff]
      %v479 = vld [vmem:[%s1 + $0x10] sm:$0xff]
      %v480 = vld [vmem:[%s1 + $0x18] sm:$0xff]
      %v481 = vld [vmem:[%s1 + $0x20] sm:$0xff]
      %v482 = vld [vmem:[%s1 + $0x28] sm:$0xff]
      %v483 = vld [vmem:[%s1 + $0x30] sm:$0xff]
      %v484 = vld [vmem:[%s1 + $0x38] sm:$0xff]
      %v485 = vld [vmem:[%s1 + $0x40] sm:$0xff]
      %v486 = vld [vmem:[%s1 + $0x48] sm:$0xff]
      %v487 = vld [vmem:[%s1 + $0x50] sm:$0xff]
      %v488 = vld [vmem:[%s1 + $0x58] sm:$0xff]
      %v489 = vld [vmem:[%s1 + $0x60] sm:$0xff]
      %v490 = vld [vmem:[%s1 + $0x68] sm:$0xff]
      %v491 = vld [vmem:[%s1 + $0x70] sm:$0xff]
      %v492 = vld [vmem:[%s1 + $0x78] sm:$0xff]
      %v501 = vunpack.c.l.b16 %v469
      %v502 = vunpack.c.l.b16 %v470
      %v503 = vunpack.c.l.b16 %v471
      %v504 = vunpack.c.l.b16 %v472
      %v505 = vunpack.c.l.b16 %v473
      %v506 = vunpack.c.l.b16 %v474
      %v507 = vunpack.c.l.b16 %v475
      %v508 = vunpack.c.l.b16 %v476
      %v509 = vpack.c.b16 %v502, %v501
      %v510 = vpack.c.b16 %v504, %v503
      %v511 = vpack.c.b16 %v506, %v505
      %v512 = vpack.c.b16 %v508, %v507
      %v533 = vunpack.c.l.b16 %v477
      %v534 = vunpack.c.h.b16 %v477
      %v535 = vunpack.c.l.b16 %v478
      %v536 = vunpack.c.h.b16 %v478
      %v537 = vunpack.c.l.b16 %v479
      %v538 = vunpack.c.h.b16 %v479
      %v539 = vunpack.c.l.b16 %v480
      %v540 = vunpack.c.h.b16 %v480
      %v541 = vunpack.c.l.b16 %v481
      %v542 = vunpack.c.h.b16 %v481
      %v543 = vunpack.c.l.b16 %v482
      %v544 = vunpack.c.h.b16 %v482
      %v545 = vunpack.c.l.b16 %v483
      %v546 = vunpack.c.h.b16 %v483
      %v547 = vunpack.c.l.b16 %v484
      %v548 = vunpack.c.h.b16 %v484
      %v549 = vunpack.c.l.b16 %v485
      %v550 = vunpack.c.h.b16 %v485
      %v551 = vunpack.c.l.b16 %v486
      %v552 = vunpack.c.h.b16 %v486
      %v553 = vunpack.c.l.b16 %v487
      %v554 = vunpack.c.h.b16 %v487
      %v555 = vunpack.c.l.b16 %v488
      %v556 = vunpack.c.h.b16 %v488
      %v557 = vunpack.c.l.b16 %v489
      %v558 = vunpack.c.h.b16 %v489
      %v559 = vunpack.c.l.b16 %v490
      %v560 = vunpack.c.h.b16 %v490
      %v561 = vunpack.c.l.b16 %v491
      %v562 = vunpack.c.h.b16 %v491
      %v563 = vunpack.c.l.b16 %v492
      %v564 = vunpack.c.h.b16 %v492
      %v565 = vpack.c.b16 %v535, %v533
      %v566 = vpack.c.b16 %v536, %v534
      %v567 = vpack.c.b16 %v539, %v537
      %v568 = vpack.c.b16 %v540, %v538
      %v569 = vpack.c.b16 %v543, %v541
      %v570 = vpack.c.b16 %v544, %v542
      %v571 = vpack.c.b16 %v547, %v545
      %v572 = vpack.c.b16 %v548, %v546
      %v573 = vpack.c.b16 %v551, %v549
      %v574 = vpack.c.b16 %v552, %v550
      %v575 = vpack.c.b16 %v555, %v553
      %v576 = vpack.c.b16 %v556, %v554
      %v577 = vpack.c.b16 %v559, %v557
      %v578 = vpack.c.b16 %v560, %v558
      %v579 = vpack.c.b16 %v563, %v561
      %v580 = vpack.c.b16 %v564, %v562
      %597 = vmatprep.subr.bf16.mxu0 %v566
      %598 = vmatpush1.bf16.msra.mxu0 %v565
      %599 = vmatprep.subr.bf16.mxu0 %v568
      %600 = vmatpush1.bf16.msra.mxu0 %v567
      %601 = vmatprep.subr.bf16.mxu0 %v570
      %602 = vmatpush1.bf16.msra.mxu0 %v569
      %603 = vmatprep.subr.bf16.mxu0 %v572
      %604 = vmatpush1.bf16.msra.mxu0 %v571
      %605 = vmatprep.subr.bf16.mxu0 %v574
      %606 = vmatpush1.bf16.msra.mxu0 %v573
      %607 = vmatprep.subr.bf16.mxu0 %v576
      %608 = vmatpush1.bf16.msra.mxu0 %v575
      %609 = vmatprep.subr.bf16.mxu0 %v578
      %610 = vmatpush1.bf16.msra.mxu0 %v577
      %611 = vmatprep.subr.bf16.mxu0 %v580
      %612 = vmatpush1.bf16.msra.mxu0 %v579
      %613 = vmatprep.subr.bf16.mxu0 0
      %614 = vmatpush1.bf16.msra.mxu0 0
      %615 = vmatprep.subr.bf16.mxu0 0
      %616 = vmatpush1.bf16.msra.mxu0 0
      %617 = vmatprep.subr.bf16.mxu0 0
      %618 = vmatpush1.bf16.msra.mxu0 0
      %619 = vmatprep.subr.bf16.mxu0 0
      %620 = vmatpush1.bf16.msra.mxu0 0
      %621 = vmatprep.subr.bf16.mxu0 0
      %622 = vmatpush1.bf16.msra.mxu0 0
      %623 = vmatprep.subr.bf16.mxu0 0
      %624 = vmatpush1.bf16.msra.mxu0 0
      %625 = vmatprep.subr.bf16.mxu0 0
      %626 = vmatpush1.bf16.msra.mxu0 0
      %627 = vmatprep.subr.bf16.mxu0 0
      %628 = vmatpush1.bf16.msra.mxu0 0
      %629 = vmatprep.mubr.bf16.mxu0 0
      %630 = vmatmul.mubr.bf16.gmra.mrb[0].mxu0 %v509
      %v631 = vpop.f32.mrb[0].mxu0
      %v632 = vadd.f32 0.0, %v631
      %v633 = vpop.f32.mrb[0].mxu0
      %v634 = vadd.f32 0.0, %v633
      %v635 = vpop.f32.mrb[0].mxu0
      %v636 = vadd.f32 0.0, %v635
      %v637 = vpop.f32.mrb[0].mxu0
      %v638 = vadd.f32 0.0, %v637
      %639 = vmatprep.mubr.bf16.mxu0 0
      %640 = vmatmul.mubr.bf16.gmra.mrb[0].mxu0 %v510
      %v641 = vpop.f32.mrb[0].mxu0
      %v642 = vadd.f32 0.0, %v641
      %v643 = vpop.f32.mrb[0].mxu0
      %v644 = vadd.f32 0.0, %v643
      %v645 = vpop.f32.mrb[0].mxu0
      %v646 = vadd.f32 0.0, %v645
      %v647 = vpop.f32.mrb[0].mxu0
      %v648 = vadd.f32 0.0, %v647
      %649 = vmatprep.mubr.bf16.mxu0 0
      %650 = vmatmul.mubr.bf16.gmra.mrb[0].mxu0 %v511
      %v651 = vpop.f32.mrb[0].mxu0
      %v652 = vadd.f32 0.0, %v651
      %v653 = vpop.f32.mrb[0].mxu0
      %v654 = vadd.f32 0.0, %v653
      %v655 = vpop.f32.mrb[0].mxu0
      %v656 = vadd.f32 0.0, %v655
      %v657 = vpop.f32.mrb[0].mxu0
      %v658 = vadd.f32 0.0, %v657
      %659 = vmatprep.mubr.bf16.mxu0 0
      %660 = vmatmul.mubr.bf16.gmra.mrb[0].mxu0 %v512
      %v661 = vpop.f32.mrb[0].mxu0
      %v662 = vadd.f32 0.0, %v661
      %v663 = vpop.f32.mrb[0].mxu0
      %v664 = vadd.f32 0.0, %v663
      %v665 = vpop.f32.mrb[0].mxu0
      %v666 = vadd.f32 0.0, %v665
      %v667 = vpop.f32.mrb[0].mxu0
      %v668 = vadd.f32 0.0, %v667
      %669 = vdwg.mxu0
      %v670 = vld [vmem:[%s2] sm:$0x3]
      %v672 = vlaneseq
      %v673 = vshrl.u32 %v672, 7
      %v674 = vsub.s32 0, %v673
      %v675 = vrot.slane %v670, %v674
      %v676 = vlaneseq
      %v677 = vshrl.u32 %v676, 7
      %v678 = vsub.s32 1, %v677
      %v679 = vrot.slane %v670, %v678
      %v682 = vmul.f32 %v632, %v675
      %v683 = vmul.f32 %v634, %v679
      %v684 = vmul.f32 %v636, %v675
      %v685 = vmul.f32 %v638, %v679
      %v686 = vmul.f32 %v642, %v675
      %v687 = vmul.f32 %v644, %v679
      %v688 = vmul.f32 %v646, %v675
      %v689 = vmul.f32 %v648, %v679
      %v690 = vmul.f32 %v652, %v675
      %v691 = vmul.f32 %v654, %v679
      %v692 = vmul.f32 %v656, %v675
      %v693 = vmul.f32 %v658, %v679
      %v694 = vmul.f32 %v662, %v675
      %v695 = vmul.f32 %v664, %v679
      %v696 = vmul.f32 %v666, %v675
      %v697 = vmul.f32 %v668, %v679
      %v698 = vld [vmem:[%s3] sm:$0x3]
      %v700 = vlaneseq
      %v701 = vshrl.u32 %v700, 7
      %v702 = vsub.s32 0, %v701
      %v703 = vrot.slane %v698, %v702
      %v704 = vlaneseq
      %v705 = vshrl.u32 %v704, 7
      %v706 = vsub.s32 1, %v705
      %v707 = vrot.slane %v698, %v706
      %v710 = vadd.f32 %v682, %v703
      %v711 = vadd.f32 %v683, %v707
      %v712 = vadd.f32 %v684, %v703
      %v713 = vadd.f32 %v685, %v707
      %v714 = vadd.f32 %v686, %v703
      %v715 = vadd.f32 %v687, %v707
      %v716 = vadd.f32 %v688, %v703
      %v717 = vadd.f32 %v689, %v707
      %v718 = vadd.f32 %v690, %v703
      %v719 = vadd.f32 %v691, %v707
      %v720 = vadd.f32 %v692, %v703
      %v721 = vadd.f32 %v693, %v707
      %v722 = vadd.f32 %v694, %v703
      %v723 = vadd.f32 %v695, %v707
      %v724 = vadd.f32 %v696, %v703
      %v725 = vadd.f32 %v697, %v707
      %v726 = vxor.u32 %v710, 2147483648
      %v727 = vxor.u32 %v711, 2147483648
      %v728 = vxor.u32 %v712, 2147483648
      %v729 = vxor.u32 %v713, 2147483648
      %v730 = vxor.u32 %v714, 2147483648
      %v731 = vxor.u32 %v715, 2147483648
      %v732 = vxor.u32 %v716, 2147483648
      %v733 = vxor.u32 %v717, 2147483648
      %v734 = vxor.u32 %v718, 2147483648
      %v735 = vxor.u32 %v719, 2147483648
      %v736 = vxor.u32 %v720, 2147483648
      %v737 = vxor.u32 %v721, 2147483648
      %v738 = vxor.u32 %v722, 2147483648
      %v739 = vxor.u32 %v723, 2147483648
      %v740 = vxor.u32 %v724, 2147483648
      %v741 = vxor.u32 %v725, 2147483648
      %v742 = vmul.f32 %v726, 1.442695
      %v743 = vpow.pop %v742
      %v744 = vmul.f32 %v727, 1.442695
      %v745 = vpow.pop %v744
      %v746 = vmul.f32 %v728, 1.442695
      %v747 = vpow.pop %v746
      %v748 = vmul.f32 %v729, 1.442695
      %v749 = vpow.pop %v748
      %v750 = vmul.f32 %v730, 1.442695
      %v751 = vpow.pop %v750
      %v752 = vmul.f32 %v731, 1.442695
      %v753 = vpow.pop %v752
      %v754 = vmul.f32 %v732, 1.442695
      %v755 = vpow.pop %v754
      %v756 = vmul.f32 %v733, 1.442695
      %v757 = vpow.pop %v756
      %v758 = vmul.f32 %v734, 1.442695
      %v759 = vpow.pop %v758
      %v760 = vmul.f32 %v735, 1.442695
      %v761 = vpow.pop %v760
      %v762 = vmul.f32 %v736, 1.442695
      %v763 = vpow.pop %v762
      %v764 = vmul.f32 %v737, 1.442695
      %v765 = vpow.pop %v764
      %v766 = vmul.f32 %v738, 1.442695
      %v767 = vpow.pop %v766
      %v768 = vmul.f32 %v739, 1.442695
      %v769 = vpow.pop %v768
      %v770 = vmul.f32 %v740, 1.442695
      %v771 = vpow.pop %v770
      %v772 = vmul.f32 %v741, 1.442695
      %v773 = vpow.pop %v772
      %v774 = vadd.f32 %v743, 1.0
      %v775 = vadd.f32 %v745, 1.0
      %v776 = vadd.f32 %v747, 1.0
      %v777 = vadd.f32 %v749, 1.0
      %v778 = vadd.f32 %v751, 1.0
      %v779 = vadd.f32 %v753, 1.0
      %v780 = vadd.f32 %v755, 1.0
      %v781 = vadd.f32 %v757, 1.0
      %v782 = vadd.f32 %v759, 1.0
      %v783 = vadd.f32 %v761, 1.0
      %v784 = vadd.f32 %v763, 1.0
      %v785 = vadd.f32 %v765, 1.0
      %v786 = vadd.f32 %v767, 1.0
      %v787 = vadd.f32 %v769, 1.0
      %v788 = vadd.f32 %v771, 1.0
      %v789 = vadd.f32 %v773, 1.0
      %v790 = vrcp.pop %v774
      %v791 = vmul.f32 1.0, %v790
      %v792 = vrcp.pop %v775
      %v793 = vmul.f32 1.0, %v792
      %v794 = vrcp.pop %v776
      %v795 = vmul.f32 1.0, %v794
      %v796 = vrcp.pop %v777
      %v797 = vmul.f32 1.0, %v796
      %v798 = vrcp.pop %v778
      %v799 = vmul.f32 1.0, %v798
      %v800 = vrcp.pop %v779
      %v801 = vmul.f32 1.0, %v800
      %v802 = vrcp.pop %v780
      %v803 = vmul.f32 1.0, %v802
      %v804 = vrcp.pop %v781
      %v805 = vmul.f32 1.0, %v804
      %v806 = vrcp.pop %v782
      %v807 = vmul.f32 1.0, %v806
      %v808 = vrcp.pop %v783
      %v809 = vmul.f32 1.0, %v808
      %v810 = vrcp.pop %v784
      %v811 = vmul.f32 1.0, %v810
      %v812 = vrcp.pop %v785
      %v813 = vmul.f32 1.0, %v812
      %v814 = vrcp.pop %v786
      %v815 = vmul.f32 1.0, %v814
      %v816 = vrcp.pop %v787
      %v817 = vmul.f32 1.0, %v816
      %v818 = vrcp.pop %v788
      %v819 = vmul.f32 1.0, %v818
      %v820 = vrcp.pop %v789
      %v821 = vmul.f32 1.0, %v820
      %v822 = vmul.f32 %v710, %v791
      %v823 = vmul.f32 %v711, %v793
      %v824 = vmul.f32 %v712, %v795
      %v825 = vmul.f32 %v713, %v797
      %v826 = vmul.f32 %v714, %v799
      %v827 = vmul.f32 %v715, %v801
      %v828 = vmul.f32 %v716, %v803
      %v829 = vmul.f32 %v717, %v805
      %v830 = vmul.f32 %v718, %v807
      %v831 = vmul.f32 %v719, %v809
      %v832 = vmul.f32 %v720, %v811
      %v833 = vmul.f32 %v721, %v813
      %v834 = vmul.f32 %v722, %v815
      %v835 = vmul.f32 %v723, %v817
      %v836 = vmul.f32 %v724, %v819
      %v837 = vmul.f32 %v725, %v821
      %838 = vst [vmem:[#allocation2] sm:$0xff] 0.0
      %839 = vst [vmem:[#allocation2 + $0x8] sm:$0xff] 0.0
      %840 = vst [vmem:[#allocation2 + $0x10] sm:$0x3] 0.0
      %841 = vst [vmem:[#allocation2 + $0x18] sm:$0x3] 0.0
      %842 = vst [vmem:[#allocation2 + $0x20] sm:$0xff] 0.0
      %843 = vst [vmem:[#allocation2 + $0x28] sm:$0xff] 0.0
      %844 = vst [vmem:[#allocation2 + $0x30] sm:$0x3] 0.0
      %845 = vst [vmem:[#allocation2 + $0x38] sm:$0x3] 0.0
      %846 = vst [vmem:[#allocation2 + $0x40] sm:$0xff] 0.0
      %847 = vst [vmem:[#allocation2 + $0x48] sm:$0xff] 0.0
      %848 = vst [vmem:[#allocation2 + $0x50] sm:$0x3] 0.0
      %849 = vst [vmem:[#allocation2 + $0x58] sm:$0x3] 0.0
      %850 = vst [vmem:[#allocation2 + $0x60] sm:$0xff] 0.0
      %851 = vst [vmem:[#allocation2 + $0x68] sm:$0xff] 0.0
      %852 = vst [vmem:[#allocation2 + $0x70] sm:$0x3] 0.0
      %853 = vst [vmem:[#allocation2 + $0x78] sm:$0x3] 0.0
      %854 = vst [vmem:[#allocation2 + $0x80] sm:$0xff] 0.0
      %855 = vst [vmem:[#allocation2 + $0x88] sm:$0xff] 0.0
      %856 = vst [vmem:[#allocation2 + $0x90] sm:$0x3] 0.0
      %857 = vst [vmem:[#allocation2 + $0x98] sm:$0x3] 0.0
      %858 = vst [vmem:[#allocation2 + $0xa0] sm:$0xff] 0.0
      %859 = vst [vmem:[#allocation2 + $0xa8] sm:$0xff] 0.0
      %860 = vst [vmem:[#allocation2 + $0xb0] sm:$0x3] 0.0
      %861 = vst [vmem:[#allocation2 + $0xb8] sm:$0x3] 0.0
      %862 = vst [vmem:[#allocation2 + $0xc0] sm:$0xff] 0.0
      %863 = vst [vmem:[#allocation2 + $0xc8] sm:$0xff] 0.0
      %864 = vst [vmem:[#allocation2 + $0xd0] sm:$0x3] 0.0
      %865 = vst [vmem:[#allocation2 + $0xd8] sm:$0x3] 0.0
      %866 = vst [vmem:[#allocation2 + $0xe0] sm:$0xff] 0.0
      %867 = vst [vmem:[#allocation2 + $0xe8] sm:$0xff] 0.0
      %868 = vst [vmem:[#allocation2 + $0xf0] sm:$0x3] 0.0
      %869 = vst [vmem:[#allocation2 + $0xf8] sm:$0x3] 0.0
      %870 = vst [vmem:[#allocation2 + $0x100] sm:$0xff] 0.0
      %871 = vst [vmem:[#allocation2 + $0x108] sm:$0xff] 0.0
      %872 = vst [vmem:[#allocation2 + $0x110] sm:$0x3] 0.0
      %873 = vst [vmem:[#allocation2 + $0x118] sm:$0x3] 0.0
      %874 = vst [vmem:[#allocation2 + $0x120] sm:$0xff] 0.0
      %875 = vst [vmem:[#allocation2 + $0x128] sm:$0xff] 0.0
      %876 = vst [vmem:[#allocation2 + $0x130] sm:$0x3] 0.0
      %877 = vst [vmem:[#allocation2 + $0x138] sm:$0x3] 0.0
      %v894 = vrot.slane %v822, 7
      %v895 = vrot.slane %v823, 7
      %v896 = vrot.slane %v824, 7
      %v897 = vrot.slane %v825, 7
      %v898 = vrot.slane %v826, 7
      %v899 = vrot.slane %v827, 7
      %v900 = vrot.slane %v828, 7
      %v901 = vrot.slane %v829, 7
      %v902 = vrot.slane %v830, 7
      %v903 = vrot.slane %v831, 7
      %v904 = vrot.slane %v832, 7
      %v905 = vrot.slane %v833, 7
      %v906 = vrot.slane %v834, 7
      %v907 = vrot.slane %v835, 7
      %v908 = vrot.slane %v836, 7
      %v909 = vrot.slane %v837, 7
      %s926 = scalar_lea.vmem [#allocation2], 32
      %927 = vst [vmem:[%s926] sm:$0xfe] %v894
      %928 = vst [vmem:[%s926 + $0x8] sm:$0xfe] %v895
      %929 = vst [vmem:[%s926 + $0x10] sm:$0x1] %v894
      %930 = vst [vmem:[%s926 + $0x18] sm:$0x1] %v895
      %931 = vst [vmem:[%s926 + $0x20] sm:$0xfe] %v896
      %932 = vst [vmem:[%s926 + $0x28] sm:$0xfe] %v897
      %933 = vst [vmem:[%s926 + $0x30] sm:$0x1] %v896
      %934 = vst [vmem:[%s926 + $0x38] sm:$0x1] %v897
      %935 = vst [vmem:[%s926 + $0x40] sm:$0xfe] %v898
      %936 = vst [vmem:[%s926 + $0x48] sm:$0xfe] %v899
      %937 = vst [vmem:[%s926 + $0x50] sm:$0x1] %v898
      %938 = vst [vmem:[%s926 + $0x58] sm:$0x1] %v899
      %939 = vst [vmem:[%s926 + $0x60] sm:$0xfe] %v900
      %940 = vst [vmem:[%s926 + $0x68] sm:$0xfe] %v901
      %941 = vst [vmem:[%s926 + $0x70] sm:$0x1] %v900
      %942 = vst [vmem:[%s926 + $0x78] sm:$0x1] %v901
      %943 = vst [vmem:[%s926 + $0x80] sm:$0xfe] %v902
      %944 = vst [vmem:[%s926 + $0x88] sm:$0xfe] %v903
      %945 = vst [vmem:[%s926 + $0x90] sm:$0x1] %v902
      %946 = vst [vmem:[%s926 + $0x98] sm:$0x1] %v903
      %947 = vst [vmem:[%s926 + $0xa0] sm:$0xfe] %v904
      %948 = vst [vmem:[%s926 + $0xa8] sm:$0xfe] %v905
      %949 = vst [vmem:[%s926 + $0xb0] sm:$0x1] %v904
      %950 = vst [vmem:[%s926 + $0xb8] sm:$0x1] %v905
      %951 = vst [vmem:[%s926 + $0xc0] sm:$0xfe] %v906
      %952 = vst [vmem:[%s926 + $0xc8] sm:$0xfe] %v907
      %953 = vst [vmem:[%s926 + $0xd0] sm:$0x1] %v906
      %954 = vst [vmem:[%s926 + $0xd8] sm:$0x1] %v907
      %955 = vst [vmem:[%s926 + $0xe0] sm:$0xfe] %v908
      %956 = vst [vmem:[%s926 + $0xe8] sm:$0xfe] %v909
      %957 = vst [vmem:[%s926 + $0xf0] sm:$0x1] %v908
      %958 = vst [vmem:[%s926 + $0xf8] sm:$0x1] %v909
      %v959 = vld [vmem:[#allocation2] sm:$0xff]
      %v960 = vld [vmem:[#allocation2 + $0x8] sm:$0xff]
      %v961 = vld [vmem:[#allocation2 + $0x20] sm:$0xff]
      %v962 = vld [vmem:[#allocation2 + $0x28] sm:$0xff]
      %v963 = vld [vmem:[#allocation2 + $0x40] sm:$0xff]
      %v964 = vld [vmem:[#allocation2 + $0x48] sm:$0xff]
      %v965 = vld [vmem:[#allocation2 + $0x60] sm:$0xff]
      %v966 = vld [vmem:[#allocation2 + $0x68] sm:$0xff]
      %v967 = vld [vmem:[#allocation2 + $0x80] sm:$0xff]
      %v968 = vld [vmem:[#allocation2 + $0x88] sm:$0xff]
      %v969 = vld [vmem:[#allocation2 + $0xa0] sm:$0xff]
      %v970 = vld [vmem:[#allocation2 + $0xa8] sm:$0xff]
      %v971 = vld [vmem:[#allocation2 + $0xc0] sm:$0xff]
      %v972 = vld [vmem:[#allocation2 + $0xc8] sm:$0xff]
      %v973 = vld [vmem:[#allocation2 + $0xe0] sm:$0xff]
      %v974 = vld [vmem:[#allocation2 + $0xe8] sm:$0xff]
      %v975 = vld [vmem:[%s4] sm:$0x3]
      %v977 = vlaneseq
      %v978 = vshrl.u32 %v977, 7
      %v979 = vsub.s32 0, %v978
      %v980 = vrot.slane %v975, %v979
      %v981 = vlaneseq
      %v982 = vshrl.u32 %v981, 7
      %v983 = vsub.s32 1, %v982
      %v984 = vrot.slane %v975, %v983
      %v987 = vmul.f32 %v959, %v980
      %v988 = vmul.f32 %v960, %v984
      %v989 = vmul.f32 %v961, %v980
      %v990 = vmul.f32 %v962, %v984
      %v991 = vmul.f32 %v963, %v980
      %v992 = vmul.f32 %v964, %v984
      %v993 = vmul.f32 %v965, %v980
      %v994 = vmul.f32 %v966, %v984
      %v995 = vmul.f32 %v967, %v980
      %v996 = vmul.f32 %v968, %v984
      %v997 = vmul.f32 %v969, %v980
      %v998 = vmul.f32 %v970, %v984
      %v999 = vmul.f32 %v971, %v980
      %v1000 = vmul.f32 %v972, %v984
      %v1001 = vmul.f32 %v973, %v980
      %v1002 = vmul.f32 %v974, %v984
      %v1003 = vld [vmem:[#allocation2] sm:$0xfe]
      %v1004 = vld [vmem:[#allocation2 + $0x8] sm:$0xfe]
      %v1005 = vld [vmem:[#allocation2 + $0x10] sm:$0x1]
      %v1006 = vld [vmem:[#allocation2 + $0x18] sm:$0x1]
      %v1007 = vld [vmem:[#allocation2 + $0x20] sm:$0xfe]
      %v1008 = vld [vmem:[#allocation2 + $0x28] sm:$0xfe]
      %v1009 = vld [vmem:[#allocation2 + $0x30] sm:$0x1]
      %v1010 = vld [vmem:[#allocation2 + $0x38] sm:$0x1]
      %v1011 = vld [vmem:[#allocation2 + $0x40] sm:$0xfe]
      %v1012 = vld [vmem:[#allocation2 + $0x48] sm:$0xfe]
      %v1013 = vld [vmem:[#allocation2 + $0x50] sm:$0x1]
      %v1014 = vld [vmem:[#allocation2 + $0x58] sm:$0x1]
      %v1015 = vld [vmem:[#allocation2 + $0x60] sm:$0xfe]
      %v1016 = vld [vmem:[#allocation2 + $0x68] sm:$0xfe]
      %v1017 = vld [vmem:[#allocation2 + $0x70] sm:$0x1]
      %v1018 = vld [vmem:[#allocation2 + $0x78] sm:$0x1]
      %v1019 = vld [vmem:[#allocation2 + $0x80] sm:$0xfe]
      %v1020 = vld [vmem:[#allocation2 + $0x88] sm:$0xfe]
      %v1021 = vld [vmem:[#allocation2 + $0x90] sm:$0x1]
      %v1022 = vld [vmem:[#allocation2 + $0x98] sm:$0x1]
      %v1023 = vld [vmem:[#allocation2 + $0xa0] sm:$0xfe]
      %v1024 = vld [vmem:[#allocation2 + $0xa8] sm:$0xfe]
      %v1025 = vld [vmem:[#allocation2 + $0xb0] sm:$0x1]
      %v1026 = vld [vmem:[#allocation2 + $0xb8] sm:$0x1]
      %v1027 = vld [vmem:[#allocation2 + $0xc0] sm:$0xfe]
      %v1028 = vld [vmem:[#allocation2 + $0xc8] sm:$0xfe]
      %v1029 = vld [vmem:[#allocation2 + $0xd0] sm:$0x1]
      %v1030 = vld [vmem:[#allocation2 + $0xd8] sm:$0x1]
      %v1031 = vld [vmem:[#allocation2 + $0xe0] sm:$0xfe]
      %v1032 = vld [vmem:[#allocation2 + $0xe8] sm:$0xfe]
      %v1033 = vld [vmem:[#allocation2 + $0xf0] sm:$0x1]
      %v1034 = vld [vmem:[#allocation2 + $0xf8] sm:$0x1]
      %s1035 = scalar_lea.vmem %s4, 2
      %v1036 = vld [vmem:[%s1035] sm:$0x3]
      %v1038 = vlaneseq
      %v1039 = vshrl.u32 %v1038, 7
      %v1040 = vsub.s32 0, %v1039
      %v1041 = vrot.slane %v1036, %v1040
      %v1042 = vlaneseq
      %v1043 = vshrl.u32 %v1042, 7
      %v1044 = vsub.s32 1, %v1043
      %v1045 = vrot.slane %v1036, %v1044
      %v1048 = vmul.f32 %v1003, %v1041
      %v1049 = vmul.f32 %v1004, %v1045
      %v1050 = vmul.f32 %v1005, %v1041
      %v1051 = vmul.f32 %v1006, %v1045
      %v1052 = vmul.f32 %v1007, %v1041
      %v1053 = vmul.f32 %v1008, %v1045
      %v1054 = vmul.f32 %v1009, %v1041
      %v1055 = vmul.f32 %v1010, %v1045
      %v1056 = vmul.f32 %v1011, %v1041
      %v1057 = vmul.f32 %v1012, %v1045
      %v1058 = vmul.f32 %v1013, %v1041
      %v1059 = vmul.f32 %v1014, %v1045
      %v1060 = vmul.f32 %v1015, %v1041
      %v1061 = vmul.f32 %v1016, %v1045
      %v1062 = vmul.f32 %v1017, %v1041
      %v1063 = vmul.f32 %v1018, %v1045
      %v1064 = vmul.f32 %v1019, %v1041
      %v1065 = vmul.f32 %v1020, %v1045
      %v1066 = vmul.f32 %v1021, %v1041
      %v1067 = vmul.f32 %v1022, %v1045
      %v1068 = vmul.f32 %v1023, %v1041
      %v1069 = vmul.f32 %v1024, %v1045
      %v1070 = vmul.f32 %v1025, %v1041
      %v1071 = vmul.f32 %v1026, %v1045
      %v1072 = vmul.f32 %v1027, %v1041
      %v1073 = vmul.f32 %v1028, %v1045
      %v1074 = vmul.f32 %v1029, %v1041
      %v1075 = vmul.f32 %v1030, %v1045
      %v1076 = vmul.f32 %v1031, %v1041
      %v1077 = vmul.f32 %v1032, %v1045
      %v1078 = vmul.f32 %v1033, %v1041
      %v1079 = vmul.f32 %v1034, %v1045
      %vm1112 = vcmask 1046528
      %v1113 = vrot.slane %v1048, 1
      %v1114 = vrot.slane %v1050, 1
      %v1115 = vsel %vm1112, %v1113, %v1114
      %v1116 = vrot.slane %v1049, 1
      %v1117 = vrot.slane %v1051, 1
      %v1118 = vsel %vm1112, %v1116, %v1117
      %v1119 = vrot.slane %v1052, 1
      %v1120 = vrot.slane %v1054, 1
      %v1121 = vsel %vm1112, %v1119, %v1120
      %v1122 = vrot.slane %v1053, 1
      %v1123 = vrot.slane %v1055, 1
      %v1124 = vsel %vm1112, %v1122, %v1123
      %v1125 = vrot.slane %v1056, 1
      %v1126 = vrot.slane %v1058, 1
      %v1127 = vsel %vm1112, %v1125, %v1126
      %v1128 = vrot.slane %v1057, 1
      %v1129 = vrot.slane %v1059, 1
      %v1130 = vsel %vm1112, %v1128, %v1129
      %v1131 = vrot.slane %v1060, 1
      %v1132 = vrot.slane %v1062, 1
      %v1133 = vsel %vm1112, %v1131, %v1132
      %v1134 = vrot.slane %v1061, 1
      %v1135 = vrot.slane %v1063, 1
      %v1136 = vsel %vm1112, %v1134, %v1135
      %v1137 = vrot.slane %v1064, 1
      %v1138 = vrot.slane %v1066, 1
      %v1139 = vsel %vm1112, %v1137, %v1138
      %v1140 = vrot.slane %v1065, 1
      %v1141 = vrot.slane %v1067, 1
      %v1142 = vsel %vm1112, %v1140, %v1141
      %v1143 = vrot.slane %v1068, 1
      %v1144 = vrot.slane %v1070, 1
      %v1145 = vsel %vm1112, %v1143, %v1144
      %v1146 = vrot.slane %v1069, 1
      %v1147 = vrot.slane %v1071, 1
      %v1148 = vsel %vm1112, %v1146, %v1147
      %v1149 = vrot.slane %v1072, 1
      %v1150 = vrot.slane %v1074, 1
      %v1151 = vsel %vm1112, %v1149, %v1150
      %v1152 = vrot.slane %v1073, 1
      %v1153 = vrot.slane %v1075, 1
      %v1154 = vsel %vm1112, %v1152, %v1153
      %v1155 = vrot.slane %v1076, 1
      %v1156 = vrot.slane %v1078, 1
      %v1157 = vsel %vm1112, %v1155, %v1156
      %v1158 = vrot.slane %v1077, 1
      %v1159 = vrot.slane %v1079, 1
      %v1160 = vsel %vm1112, %v1158, %v1159
      %v1177 = vadd.f32 %v987, %v1115
      %v1178 = vadd.f32 %v988, %v1118
      %v1179 = vadd.f32 %v989, %v1121
      %v1180 = vadd.f32 %v990, %v1124
      %v1181 = vadd.f32 %v991, %v1127
      %v1182 = vadd.f32 %v992, %v1130
      %v1183 = vadd.f32 %v993, %v1133
      %v1184 = vadd.f32 %v994, %v1136
      %v1185 = vadd.f32 %v995, %v1139
      %v1186 = vadd.f32 %v996, %v1142
      %v1187 = vadd.f32 %v997, %v1145
      %v1188 = vadd.f32 %v998, %v1148
      %v1189 = vadd.f32 %v999, %v1151
      %v1190 = vadd.f32 %v1000, %v1154
      %v1191 = vadd.f32 %v1001, %v1157
      %v1192 = vadd.f32 %v1002, %v1160
      %v1193 = vld [vmem:[#allocation2] sm:$0xfc]
      %v1194 = vld [vmem:[#allocation2 + $0x8] sm:$0xfc]
      %v1195 = vld [vmem:[#allocation2 + $0x10] sm:$0x3]
      %v1196 = vld [vmem:[#allocation2 + $0x18] sm:$0x3]
      %v1197 = vld [vmem:[#allocation2 + $0x20] sm:$0xfc]
      %v1198 = vld [vmem:[#allocation2 + $0x28] sm:$0xfc]
      %v1199 = vld [vmem:[#allocation2 + $0x30] sm:$0x3]
      %v1200 = vld [vmem:[#allocation2 + $0x38] sm:$0x3]
      %v1201 = vld [vmem:[#allocation2 + $0x40] sm:$0xfc]
      %v1202 = vld [vmem:[#allocation2 + $0x48] sm:$0xfc]
      %v1203 = vld [vmem:[#allocation2 + $0x50] sm:$0x3]
      %v1204 = vld [vmem:[#allocation2 + $0x58] sm:$0x3]
      %v1205 = vld [vmem:[#allocation2 + $0x60] sm:$0xfc]
      %v1206 = vld [vmem:[#allocation2 + $0x68] sm:$0xfc]
      %v1207 = vld [vmem:[#allocation2 + $0x70] sm:$0x3]
      %v1208 = vld [vmem:[#allocation2 + $0x78] sm:$0x3]
      %v1209 = vld [vmem:[#allocation2 + $0x80] sm:$0xfc]
      %v1210 = vld [vmem:[#allocation2 + $0x88] sm:$0xfc]
      %v1211 = vld [vmem:[#allocation2 + $0x90] sm:$0x3]
      %v1212 = vld [vmem:[#allocation2 + $0x98] sm:$0x3]
      %v1213 = vld [vmem:[#allocation2 + $0xa0] sm:$0xfc]
      %v1214 = vld [vmem:[#allocation2 + $0xa8] sm:$0xfc]
      %v1215 = vld [vmem:[#allocation2 + $0xb0] sm:$0x3]
      %v1216 = vld [vmem:[#allocation2 + $0xb8] sm:$0x3]
      %v1217 = vld [vmem:[#allocation2 + $0xc0] sm:$0xfc]
      %v1218 = vld [vmem:[#allocation2 + $0xc8] sm:$0xfc]
      %v1219 = vld [vmem:[#allocation2 + $0xd0] sm:$0x3]
      %v1220 = vld [vmem:[#allocation2 + $0xd8] sm:$0x3]
      %v1221 = vld [vmem:[#allocation2 + $0xe0] sm:$0xfc]
      %v1222 = vld [vmem:[#allocation2 + $0xe8] sm:$0xfc]
      %v1223 = vld [vmem:[#allocation2 + $0xf0] sm:$0x3]
      %v1224 = vld [vmem:[#allocation2 + $0xf8] sm:$0x3]
      %s1225 = scalar_lea.vmem %s4, 4
      %v1226 = vld [vmem:[%s1225] sm:$0x3]
      %v1228 = vlaneseq
      %v1229 = vshrl.u32 %v1228, 7
      %v1230 = vsub.s32 0, %v1229
      %v1231 = vrot.slane %v1226, %v1230
      %v1232 = vlaneseq
      %v1233 = vshrl.u32 %v1232, 7
      %v1234 = vsub.s32 1, %v1233
      %v1235 = vrot.slane %v1226, %v1234
      %v1238 = vmul.f32 %v1193, %v1231
      %v1239 = vmul.f32 %v1194, %v1235
      %v1240 = vmul.f32 %v1195, %v1231
      %v1241 = vmul.f32 %v1196, %v1235
      %v1242 = vmul.f32 %v1197, %v1231
      %v1243 = vmul.f32 %v1198, %v1235
      %v1244 = vmul.f32 %v1199, %v1231
      %v1245 = vmul.f32 %v1200, %v1235
      %v1246 = vmul.f32 %v1201, %v1231
      %v1247 = vmul.f32 %v1202, %v1235
      %v1248 = vmul.f32 %v1203, %v1231
      %v1249 = vmul.f32 %v1204, %v1235
      %v1250 = vmul.f32 %v1205, %v1231
      %v1251 = vmul.f32 %v1206, %v1235
      %v1252 = vmul.f32 %v1207, %v1231
      %v1253 = vmul.f32 %v1208, %v1235
      %v1254 = vmul.f32 %v1209, %v1231
      %v1255 = vmul.f32 %v1210, %v1235
      %v1256 = vmul.f32 %v1211, %v1231
      %v1257 = vmul.f32 %v1212, %v1235
      %v1258 = vmul.f32 %v1213, %v1231
      %v1259 = vmul.f32 %v1214, %v1235
      %v1260 = vmul.f32 %v1215, %v1231
      %v1261 = vmul.f32 %v1216, %v1235
      %v1262 = vmul.f32 %v1217, %v1231
      %v1263 = vmul.f32 %v1218, %v1235
      %v1264 = vmul.f32 %v1219, %v1231
      %v1265 = vmul.f32 %v1220, %v1235
      %v1266 = vmul.f32 %v1221, %v1231
      %v1267 = vmul.f32 %v1222, %v1235
      %v1268 = vmul.f32 %v1223, %v1231
      %v1269 = vmul.f32 %v1224, %v1235
      %vm1302 = vcmask 1045504
      %v1303 = vrot.slane %v1238, 2
      %v1304 = vrot.slane %v1240, 2
      %v1305 = vsel %vm1302, %v1303, %v1304
      %v1306 = vrot.slane %v1239, 2
      %v1307 = vrot.slane %v1241, 2
      %v1308 = vsel %vm1302, %v1306, %v1307
      %v1309 = vrot.slane %v1242, 2
      %v1310 = vrot.slane %v1244, 2
      %v1311 = vsel %vm1302, %v1309, %v1310
      %v1312 = vrot.slane %v1243, 2
      %v1313 = vrot.slane %v1245, 2
      %v1314 = vsel %vm1302, %v1312, %v1313
      %v1315 = vrot.slane %v1246, 2
      %v1316 = vrot.slane %v1248, 2
      %v1317 = vsel %vm1302, %v1315, %v1316
      %v1318 = vrot.slane %v1247, 2
      %v1319 = vrot.slane %v1249, 2
      %v1320 = vsel %vm1302, %v1318, %v1319
      %v1321 = vrot.slane %v1250, 2
      %v1322 = vrot.slane %v1252, 2
      %v1323 = vsel %vm1302, %v1321, %v1322
      %v1324 = vrot.slane %v1251, 2
      %v1325 = vrot.slane %v1253, 2
      %v1326 = vsel %vm1302, %v1324, %v1325
      %v1327 = vrot.slane %v1254, 2
      %v1328 = vrot.slane %v1256, 2
      %v1329 = vsel %vm1302, %v1327, %v1328
      %v1330 = vrot.slane %v1255, 2
      %v1331 = vrot.slane %v1257, 2
      %v1332 = vsel %vm1302, %v1330, %v1331
      %v1333 = vrot.slane %v1258, 2
      %v1334 = vrot.slane %v1260, 2
      %v1335 = vsel %vm1302, %v1333, %v1334
      %v1336 = vrot.slane %v1259, 2
      %v1337 = vrot.slane %v1261, 2
      %v1338 = vsel %vm1302, %v1336, %v1337
      %v1339 = vrot.slane %v1262, 2
      %v1340 = vrot.slane %v1264, 2
      %v1341 = vsel %vm1302, %v1339, %v1340
      %v1342 = vrot.slane %v1263, 2
      %v1343 = vrot.slane %v1265, 2
      %v1344 = vsel %vm1302, %v1342, %v1343
      %v1345 = vrot.slane %v1266, 2
      %v1346 = vrot.slane %v1268, 2
      %v1347 = vsel %vm1302, %v1345, %v1346
      %v1348 = vrot.slane %v1267, 2
      %v1349 = vrot.slane %v1269, 2
      %v1350 = vsel %vm1302, %v1348, %v1349
      %v1367 = vadd.f32 %v1177, %v1305
      %v1368 = vadd.f32 %v1178, %v1308
      %v1369 = vadd.f32 %v1179, %v1311
      %v1370 = vadd.f32 %v1180, %v1314
      %v1371 = vadd.f32 %v1181, %v1317
      %v1372 = vadd.f32 %v1182, %v1320
      %v1373 = vadd.f32 %v1183, %v1323
      %v1374 = vadd.f32 %v1184, %v1326
      %v1375 = vadd.f32 %v1185, %v1329
      %v1376 = vadd.f32 %v1186, %v1332
      %v1377 = vadd.f32 %v1187, %v1335
      %v1378 = vadd.f32 %v1188, %v1338
      %v1379 = vadd.f32 %v1189, %v1341
      %v1380 = vadd.f32 %v1190, %v1344
      %v1381 = vadd.f32 %v1191, %v1347
      %v1382 = vadd.f32 %v1192, %v1350
      %v1383 = vld [vmem:[%s926] sm:$0xff]
      %v1384 = vld [vmem:[%s926 + $0x8] sm:$0xff]
      %v1385 = vld [vmem:[%s926 + $0x20] sm:$0xff]
      %v1386 = vld [vmem:[%s926 + $0x28] sm:$0xff]
      %v1387 = vld [vmem:[%s926 + $0x40] sm:$0xff]
      %v1388 = vld [vmem:[%s926 + $0x48] sm:$0xff]
      %v1389 = vld [vmem:[%s926 + $0x60] sm:$0xff]
      %v1390 = vld [vmem:[%s926 + $0x68] sm:$0xff]
      %v1391 = vld [vmem:[%s926 + $0x80] sm:$0xff]
      %v1392 = vld [vmem:[%s926 + $0x88] sm:$0xff]
      %v1393 = vld [vmem:[%s926 + $0xa0] sm:$0xff]
      %v1394 = vld [vmem:[%s926 + $0xa8] sm:$0xff]
      %v1395 = vld [vmem:[%s926 + $0xc0] sm:$0xff]
      %v1396 = vld [vmem:[%s926 + $0xc8] sm:$0xff]
      %v1397 = vld [vmem:[%s926 + $0xe0] sm:$0xff]
      %v1398 = vld [vmem:[%s926 + $0xe8] sm:$0xff]
      %s1399 = scalar_lea.vmem %s4, 6
      %v1400 = vld [vmem:[%s1399] sm:$0x3]
      %v1402 = vlaneseq
      %v1403 = vshrl.u32 %v1402, 7
      %v1404 = vsub.s32 0, %v1403
      %v1405 = vrot.slane %v1400, %v1404
      %v1406 = vlaneseq
      %v1407 = vshrl.u32 %v1406, 7
      %v1408 = vsub.s32 1, %v1407
      %v1409 = vrot.slane %v1400, %v1408
      %v1412 = vmul.f32 %v1383, %v1405
      %v1413 = vmul.f32 %v1384, %v1409
      %v1414 = vmul.f32 %v1385, %v1405
      %v1415 = vmul.f32 %v1386, %v1409
      %v1416 = vmul.f32 %v1387, %v1405
      %v1417 = vmul.f32 %v1388, %v1409
      %v1418 = vmul.f32 %v1389, %v1405
      %v1419 = vmul.f32 %v1390, %v1409
      %v1420 = vmul.f32 %v1391, %v1405
      %v1421 = vmul.f32 %v1392, %v1409
      %v1422 = vmul.f32 %v1393, %v1405
      %v1423 = vmul.f32 %v1394, %v1409
      %v1424 = vmul.f32 %v1395, %v1405
      %v1425 = vmul.f32 %v1396, %v1409
      %v1426 = vmul.f32 %v1397, %v1405
      %v1427 = vmul.f32 %v1398, %v1409
      %v1428 = vadd.f32 %v1367, %v1412
      %v1429 = vadd.f32 %v1368, %v1413
      %v1430 = vadd.f32 %v1369, %v1414
      %v1431 = vadd.f32 %v1370, %v1415
      %v1432 = vadd.f32 %v1371, %v1416
      %v1433 = vadd.f32 %v1372, %v1417
      %v1434 = vadd.f32 %v1373, %v1418
      %v1435 = vadd.f32 %v1374, %v1419
      %v1436 = vadd.f32 %v1375, %v1420
      %v1437 = vadd.f32 %v1376, %v1421
      %v1438 = vadd.f32 %v1377, %v1422
      %v1439 = vadd.f32 %v1378, %v1423
      %v1440 = vadd.f32 %v1379, %v1424
      %v1441 = vadd.f32 %v1380, %v1425
      %v1442 = vadd.f32 %v1381, %v1426
      %v1443 = vadd.f32 %v1382, %v1427
      %v1444 = vld [vmem:[%s926] sm:$0xfe]
      %v1445 = vld [vmem:[%s926 + $0x8] sm:$0xfe]
      %v1446 = vld [vmem:[%s926 + $0x10] sm:$0x1]
      %v1447 = vld [vmem:[%s926 + $0x18] sm:$0x1]
      %v1448 = vld [vmem:[%s926 + $0x20] sm:$0xfe]
      %v1449 = vld [vmem:[%s926 + $0x28] sm:$0xfe]
      %v1450 = vld [vmem:[%s926 + $0x30] sm:$0x1]
      %v1451 = vld [vmem:[%s926 + $0x38] sm:$0x1]
      %v1452 = vld [vmem:[%s926 + $0x40] sm:$0xfe]
      %v1453 = vld [vmem:[%s926 + $0x48] sm:$0xfe]
      %v1454 = vld [vmem:[%s926 + $0x50] sm:$0x1]
      %v1455 = vld [vmem:[%s926 + $0x58] sm:$0x1]
      %v1456 = vld [vmem:[%s926 + $0x60] sm:$0xfe]
      %v1457 = vld [vmem:[%s926 + $0x68] sm:$0xfe]
      %v1458 = vld [vmem:[%s926 + $0x70] sm:$0x1]
      %v1459 = vld [vmem:[%s926 + $0x78] sm:$0x1]
      %v1460 = vld [vmem:[%s926 + $0x80] sm:$0xfe]
      %v1461 = vld [vmem:[%s926 + $0x88] sm:$0xfe]
      %v1462 = vld [vmem:[%s926 + $0x90] sm:$0x1]
      %v1463 = vld [vmem:[%s926 + $0x98] sm:$0x1]
      %v1464 = vld [vmem:[%s926 + $0xa0] sm:$0xfe]
      %v1465 = vld [vmem:[%s926 + $0xa8] sm:$0xfe]
      %v1466 = vld [vmem:[%s926 + $0xb0] sm:$0x1]
      %v1467 = vld [vmem:[%s926 + $0xb8] sm:$0x1]
      %v1468 = vld [vmem:[%s926 + $0xc0] sm:$0xfe]
      %v1469 = vld [vmem:[%s926 + $0xc8] sm:$0xfe]
      %v1470 = vld [vmem:[%s926 + $0xd0] sm:$0x1]
      %v1471 = vld [vmem:[%s926 + $0xd8] sm:$0x1]
      %v1472 = vld [vmem:[%s926 + $0xe0] sm:$0xfe]
      %v1473 = vld [vmem:[%s926 + $0xe8] sm:$0xfe]
      %v1474 = vld [vmem:[%s926 + $0xf0] sm:$0x1]
      %v1475 = vld [vmem:[%s926 + $0xf8] sm:$0x1]
      %s1476 = scalar_lea.vmem %s4, 8
      %v1477 = vld [vmem:[%s1476] sm:$0x3]
      %v1479 = vlaneseq
      %v1480 = vshrl.u32 %v1479, 7
      %v1481 = vsub.s32 0, %v1480
      %v1482 = vrot.slane %v1477, %v1481
      %v1483 = vlaneseq
      %v1484 = vshrl.u32 %v1483, 7
      %v1485 = vsub.s32 1, %v1484
      %v1486 = vrot.slane %v1477, %v1485
      %v1489 = vmul.f32 %v1444, %v1482
      %v1490 = vmul.f32 %v1445, %v1486
      %v1491 = vmul.f32 %v1446, %v1482
      %v1492 = vmul.f32 %v1447, %v1486
      %v1493 = vmul.f32 %v1448, %v1482
      %v1494 = vmul.f32 %v1449, %v1486
      %v1495 = vmul.f32 %v1450, %v1482
      %v1496 = vmul.f32 %v1451, %v1486
      %v1497 = vmul.f32 %v1452, %v1482
      %v1498 = vmul.f32 %v1453, %v1486
      %v1499 = vmul.f32 %v1454, %v1482
      %v1500 = vmul.f32 %v1455, %v1486
      %v1501 = vmul.f32 %v1456, %v1482
      %v1502 = vmul.f32 %v1457, %v1486
      %v1503 = vmul.f32 %v1458, %v1482
      %v1504 = vmul.f32 %v1459, %v1486
      %v1505 = vmul.f32 %v1460, %v1482
      %v1506 = vmul.f32 %v1461, %v1486
      %v1507 = vmul.f32 %v1462, %v1482
      %v1508 = vmul.f32 %v1463, %v1486
      %v1509 = vmul.f32 %v1464, %v1482
      %v1510 = vmul.f32 %v1465, %v1486
      %v1511 = vmul.f32 %v1466, %v1482
      %v1512 = vmul.f32 %v1467, %v1486
      %v1513 = vmul.f32 %v1468, %v1482
      %v1514 = vmul.f32 %v1469, %v1486
      %v1515 = vmul.f32 %v1470, %v1482
      %v1516 = vmul.f32 %v1471, %v1486
      %v1517 = vmul.f32 %v1472, %v1482
      %v1518 = vmul.f32 %v1473, %v1486
      %v1519 = vmul.f32 %v1474, %v1482
      %v1520 = vmul.f32 %v1475, %v1486
      %v1553 = vrot.slane %v1489, 1
      %v1554 = vrot.slane %v1491, 1
      %v1555 = vsel %vm1112, %v1553, %v1554
      %v1556 = vrot.slane %v1490, 1
      %v1557 = vrot.slane %v1492, 1
      %v1558 = vsel %vm1112, %v1556, %v1557
      %v1559 = vrot.slane %v1493, 1
      %v1560 = vrot.slane %v1495, 1
      %v1561 = vsel %vm1112, %v1559, %v1560
      %v1562 = vrot.slane %v1494, 1
      %v1563 = vrot.slane %v1496, 1
      %v1564 = vsel %vm1112, %v1562, %v1563
      %v1565 = vrot.slane %v1497, 1
      %v1566 = vrot.slane %v1499, 1
      %v1567 = vsel %vm1112, %v1565, %v1566
      %v1568 = vrot.slane %v1498, 1
      %v1569 = vrot.slane %v1500, 1
      %v1570 = vsel %vm1112, %v1568, %v1569
      %v1571 = vrot.slane %v1501, 1
      %v1572 = vrot.slane %v1503, 1
      %v1573 = vsel %vm1112, %v1571, %v1572
      %v1574 = vrot.slane %v1502, 1
      %v1575 = vrot.slane %v1504, 1
      %v1576 = vsel %vm1112, %v1574, %v1575
      %v1577 = vrot.slane %v1505, 1
      %v1578 = vrot.slane %v1507, 1
      %v1579 = vsel %vm1112, %v1577, %v1578
      %v1580 = vrot.slane %v1506, 1
      %v1581 = vrot.slane %v1508, 1
      %v1582 = vsel %vm1112, %v1580, %v1581
      %v1583 = vrot.slane %v1509, 1
      %v1584 = vrot.slane %v1511, 1
      %v1585 = vsel %vm1112, %v1583, %v1584
      %v1586 = vrot.slane %v1510, 1
      %v1587 = vrot.slane %v1512, 1
      %v1588 = vsel %vm1112, %v1586, %v1587
      %v1589 = vrot.slane %v1513, 1
      %v1590 = vrot.slane %v1515, 1
      %v1591 = vsel %vm1112, %v1589, %v1590
      %v1592 = vrot.slane %v1514, 1
      %v1593 = vrot.slane %v1516, 1
      %v1594 = vsel %vm1112, %v1592, %v1593
      %v1595 = vrot.slane %v1517, 1
      %v1596 = vrot.slane %v1519, 1
      %v1597 = vsel %vm1112, %v1595, %v1596
      %v1598 = vrot.slane %v1518, 1
      %v1599 = vrot.slane %v1520, 1
      %v1600 = vsel %vm1112, %v1598, %v1599
      %v1617 = vadd.f32 %v1428, %v1555
      %v1618 = vadd.f32 %v1429, %v1558
      %v1619 = vadd.f32 %v1430, %v1561
      %v1620 = vadd.f32 %v1431, %v1564
      %v1621 = vadd.f32 %v1432, %v1567
      %v1622 = vadd.f32 %v1433, %v1570
      %v1623 = vadd.f32 %v1434, %v1573
      %v1624 = vadd.f32 %v1435, %v1576
      %v1625 = vadd.f32 %v1436, %v1579
      %v1626 = vadd.f32 %v1437, %v1582
      %v1627 = vadd.f32 %v1438, %v1585
      %v1628 = vadd.f32 %v1439, %v1588
      %v1629 = vadd.f32 %v1440, %v1591
      %v1630 = vadd.f32 %v1441, %v1594
      %v1631 = vadd.f32 %v1442, %v1597
      %v1632 = vadd.f32 %v1443, %v1600
      %v1633 = vld [vmem:[%s926] sm:$0xfc]
      %v1634 = vld [vmem:[%s926 + $0x8] sm:$0xfc]
      %v1635 = vld [vmem:[%s926 + $0x10] sm:$0x3]
      %v1636 = vld [vmem:[%s926 + $0x18] sm:$0x3]
      %v1637 = vld [vmem:[%s926 + $0x20] sm:$0xfc]
      %v1638 = vld [vmem:[%s926 + $0x28] sm:$0xfc]
      %v1639 = vld [vmem:[%s926 + $0x30] sm:$0x3]
      %v1640 = vld [vmem:[%s926 + $0x38] sm:$0x3]
      %v1641 = vld [vmem:[%s926 + $0x40] sm:$0xfc]
      %v1642 = vld [vmem:[%s926 + $0x48] sm:$0xfc]
      %v1643 = vld [vmem:[%s926 + $0x50] sm:$0x3]
      %v1644 = vld [vmem:[%s926 + $0x58] sm:$0x3]
      %v1645 = vld [vmem:[%s926 + $0x60] sm:$0xfc]
      %v1646 = vld [vmem:[%s926 + $0x68] sm:$0xfc]
      %v1647 = vld [vmem:[%s926 + $0x70] sm:$0x3]
      %v1648 = vld [vmem:[%s926 + $0x78] sm:$0x3]
      %v1649 = vld [vmem:[%s926 + $0x80] sm:$0xfc]
      %v1650 = vld [vmem:[%s926 + $0x88] sm:$0xfc]
      %v1651 = vld [vmem:[%s926 + $0x90] sm:$0x3]
      %v1652 = vld [vmem:[%s926 + $0x98] sm:$0x3]
      %v1653 = vld [vmem:[%s926 + $0xa0] sm:$0xfc]
      %v1654 = vld [vmem:[%s926 + $0xa8] sm:$0xfc]
      %v1655 = vld [vmem:[%s926 + $0xb0] sm:$0x3]
      %v1656 = vld [vmem:[%s926 + $0xb8] sm:$0x3]
      %v1657 = vld [vmem:[%s926 + $0xc0] sm:$0xfc]
      %v1658 = vld [vmem:[%s926 + $0xc8] sm:$0xfc]
      %v1659 = vld [vmem:[%s926 + $0xd0] sm:$0x3]
      %v1660 = vld [vmem:[%s926 + $0xd8] sm:$0x3]
      %v1661 = vld [vmem:[%s926 + $0xe0] sm:$0xfc]
      %v1662 = vld [vmem:[%s926 + $0xe8] sm:$0xfc]
      %v1663 = vld [vmem:[%s926 + $0xf0] sm:$0x3]
      %v1664 = vld [vmem:[%s926 + $0xf8] sm:$0x3]
      %s1665 = scalar_lea.vmem %s4, 10
      %v1666 = vld [vmem:[%s1665] sm:$0x3]
      %v1668 = vlaneseq
      %v1669 = vshrl.u32 %v1668, 7
      %v1670 = vsub.s32 0, %v1669
      %v1671 = vrot.slane %v1666, %v1670
      %v1672 = vlaneseq
      %v1673 = vshrl.u32 %v1672, 7
      %v1674 = vsub.s32 1, %v1673
      %v1675 = vrot.slane %v1666, %v1674
      %v1678 = vmul.f32 %v1633, %v1671
      %v1679 = vmul.f32 %v1634, %v1675
      %v1680 = vmul.f32 %v1635, %v1671
      %v1681 = vmul.f32 %v1636, %v1675
      %v1682 = vmul.f32 %v1637, %v1671
      %v1683 = vmul.f32 %v1638, %v1675
      %v1684 = vmul.f32 %v1639, %v1671
      %v1685 = vmul.f32 %v1640, %v1675
      %v1686 = vmul.f32 %v1641, %v1671
      %v1687 = vmul.f32 %v1642, %v1675
      %v1688 = vmul.f32 %v1643, %v1671
      %v1689 = vmul.f32 %v1644, %v1675
      %v1690 = vmul.f32 %v1645, %v1671
      %v1691 = vmul.f32 %v1646, %v1675
      %v1692 = vmul.f32 %v1647, %v1671
      %v1693 = vmul.f32 %v1648, %v1675
      %v1694 = vmul.f32 %v1649, %v1671
      %v1695 = vmul.f32 %v1650, %v1675
      %v1696 = vmul.f32 %v1651, %v1671
      %v1697 = vmul.f32 %v1652, %v1675
      %v1698 = vmul.f32 %v1653, %v1671
      %v1699 = vmul.f32 %v1654, %v1675
      %v1700 = vmul.f32 %v1655, %v1671
      %v1701 = vmul.f32 %v1656, %v1675
      %v1702 = vmul.f32 %v1657, %v1671
      %v1703 = vmul.f32 %v1658, %v1675
      %v1704 = vmul.f32 %v1659, %v1671
      %v1705 = vmul.f32 %v1660, %v1675
      %v1706 = vmul.f32 %v1661, %v1671
      %v1707 = vmul.f32 %v1662, %v1675
      %v1708 = vmul.f32 %v1663, %v1671
      %v1709 = vmul.f32 %v1664, %v1675
      %v1742 = vrot.slane %v1678, 2
      %v1743 = vrot.slane %v1680, 2
      %v1744 = vsel %vm1302, %v1742, %v1743
      %v1745 = vrot.slane %v1679, 2
      %v1746 = vrot.slane %v1681, 2
      %v1747 = vsel %vm1302, %v1745, %v1746
      %v1748 = vrot.slane %v1682, 2
      %v1749 = vrot.slane %v1684, 2
      %v1750 = vsel %vm1302, %v1748, %v1749
      %v1751 = vrot.slane %v1683, 2
      %v1752 = vrot.slane %v1685, 2
      %v1753 = vsel %vm1302, %v1751, %v1752
      %v1754 = vrot.slane %v1686, 2
      %v1755 = vrot.slane %v1688, 2
      %v1756 = vsel %vm1302, %v1754, %v1755
      %v1757 = vrot.slane %v1687, 2
      %v1758 = vrot.slane %v1689, 2
      %v1759 = vsel %vm1302, %v1757, %v1758
      %v1760 = vrot.slane %v1690, 2
      %v1761 = vrot.slane %v1692, 2
      %v1762 = vsel %vm1302, %v1760, %v1761
      %v1763 = vrot.slane %v1691, 2
      %v1764 = vrot.slane %v1693, 2
      %v1765 = vsel %vm1302, %v1763, %v1764
      %v1766 = vrot.slane %v1694, 2
      %v1767 = vrot.slane %v1696, 2
      %v1768 = vsel %vm1302, %v1766, %v1767
      %v1769 = vrot.slane %v1695, 2
      %v1770 = vrot.slane %v1697, 2
      %v1771 = vsel %vm1302, %v1769, %v1770
      %v1772 = vrot.slane %v1698, 2
      %v1773 = vrot.slane %v1700, 2
      %v1774 = vsel %vm1302, %v1772, %v1773
      %v1775 = vrot.slane %v1699, 2
      %v1776 = vrot.slane %v1701, 2
      %v1777 = vsel %vm1302, %v1775, %v1776
      %v1778 = vrot.slane %v1702, 2
      %v1779 = vrot.slane %v1704, 2
      %v1780 = vsel %vm1302, %v1778, %v1779
      %v1781 = vrot.slane %v1703, 2
      %v1782 = vrot.slane %v1705, 2
      %v1783 = vsel %vm1302, %v1781, %v1782
      %v1784 = vrot.slane %v1706, 2
      %v1785 = vrot.slane %v1708, 2
      %v1786 = vsel %vm1302, %v1784, %v1785
      %v1787 = vrot.slane %v1707, 2
      %v1788 = vrot.slane %v1709, 2
      %v1789 = vsel %vm1302, %v1787, %v1788
      %v1806 = vadd.f32 %v1617, %v1744
      %v1807 = vadd.f32 %v1618, %v1747
      %v1808 = vadd.f32 %v1619, %v1750
      %v1809 = vadd.f32 %v1620, %v1753
      %v1810 = vadd.f32 %v1621, %v1756
      %v1811 = vadd.f32 %v1622, %v1759
      %v1812 = vadd.f32 %v1623, %v1762
      %v1813 = vadd.f32 %v1624, %v1765
      %v1814 = vadd.f32 %v1625, %v1768
      %v1815 = vadd.f32 %v1626, %v1771
      %v1816 = vadd.f32 %v1627, %v1774
      %v1817 = vadd.f32 %v1628, %v1777
      %v1818 = vadd.f32 %v1629, %v1780
      %v1819 = vadd.f32 %v1630, %v1783
      %v1820 = vadd.f32 %v1631, %v1786
      %v1821 = vadd.f32 %v1632, %v1789
      %s1822 = scalar_lea.vmem [#allocation2], 64
      %v1823 = vld [vmem:[%s1822] sm:$0xff]
      %v1824 = vld [vmem:[%s1822 + $0x8] sm:$0xff]
      %v1825 = vld [vmem:[%s1822 + $0x20] sm:$0xff]
      %v1826 = vld [vmem:[%s1822 + $0x28] sm:$0xff]
      %v1827 = vld [vmem:[%s1822 + $0x40] sm:$0xff]
      %v1828 = vld [vmem:[%s1822 + $0x48] sm:$0xff]
      %v1829 = vld [vmem:[%s1822 + $0x60] sm:$0xff]
      %v1830 = vld [vmem:[%s1822 + $0x68] sm:$0xff]
      %v1831 = vld [vmem:[%s1822 + $0x80] sm:$0xff]
      %v1832 = vld [vmem:[%s1822 + $0x88] sm:$0xff]
      %v1833 = vld [vmem:[%s1822 + $0xa0] sm:$0xff]
      %v1834 = vld [vmem:[%s1822 + $0xa8] sm:$0xff]
      %v1835 = vld [vmem:[%s1822 + $0xc0] sm:$0xff]
      %v1836 = vld [vmem:[%s1822 + $0xc8] sm:$0xff]
      %v1837 = vld [vmem:[%s1822 + $0xe0] sm:$0xff]
      %v1838 = vld [vmem:[%s1822 + $0xe8] sm:$0xff]
      %s1839 = scalar_lea.vmem %s4, 12
      %v1840 = vld [vmem:[%s1839] sm:$0x3]
      %v1842 = vlaneseq
      %v1843 = vshrl.u32 %v1842, 7
      %v1844 = vsub.s32 0, %v1843
      %v1845 = vrot.slane %v1840, %v1844
      %v1846 = vlaneseq
      %v1847 = vshrl.u32 %v1846, 7
      %v1848 = vsub.s32 1, %v1847
      %v1849 = vrot.slane %v1840, %v1848
      %v1852 = vmul.f32 %v1823, %v1845
      %v1853 = vmul.f32 %v1824, %v1849
      %v1854 = vmul.f32 %v1825, %v1845
      %v1855 = vmul.f32 %v1826, %v1849
      %v1856 = vmul.f32 %v1827, %v1845
      %v1857 = vmul.f32 %v1828, %v1849
      %v1858 = vmul.f32 %v1829, %v1845
      %v1859 = vmul.f32 %v1830, %v1849
      %v1860 = vmul.f32 %v1831, %v1845
      %v1861 = vmul.f32 %v1832, %v1849
      %v1862 = vmul.f32 %v1833, %v1845
      %v1863 = vmul.f32 %v1834, %v1849
      %v1864 = vmul.f32 %v1835, %v1845
      %v1865 = vmul.f32 %v1836, %v1849
      %v1866 = vmul.f32 %v1837, %v1845
      %v1867 = vmul.f32 %v1838, %v1849
      %v1868 = vadd.f32 %v1806, %v1852
      %v1869 = vadd.f32 %v1807, %v1853
      %v1870 = vadd.f32 %v1808, %v1854
      %v1871 = vadd.f32 %v1809, %v1855
      %v1872 = vadd.f32 %v1810, %v1856
      %v1873 = vadd.f32 %v1811, %v1857
      %v1874 = vadd.f32 %v1812, %v1858
      %v1875 = vadd.f32 %v1813, %v1859
      %v1876 = vadd.f32 %v1814, %v1860
      %v1877 = vadd.f32 %v1815, %v1861
      %v1878 = vadd.f32 %v1816, %v1862
      %v1879 = vadd.f32 %v1817, %v1863
      %v1880 = vadd.f32 %v1818, %v1864
      %v1881 = vadd.f32 %v1819, %v1865
      %v1882 = vadd.f32 %v1820, %v1866
      %v1883 = vadd.f32 %v1821, %v1867
      %v1884 = vld [vmem:[%s1822] sm:$0xfe]
      %v1885 = vld [vmem:[%s1822 + $0x8] sm:$0xfe]
      %v1886 = vld [vmem:[%s1822 + $0x10] sm:$0x1]
      %v1887 = vld [vmem:[%s1822 + $0x18] sm:$0x1]
      %v1888 = vld [vmem:[%s1822 + $0x20] sm:$0xfe]
      %v1889 = vld [vmem:[%s1822 + $0x28] sm:$0xfe]
      %v1890 = vld [vmem:[%s1822 + $0x30] sm:$0x1]
      %v1891 = vld [vmem:[%s1822 + $0x38] sm:$0x1]
      %v1892 = vld [vmem:[%s1822 + $0x40] sm:$0xfe]
      %v1893 = vld [vmem:[%s1822 + $0x48] sm:$0xfe]
      %v1894 = vld [vmem:[%s1822 + $0x50] sm:$0x1]
      %v1895 = vld [vmem:[%s1822 + $0x58] sm:$0x1]
      %v1896 = vld [vmem:[%s1822 + $0x60] sm:$0xfe]
      %v1897 = vld [vmem:[%s1822 + $0x68] sm:$0xfe]
      %v1898 = vld [vmem:[%s1822 + $0x70] sm:$0x1]
      %v1899 = vld [vmem:[%s1822 + $0x78] sm:$0x1]
      %v1900 = vld [vmem:[%s1822 + $0x80] sm:$0xfe]
      %v1901 = vld [vmem:[%s1822 + $0x88] sm:$0xfe]
      %v1902 = vld [vmem:[%s1822 + $0x90] sm:$0x1]
      %v1903 = vld [vmem:[%s1822 + $0x98] sm:$0x1]
      %v1904 = vld [vmem:[%s1822 + $0xa0] sm:$0xfe]
      %v1905 = vld [vmem:[%s1822 + $0xa8] sm:$0xfe]
      %v1906 = vld [vmem:[%s1822 + $0xb0] sm:$0x1]
      %v1907 = vld [vmem:[%s1822 + $0xb8] sm:$0x1]
      %v1908 = vld [vmem:[%s1822 + $0xc0] sm:$0xfe]
      %v1909 = vld [vmem:[%s1822 + $0xc8] sm:$0xfe]
      %v1910 = vld [vmem:[%s1822 + $0xd0] sm:$0x1]
      %v1911 = vld [vmem:[%s1822 + $0xd8] sm:$0x1]
      %v1912 = vld [vmem:[%s1822 + $0xe0] sm:$0xfe]
      %v1913 = vld [vmem:[%s1822 + $0xe8] sm:$0xfe]
      %v1914 = vld [vmem:[%s1822 + $0xf0] sm:$0x1]
      %v1915 = vld [vmem:[%s1822 + $0xf8] sm:$0x1]
      %s1916 = scalar_lea.vmem %s4, 14
      %v1917 = vld [vmem:[%s1916] sm:$0x3]
      %v1919 = vlaneseq
      %v1920 = vshrl.u32 %v1919, 7
      %v1921 = vsub.s32 0, %v1920
      %v1922 = vrot.slane %v1917, %v1921
      %v1923 = vlaneseq
      %v1924 = vshrl.u32 %v1923, 7
      %v1925 = vsub.s32 1, %v1924
      %v1926 = vrot.slane %v1917, %v1925
      %v1929 = vmul.f32 %v1884, %v1922
      %v1930 = vmul.f32 %v1885, %v1926
      %v1931 = vmul.f32 %v1886, %v1922
      %v1932 = vmul.f32 %v1887, %v1926
      %v1933 = vmul.f32 %v1888, %v1922
      %v1934 = vmul.f32 %v1889, %v1926
      %v1935 = vmul.f32 %v1890, %v1922
      %v1936 = vmul.f32 %v1891, %v1926
      %v1937 = vmul.f32 %v1892, %v1922
      %v1938 = vmul.f32 %v1893, %v1926
      %v1939 = vmul.f32 %v1894, %v1922
      %v1940 = vmul.f32 %v1895, %v1926
      %v1941 = vmul.f32 %v1896, %v1922
      %v1942 = vmul.f32 %v1897, %v1926
      %v1943 = vmul.f32 %v1898, %v1922
      %v1944 = vmul.f32 %v1899, %v1926
      %v1945 = vmul.f32 %v1900, %v1922
      %v1946 = vmul.f32 %v1901, %v1926
      %v1947 = vmul.f32 %v1902, %v1922
      %v1948 = vmul.f32 %v1903, %v1926
      %v1949 = vmul.f32 %v1904, %v1922
      %v1950 = vmul.f32 %v1905, %v1926
      %v1951 = vmul.f32 %v1906, %v1922
      %v1952 = vmul.f32 %v1907, %v1926
      %v1953 = vmul.f32 %v1908, %v1922
      %v1954 = vmul.f32 %v1909, %v1926
      %v1955 = vmul.f32 %v1910, %v1922
      %v1956 = vmul.f32 %v1911, %v1926
      %v1957 = vmul.f32 %v1912, %v1922
      %v1958 = vmul.f32 %v1913, %v1926
      %v1959 = vmul.f32 %v1914, %v1922
      %v1960 = vmul.f32 %v1915, %v1926
      %v1993 = vrot.slane %v1929, 1
      %v1994 = vrot.slane %v1931, 1
      %v1995 = vsel %vm1112, %v1993, %v1994
      %v1996 = vrot.slane %v1930, 1
      %v1997 = vrot.slane %v1932, 1
      %v1998 = vsel %vm1112, %v1996, %v1997
      %v1999 = vrot.slane %v1933, 1
      %v2000 = vrot.slane %v1935, 1
      %v2001 = vsel %vm1112, %v1999, %v2000
      %v2002 = vrot.slane %v1934, 1
      %v2003 = vrot.slane %v1936, 1
      %v2004 = vsel %vm1112, %v2002, %v2003
      %v2005 = vrot.slane %v1937, 1
      %v2006 = vrot.slane %v1939, 1
      %v2007 = vsel %vm1112, %v2005, %v2006
      %v2008 = vrot.slane %v1938, 1
      %v2009 = vrot.slane %v1940, 1
      %v2010 = vsel %vm1112, %v2008, %v2009
      %v2011 = vrot.slane %v1941, 1
      %v2012 = vrot.slane %v1943, 1
      %v2013 = vsel %vm1112, %v2011, %v2012
      %v2014 = vrot.slane %v1942, 1
      %v2015 = vrot.slane %v1944, 1
      %v2016 = vsel %vm1112, %v2014, %v2015
      %v2017 = vrot.slane %v1945, 1
      %v2018 = vrot.slane %v1947, 1
      %v2019 = vsel %vm1112, %v2017, %v2018
      %v2020 = vrot.slane %v1946, 1
      %v2021 = vrot.slane %v1948, 1
      %v2022 = vsel %vm1112, %v2020, %v2021
      %v2023 = vrot.slane %v1949, 1
      %v2024 = vrot.slane %v1951, 1
      %v2025 = vsel %vm1112, %v2023, %v2024
      %v2026 = vrot.slane %v1950, 1
      %v2027 = vrot.slane %v1952, 1
      %v2028 = vsel %vm1112, %v2026, %v2027
      %v2029 = vrot.slane %v1953, 1
      %v2030 = vrot.slane %v1955, 1
      %v2031 = vsel %vm1112, %v2029, %v2030
      %v2032 = vrot.slane %v1954, 1
      %v2033 = vrot.slane %v1956, 1
      %v2034 = vsel %vm1112, %v2032, %v2033
      %v2035 = vrot.slane %v1957, 1
      %v2036 = vrot.slane %v1959, 1
      %v2037 = vsel %vm1112, %v2035, %v2036
      %v2038 = vrot.slane %v1958, 1
      %v2039 = vrot.slane %v1960, 1
      %v2040 = vsel %vm1112, %v2038, %v2039
      %v2057 = vadd.f32 %v1868, %v1995
      %v2058 = vadd.f32 %v1869, %v1998
      %v2059 = vadd.f32 %v1870, %v2001
      %v2060 = vadd.f32 %v1871, %v2004
      %v2061 = vadd.f32 %v1872, %v2007
      %v2062 = vadd.f32 %v1873, %v2010
      %v2063 = vadd.f32 %v1874, %v2013
      %v2064 = vadd.f32 %v1875, %v2016
      %v2065 = vadd.f32 %v1876, %v2019
      %v2066 = vadd.f32 %v1877, %v2022
      %v2067 = vadd.f32 %v1878, %v2025
      %v2068 = vadd.f32 %v1879, %v2028
      %v2069 = vadd.f32 %v1880, %v2031
      %v2070 = vadd.f32 %v1881, %v2034
      %v2071 = vadd.f32 %v1882, %v2037
      %v2072 = vadd.f32 %v1883, %v2040
      %v2073 = vld [vmem:[%s1822] sm:$0xfc]
      %v2074 = vld [vmem:[%s1822 + $0x8] sm:$0xfc]
      %v2075 = vld [vmem:[%s1822 + $0x10] sm:$0x3]
      %v2076 = vld [vmem:[%s1822 + $0x18] sm:$0x3]
      %v2077 = vld [vmem:[%s1822 + $0x20] sm:$0xfc]
      %v2078 = vld [vmem:[%s1822 + $0x28] sm:$0xfc]
      %v2079 = vld [vmem:[%s1822 + $0x30] sm:$0x3]
      %v2080 = vld [vmem:[%s1822 + $0x38] sm:$0x3]
      %v2081 = vld [vmem:[%s1822 + $0x40] sm:$0xfc]
      %v2082 = vld [vmem:[%s1822 + $0x48] sm:$0xfc]
      %v2083 = vld [vmem:[%s1822 + $0x50] sm:$0x3]
      %v2084 = vld [vmem:[%s1822 + $0x58] sm:$0x3]
      %v2085 = vld [vmem:[%s1822 + $0x60] sm:$0xfc]
      %v2086 = vld [vmem:[%s1822 + $0x68] sm:$0xfc]
      %v2087 = vld [vmem:[%s1822 + $0x70] sm:$0x3]
      %v2088 = vld [vmem:[%s1822 + $0x78] sm:$0x3]
      %v2089 = vld [vmem:[%s1822 + $0x80] sm:$0xfc]
      %v2090 = vld [vmem:[%s1822 + $0x88] sm:$0xfc]
      %v2091 = vld [vmem:[%s1822 + $0x90] sm:$0x3]
      %v2092 = vld [vmem:[%s1822 + $0x98] sm:$0x3]
      %v2093 = vld [vmem:[%s1822 + $0xa0] sm:$0xfc]
      %v2094 = vld [vmem:[%s1822 + $0xa8] sm:$0xfc]
      %v2095 = vld [vmem:[%s1822 + $0xb0] sm:$0x3]
      %v2096 = vld [vmem:[%s1822 + $0xb8] sm:$0x3]
      %v2097 = vld [vmem:[%s1822 + $0xc0] sm:$0xfc]
      %v2098 = vld [vmem:[%s1822 + $0xc8] sm:$0xfc]
      %v2099 = vld [vmem:[%s1822 + $0xd0] sm:$0x3]
      %v2100 = vld [vmem:[%s1822 + $0xd8] sm:$0x3]
      %v2101 = vld [vmem:[%s1822 + $0xe0] sm:$0xfc]
      %v2102 = vld [vmem:[%s1822 + $0xe8] sm:$0xfc]
      %v2103 = vld [vmem:[%s1822 + $0xf0] sm:$0x3]
      %v2104 = vld [vmem:[%s1822 + $0xf8] sm:$0x3]
      %s2105 = scalar_lea.vmem %s4, 16
      %v2106 = vld [vmem:[%s2105] sm:$0x3]
      %v2108 = vlaneseq
      %v2109 = vshrl.u32 %v2108, 7
      %v2110 = vsub.s32 0, %v2109
      %v2111 = vrot.slane %v2106, %v2110
      %v2112 = vlaneseq
      %v2113 = vshrl.u32 %v2112, 7
      %v2114 = vsub.s32 1, %v2113
      %v2115 = vrot.slane %v2106, %v2114
      %v2118 = vmul.f32 %v2073, %v2111
      %v2119 = vmul.f32 %v2074, %v2115
      %v2120 = vmul.f32 %v2075, %v2111
      %v2121 = vmul.f32 %v2076, %v2115
      %v2122 = vmul.f32 %v2077, %v2111
      %v2123 = vmul.f32 %v2078, %v2115
      %v2124 = vmul.f32 %v2079, %v2111
      %v2125 = vmul.f32 %v2080, %v2115
      %v2126 = vmul.f32 %v2081, %v2111
      %v2127 = vmul.f32 %v2082, %v2115
      %v2128 = vmul.f32 %v2083, %v2111
      %v2129 = vmul.f32 %v2084, %v2115
      %v2130 = vmul.f32 %v2085, %v2111
      %v2131 = vmul.f32 %v2086, %v2115
      %v2132 = vmul.f32 %v2087, %v2111
      %v2133 = vmul.f32 %v2088, %v2115
      %v2134 = vmul.f32 %v2089, %v2111
      %v2135 = vmul.f32 %v2090, %v2115
      %v2136 = vmul.f32 %v2091, %v2111
      %v2137 = vmul.f32 %v2092, %v2115
      %v2138 = vmul.f32 %v2093, %v2111
      %v2139 = vmul.f32 %v2094, %v2115
      %v2140 = vmul.f32 %v2095, %v2111
      %v2141 = vmul.f32 %v2096, %v2115
      %v2142 = vmul.f32 %v2097, %v2111
      %v2143 = vmul.f32 %v2098, %v2115
      %v2144 = vmul.f32 %v2099, %v2111
      %v2145 = vmul.f32 %v2100, %v2115
      %v2146 = vmul.f32 %v2101, %v2111
      %v2147 = vmul.f32 %v2102, %v2115
      %v2148 = vmul.f32 %v2103, %v2111
      %v2149 = vmul.f32 %v2104, %v2115
      %v2182 = vrot.slane %v2118, 2
      %v2183 = vrot.slane %v2120, 2
      %v2184 = vsel %vm1302, %v2182, %v2183
      %v2185 = vrot.slane %v2119, 2
      %v2186 = vrot.slane %v2121, 2
      %v2187 = vsel %vm1302, %v2185, %v2186
      %v2188 = vrot.slane %v2122, 2
      %v2189 = vrot.slane %v2124, 2
      %v2190 = vsel %vm1302, %v2188, %v2189
      %v2191 = vrot.slane %v2123, 2
      %v2192 = vrot.slane %v2125, 2
      %v2193 = vsel %vm1302, %v2191, %v2192
      %v2194 = vrot.slane %v2126, 2
      %v2195 = vrot.slane %v2128, 2
      %v2196 = vsel %vm1302, %v2194, %v2195
      %v2197 = vrot.slane %v2127, 2
      %v2198 = vrot.slane %v2129, 2
      %v2199 = vsel %vm1302, %v2197, %v2198
      %v2200 = vrot.slane %v2130, 2
      %v2201 = vrot.slane %v2132, 2
      %v2202 = vsel %vm1302, %v2200, %v2201
      %v2203 = vrot.slane %v2131, 2
      %v2204 = vrot.slane %v2133, 2
      %v2205 = vsel %vm1302, %v2203, %v2204
      %v2206 = vrot.slane %v2134, 2
      %v2207 = vrot.slane %v2136, 2
      %v2208 = vsel %vm1302, %v2206, %v2207
      %v2209 = vrot.slane %v2135, 2
      %v2210 = vrot.slane %v2137, 2
      %v2211 = vsel %vm1302, %v2209, %v2210
      %v2212 = vrot.slane %v2138, 2
      %v2213 = vrot.slane %v2140, 2
      %v2214 = vsel %vm1302, %v2212, %v2213
      %v2215 = vrot.slane %v2139, 2
      %v2216 = vrot.slane %v2141, 2
      %v2217 = vsel %vm1302, %v2215, %v2216
      %v2218 = vrot.slane %v2142, 2
      %v2219 = vrot.slane %v2144, 2
      %v2220 = vsel %vm1302, %v2218, %v2219
      %v2221 = vrot.slane %v2143, 2
      %v2222 = vrot.slane %v2145, 2
      %v2223 = vsel %vm1302, %v2221, %v2222
      %v2224 = vrot.slane %v2146, 2
      %v2225 = vrot.slane %v2148, 2
      %v2226 = vsel %vm1302, %v2224, %v2225
      %v2227 = vrot.slane %v2147, 2
      %v2228 = vrot.slane %v2149, 2
      %v2229 = vsel %vm1302, %v2227, %v2228
      %v2246 = vadd.f32 %v2057, %v2184
      %v2247 = vadd.f32 %v2058, %v2187
      %v2248 = vadd.f32 %v2059, %v2190
      %v2249 = vadd.f32 %v2060, %v2193
      %v2250 = vadd.f32 %v2061, %v2196
      %v2251 = vadd.f32 %v2062, %v2199
      %v2252 = vadd.f32 %v2063, %v2202
      %v2253 = vadd.f32 %v2064, %v2205
      %v2254 = vadd.f32 %v2065, %v2208
      %v2255 = vadd.f32 %v2066, %v2211
      %v2256 = vadd.f32 %v2067, %v2214
      %v2257 = vadd.f32 %v2068, %v2217
      %v2258 = vadd.f32 %v2069, %v2220
      %v2259 = vadd.f32 %v2070, %v2223
      %v2260 = vadd.f32 %v2071, %v2226
      %v2261 = vadd.f32 %v2072, %v2229
      %v2262 = vld [vmem:[%s5] sm:$0x3]
      %v2264 = vlaneseq
      %v2265 = vshrl.u32 %v2264, 7
      %v2266 = vsub.s32 0, %v2265
      %v2267 = vrot.slane %v2262, %v2266
      %v2268 = vlaneseq
      %v2269 = vshrl.u32 %v2268, 7
      %v2270 = vsub.s32 1, %v2269
      %v2271 = vrot.slane %v2262, %v2270
      %v2274 = vmul.f32 %v2246, %v2267
      %v2275 = vmul.f32 %v2247, %v2271
      %v2276 = vmul.f32 %v2248, %v2267
      %v2277 = vmul.f32 %v2249, %v2271
      %v2278 = vmul.f32 %v2250, %v2267
      %v2279 = vmul.f32 %v2251, %v2271
      %v2280 = vmul.f32 %v2252, %v2267
      %v2281 = vmul.f32 %v2253, %v2271
      %v2282 = vmul.f32 %v2254, %v2267
      %v2283 = vmul.f32 %v2255, %v2271
      %v2284 = vmul.f32 %v2256, %v2267
      %v2285 = vmul.f32 %v2257, %v2271
      %v2286 = vmul.f32 %v2258, %v2267
      %v2287 = vmul.f32 %v2259, %v2271
      %v2288 = vmul.f32 %v2260, %v2267
      %v2289 = vmul.f32 %v2261, %v2271
      %v2290 = vld [vmem:[%s6] sm:$0x3]
      %v2292 = vlaneseq
      %v2293 = vshrl.u32 %v2292, 7
      %v2294 = vsub.s32 0, %v2293
      %v2295 = vrot.slane %v2290, %v2294
      %v2296 = vlaneseq
      %v2297 = vshrl.u32 %v2296, 7
      %v2298 = vsub.s32 1, %v2297
      %v2299 = vrot.slane %v2290, %v2298
      %v2302 = vadd.f32 %v2274, %v2295
      %v2303 = vadd.f32 %v2275, %v2299
      %v2304 = vadd.f32 %v2276, %v2295
      %v2305 = vadd.f32 %v2277, %v2299
      %v2306 = vadd.f32 %v2278, %v2295
      %v2307 = vadd.f32 %v2279, %v2299
      %v2308 = vadd.f32 %v2280, %v2295
      %v2309 = vadd.f32 %v2281, %v2299
      %v2310 = vadd.f32 %v2282, %v2295
      %v2311 = vadd.f32 %v2283, %v2299
      %v2312 = vadd.f32 %v2284, %v2295
      %v2313 = vadd.f32 %v2285, %v2299
      %v2314 = vadd.f32 %v2286, %v2295
      %v2315 = vadd.f32 %v2287, %v2299
      %v2316 = vadd.f32 %v2288, %v2295
      %v2317 = vadd.f32 %v2289, %v2299
      %v2318 = vxor.u32 %v2302, 2147483648
      %v2319 = vxor.u32 %v2303, 2147483648
      %v2320 = vxor.u32 %v2304, 2147483648
      %v2321 = vxor.u32 %v2305, 2147483648
      %v2322 = vxor.u32 %v2306, 2147483648
      %v2323 = vxor.u32 %v2307, 2147483648
      %v2324 = vxor.u32 %v2308, 2147483648
      %v2325 = vxor.u32 %v2309, 2147483648
      %v2326 = vxor.u32 %v2310, 2147483648
      %v2327 = vxor.u32 %v2311, 2147483648
      %v2328 = vxor.u32 %v2312, 2147483648
      %v2329 = vxor.u32 %v2313, 2147483648
      %v2330 = vxor.u32 %v2314, 2147483648
      %v2331 = vxor.u32 %v2315, 2147483648
      %v2332 = vxor.u32 %v2316, 2147483648
      %v2333 = vxor.u32 %v2317, 2147483648
      %v2334 = vmul.f32 %v2318, 1.442695
      %v2335 = vpow.pop %v2334
      %v2336 = vmul.f32 %v2319, 1.442695
      %v2337 = vpow.pop %v2336
      %v2338 = vmul.f32 %v2320, 1.442695
      %v2339 = vpow.pop %v2338
      %v2340 = vmul.f32 %v2321, 1.442695
      %v2341 = vpow.pop %v2340
      %v2342 = vmul.f32 %v2322, 1.442695
      %v2343 = vpow.pop %v2342
      %v2344 = vmul.f32 %v2323, 1.442695
      %v2345 = vpow.pop %v2344
      %v2346 = vmul.f32 %v2324, 1.442695
      %v2347 = vpow.pop %v2346
      %v2348 = vmul.f32 %v2325, 1.442695
      %v2349 = vpow.pop %v2348
      %v2350 = vmul.f32 %v2326, 1.442695
      %v2351 = vpow.pop %v2350
      %v2352 = vmul.f32 %v2327, 1.442695
      %v2353 = vpow.pop %v2352
      %v2354 = vmul.f32 %v2328, 1.442695
      %v2355 = vpow.pop %v2354
      %v2356 = vmul.f32 %v2329, 1.442695
      %v2357 = vpow.pop %v2356
      %v2358 = vmul.f32 %v2330, 1.442695
      %v2359 = vpow.pop %v2358
      %v2360 = vmul.f32 %v2331, 1.442695
      %v2361 = vpow.pop %v2360
      %v2362 = vmul.f32 %v2332, 1.442695
      %v2363 = vpow.pop %v2362
      %v2364 = vmul.f32 %v2333, 1.442695
      %v2365 = vpow.pop %v2364
      %v2366 = vadd.f32 %v2335, 1.0
      %v2367 = vadd.f32 %v2337, 1.0
      %v2368 = vadd.f32 %v2339, 1.0
      %v2369 = vadd.f32 %v2341, 1.0
      %v2370 = vadd.f32 %v2343, 1.0
      %v2371 = vadd.f32 %v2345, 1.0
      %v2372 = vadd.f32 %v2347, 1.0
      %v2373 = vadd.f32 %v2349, 1.0
      %v2374 = vadd.f32 %v2351, 1.0
      %v2375 = vadd.f32 %v2353, 1.0
      %v2376 = vadd.f32 %v2355, 1.0
      %v2377 = vadd.f32 %v2357, 1.0
      %v2378 = vadd.f32 %v2359, 1.0
      %v2379 = vadd.f32 %v2361, 1.0
      %v2380 = vadd.f32 %v2363, 1.0
      %v2381 = vadd.f32 %v2365, 1.0
      %v2382 = vrcp.pop %v2366
      %v2383 = vmul.f32 1.0, %v2382
      %v2384 = vrcp.pop %v2367
      %v2385 = vmul.f32 1.0, %v2384
      %v2386 = vrcp.pop %v2368
      %v2387 = vmul.f32 1.0, %v2386
      %v2388 = vrcp.pop %v2369
      %v2389 = vmul.f32 1.0, %v2388
      %v2390 = vrcp.pop %v2370
      %v2391 = vmul.f32 1.0, %v2390
      %v2392 = vrcp.pop %v2371
      %v2393 = vmul.f32 1.0, %v2392
      %v2394 = vrcp.pop %v2372
      %v2395 = vmul.f32 1.0, %v2394
      %v2396 = vrcp.pop %v2373
      %v2397 = vmul.f32 1.0, %v2396
      %v2398 = vrcp.pop %v2374
      %v2399 = vmul.f32 1.0, %v2398
      %v2400 = vrcp.pop %v2375
      %v2401 = vmul.f32 1.0, %v2400
      %v2402 = vrcp.pop %v2376
      %v2403 = vmul.f32 1.0, %v2402
      %v2404 = vrcp.pop %v2377
      %v2405 = vmul.f32 1.0, %v2404
      %v2406 = vrcp.pop %v2378
      %v2407 = vmul.f32 1.0, %v2406
      %v2408 = vrcp.pop %v2379
      %v2409 = vmul.f32 1.0, %v2408
      %v2410 = vrcp.pop %v2380
      %v2411 = vmul.f32 1.0, %v2410
      %v2412 = vrcp.pop %v2381
      %v2413 = vmul.f32 1.0, %v2412
      %v2414 = vmul.f32 %v2302, %v2383
      %v2415 = vmul.f32 %v2303, %v2385
      %v2416 = vmul.f32 %v2304, %v2387
      %v2417 = vmul.f32 %v2305, %v2389
      %v2418 = vmul.f32 %v2306, %v2391
      %v2419 = vmul.f32 %v2307, %v2393
      %v2420 = vmul.f32 %v2308, %v2395
      %v2421 = vmul.f32 %v2309, %v2397
      %v2422 = vmul.f32 %v2310, %v2399
      %v2423 = vmul.f32 %v2311, %v2401
      %v2424 = vmul.f32 %v2312, %v2403
      %v2425 = vmul.f32 %v2313, %v2405
      %v2426 = vmul.f32 %v2314, %v2407
      %v2427 = vmul.f32 %v2315, %v2409
      %v2428 = vmul.f32 %v2316, %v2411
      %v2429 = vmul.f32 %v2317, %v2413
      %v2430 = vunpack.c.l.bf16 %v469
      %v2431 = vunpack.c.l.bf16 %v470
      %v2432 = vunpack.c.l.bf16 %v471
      %v2433 = vunpack.c.l.bf16 %v472
      %v2434 = vunpack.c.l.bf16 %v473
      %v2435 = vunpack.c.l.bf16 %v474
      %v2436 = vunpack.c.l.bf16 %v475
      %v2437 = vunpack.c.l.bf16 %v476
      %v2438 = vadd.f32 %v2414, %v2416
      %v2439 = vadd.f32 %v2438, %v2418
      %v2440 = vadd.f32 %v2439, %v2420
      %v2441 = vadd.f32 %v2440, %v2422
      %v2442 = vadd.f32 %v2441, %v2424
      %v2443 = vadd.f32 %v2442, %v2426
      %v2444 = vadd.f32 %v2443, %v2428
      %v2445 = vadd.f32 %v2415, %v2417
      %v2446 = vadd.f32 %v2445, %v2419
      %v2447 = vadd.f32 %v2446, %v2421
      %v2448 = vadd.f32 %v2447, %v2423
      %v2449 = vadd.f32 %v2448, %v2425
      %v2450 = vadd.f32 %v2449, %v2427
      %v2451 = vadd.f32 %v2450, %v2429
      %v2452 = vrot.slane %v2444, 4
      %v2453 = vadd.f32 %v2444, %v2452
      %v2454 = vrot.slane %v2453, 2
      %v2455 = vadd.f32 %v2453, %v2454
      %v2456 = vrot.slane %v2455, 1
      %v2457 = vadd.f32 %v2455, %v2456
      %v2458 = vrot.slane %v2451, 4
      %v2459 = vadd.f32 %v2451, %v2458
      %v2460 = vrot.slane %v2459, 2
      %v2461 = vadd.f32 %v2459, %v2460
      %v2462 = vrot.slane %v2461, 1
      %v2463 = vadd.f32 %v2461, %v2462
      %v2464 = vmul.f32 %v2457, 0.015625
      %v2465 = vmul.f32 %v2463, 0.015625
      %v2466 = vpack.c.bf16 %v2464, %v2464
      %v2467 = vpack.c.bf16 %v2465, %v2465
      %v2468 = vld [vmem:[%s7] sm:$0xf]
      %v2469 = vld [vmem:[%s7 + $0x4] sm:$0xf]
      %v2470 = vld [vmem:[%s7 + $0x8] sm:$0xf]
      %v2471 = vld [vmem:[%s7 + $0xc] sm:$0xf]
      %v2472 = vld [vmem:[%s7 + $0x10] sm:$0xf]
      %v2473 = vld [vmem:[%s7 + $0x14] sm:$0xf]
      %v2474 = vld [vmem:[%s7 + $0x18] sm:$0xf]
      %v2475 = vld [vmem:[%s7 + $0x1c] sm:$0xf]
      %v2476 = vld [vmem:[%s7 + $0x20] sm:$0xf]
      %v2477 = vld [vmem:[%s7 + $0x24] sm:$0xf]
      %v2478 = vld [vmem:[%s7 + $0x28] sm:$0xf]
      %v2479 = vld [vmem:[%s7 + $0x2c] sm:$0xf]
      %v2480 = vld [vmem:[%s7 + $0x30] sm:$0xf]
      %v2481 = vld [vmem:[%s7 + $0x34] sm:$0xf]
      %v2482 = vld [vmem:[%s7 + $0x38] sm:$0xf]
      %v2483 = vld [vmem:[%s7 + $0x3c] sm:$0xf]
      %v2484 = vld [vmem:[%s7 + $0x40] sm:$0xf]
      %v2485 = vld [vmem:[%s7 + $0x44] sm:$0xf]
      %v2486 = vld [vmem:[%s7 + $0x48] sm:$0xf]
      %v2487 = vld [vmem:[%s7 + $0x4c] sm:$0xf]
      %v2488 = vld [vmem:[%s7 + $0x50] sm:$0xf]
      %v2489 = vld [vmem:[%s7 + $0x54] sm:$0xf]
      %v2490 = vld [vmem:[%s7 + $0x58] sm:$0xf]
      %v2491 = vld [vmem:[%s7 + $0x5c] sm:$0xf]
      %v2492 = vld [vmem:[%s7 + $0x60] sm:$0xf]
      %v2493 = vld [vmem:[%s7 + $0x64] sm:$0xf]
      %v2494 = vld [vmem:[%s7 + $0x68] sm:$0xf]
      %v2495 = vld [vmem:[%s7 + $0x6c] sm:$0xf]
      %v2496 = vld [vmem:[%s7 + $0x70] sm:$0xf]
      %v2497 = vld [vmem:[%s7 + $0x74] sm:$0xf]
      %v2498 = vld [vmem:[%s7 + $0x78] sm:$0xf]
      %v2499 = vld [vmem:[%s7 + $0x7c] sm:$0xf]
      %v2500 = vld [vmem:[%s8] sm:$0x1]
      %v2533 = vunpack.c.l.b16 %v2468
      %v2534 = vunpack.c.l.b16 %v2469
      %v2535 = vunpack.c.l.b16 %v2470
      %v2536 = vunpack.c.l.b16 %v2471
      %v2537 = vunpack.c.l.b16 %v2472
      %v2538 = vunpack.c.l.b16 %v2473
      %v2539 = vunpack.c.l.b16 %v2474
      %v2540 = vunpack.c.l.b16 %v2475
      %v2541 = vunpack.c.l.b16 %v2476
      %v2542 = vunpack.c.l.b16 %v2477
      %v2543 = vunpack.c.l.b16 %v2478
      %v2544 = vunpack.c.l.b16 %v2479
      %v2545 = vunpack.c.l.b16 %v2480
      %v2546 = vunpack.c.l.b16 %v2481
      %v2547 = vunpack.c.l.b16 %v2482
      %v2548 = vunpack.c.l.b16 %v2483
      %v2549 = vunpack.c.l.b16 %v2484
      %v2550 = vunpack.c.l.b16 %v2485
      %v2551 = vunpack.c.l.b16 %v2486
      %v2552 = vunpack.c.l.b16 %v2487
      %v2553 = vunpack.c.l.b16 %v2488
      %v2554 = vunpack.c.l.b16 %v2489
      %v2555 = vunpack.c.l.b16 %v2490
      %v2556 = vunpack.c.l.b16 %v2491
      %v2557 = vunpack.c.l.b16 %v2492
      %v2558 = vunpack.c.l.b16 %v2493
      %v2559 = vunpack.c.l.b16 %v2494
      %v2560 = vunpack.c.l.b16 %v2495
      %v2561 = vunpack.c.l.b16 %v2496
      %v2562 = vunpack.c.l.b16 %v2497
      %v2563 = vunpack.c.l.b16 %v2498
      %v2564 = vunpack.c.l.b16 %v2499
      %v2565 = vpack.c.b16 %v2534, %v2533
      %v2566 = vpack.c.b16 %v2536, %v2535
      %v2567 = vpack.c.b16 %v2538, %v2537
      %v2568 = vpack.c.b16 %v2540, %v2539
      %v2569 = vpack.c.b16 %v2542, %v2541
      %v2570 = vpack.c.b16 %v2544, %v2543
      %v2571 = vpack.c.b16 %v2546, %v2545
      %v2572 = vpack.c.b16 %v2548, %v2547
      %v2573 = vpack.c.b16 %v2550, %v2549
      %v2574 = vpack.c.b16 %v2552, %v2551
      %v2575 = vpack.c.b16 %v2554, %v2553
      %v2576 = vpack.c.b16 %v2556, %v2555
      %v2577 = vpack.c.b16 %v2558, %v2557
      %v2578 = vpack.c.b16 %v2560, %v2559
      %v2579 = vpack.c.b16 %v2562, %v2561
      %v2580 = vpack.c.b16 %v2564, %v2563
      %2597 = vmatprep.subr.bf16.mxu0 0
      %2598 = vmatpush1.bf16.msra.mxu0 %v2565
      %2599 = vmatprep.subr.bf16.mxu0 0
      %2600 = vmatpush1.bf16.msra.mxu0 %v2566
      %2601 = vmatprep.subr.bf16.mxu0 0
      %2602 = vmatpush1.bf16.msra.mxu0 %v2567
      %2603 = vmatprep.subr.bf16.mxu0 0
      %2604 = vmatpush1.bf16.msra.mxu0 %v2568
      %2605 = vmatprep.subr.bf16.mxu0 0
      %2606 = vmatpush1.bf16.msra.mxu0 %v2569
      %2607 = vmatprep.subr.bf16.mxu0 0
      %2608 = vmatpush1.bf16.msra.mxu0 %v2570
      %2609 = vmatprep.subr.bf16.mxu0 0
      %2610 = vmatpush1.bf16.msra.mxu0 %v2571
      %2611 = vmatprep.subr.bf16.mxu0 0
      %2612 = vmatpush1.bf16.msra.mxu0 %v2572
      %2613 = vmatprep.subr.bf16.mxu0 0
      %2614 = vmatpush1.bf16.msra.mxu0 %v2573
      %2615 = vmatprep.subr.bf16.mxu0 0
      %2616 = vmatpush1.bf16.msra.mxu0 %v2574
      %2617 = vmatprep.subr.bf16.mxu0 0
      %2618 = vmatpush1.bf16.msra.mxu0 %v2575
      %2619 = vmatprep.subr.bf16.mxu0 0
      %2620 = vmatpush1.bf16.msra.mxu0 %v2576
      %2621 = vmatprep.subr.bf16.mxu0 0
      %2622 = vmatpush1.bf16.msra.mxu0 %v2577
      %2623 = vmatprep.subr.bf16.mxu0 0
      %2624 = vmatpush1.bf16.msra.mxu0 %v2578
      %2625 = vmatprep.subr.bf16.mxu0 0
      %2626 = vmatpush1.bf16.msra.mxu0 %v2579
      %2627 = vmatprep.subr.bf16.mxu0 0
      %2628 = vmatpush1.bf16.msra.mxu0 %v2580
      %2629 = vmatprep.mubr.bf16.mxu0 %v2467
      %2630 = vmatmul.mubr.bf16.gmra.mrb[0].mxu0 %v2466
      %v2631 = vpop.f32.mrb[0].mxu0
      %v2632 = vadd.f32 %v2500, %v2631
      %v2633 = vpop.f32.mrb[0].mxu0
      %v2634 = vpop.f32.mrb[0].mxu0
      %v2635 = vpop.f32.mrb[0].mxu0
      %2636 = vdwg.mxu0
      %v2637 = vxor.u32 %v2632, 2147483648
      %v2638 = vmul.f32 %v2637, 1.442695
      %v2639 = vpow.pop %v2638
      %v2640 = vadd.f32 %v2639, 1.0
      %v2641 = vrcp.pop %v2640
      %v2642 = vmul.f32 1.0, %v2641
      %v2643 = vmul.f32 %v2632, %v2642
      %v2644 = vpack.c.bf16 %v2643, %v2643
      %v2645 = vld [vmem:[%s9] sm:$0xff]
      %v2646 = vld [vmem:[%s9 + $0x8] sm:$0xff]
      %v2647 = vld [vmem:[%s9 + $0x10] sm:$0xff]
      %v2648 = vld [vmem:[%s9 + $0x18] sm:$0xff]
      %v2649 = vld [vmem:[%s9 + $0x20] sm:$0xff]
      %v2650 = vld [vmem:[%s9 + $0x28] sm:$0xff]
      %v2651 = vld [vmem:[%s9 + $0x30] sm:$0xff]
      %v2652 = vld [vmem:[%s9 + $0x38] sm:$0xff]
      %v2653 = vld [vmem:[%s9 + $0x40] sm:$0xff]
      %v2654 = vld [vmem:[%s9 + $0x48] sm:$0xff]
      %v2655 = vld [vmem:[%s9 + $0x50] sm:$0xff]
      %v2656 = vld [vmem:[%s9 + $0x58] sm:$0xff]
      %v2657 = vld [vmem:[%s9 + $0x60] sm:$0xff]
      %v2658 = vld [vmem:[%s9 + $0x68] sm:$0xff]
      %v2659 = vld [vmem:[%s9 + $0x70] sm:$0xff]
      %v2660 = vld [vmem:[%s9 + $0x78] sm:$0xff]
      %v2661 = vld [vmem:[%s10] sm:$0x3]
      %v2678 = vunpack.c.l.b16 %v2645
      %v2679 = vunpack.c.h.b16 %v2645
      %v2680 = vunpack.c.l.b16 %v2646
      %v2681 = vunpack.c.h.b16 %v2646
      %v2682 = vunpack.c.l.b16 %v2647
      %v2683 = vunpack.c.h.b16 %v2647
      %v2684 = vunpack.c.l.b16 %v2648
      %v2685 = vunpack.c.h.b16 %v2648
      %v2686 = vunpack.c.l.b16 %v2649
      %v2687 = vunpack.c.h.b16 %v2649
      %v2688 = vunpack.c.l.b16 %v2650
      %v2689 = vunpack.c.h.b16 %v2650
      %v2690 = vunpack.c.l.b16 %v2651
      %v2691 = vunpack.c.h.b16 %v2651
      %v2692 = vunpack.c.l.b16 %v2652
      %v2693 = vunpack.c.h.b16 %v2652
      %v2694 = vunpack.c.l.b16 %v2653
      %v2695 = vunpack.c.h.b16 %v2653
      %v2696 = vunpack.c.l.b16 %v2654
      %v2697 = vunpack.c.h.b16 %v2654
      %v2698 = vunpack.c.l.b16 %v2655
      %v2699 = vunpack.c.h.b16 %v2655
      %v2700 = vunpack.c.l.b16 %v2656
      %v2701 = vunpack.c.h.b16 %v2656
      %v2702 = vunpack.c.l.b16 %v2657
      %v2703 = vunpack.c.h.b16 %v2657
      %v2704 = vunpack.c.l.b16 %v2658
      %v2705 = vunpack.c.h.b16 %v2658
      %v2706 = vunpack.c.l.b16 %v2659
      %v2707 = vunpack.c.h.b16 %v2659
      %v2708 = vunpack.c.l.b16 %v2660
      %v2709 = vunpack.c.h.b16 %v2660
      %v2710 = vpack.c.b16 %v2680, %v2678
      %v2711 = vpack.c.b16 %v2681, %v2679
      %v2712 = vpack.c.b16 %v2684, %v2682
      %v2713 = vpack.c.b16 %v2685, %v2683
      %v2714 = vpack.c.b16 %v2688, %v2686
      %v2715 = vpack.c.b16 %v2689, %v2687
      %v2716 = vpack.c.b16 %v2692, %v2690
      %v2717 = vpack.c.b16 %v2693, %v2691
      %v2718 = vpack.c.b16 %v2696, %v2694
      %v2719 = vpack.c.b16 %v2697, %v2695
      %v2720 = vpack.c.b16 %v2700, %v2698
      %v2721 = vpack.c.b16 %v2701, %v2699
      %v2722 = vpack.c.b16 %v2704, %v2702
      %v2723 = vpack.c.b16 %v2705, %v2703
      %v2724 = vpack.c.b16 %v2708, %v2706
      %v2725 = vpack.c.b16 %v2709, %v2707
      %v2743 = vlaneseq
      %v2744 = vshrl.u32 %v2743, 7
      %v2745 = vsub.s32 0, %v2744
      %v2746 = vrot.slane %v2661, %v2745
      %v2747 = vlaneseq
      %v2748 = vshrl.u32 %v2747, 7
      %v2749 = vsub.s32 1, %v2748
      %v2750 = vrot.slane %v2661, %v2749
      %2753 = vmatprep.subr.bf16.mxu0 %v2711
      %2754 = vmatpush1.bf16.msra.mxu0 %v2710
      %2755 = vmatprep.subr.bf16.mxu0 %v2713
      %2756 = vmatpush1.bf16.msra.mxu0 %v2712
      %2757 = vmatprep.subr.bf16.mxu0 %v2715
      %2758 = vmatpush1.bf16.msra.mxu0 %v2714
      %2759 = vmatprep.subr.bf16.mxu0 %v2717
      %2760 = vmatpush1.bf16.msra.mxu0 %v2716
      %2761 = vmatprep.subr.bf16.mxu0 %v2719
      %2762 = vmatpush1.bf16.msra.mxu0 %v2718
      %2763 = vmatprep.subr.bf16.mxu0 %v2721
      %2764 = vmatpush1.bf16.msra.mxu0 %v2720
      %2765 = vmatprep.subr.bf16.mxu0 %v2723
      %2766 = vmatpush1.bf16.msra.mxu0 %v2722
      %2767 = vmatprep.subr.bf16.mxu0 %v2725
      %2768 = vmatpush1.bf16.msra.mxu0 %v2724
      %2769 = vmatprep.subr.bf16.mxu0 0
      %2770 = vmatpush1.bf16.msra.mxu0 0
      %2771 = vmatprep.subr.bf16.mxu0 0
      %2772 = vmatpush1.bf16.msra.mxu0 0
      %2773 = vmatprep.subr.bf16.mxu0 0
      %2774 = vmatpush1.bf16.msra.mxu0 0
      %2775 = vmatprep.subr.bf16.mxu0 0
      %2776 = vmatpush1.bf16.msra.mxu0 0
      %2777 = vmatprep.subr.bf16.mxu0 0
      %2778 = vmatpush1.bf16.msra.mxu0 0
      %2779 = vmatprep.subr.bf16.mxu0 0
      %2780 = vmatpush1.bf16.msra.mxu0 0
      %2781 = vmatprep.subr.bf16.mxu0 0
      %2782 = vmatpush1.bf16.msra.mxu0 0
      %2783 = vmatprep.subr.bf16.mxu0 0
      %2784 = vmatpush1.bf16.msra.mxu0 0
      %2785 = vmatprep.mubr.bf16.mxu0 0
      %2786 = vmatmul.mubr.bf16.gmra.mrb[0].mxu0 %v2644
      %v2787 = vpop.f32.mrb[0].mxu0
      %v2788 = vadd.f32 %v2746, %v2787
      %v2789 = vpop.f32.mrb[0].mxu0
      %v2790 = vadd.f32 %v2750, %v2789
      %v2791 = vpop.f32.mrb[0].mxu0
      %v2792 = vpop.f32.mrb[0].mxu0
      %2793 = vdwg.mxu0
      %v2794 = vxor.u32 %v2788, 2147483648
      %v2795 = vxor.u32 %v2790, 2147483648
      %v2796 = vmul.f32 %v2794, 1.442695
      %v2797 = vpow.pop %v2796
      %v2798 = vmul.f32 %v2795, 1.442695
      %v2799 = vpow.pop %v2798
      %v2800 = vadd.f32 %v2797, 1.0
      %v2801 = vadd.f32 %v2799, 1.0
      %v2802 = vrcp.pop %v2800
      %v2803 = vmul.f32 1.0, %v2802
      %v2804 = vrcp.pop %v2801
      %v2805 = vmul.f32 1.0, %v2804
      %v2806 = vlaneseq
      %v2807 = vshrl.u32 %v2806, 7
      %v2808 = vsub.s32 0, %v2807
      %v2809 = vrot.slane %v2803, %v2808
      %v2810 = vlaneseq
      %v2811 = vshrl.u32 %v2810, 7
      %v2812 = vsub.s32 0, %v2811
      %v2813 = vrot.slane %v2805, %v2812
      %v2814 = vmul.f32 %v2414, %v2809
      %v2815 = vmul.f32 %v2415, %v2813
      %v2816 = vmul.f32 %v2416, %v2809
      %v2817 = vmul.f32 %v2417, %v2813
      %v2818 = vmul.f32 %v2418, %v2809
      %v2819 = vmul.f32 %v2419, %v2813
      %v2820 = vmul.f32 %v2420, %v2809
      %v2821 = vmul.f32 %v2421, %v2813
      %v2822 = vmul.f32 %v2422, %v2809
      %v2823 = vmul.f32 %v2423, %v2813
      %v2824 = vmul.f32 %v2424, %v2809
      %v2825 = vmul.f32 %v2425, %v2813
      %v2826 = vmul.f32 %v2426, %v2809
      %v2827 = vmul.f32 %v2427, %v2813
      %v2828 = vmul.f32 %v2428, %v2809
      %v2829 = vmul.f32 %v2429, %v2813
      %v2830 = vpack.c.bf16 %v2816, %v2814
      %v2831 = vpack.c.bf16 %v2817, %v2815
      %v2832 = vpack.c.bf16 %v2820, %v2818
      %v2833 = vpack.c.bf16 %v2821, %v2819
      %v2834 = vpack.c.bf16 %v2824, %v2822
      %v2835 = vpack.c.bf16 %v2825, %v2823
      %v2836 = vpack.c.bf16 %v2828, %v2826
      %v2837 = vpack.c.bf16 %v2829, %v2827
      %v2838 = vld [vmem:[%s11] sm:$0xf]
      %v2839 = vld [vmem:[%s11 + $0x4] sm:$0xf]
      %v2840 = vld [vmem:[%s11 + $0x8] sm:$0xf]
      %v2841 = vld [vmem:[%s11 + $0xc] sm:$0xf]
      %v2842 = vld [vmem:[%s11 + $0x10] sm:$0xf]
      %v2843 = vld [vmem:[%s11 + $0x14] sm:$0xf]
      %v2844 = vld [vmem:[%s11 + $0x18] sm:$0xf]
      %v2845 = vld [vmem:[%s11 + $0x1c] sm:$0xf]
      %v2846 = vld [vmem:[%s11 + $0x20] sm:$0xf]
      %v2847 = vld [vmem:[%s11 + $0x24] sm:$0xf]
      %v2848 = vld [vmem:[%s11 + $0x28] sm:$0xf]
      %v2849 = vld [vmem:[%s11 + $0x2c] sm:$0xf]
      %v2850 = vld [vmem:[%s11 + $0x30] sm:$0xf]
      %v2851 = vld [vmem:[%s11 + $0x34] sm:$0xf]
      %v2852 = vld [vmem:[%s11 + $0x38] sm:$0xf]
      %v2853 = vld [vmem:[%s11 + $0x3c] sm:$0xf]
      %v2854 = vld [vmem:[%s11 + $0x40] sm:$0xf]
      %v2855 = vld [vmem:[%s11 + $0x44] sm:$0xf]
      %v2856 = vld [vmem:[%s11 + $0x48] sm:$0xf]
      %v2857 = vld [vmem:[%s11 + $0x4c] sm:$0xf]
      %v2858 = vld [vmem:[%s11 + $0x50] sm:$0xf]
      %v2859 = vld [vmem:[%s11 + $0x54] sm:$0xf]
      %v2860 = vld [vmem:[%s11 + $0x58] sm:$0xf]
      %v2861 = vld [vmem:[%s11 + $0x5c] sm:$0xf]
      %v2862 = vld [vmem:[%s11 + $0x60] sm:$0xf]
      %v2863 = vld [vmem:[%s11 + $0x64] sm:$0xf]
      %v2864 = vld [vmem:[%s11 + $0x68] sm:$0xf]
      %v2865 = vld [vmem:[%s11 + $0x6c] sm:$0xf]
      %v2866 = vld [vmem:[%s11 + $0x70] sm:$0xf]
      %v2867 = vld [vmem:[%s11 + $0x74] sm:$0xf]
      %v2868 = vld [vmem:[%s11 + $0x78] sm:$0xf]
      %v2869 = vld [vmem:[%s11 + $0x7c] sm:$0xf]
      %v2902 = vunpack.c.l.b16 %v2838
      %v2903 = vunpack.c.l.b16 %v2839
      %v2904 = vunpack.c.l.b16 %v2840
      %v2905 = vunpack.c.l.b16 %v2841
      %v2906 = vunpack.c.l.b16 %v2842
      %v2907 = vunpack.c.l.b16 %v2843
      %v2908 = vunpack.c.l.b16 %v2844
      %v2909 = vunpack.c.l.b16 %v2845
      %v2910 = vunpack.c.l.b16 %v2846
      %v2911 = vunpack.c.l.b16 %v2847
      %v2912 = vunpack.c.l.b16 %v2848
      %v2913 = vunpack.c.l.b16 %v2849
      %v2914 = vunpack.c.l.b16 %v2850
      %v2915 = vunpack.c.l.b16 %v2851
      %v2916 = vunpack.c.l.b16 %v2852
      %v2917 = vunpack.c.l.b16 %v2853
      %v2918 = vunpack.c.l.b16 %v2854
      %v2919 = vunpack.c.l.b16 %v2855
      %v2920 = vunpack.c.l.b16 %v2856
      %v2921 = vunpack.c.l.b16 %v2857
      %v2922 = vunpack.c.l.b16 %v2858
      %v2923 = vunpack.c.l.b16 %v2859
      %v2924 = vunpack.c.l.b16 %v2860
      %v2925 = vunpack.c.l.b16 %v2861
      %v2926 = vunpack.c.l.b16 %v2862
      %v2927 = vunpack.c.l.b16 %v2863
      %v2928 = vunpack.c.l.b16 %v2864
      %v2929 = vunpack.c.l.b16 %v2865
      %v2930 = vunpack.c.l.b16 %v2866
      %v2931 = vunpack.c.l.b16 %v2867
      %v2932 = vunpack.c.l.b16 %v2868
      %v2933 = vunpack.c.l.b16 %v2869
      %v2934 = vpack.c.b16 %v2903, %v2902
      %v2935 = vpack.c.b16 %v2905, %v2904
      %v2936 = vpack.c.b16 %v2907, %v2906
      %v2937 = vpack.c.b16 %v2909, %v2908
      %v2938 = vpack.c.b16 %v2911, %v2910
      %v2939 = vpack.c.b16 %v2913, %v2912
      %v2940 = vpack.c.b16 %v2915, %v2914
      %v2941 = vpack.c.b16 %v2917, %v2916
      %v2942 = vpack.c.b16 %v2919, %v2918
      %v2943 = vpack.c.b16 %v2921, %v2920
      %v2944 = vpack.c.b16 %v2923, %v2922
      %v2945 = vpack.c.b16 %v2925, %v2924
      %v2946 = vpack.c.b16 %v2927, %v2926
      %v2947 = vpack.c.b16 %v2929, %v2928
      %v2948 = vpack.c.b16 %v2931, %v2930
      %v2949 = vpack.c.b16 %v2933, %v2932
      %2966 = vmatprep.subr.bf16.mxu0 0
      %2967 = vmatpush1.bf16.msra.mxu0 %v2934
      %2968 = vmatprep.subr.bf16.mxu0 0
      %2969 = vmatpush1.bf16.msra.mxu0 %v2935
      %2970 = vmatprep.subr.bf16.mxu0 0
      %2971 = vmatpush1.bf16.msra.mxu0 %v2936
      %2972 = vmatprep.subr.bf16.mxu0 0
      %2973 = vmatpush1.bf16.msra.mxu0 %v2937
      %2974 = vmatprep.subr.bf16.mxu0 0
      %2975 = vmatpush1.bf16.msra.mxu0 %v2938
      %2976 = vmatprep.subr.bf16.mxu0 0
      %2977 = vmatpush1.bf16.msra.mxu0 %v2939
      %2978 = vmatprep.subr.bf16.mxu0 0
      %2979 = vmatpush1.bf16.msra.mxu0 %v2940
      %2980 = vmatprep.subr.bf16.mxu0 0
      %2981 = vmatpush1.bf16.msra.mxu0 %v2941
      %2982 = vmatprep.subr.bf16.mxu0 0
      %2983 = vmatpush1.bf16.msra.mxu0 %v2942
      %2984 = vmatprep.subr.bf16.mxu0 0
      %2985 = vmatpush1.bf16.msra.mxu0 %v2943
      %2986 = vmatprep.subr.bf16.mxu0 0
      %2987 = vmatpush1.bf16.msra.mxu0 %v2944
      %2988 = vmatprep.subr.bf16.mxu0 0
      %2989 = vmatpush1.bf16.msra.mxu0 %v2945
      %2990 = vmatprep.subr.bf16.mxu0 0
      %2991 = vmatpush1.bf16.msra.mxu0 %v2946
      %2992 = vmatprep.subr.bf16.mxu0 0
      %2993 = vmatpush1.bf16.msra.mxu0 %v2947
      %2994 = vmatprep.subr.bf16.mxu0 0
      %2995 = vmatpush1.bf16.msra.mxu0 %v2948
      %2996 = vmatprep.subr.bf16.mxu0 0
      %2997 = vmatpush1.bf16.msra.mxu0 %v2949
      %2998 = vmatprep.mubr.bf16.mxu0 %v2831
      %2999 = vmatmul.mubr.bf16.gmra.mrb[0].mxu0 %v2830
      %v3000 = vpop.f32.mrb[0].mxu0
      %v3001 = vadd.f32 0.0, %v3000
      %v3002 = vpop.f32.mrb[0].mxu0
      %v3003 = vpop.f32.mrb[0].mxu0
      %v3004 = vadd.f32 0.0, %v3003
      %v3005 = vpop.f32.mrb[0].mxu0
      %3006 = vmatprep.mubr.bf16.mxu0 %v2833
      %3007 = vmatmul.mubr.bf16.gmra.mrb[0].mxu0 %v2832
      %v3008 = vpop.f32.mrb[0].mxu0
      %v3009 = vadd.f32 0.0, %v3008
      %v3010 = vpop.f32.mrb[0].mxu0
      %v3011 = vpop.f32.mrb[0].mxu0
      %v3012 = vadd.f32 0.0, %v3011
      %v3013 = vpop.f32.mrb[0].mxu0
      %3014 = vmatprep.mubr.bf16.mxu0 %v2835
      %3015 = vmatmul.mubr.bf16.gmra.mrb[0].mxu0 %v2834
      %v3016 = vpop.f32.mrb[0].mxu0
      %v3017 = vadd.f32 0.0, %v3016
      %v3018 = vpop.f32.mrb[0].mxu0
      %v3019 = vpop.f32.mrb[0].mxu0
      %v3020 = vadd.f32 0.0, %v3019
      %v3021 = vpop.f32.mrb[0].mxu0
      %3022 = vmatprep.mubr.bf16.mxu0 %v2837
      %3023 = vmatmul.mubr.bf16.gmra.mrb[0].mxu0 %v2836
      %v3024 = vpop.f32.mrb[0].mxu0
      %v3025 = vadd.f32 0.0, %v3024
      %v3026 = vpop.f32.mrb[0].mxu0
      %v3027 = vpop.f32.mrb[0].mxu0
      %v3028 = vadd.f32 0.0, %v3027
      %v3029 = vpop.f32.mrb[0].mxu0
      %3030 = vdwg.mxu0
      %v3031 = vld [vmem:[%s12] sm:$0x1]
      %v3033 = vlaneseq
      %v3034 = vshrl.u32 %v3033, 7
      %v3035 = vsub.s32 0, %v3034
      %v3036 = vrot.slane %v3031, %v3035
      %v3038 = vmul.f32 %v3001, %v3036
      %v3039 = vmul.f32 %v3004, %v3036
      %v3040 = vmul.f32 %v3009, %v3036
      %v3041 = vmul.f32 %v3012, %v3036
      %v3042 = vmul.f32 %v3017, %v3036
      %v3043 = vmul.f32 %v3020, %v3036
      %v3044 = vmul.f32 %v3025, %v3036
      %v3045 = vmul.f32 %v3028, %v3036
      %v3046 = vld [vmem:[%s13] sm:$0x1]
      %v3048 = vlaneseq
      %v3049 = vshrl.u32 %v3048, 7
      %v3050 = vsub.s32 0, %v3049
      %v3051 = vrot.slane %v3046, %v3050
      %v3053 = vadd.f32 %v3038, %v3051
      %v3054 = vadd.f32 %v3039, %v3051
      %v3055 = vadd.f32 %v3040, %v3051
      %v3056 = vadd.f32 %v3041, %v3051
      %v3057 = vadd.f32 %v3042, %v3051
      %v3058 = vadd.f32 %v3043, %v3051
      %v3059 = vadd.f32 %v3044, %v3051
      %v3060 = vadd.f32 %v3045, %v3051
      %v3061 = vadd.f32 %v3053, %v2430
      %v3062 = vadd.f32 %v3054, %v2431
      %v3063 = vadd.f32 %v3055, %v2432
      %v3064 = vadd.f32 %v3056, %v2433
      %v3065 = vadd.f32 %v3057, %v2434
      %v3066 = vadd.f32 %v3058, %v2435
      %v3067 = vadd.f32 %v3059, %v2436
      %v3068 = vadd.f32 %v3060, %v2437
      %v3069 = vpack.c.bf16 %v3062, %v3061
      %v3070 = vpack.c.bf16 %v3064, %v3063
      %v3071 = vpack.c.bf16 %v3066, %v3065
      %v3072 = vpack.c.bf16 %v3068, %v3067
      %v3077 = vunpack.c.l.b16 %v3069
      %v3078 = vunpack.c.h.b16 %v3069
      %v3079 = vunpack.c.l.b16 %v3070
      %v3080 = vunpack.c.h.b16 %v3070
      %v3081 = vunpack.c.l.b16 %v3071
      %v3082 = vunpack.c.h.b16 %v3071
      %v3083 = vunpack.c.l.b16 %v3072
      %v3084 = vunpack.c.h.b16 %v3072
      %v3085 = vpack.c.b16 %v3077, %v3077
      %v3086 = vpack.c.b16 %v3078, %v3078
      %v3087 = vpack.c.b16 %v3079, %v3079
      %v3088 = vpack.c.b16 %v3080, %v3080
      %v3089 = vpack.c.b16 %v3081, %v3081
      %v3090 = vpack.c.b16 %v3082, %v3082
      %v3091 = vpack.c.b16 %v3083, %v3083
      %v3092 = vpack.c.b16 %v3084, %v3084
      %3101 = vst [vmem:[%s467] sm:$0xf] %v3085
      %3102 = vst [vmem:[%s467 + $0x4] sm:$0xf] %v3086
      %3103 = vst [vmem:[%s467 + $0x8] sm:$0xf] %v3087
      %3104 = vst [vmem:[%s467 + $0xc] sm:$0xf] %v3088
      %3105 = vst [vmem:[%s467 + $0x10] sm:$0xf] %v3089
      %3106 = vst [vmem:[%s467 + $0x14] sm:$0xf] %v3090
      %3107 = vst [vmem:[%s467 + $0x18] sm:$0xf] %v3091
      %3108 = vst [vmem:[%s467 + $0x1c] sm:$0xf] %v3092
      %p3109 = scmp.lt.s32.totalorder %s25, 1
      %s3110 = scalar_select %p3109, %s25, 1
      %s3111 = smul.addr %s3110, 8
      %s3112 = smul.addr %s3111, 4
      %s3113 = scalar_lea.vmem %s14, %s3112
      // Predicated region
      $region77: #{bengali_forward.10} parent=75 // pred_check
        %p3114 = pneg %p342
      $region78: #{bengali_forward.10} parent=75 // pred_check_branch
        %3116 = sbr.rel (%p3114) target = $region80
      $region79: #{bengali_forward.10} parent=75 // pred_region
        _
      $region80: #{bengali_forward.10} parent=75 // pred_fallthru
        _
    $region76: #{bengali_forward.10} parent=5 // pred_fallthru
      _
    %p3117 = scmp.le.s32.totalorder 2, %s20
    // Predicated region
    $region81: #{bengali_forward.10} parent=5 // pred_check
      %p3118 = pneg %p3117
    $region82: #{bengali_forward.10} parent=5 // pred_check_branch
      %3120 = sbr.rel (%p3118) target = $region84
    $region83: #{bengali_forward.10} parent=5 // pred_region
      %s3121 = ssub.s32 %s20, 2
      // Predicated region
      $region85: #{bengali_forward.10} parent=83 // pred_check
        %p3122 = pneg %p348
      $region86: #{bengali_forward.10} parent=83 // pred_check_branch
        %3124 = sbr.rel (%p3122) target = $region88
      $region87: #{bengali_forward.10} parent=83 // pred_region
        %p3125 = scmp.lt.s32.totalorder %s26, 1
        %s3126 = scalar_select %p3125, %s26, 1
        %s3127 = smul.addr %s3126, 8
        %s3128 = smul.addr %s3127, 4
        %s3129 = scalar_lea.vmem %s14, %s3128
      $region88: #{bengali_forward.10} parent=83 // pred_fallthru
        _
    $region84: #{bengali_forward.10} parent=5 // pred_fallthru
      _
  $region6: #{bengali_forward.10} parent=0 // loop_footer
    %s24 = sadd.s32 1, %s20
  $region7: #{bengali_forward.10} parent=0 // loop_footer_branch
    %19 = sbr.rel target = $region3
  $region8: #{bengali_forward.10} parent=0 // loop_exit
    _

</llo_original>
